<compile_context>
chip_gen: v5e
topology: v5e:2x2
jax: 0.10.0
libtpu: 0.0.40
codegen_flags: <defaults>
</compile_context>

<pallas_src>
import jax
import jax.numpy as jnp
from jax.experimental import pallas as pl
from jax.experimental.pallas import tpu as pltpu


def _round_up(x, m):
    return (x + m - 1) // m * m


def _pick_batch_tile(n, max_nb=8):
    """Largest divisor of n that is <= max_nb while keeping >= 2 grid steps
    (so the batch grid axis can shard across the 2 TensorCores on v7x)."""
    if n <= 1:
        return max(n, 1)
    best = 1
    for d in range(1, min(n, max_nb) + 1):
        if n % d == 0 and n // d >= 2:
            best = d
    return best


# --------------------------------------------------------------------------------------
# Kernel
# --------------------------------------------------------------------------------------
def _make_kernel(Nb, H, W, Cp, Cop, stride, same_channels):
    """Fused BasicBlock kernel, Nb batch elements per grid step.

      h1  = relu(conv3x3_s(x) * bn1_scale + bn1_bias)      (BN folded into w1/b1)
      y   = conv3x3_1(h1) * bn2_scale + bn2_bias           (BN folded into w2/b2)
      id  = conv1x1_s(x) + bid   (if Cin != Cout)  else  x
      out = relu(y + id)
    """
    Ho = (H - 1) // stride + 1
    Wo = (W - 1) // stride + 1
    Hq, Wq = Ho + 2, Wo + 2          # padded intermediate (h1) scratch dims
    M = Nb * Ho * Wo

    def conv3x3(src_ref, w_ref, s, ho, wo):
        """3x3 conv as 9 big (M, Cin) x (Cin, Cout) MXU matmuls, f32 accumulation.

        Only 3 kw-shifted slabs are materialized (one sublane relayout each);
        the kh taps are outer-dim slices of those slabs (no extra relayout).
        """
        wext = s * (wo - 1) + 1
        hext = s * (ho - 1) + 1
        slabs = []
        for kw in range(3):
            slab = src_ref[:, :, kw:kw + wext, :]
            if s != 1:
                slab = slab[:, :, ::s, :]
            slabs.append(slab)
        cin = slabs[0].shape[-1]
        acc = jnp.zeros((Nb * ho * wo, Cop), jnp.float32)
        for kh in range(3):
            for kw in range(3):
                v = slabs[kw][:, kh:kh + hext, :, :]
                if s != 1:
                    v = v[:, ::s, :, :]
                acc += jnp.dot(v.reshape(Nb * ho * wo, cin), w_ref[kh, kw],
                               preferred_element_type=jnp.float32)
        return acc

    def kernel(x_ref, w1_ref, b1_ref, w2_ref, b2_ref, wid_ref, bid_ref,
               out_ref, h1pad_ref):
        # ---- conv1: 3x3, stride=s, pad=1 (pad already fused into the wrapper DMA)
        #      + folded BN1 + ReLU, single f32 epilogue over the whole slab --------
        acc = conv3x3(x_ref, w1_ref, stride, Ho, Wo)
        h1 = jnp.maximum(acc + b1_ref[...], 0.0)

        # ---- padded intermediate for conv2 ----------------------------------------
        # Thin halo strips zeroed per step (cheap; safe under core-sharded grids),
        # then one bulk lane-dense interior store.
        h1pad_ref[:, 0:1, :, :] = jnp.zeros((Nb, 1, Wq, Cop), jnp.bfloat16)
        h1pad_ref[:, Hq - 1:Hq, :, :] = jnp.zeros((Nb, 1, Wq, Cop), jnp.bfloat16)
        h1pad_ref[:, 1:Ho + 1, 0:1, :] = jnp.zeros((Nb, Ho, 1, Cop), jnp.bfloat16)
        h1pad_ref[:, 1:Ho + 1, Wq - 1:Wq, :] = jnp.zeros((Nb, Ho, 1, Cop),
                                                         jnp.bfloat16)
        h1pad_ref[:, 1:Ho + 1, 1:Wo + 1, :] = (
            h1.astype(jnp.bfloat16).reshape(Nb, Ho, Wo, Cop))

        # ---- conv2: 3x3, stride=1, pad=1 (+ folded BN2) ----------------------------
        y = conv3x3(h1pad_ref, w2_ref, 1, Ho, Wo) + b2_ref[...]

        # ---- identity branch -------------------------------------------------------
        xi = x_ref[:, 1:H + 1, 1:W + 1, :]         # un-padded interior
        if same_channels:
            # PyTorch semantics: identity = x (shape-valid only for stride == 1).
            ident = xi.reshape(M, Cp).astype(jnp.float32)
        else:
            if stride != 1:
                xi = xi[:, ::stride, ::stride, :]
            ident = jnp.dot(xi.reshape(M, Cp), wid_ref[...],
                            preferred_element_type=jnp.float32) + bid_ref[...]

        # ---- residual add + ReLU: one lane-dense bf16 store ------------------------
        out_ref[...] = jnp.maximum(y + ident, 0.0).reshape(
            Nb, Ho, Wo, Cop).astype(out_ref.dtype)

    return kernel, Ho, Wo


# --------------------------------------------------------------------------------------
# Parameter handling (plain-JAX glue)
# --------------------------------------------------------------------------------------
def _fold_bn(w_oihw, b, gamma, beta, mean, var, eps=1e-5):
    """Folds an eval-mode BatchNorm into the preceding conv. Returns HWIO weight + bias."""
    scale = gamma / jnp.sqrt(var + eps)                      # (Cout,)
    w_hwio = jnp.transpose(w_oihw, (2, 3, 1, 0)) * scale     # (kh, kw, Cin, Cout)
    bias = (b - mean) * scale + beta
    return w_hwio.astype(jnp.float32), bias.astype(jnp.float32)


def _pad_weight(w_hwio, Cp, Cop):
    kh, kw, ci, co = w_hwio.shape
    out = jnp.zeros((kh, kw, Cp, Cop), jnp.bfloat16)
    return out.at[:, :, :ci, :co].set(w_hwio.astype(jnp.bfloat16))


def _pad_bias(b, Cop):
    return jnp.zeros((1, Cop), jnp.float32).at[0, :b.shape[0]].set(
        b.astype(jnp.float32))


def init_params(key, cin, cout):
    ks = jax.random.split(key, 6)
    p = {
        "w1": jax.random.normal(ks[0], (cout, cin, 3, 3), jnp.float32) * 0.2,
        "b1": jax.random.normal(ks[1], (cout,), jnp.float32) * 0.1,
        "w2": jax.random.normal(ks[2], (cout, cout, 3, 3), jnp.float32) * 0.2,
        "b2": jax.random.normal(ks[3], (cout,), jnp.float32) * 0.1,
        "wid": jax.random.normal(ks[4], (cout, cin, 1, 1), jnp.float32) * 0.2,
        "bid": jax.random.normal(ks[5], (cout,), jnp.float32) * 0.1,
        # deterministic, non-trivial eval-mode BatchNorm parameters
        "g1": 1.0 + 0.10 * jnp.arange(cout, dtype=jnp.float32),
        "be1": 0.05 * jnp.arange(cout, dtype=jnp.float32) - 0.10,
        "m1": 0.02 * jnp.arange(cout, dtype=jnp.float32),
        "v1": 1.0 + 0.03 * jnp.arange(cout, dtype=jnp.float32),
        "g2": 1.0 - 0.05 * jnp.arange(cout, dtype=jnp.float32) / cout,
        "be2": 0.02 * jnp.arange(cout, dtype=jnp.float32),
        "m2": -0.01 * jnp.arange(cout, dtype=jnp.float32),
        "v2": 1.0 + 0.05 * jnp.arange(cout, dtype=jnp.float32),
    }
    return p


# --------------------------------------------------------------------------------------
# Pallas wrapper
# --------------------------------------------------------------------------------------
def basic_block_pallas(x_nchw, p, stride, eps=1e-5, max_nb=8):
    cin, cout = p["w1"].shape[1], p["w1"].shape[0]
    same = (cin == cout)
    if same and stride != 1:
        raise ValueError("identity-as-x requires stride == 1 (as in the PyTorch module)")

    Cp = _round_up(cin, 128)     # lane-dense padded channel counts
    Cop = _round_up(cout, 128)

    # Fold eval-mode BN into the conv weights/biases; bf16 operands for MXU.
    w1, b1 = _fold_bn(p["w1"], p["b1"], p["g1"], p["be1"], p["m1"], p["v1"], eps)
    w2, b2 = _fold_bn(p["w2"], p["b2"], p["g2"], p["be2"], p["m2"], p["v2"], eps)
    wid = jnp.transpose(p["wid"][:, :, 0, 0], (1, 0)).astype(jnp.float32)  # (Cin, Cout)

    w1p = _pad_weight(w1, Cp, Cop)
    w2p = _pad_weight(w2, Cop, Cop)
    b1p = _pad_bias(b1, Cop)
    b2p = _pad_bias(b2, Cop)
    widp = jnp.zeros((Cp, Cop), jnp.bfloat16).at[:cin, :cout].set(
        wid.astype(jnp.bfloat16))
    bidp = _pad_bias(p["bid"], Cop)

    # NCHW -> NHWC bf16; spatial halo + channel pad fused into ONE wrapper-side
    # jnp.pad. The kernel receives a pre-padded block (no in-kernel halo copy).
    x = jnp.transpose(x_nchw, (0, 2, 3, 1)).astype(jnp.bfloat16)
    N, H, W, _ = x.shape
    x = jnp.pad(x, ((0, 0), (1, 1), (1, 1), (0, Cp - cin)))
    Hp, Wp = H + 2, W + 2

    Nb = _pick_batch_tile(N, max_nb)
    kernel, Ho, Wo = _make_kernel(Nb, H, W, Cp, Cop, stride, same)

    flops = int(N * Ho * Wo) * (2 * 9 * Cp * Cop + 2 * 9 * Cop * Cop
                                + (0 if same else 2 * Cp * Cop))
    bytes_accessed = int(
        x.size * 2                                   # bf16 padded input
        + (w1p.size + w2p.size + widp.size) * 2      # bf16 weights
        + (b1p.size + b2p.size + bidp.size) * 4      # f32 biases
        + N * Ho * Wo * Cop * 2)                     # bf16 output

    out_padded = pl.pallas_call(
        kernel,
        out_shape=jax.ShapeDtypeStruct((N, Ho, Wo, Cop), jnp.bfloat16),
        grid=(N // Nb,),
        in_specs=[
            pl.BlockSpec((Nb, Hp, Wp, Cp), lambda n: (n, 0, 0, 0)),
            pl.BlockSpec((3, 3, Cp, Cop), lambda n: (0, 0, 0, 0)),
            pl.BlockSpec((1, Cop), lambda n: (0, 0)),
            pl.BlockSpec((3, 3, Cop, Cop), lambda n: (0, 0, 0, 0)),
            pl.BlockSpec((1, Cop), lambda n: (0, 0)),
            pl.BlockSpec((Cp, Cop), lambda n: (0, 0)),
            pl.BlockSpec((1, Cop), lambda n: (0, 0)),
        ],
        out_specs=pl.BlockSpec((Nb, Ho, Wo, Cop), lambda n: (n, 0, 0, 0)),
        scratch_shapes=[
            pltpu.VMEM((Nb, Ho + 2, Wo + 2, Cop), jnp.bfloat16),  # padded h1
        ],
        compiler_params=pltpu.CompilerParams(
            dimension_semantics=("parallel",),
            vmem_limit_bytes=64 * 1024 * 1024),
        cost_estimate=pl.CostEstimate(flops=flops, transcendentals=0,
                                      bytes_accessed=bytes_accessed),
    )(x, w1p, b1p, w2p, b2p, widp, bidp)

    # strip channel padding; NHWC -> NCHW, f32 to match the PyTorch output convention
    return jnp.transpose(out_padded[..., :cout], (0, 3, 1, 2)).astype(jnp.float32)


# --------------------------------------------------------------------------------------
# Pure-JAX f32 reference (same eval-mode-BN semantics) for a correctness check
# --------------------------------------------------------------------------------------
def ref_forward(x_nchw, p, stride, eps=1e-5):
    def conv(x, w, b, s, pad):
        y = jax.lax.conv_general_dilated(
            x, w, window_strides=(s, s), padding=[(pad, pad), (pad, pad)],
            dimension_numbers=("NCHW", "OIHW", "NCHW"))
        return y + b[None, :, None, None]

    def bn(x, g, be, m, v):
        inv = 1.0 / jnp.sqrt(v + eps)
        return (x - m[None, :, None, None]) * (g * inv)[None, :, None, None] \
            + be[None, :, None, None]

    cin, cout = p["w1"].shape[1], p["w1"].shape[0]
    out = conv(x_nchw, p["w1"], p["b1"], stride, 1)
    out = jnp.maximum(bn(out, p["g1"], p["be1"], p["m1"], p["v1"]), 0.0)
    out = conv(out, p["w2"], p["b2"], 1, 1)
    out = bn(out, p["g2"], p["be2"], p["m2"], p["v2"])
    if cin != cout:
        identity = conv(x_nchw, p["wid"], p["bid"], stride, 0)
    else:
        identity = x_nchw
    return jnp.maximum(out + identity, 0.0)


# --------------------------------------------------------------------------------------
if __name__ == "__main__":
    key = jax.random.PRNGKey(0)

    configs = [
        (4, 8, 1),   # cin != cout -> 1x1-conv identity branch
        (8, 8, 1),   # cin == cout -> plain identity branch
    ]
    for idx, (cin, cout, stride) in enumerate(configs):
        kx, kp = jax.random.split(jax.random.fold_in(key, idx))
        N, H, W = 4, 16, 16           # N=4 -> Nb=2 per grid step, 2 grid steps
        x = jax.random.normal(kx, (N, cin, H, W), jnp.float32)
        params = init_params(kp, cin, cout)

        out = jax.block_until_ready(basic_block_pallas(x, params, stride))
        ref = jax.block_until_ready(ref_forward(x, params, stride))

        Ho = (H - 1) // stride + 1
        Wo = (W - 1) // stride + 1
        assert out.shape == (N, cout, Ho, Wo), out.shape
        # bf16 operands / bf16 output -> compare with a scaled (relative-ish) tolerance
        err = float(jnp.max(jnp.abs(out - ref) / (1.0 + jnp.abs(ref))))
        assert err < 5e-2, f"cfg {(cin, cout, stride)}: max scaled err {err}"

    print("KERNEL_OK")
</pallas_src>

<mosaic_0001>
module attributes {stable_mosaic.version = 11 : i64} {
  func.func @kernel(%arg0: i32, %arg1: memref<2x18x18x128xbf16, #tpu.memory_space<vmem>>, %arg2: memref<3x3x128x128xbf16, #tpu.memory_space<vmem>>, %arg3: memref<1x128xf32, #tpu.memory_space<vmem>>, %arg4: memref<3x3x128x128xbf16, #tpu.memory_space<vmem>>, %arg5: memref<1x128xf32, #tpu.memory_space<vmem>>, %arg6: memref<128x128xbf16, #tpu.memory_space<vmem>>, %arg7: memref<1x128xf32, #tpu.memory_space<vmem>>, %arg8: memref<2x16x16x128xbf16, #tpu.memory_space<vmem>>, %arg9: memref<2x18x18x128xbf16, #tpu.memory_space<vmem>>) attributes {dimension_semantics = [#tpu.dimension_semantics<parallel>], iteration_bounds = array<i64: 2>, scalar_prefetch = 0 : i64, scratch_operands = 1 : i64, tpu.core_type = #tpu.core_type<tc>, window_params = [{transform_indices = @transform_0, window_bounds = array<i64: 2, 18, 18, 128>}, {pipeline_mode = #tpu.pipeline_mode<synchronous>, transform_indices = @transform_1, window_bounds = array<i64: 3, 3, 128, 128>}, {pipeline_mode = #tpu.pipeline_mode<synchronous>, transform_indices = @transform_2, window_bounds = array<i64: 1, 128>}, {pipeline_mode = #tpu.pipeline_mode<synchronous>, transform_indices = @transform_3, window_bounds = array<i64: 3, 3, 128, 128>}, {pipeline_mode = #tpu.pipeline_mode<synchronous>, transform_indices = @transform_4, window_bounds = array<i64: 1, 128>}, {pipeline_mode = #tpu.pipeline_mode<synchronous>, transform_indices = @transform_5, window_bounds = array<i64: 128, 128>}, {pipeline_mode = #tpu.pipeline_mode<synchronous>, transform_indices = @transform_6, window_bounds = array<i64: 1, 128>}, {transform_indices = @transform_7, window_bounds = array<i64: 2, 16, 16, 128>}]} {
    %c0 = arith.constant 0 : index
    %c0_0 = arith.constant 0 : index
    %c0_1 = arith.constant 0 : index
    %c0_2 = arith.constant 0 : index
    %0 = vector.load %arg1[%c0, %c0_0, %c0_1, %c0_2] : memref<2x18x18x128xbf16, #tpu.memory_space<vmem>>, vector<2x18x16x128xbf16>
    %c0_3 = arith.constant 0 : index
    %c0_4 = arith.constant 0 : index
    %c1 = arith.constant 1 : index
    %c0_5 = arith.constant 0 : index
    %1 = vector.load %arg1[%c0_3, %c0_4, %c1, %c0_5] : memref<2x18x18x128xbf16, #tpu.memory_space<vmem>>, vector<2x18x16x128xbf16>
    %c0_6 = arith.constant 0 : index
    %c0_7 = arith.constant 0 : index
    %c2 = arith.constant 2 : index
    %c0_8 = arith.constant 0 : index
    %2 = vector.load %arg1[%c0_6, %c0_7, %c2, %c0_8] : memref<2x18x18x128xbf16, #tpu.memory_space<vmem>>, vector<2x18x16x128xbf16>
    %cst = arith.constant 0.000000e+00 : f32
    %3 = vector.broadcast %cst : f32 to vector<512x128xf32>
    %4 = vector.extract_strided_slice %0 {offsets = [0, 0, 0, 0], sizes = [2, 16, 16, 128], strides = [1, 1, 1, 1]} : vector<2x18x16x128xbf16> to vector<2x16x16x128xbf16>
    %5 = vector.shape_cast %4 : vector<2x16x16x128xbf16> to vector<512x128xbf16>
    %c0_9 = arith.constant 0 : index
    %c0_10 = arith.constant 0 : index
    %c0_11 = arith.constant 0 : index
    %c0_12 = arith.constant 0 : index
    %6 = vector.load %arg2[%c0_9, %c0_10, %c0_11, %c0_12] : memref<3x3x128x128xbf16, #tpu.memory_space<vmem>>, vector<1x1x128x128xbf16>
    %7 = vector.shape_cast %6 : vector<1x1x128x128xbf16> to vector<128x128xbf16>
    %cst_13 = arith.constant dense<0.000000e+00> : vector<512x128xf32>
    %8 = tpu.matmul %5, %7, %cst_13 {dimension_numbers = #tpu.dot_dimension_numbers<[1], [0], [0], [1], [0, 0, 1, 1], [], []>} : vector<512x128xbf16>, vector<128x128xbf16>, vector<512x128xf32> -> vector<512x128xf32>
    %9 = arith.addf %3, %8 : vector<512x128xf32>
    %10 = vector.extract_strided_slice %1 {offsets = [0, 0, 0, 0], sizes = [2, 16, 16, 128], strides = [1, 1, 1, 1]} : vector<2x18x16x128xbf16> to vector<2x16x16x128xbf16>
    %11 = vector.shape_cast %10 : vector<2x16x16x128xbf16> to vector<512x128xbf16>
    %c0_14 = arith.constant 0 : index
    %c1_15 = arith.constant 1 : index
    %c0_16 = arith.constant 0 : index
    %c0_17 = arith.constant 0 : index
    %12 = vector.load %arg2[%c0_14, %c1_15, %c0_16, %c0_17] : memref<3x3x128x128xbf16, #tpu.memory_space<vmem>>, vector<1x1x128x128xbf16>
    %13 = vector.shape_cast %12 : vector<1x1x128x128xbf16> to vector<128x128xbf16>
    %cst_18 = arith.constant dense<0.000000e+00> : vector<512x128xf32>
    %14 = tpu.matmul %11, %13, %cst_18 {dimension_numbers = #tpu.dot_dimension_numbers<[1], [0], [0], [1], [0, 0, 1, 1], [], []>} : vector<512x128xbf16>, vector<128x128xbf16>, vector<512x128xf32> -> vector<512x128xf32>
    %15 = arith.addf %9, %14 : vector<512x128xf32>
    %16 = vector.extract_strided_slice %2 {offsets = [0, 0, 0, 0], sizes = [2, 16, 16, 128], strides = [1, 1, 1, 1]} : vector<2x18x16x128xbf16> to vector<2x16x16x128xbf16>
    %17 = vector.shape_cast %16 : vector<2x16x16x128xbf16> to vector<512x128xbf16>
    %c0_19 = arith.constant 0 : index
    %c2_20 = arith.constant 2 : index
    %c0_21 = arith.constant 0 : index
    %c0_22 = arith.constant 0 : index
    %18 = vector.load %arg2[%c0_19, %c2_20, %c0_21, %c0_22] : memref<3x3x128x128xbf16, #tpu.memory_space<vmem>>, vector<1x1x128x128xbf16>
    %19 = vector.shape_cast %18 : vector<1x1x128x128xbf16> to vector<128x128xbf16>
    %cst_23 = arith.constant dense<0.000000e+00> : vector<512x128xf32>
    %20 = tpu.matmul %17, %19, %cst_23 {dimension_numbers = #tpu.dot_dimension_numbers<[1], [0], [0], [1], [0, 0, 1, 1], [], []>} : vector<512x128xbf16>, vector<128x128xbf16>, vector<512x128xf32> -> vector<512x128xf32>
    %21 = arith.addf %15, %20 : vector<512x128xf32>
    %22 = vector.extract_strided_slice %0 {offsets = [0, 1, 0, 0], sizes = [2, 16, 16, 128], strides = [1, 1, 1, 1]} : vector<2x18x16x128xbf16> to vector<2x16x16x128xbf16>
    %23 = vector.shape_cast %22 : vector<2x16x16x128xbf16> to vector<512x128xbf16>
    %c1_24 = arith.constant 1 : index
    %c0_25 = arith.constant 0 : index
    %c0_26 = arith.constant 0 : index
    %c0_27 = arith.constant 0 : index
    %24 = vector.load %arg2[%c1_24, %c0_25, %c0_26, %c0_27] : memref<3x3x128x128xbf16, #tpu.memory_space<vmem>>, vector<1x1x128x128xbf16>
    %25 = vector.shape_cast %24 : vector<1x1x128x128xbf16> to vector<128x128xbf16>
    %cst_28 = arith.constant dense<0.000000e+00> : vector<512x128xf32>
    %26 = tpu.matmul %23, %25, %cst_28 {dimension_numbers = #tpu.dot_dimension_numbers<[1], [0], [0], [1], [0, 0, 1, 1], [], []>} : vector<512x128xbf16>, vector<128x128xbf16>, vector<512x128xf32> -> vector<512x128xf32>
    %27 = arith.addf %21, %26 : vector<512x128xf32>
    %28 = vector.extract_strided_slice %1 {offsets = [0, 1, 0, 0], sizes = [2, 16, 16, 128], strides = [1, 1, 1, 1]} : vector<2x18x16x128xbf16> to vector<2x16x16x128xbf16>
    %29 = vector.shape_cast %28 : vector<2x16x16x128xbf16> to vector<512x128xbf16>
    %c1_29 = arith.constant 1 : index
    %c1_30 = arith.constant 1 : index
    %c0_31 = arith.constant 0 : index
    %c0_32 = arith.constant 0 : index
    %30 = vector.load %arg2[%c1_29, %c1_30, %c0_31, %c0_32] : memref<3x3x128x128xbf16, #tpu.memory_space<vmem>>, vector<1x1x128x128xbf16>
    %31 = vector.shape_cast %30 : vector<1x1x128x128xbf16> to vector<128x128xbf16>
    %cst_33 = arith.constant dense<0.000000e+00> : vector<512x128xf32>
    %32 = tpu.matmul %29, %31, %cst_33 {dimension_numbers = #tpu.dot_dimension_numbers<[1], [0], [0], [1], [0, 0, 1, 1], [], []>} : vector<512x128xbf16>, vector<128x128xbf16>, vector<512x128xf32> -> vector<512x128xf32>
    %33 = arith.addf %27, %32 : vector<512x128xf32>
    %34 = vector.extract_strided_slice %2 {offsets = [0, 1, 0, 0], sizes = [2, 16, 16, 128], strides = [1, 1, 1, 1]} : vector<2x18x16x128xbf16> to vector<2x16x16x128xbf16>
    %35 = vector.shape_cast %34 : vector<2x16x16x128xbf16> to vector<512x128xbf16>
    %c1_34 = arith.constant 1 : index
    %c2_35 = arith.constant 2 : index
    %c0_36 = arith.constant 0 : index
    %c0_37 = arith.constant 0 : index
    %36 = vector.load %arg2[%c1_34, %c2_35, %c0_36, %c0_37] : memref<3x3x128x128xbf16, #tpu.memory_space<vmem>>, vector<1x1x128x128xbf16>
    %37 = vector.shape_cast %36 : vector<1x1x128x128xbf16> to vector<128x128xbf16>
    %cst_38 = arith.constant dense<0.000000e+00> : vector<512x128xf32>
    %38 = tpu.matmul %35, %37, %cst_38 {dimension_numbers = #tpu.dot_dimension_numbers<[1], [0], [0], [1], [0, 0, 1, 1], [], []>} : vector<512x128xbf16>, vector<128x128xbf16>, vector<512x128xf32> -> vector<512x128xf32>
    %39 = arith.addf %33, %38 : vector<512x128xf32>
    %40 = vector.extract_strided_slice %0 {offsets = [0, 2, 0, 0], sizes = [2, 16, 16, 128], strides = [1, 1, 1, 1]} : vector<2x18x16x128xbf16> to vector<2x16x16x128xbf16>
    %41 = vector.shape_cast %40 : vector<2x16x16x128xbf16> to vector<512x128xbf16>
    %c2_39 = arith.constant 2 : index
    %c0_40 = arith.constant 0 : index
    %c0_41 = arith.constant 0 : index
    %c0_42 = arith.constant 0 : index
    %42 = vector.load %arg2[%c2_39, %c0_40, %c0_41, %c0_42] : memref<3x3x128x128xbf16, #tpu.memory_space<vmem>>, vector<1x1x128x128xbf16>
    %43 = vector.shape_cast %42 : vector<1x1x128x128xbf16> to vector<128x128xbf16>
    %cst_43 = arith.constant dense<0.000000e+00> : vector<512x128xf32>
    %44 = tpu.matmul %41, %43, %cst_43 {dimension_numbers = #tpu.dot_dimension_numbers<[1], [0], [0], [1], [0, 0, 1, 1], [], []>} : vector<512x128xbf16>, vector<128x128xbf16>, vector<512x128xf32> -> vector<512x128xf32>
    %45 = arith.addf %39, %44 : vector<512x128xf32>
    %46 = vector.extract_strided_slice %1 {offsets = [0, 2, 0, 0], sizes = [2, 16, 16, 128], strides = [1, 1, 1, 1]} : vector<2x18x16x128xbf16> to vector<2x16x16x128xbf16>
    %47 = vector.shape_cast %46 : vector<2x16x16x128xbf16> to vector<512x128xbf16>
    %c2_44 = arith.constant 2 : index
    %c1_45 = arith.constant 1 : index
    %c0_46 = arith.constant 0 : index
    %c0_47 = arith.constant 0 : index
    %48 = vector.load %arg2[%c2_44, %c1_45, %c0_46, %c0_47] : memref<3x3x128x128xbf16, #tpu.memory_space<vmem>>, vector<1x1x128x128xbf16>
    %49 = vector.shape_cast %48 : vector<1x1x128x128xbf16> to vector<128x128xbf16>
    %cst_48 = arith.constant dense<0.000000e+00> : vector<512x128xf32>
    %50 = tpu.matmul %47, %49, %cst_48 {dimension_numbers = #tpu.dot_dimension_numbers<[1], [0], [0], [1], [0, 0, 1, 1], [], []>} : vector<512x128xbf16>, vector<128x128xbf16>, vector<512x128xf32> -> vector<512x128xf32>
    %51 = arith.addf %45, %50 : vector<512x128xf32>
    %52 = vector.extract_strided_slice %2 {offsets = [0, 2, 0, 0], sizes = [2, 16, 16, 128], strides = [1, 1, 1, 1]} : vector<2x18x16x128xbf16> to vector<2x16x16x128xbf16>
    %53 = vector.shape_cast %52 : vector<2x16x16x128xbf16> to vector<512x128xbf16>
    %c2_49 = arith.constant 2 : index
    %c2_50 = arith.constant 2 : index
    %c0_51 = arith.constant 0 : index
    %c0_52 = arith.constant 0 : index
    %54 = vector.load %arg2[%c2_49, %c2_50, %c0_51, %c0_52] : memref<3x3x128x128xbf16, #tpu.memory_space<vmem>>, vector<1x1x128x128xbf16>
    %55 = vector.shape_cast %54 : vector<1x1x128x128xbf16> to vector<128x128xbf16>
    %cst_53 = arith.constant dense<0.000000e+00> : vector<512x128xf32>
    %56 = tpu.matmul %53, %55, %cst_53 {dimension_numbers = #tpu.dot_dimension_numbers<[1], [0], [0], [1], [0, 0, 1, 1], [], []>} : vector<512x128xbf16>, vector<128x128xbf16>, vector<512x128xf32> -> vector<512x128xf32>
    %57 = arith.addf %51, %56 : vector<512x128xf32>
    %c0_54 = arith.constant 0 : index
    %c0_55 = arith.constant 0 : index
    %58 = vector.load %arg3[%c0_54, %c0_55] : memref<1x128xf32, #tpu.memory_space<vmem>>, vector<1x128xf32>
    %59 = vector.broadcast %58 : vector<1x128xf32> to vector<512x128xf32>
    %60 = arith.addf %57, %59 : vector<512x128xf32>
    %cst_56 = arith.constant 0.000000e+00 : f32
    %61 = vector.broadcast %cst_56 : f32 to vector<512x128xf32>
    %62 = arith.maximumf %60, %61 : vector<512x128xf32>
    %cst_57 = arith.constant 0.000000e+00 : bf16
    %63 = vector.broadcast %cst_57 : bf16 to vector<2x1x18x128xbf16>
    %c0_58 = arith.constant 0 : index
    %c0_59 = arith.constant 0 : index
    %c0_60 = arith.constant 0 : index
    %c0_61 = arith.constant 0 : index
    %64 = vector.load %arg9[%c0_58, %c0_59, %c0_60, %c0_61] : memref<2x18x18x128xbf16, #tpu.memory_space<vmem>>, vector<2x1x18x128xbf16>
    tpu.vector_store %arg9[%c0_58, %c0_59, %c0_60, %c0_61], %63 {strides = array<i32>} : memref<2x18x18x128xbf16, #tpu.memory_space<vmem>>, vector<2x1x18x128xbf16>,
    %cst_62 = arith.constant 0.000000e+00 : bf16
    %65 = vector.broadcast %cst_62 : bf16 to vector<2x1x18x128xbf16>
    %c0_63 = arith.constant 0 : index
    %c17 = arith.constant 17 : index
    %c0_64 = arith.constant 0 : index
    %c0_65 = arith.constant 0 : index
    %66 = vector.load %arg9[%c0_63, %c17, %c0_64, %c0_65] : memref<2x18x18x128xbf16, #tpu.memory_space<vmem>>, vector<2x1x18x128xbf16>
    tpu.vector_store %arg9[%c0_63, %c17, %c0_64, %c0_65], %65 {strides = array<i32>} : memref<2x18x18x128xbf16, #tpu.memory_space<vmem>>, vector<2x1x18x128xbf16>,
    %cst_66 = arith.constant 0.000000e+00 : bf16
    %67 = vector.broadcast %cst_66 : bf16 to vector<2x16x1x128xbf16>
    %c0_67 = arith.constant 0 : index
    %c1_68 = arith.constant 1 : index
    %c0_69 = arith.constant 0 : index
    %c0_70 = arith.constant 0 : index
    %68 = vector.load %arg9[%c0_67, %c1_68, %c0_69, %c0_70] : memref<2x18x18x128xbf16, #tpu.memory_space<vmem>>, vector<2x16x1x128xbf16>
    tpu.vector_store %arg9[%c0_67, %c1_68, %c0_69, %c0_70], %67 {strides = array<i32>} : memref<2x18x18x128xbf16, #tpu.memory_space<vmem>>, vector<2x16x1x128xbf16>,
    %cst_71 = arith.constant 0.000000e+00 : bf16
    %69 = vector.broadcast %cst_71 : bf16 to vector<2x16x1x128xbf16>
    %c0_72 = arith.constant 0 : index
    %c1_73 = arith.constant 1 : index
    %c17_74 = arith.constant 17 : index
    %c0_75 = arith.constant 0 : index
    %70 = vector.load %arg9[%c0_72, %c1_73, %c17_74, %c0_75] : memref<2x18x18x128xbf16, #tpu.memory_space<vmem>>, vector<2x16x1x128xbf16>
    tpu.vector_store %arg9[%c0_72, %c1_73, %c17_74, %c0_75], %69 {strides = array<i32>} : memref<2x18x18x128xbf16, #tpu.memory_space<vmem>>, vector<2x16x1x128xbf16>,
    %71 = arith.truncf %62 : vector<512x128xf32> to vector<512x128xbf16>
    %72 = vector.shape_cast %71 : vector<512x128xbf16> to vector<2x16x16x128xbf16>
    %c0_76 = arith.constant 0 : index
    %c1_77 = arith.constant 1 : index
    %c1_78 = arith.constant 1 : index
    %c0_79 = arith.constant 0 : index
    %73 = vector.load %arg9[%c0_76, %c1_77, %c1_78, %c0_79] : memref<2x18x18x128xbf16, #tpu.memory_space<vmem>>, vector<2x16x16x128xbf16>
    tpu.vector_store %arg9[%c0_76, %c1_77, %c1_78, %c0_79], %72 {strides = array<i32>} : memref<2x18x18x128xbf16, #tpu.memory_space<vmem>>, vector<2x16x16x128xbf16>,
    %c0_80 = arith.constant 0 : index
    %c0_81 = arith.constant 0 : index
    %c0_82 = arith.constant 0 : index
    %c0_83 = arith.constant 0 : index
    %74 = vector.load %arg9[%c0_80, %c0_81, %c0_82, %c0_83] : memref<2x18x18x128xbf16, #tpu.memory_space<vmem>>, vector<2x18x16x128xbf16>
    %c0_84 = arith.constant 0 : index
    %c0_85 = arith.constant 0 : index
    %c1_86 = arith.constant 1 : index
    %c0_87 = arith.constant 0 : index
    %75 = vector.load %arg9[%c0_84, %c0_85, %c1_86, %c0_87] : memref<2x18x18x128xbf16, #tpu.memory_space<vmem>>, vector<2x18x16x128xbf16>
    %c0_88 = arith.constant 0 : index
    %c0_89 = arith.constant 0 : index
    %c2_90 = arith.constant 2 : index
    %c0_91 = arith.constant 0 : index
    %76 = vector.load %arg9[%c0_88, %c0_89, %c2_90, %c0_91] : memref<2x18x18x128xbf16, #tpu.memory_space<vmem>>, vector<2x18x16x128xbf16>
    %cst_92 = arith.constant 0.000000e+00 : f32
    %77 = vector.broadcast %cst_92 : f32 to vector<512x128xf32>
    %78 = vector.extract_strided_slice %74 {offsets = [0, 0, 0, 0], sizes = [2, 16, 16, 128], strides = [1, 1, 1, 1]} : vector<2x18x16x128xbf16> to vector<2x16x16x128xbf16>
    %79 = vector.shape_cast %78 : vector<2x16x16x128xbf16> to vector<512x128xbf16>
    %c0_93 = arith.constant 0 : index
    %c0_94 = arith.constant 0 : index
    %c0_95 = arith.constant 0 : index
    %c0_96 = arith.constant 0 : index
    %80 = vector.load %arg4[%c0_93, %c0_94, %c0_95, %c0_96] : memref<3x3x128x128xbf16, #tpu.memory_space<vmem>>, vector<1x1x128x128xbf16>
    %81 = vector.shape_cast %80 : vector<1x1x128x128xbf16> to vector<128x128xbf16>
    %cst_97 = arith.constant dense<0.000000e+00> : vector<512x128xf32>
    %82 = tpu.matmul %79, %81, %cst_97 {dimension_numbers = #tpu.dot_dimension_numbers<[1], [0], [0], [1], [0, 0, 1, 1], [], []>} : vector<512x128xbf16>, vector<128x128xbf16>, vector<512x128xf32> -> vector<512x128xf32>
    %83 = arith.addf %77, %82 : vector<512x128xf32>
    %84 = vector.extract_strided_slice %75 {offsets = [0, 0, 0, 0], sizes = [2, 16, 16, 128], strides = [1, 1, 1, 1]} : vector<2x18x16x128xbf16> to vector<2x16x16x128xbf16>
    %85 = vector.shape_cast %84 : vector<2x16x16x128xbf16> to vector<512x128xbf16>
    %c0_98 = arith.constant 0 : index
    %c1_99 = arith.constant 1 : index
    %c0_100 = arith.constant 0 : index
    %c0_101 = arith.constant 0 : index
    %86 = vector.load %arg4[%c0_98, %c1_99, %c0_100, %c0_101] : memref<3x3x128x128xbf16, #tpu.memory_space<vmem>>, vector<1x1x128x128xbf16>
    %87 = vector.shape_cast %86 : vector<1x1x128x128xbf16> to vector<128x128xbf16>
    %cst_102 = arith.constant dense<0.000000e+00> : vector<512x128xf32>
    %88 = tpu.matmul %85, %87, %cst_102 {dimension_numbers = #tpu.dot_dimension_numbers<[1], [0], [0], [1], [0, 0, 1, 1], [], []>} : vector<512x128xbf16>, vector<128x128xbf16>, vector<512x128xf32> -> vector<512x128xf32>
    %89 = arith.addf %83, %88 : vector<512x128xf32>
    %90 = vector.extract_strided_slice %76 {offsets = [0, 0, 0, 0], sizes = [2, 16, 16, 128], strides = [1, 1, 1, 1]} : vector<2x18x16x128xbf16> to vector<2x16x16x128xbf16>
    %91 = vector.shape_cast %90 : vector<2x16x16x128xbf16> to vector<512x128xbf16>
    %c0_103 = arith.constant 0 : index
    %c2_104 = arith.constant 2 : index
    %c0_105 = arith.constant 0 : index
    %c0_106 = arith.constant 0 : index
    %92 = vector.load %arg4[%c0_103, %c2_104, %c0_105, %c0_106] : memref<3x3x128x128xbf16, #tpu.memory_space<vmem>>, vector<1x1x128x128xbf16>
    %93 = vector.shape_cast %92 : vector<1x1x128x128xbf16> to vector<128x128xbf16>
    %cst_107 = arith.constant dense<0.000000e+00> : vector<512x128xf32>
    %94 = tpu.matmul %91, %93, %cst_107 {dimension_numbers = #tpu.dot_dimension_numbers<[1], [0], [0], [1], [0, 0, 1, 1], [], []>} : vector<512x128xbf16>, vector<128x128xbf16>, vector<512x128xf32> -> vector<512x128xf32>
    %95 = arith.addf %89, %94 : vector<512x128xf32>
    %96 = vector.extract_strided_slice %74 {offsets = [0, 1, 0, 0], sizes = [2, 16, 16, 128], strides = [1, 1, 1, 1]} : vector<2x18x16x128xbf16> to vector<2x16x16x128xbf16>
    %97 = vector.shape_cast %96 : vector<2x16x16x128xbf16> to vector<512x128xbf16>
    %c1_108 = arith.constant 1 : index
    %c0_109 = arith.constant 0 : index
    %c0_110 = arith.constant 0 : index
    %c0_111 = arith.constant 0 : index
    %98 = vector.load %arg4[%c1_108, %c0_109, %c0_110, %c0_111] : memref<3x3x128x128xbf16, #tpu.memory_space<vmem>>, vector<1x1x128x128xbf16>
    %99 = vector.shape_cast %98 : vector<1x1x128x128xbf16> to vector<128x128xbf16>
    %cst_112 = arith.constant dense<0.000000e+00> : vector<512x128xf32>
    %100 = tpu.matmul %97, %99, %cst_112 {dimension_numbers = #tpu.dot_dimension_numbers<[1], [0], [0], [1], [0, 0, 1, 1], [], []>} : vector<512x128xbf16>, vector<128x128xbf16>, vector<512x128xf32> -> vector<512x128xf32>
    %101 = arith.addf %95, %100 : vector<512x128xf32>
    %102 = vector.extract_strided_slice %75 {offsets = [0, 1, 0, 0], sizes = [2, 16, 16, 128], strides = [1, 1, 1, 1]} : vector<2x18x16x128xbf16> to vector<2x16x16x128xbf16>
    %103 = vector.shape_cast %102 : vector<2x16x16x128xbf16> to vector<512x128xbf16>
    %c1_113 = arith.constant 1 : index
    %c1_114 = arith.constant 1 : index
    %c0_115 = arith.constant 0 : index
    %c0_116 = arith.constant 0 : index
    %104 = vector.load %arg4[%c1_113, %c1_114, %c0_115, %c0_116] : memref<3x3x128x128xbf16, #tpu.memory_space<vmem>>, vector<1x1x128x128xbf16>
    %105 = vector.shape_cast %104 : vector<1x1x128x128xbf16> to vector<128x128xbf16>
    %cst_117 = arith.constant dense<0.000000e+00> : vector<512x128xf32>
    %106 = tpu.matmul %103, %105, %cst_117 {dimension_numbers = #tpu.dot_dimension_numbers<[1], [0], [0], [1], [0, 0, 1, 1], [], []>} : vector<512x128xbf16>, vector<128x128xbf16>, vector<512x128xf32> -> vector<512x128xf32>
    %107 = arith.addf %101, %106 : vector<512x128xf32>
    %108 = vector.extract_strided_slice %76 {offsets = [0, 1, 0, 0], sizes = [2, 16, 16, 128], strides = [1, 1, 1, 1]} : vector<2x18x16x128xbf16> to vector<2x16x16x128xbf16>
    %109 = vector.shape_cast %108 : vector<2x16x16x128xbf16> to vector<512x128xbf16>
    %c1_118 = arith.constant 1 : index
    %c2_119 = arith.constant 2 : index
    %c0_120 = arith.constant 0 : index
    %c0_121 = arith.constant 0 : index
    %110 = vector.load %arg4[%c1_118, %c2_119, %c0_120, %c0_121] : memref<3x3x128x128xbf16, #tpu.memory_space<vmem>>, vector<1x1x128x128xbf16>
    %111 = vector.shape_cast %110 : vector<1x1x128x128xbf16> to vector<128x128xbf16>
    %cst_122 = arith.constant dense<0.000000e+00> : vector<512x128xf32>
    %112 = tpu.matmul %109, %111, %cst_122 {dimension_numbers = #tpu.dot_dimension_numbers<[1], [0], [0], [1], [0, 0, 1, 1], [], []>} : vector<512x128xbf16>, vector<128x128xbf16>, vector<512x128xf32> -> vector<512x128xf32>
    %113 = arith.addf %107, %112 : vector<512x128xf32>
    %114 = vector.extract_strided_slice %74 {offsets = [0, 2, 0, 0], sizes = [2, 16, 16, 128], strides = [1, 1, 1, 1]} : vector<2x18x16x128xbf16> to vector<2x16x16x128xbf16>
    %115 = vector.shape_cast %114 : vector<2x16x16x128xbf16> to vector<512x128xbf16>
    %c2_123 = arith.constant 2 : index
    %c0_124 = arith.constant 0 : index
    %c0_125 = arith.constant 0 : index
    %c0_126 = arith.constant 0 : index
    %116 = vector.load %arg4[%c2_123, %c0_124, %c0_125, %c0_126] : memref<3x3x128x128xbf16, #tpu.memory_space<vmem>>, vector<1x1x128x128xbf16>
    %117 = vector.shape_cast %116 : vector<1x1x128x128xbf16> to vector<128x128xbf16>
    %cst_127 = arith.constant dense<0.000000e+00> : vector<512x128xf32>
    %118 = tpu.matmul %115, %117, %cst_127 {dimension_numbers = #tpu.dot_dimension_numbers<[1], [0], [0], [1], [0, 0, 1, 1], [], []>} : vector<512x128xbf16>, vector<128x128xbf16>, vector<512x128xf32> -> vector<512x128xf32>
    %119 = arith.addf %113, %118 : vector<512x128xf32>
    %120 = vector.extract_strided_slice %75 {offsets = [0, 2, 0, 0], sizes = [2, 16, 16, 128], strides = [1, 1, 1, 1]} : vector<2x18x16x128xbf16> to vector<2x16x16x128xbf16>
    %121 = vector.shape_cast %120 : vector<2x16x16x128xbf16> to vector<512x128xbf16>
    %c2_128 = arith.constant 2 : index
    %c1_129 = arith.constant 1 : index
    %c0_130 = arith.constant 0 : index
    %c0_131 = arith.constant 0 : index
    %122 = vector.load %arg4[%c2_128, %c1_129, %c0_130, %c0_131] : memref<3x3x128x128xbf16, #tpu.memory_space<vmem>>, vector<1x1x128x128xbf16>
    %123 = vector.shape_cast %122 : vector<1x1x128x128xbf16> to vector<128x128xbf16>
    %cst_132 = arith.constant dense<0.000000e+00> : vector<512x128xf32>
    %124 = tpu.matmul %121, %123, %cst_132 {dimension_numbers = #tpu.dot_dimension_numbers<[1], [0], [0], [1], [0, 0, 1, 1], [], []>} : vector<512x128xbf16>, vector<128x128xbf16>, vector<512x128xf32> -> vector<512x128xf32>
    %125 = arith.addf %119, %124 : vector<512x128xf32>
    %126 = vector.extract_strided_slice %76 {offsets = [0, 2, 0, 0], sizes = [2, 16, 16, 128], strides = [1, 1, 1, 1]} : vector<2x18x16x128xbf16> to vector<2x16x16x128xbf16>
    %127 = vector.shape_cast %126 : vector<2x16x16x128xbf16> to vector<512x128xbf16>
    %c2_133 = arith.constant 2 : index
    %c2_134 = arith.constant 2 : index
    %c0_135 = arith.constant 0 : index
    %c0_136 = arith.constant 0 : index
    %128 = vector.load %arg4[%c2_133, %c2_134, %c0_135, %c0_136] : memref<3x3x128x128xbf16, #tpu.memory_space<vmem>>, vector<1x1x128x128xbf16>
    %129 = vector.shape_cast %128 : vector<1x1x128x128xbf16> to vector<128x128xbf16>
    %cst_137 = arith.constant dense<0.000000e+00> : vector<512x128xf32>
    %130 = tpu.matmul %127, %129, %cst_137 {dimension_numbers = #tpu.dot_dimension_numbers<[1], [0], [0], [1], [0, 0, 1, 1], [], []>} : vector<512x128xbf16>, vector<128x128xbf16>, vector<512x128xf32> -> vector<512x128xf32>
    %131 = arith.addf %125, %130 : vector<512x128xf32>
    %c0_138 = arith.constant 0 : index
    %c0_139 = arith.constant 0 : index
    %132 = vector.load %arg5[%c0_138, %c0_139] : memref<1x128xf32, #tpu.memory_space<vmem>>, vector<1x128xf32>
    %133 = vector.broadcast %132 : vector<1x128xf32> to vector<512x128xf32>
    %134 = arith.addf %131, %133 : vector<512x128xf32>
    %c0_140 = arith.constant 0 : index
    %c1_141 = arith.constant 1 : index
    %c1_142 = arith.constant 1 : index
    %c0_143 = arith.constant 0 : index
    %135 = vector.load %arg1[%c0_140, %c1_141, %c1_142, %c0_143] : memref<2x18x18x128xbf16, #tpu.memory_space<vmem>>, vector<2x16x16x128xbf16>
    %136 = vector.shape_cast %135 : vector<2x16x16x128xbf16> to vector<512x128xbf16>
    %c0_144 = arith.constant 0 : index
    %c0_145 = arith.constant 0 : index
    %137 = vector.load %arg6[%c0_144, %c0_145] : memref<128x128xbf16, #tpu.memory_space<vmem>>, vector<128x128xbf16>
    %cst_146 = arith.constant dense<0.000000e+00> : vector<512x128xf32>
    %138 = tpu.matmul %136, %137, %cst_146 {dimension_numbers = #tpu.dot_dimension_numbers<[1], [0], [0], [1], [0, 0, 1, 1], [], []>} : vector<512x128xbf16>, vector<128x128xbf16>, vector<512x128xf32> -> vector<512x128xf32>
    %c0_147 = arith.constant 0 : index
    %c0_148 = arith.constant 0 : index
    %139 = vector.load %arg7[%c0_147, %c0_148] : memref<1x128xf32, #tpu.memory_space<vmem>>, vector<1x128xf32>
    %140 = vector.broadcast %139 : vector<1x128xf32> to vector<512x128xf32>
    %141 = arith.addf %138, %140 : vector<512x128xf32>
    %142 = arith.addf %134, %141 : vector<512x128xf32>
    %cst_149 = arith.constant 0.000000e+00 : f32
    %143 = vector.broadcast %cst_149 : f32 to vector<512x128xf32>
    %144 = arith.maximumf %142, %143 : vector<512x128xf32>
    %145 = vector.shape_cast %144 : vector<512x128xf32> to vector<2x16x16x128xf32>
    %146 = arith.truncf %145 : vector<2x16x16x128xf32> to vector<2x16x16x128xbf16>
    %c0_150 = arith.constant 0 : index
    %c0_151 = arith.constant 0 : index
    %c0_152 = arith.constant 0 : index
    %c0_153 = arith.constant 0 : index
    %147 = vector.load %arg8[%c0_150, %c0_151, %c0_152, %c0_153] : memref<2x16x16x128xbf16, #tpu.memory_space<vmem>>, vector<2x16x16x128xbf16>
    tpu.vector_store %arg8[%c0_150, %c0_151, %c0_152, %c0_153], %146 {strides = array<i32>} : memref<2x16x16x128xbf16, #tpu.memory_space<vmem>>, vector<2x16x16x128xbf16>,
    return
  }
  func.func @transform_0(%arg0: i32) -> (i32, i32, i32, i32) {
    %c0_i32 = arith.constant 0 : i32
    %c0_i32_0 = arith.constant 0 : i32
    %c0_i32_1 = arith.constant 0 : i32
    %c0_i32_2 = arith.constant 0 : i32
    return %arg0, %c0_i32, %c0_i32_0, %c0_i32_1 : i32, i32, i32, i32
  }
  func.func @transform_1(%arg0: i32) -> (i32, i32, i32, i32) {
    %c0_i32 = arith.constant 0 : i32
    %c0_i32_0 = arith.constant 0 : i32
    %c0_i32_1 = arith.constant 0 : i32
    %c0_i32_2 = arith.constant 0 : i32
    %c0_i32_3 = arith.constant 0 : i32
    return %c0_i32, %c0_i32_0, %c0_i32_1, %c0_i32_2 : i32, i32, i32, i32
  }
  func.func @transform_2(%arg0: i32) -> (i32, i32) {
    %c0_i32 = arith.constant 0 : i32
    %c0_i32_0 = arith.constant 0 : i32
    %c0_i32_1 = arith.constant 0 : i32
    return %c0_i32, %c0_i32_0 : i32, i32
  }
  func.func @transform_3(%arg0: i32) -> (i32, i32, i32, i32) {
    %c0_i32 = arith.constant 0 : i32
    %c0_i32_0 = arith.constant 0 : i32
    %c0_i32_1 = arith.constant 0 : i32
    %c0_i32_2 = arith.constant 0 : i32
    %c0_i32_3 = arith.constant 0 : i32
    return %c0_i32, %c0_i32_0, %c0_i32_1, %c0_i32_2 : i32, i32, i32, i32
  }
  func.func @transform_4(%arg0: i32) -> (i32, i32) {
    %c0_i32 = arith.constant 0 : i32
    %c0_i32_0 = arith.constant 0 : i32
    %c0_i32_1 = arith.constant 0 : i32
    return %c0_i32, %c0_i32_0 : i32, i32
  }
  func.func @transform_5(%arg0: i32) -> (i32, i32) {
    %c0_i32 = arith.constant 0 : i32
    %c0_i32_0 = arith.constant 0 : i32
    %c0_i32_1 = arith.constant 0 : i32
    return %c0_i32, %c0_i32_0 : i32, i32
  }
  func.func @transform_6(%arg0: i32) -> (i32, i32) {
    %c0_i32 = arith.constant 0 : i32
    %c0_i32_0 = arith.constant 0 : i32
    %c0_i32_1 = arith.constant 0 : i32
    return %c0_i32, %c0_i32_0 : i32, i32
  }
  func.func @transform_7(%arg0: i32) -> (i32, i32, i32, i32) {
    %c0_i32 = arith.constant 0 : i32
    %c0_i32_0 = arith.constant 0 : i32
    %c0_i32_1 = arith.constant 0 : i32
    %c0_i32_2 = arith.constant 0 : i32
    return %arg0, %c0_i32, %c0_i32_0, %c0_i32_1 : i32, i32, i32, i32
  }
}

</mosaic_0001>

<llo_original>
// kernel: tpu_custom_call.1
$region0: #{tpu_custom_call.1}
  #allocation0 [shape = 'u32[]', space=smem, size = 0x4, offset = 0x4, fixed_abs, tag = 'smem constant byte address 0x4 - core index']
  #allocation1 [shape = 'u32[72,128]{1,0:T(1,128)}', space=vmem, size = 0x9000, scoped, tag = 'internal scratch']
  #allocation2 [shape = 'bf16[2,18,18,128]{3,2,1,0:T(8,128)(2,1)}', space=vmem, size = 0x36000, scoped, tag = 'scratch operand']
  %s0 = inlined_call_operand.vmem [shape: bf16[4,18,18,128], index: 0, kind: input, shape index: {}]
  %s1 = inlined_call_operand.vmem [shape: bf16[3,3,128,128], index: 1, kind: input, shape index: {}]
  %s2 = inlined_call_operand.vmem [shape: f32[1,128], index: 2, kind: input, shape index: {}]
  %s3 = inlined_call_operand.vmem [shape: bf16[3,3,128,128], index: 3, kind: input, shape index: {}]
  %s4 = inlined_call_operand.vmem [shape: f32[1,128], index: 4, kind: input, shape index: {}]
  %s5 = inlined_call_operand.vmem [shape: bf16[128,128], index: 5, kind: input, shape index: {}]
  %s6 = inlined_call_operand.vmem [shape: f32[1,128], index: 6, kind: input, shape index: {}]
  %s7 = inlined_call_operand.hbm [shape: bf16[4,16,16,128], index: 7, kind: output, shape index: {}]
  %s8 = sld [smem:[#allocation0]]
  $region61: #{tpu_custom_call.1} parent=0
    _
  %s10 = ssub.s32 1, %s8
  %s11 = scalar_select 0, %s10, %s8
  $region1: #{tpu_custom_call.1} parent=0
    #allocation3 [shape = 'u8[262144]{0}', space=vmem, size = 0x40000, scoped, tag = 'output window, operand 0']
    #allocation4 [shape = 's32[2]{0}', space=sflag, size = 0x8, scoped, tag = 'scoped memory for tpu_custom_call.1']
    %12 = vsyncpa [#allocation4], 0
    %s13 = scalar_lea.sflag [#allocation4], 1
    %14 = vsyncpa %s13, 0
    loop: start=0, step=1, limit=4
    $region2: #{tpu_custom_call.1} parent=1 // loop_pre_header
      _
    $region3: #{tpu_custom_call.1} parent=1 // loop_header
      %s16 = sphi 0, %s20
      %p17 = scmp.ge.s32.totalorder %s16, 4
      %s26 = sphi 0, %s28
      %s29 = sphi 0, %s26
      %s30 = sphi 0, %s29
      %s46 = sphi 0, %s30
      %s50 = sphi 0, %s50
      %s52 = sphi 0, %s50
      %s53 = sphi 0, %s52
      %s67 = sphi 0, %s53
      %s71 = sphi 0, %s71
      %s73 = sphi 0, %s71
      %s74 = sphi 0, %s73
      %s88 = sphi 0, %s74
      %s92 = sphi 0, %s92
      %s94 = sphi 0, %s92
      %s95 = sphi 0, %s94
      %s109 = sphi 0, %s95
      %s113 = sphi 0, %s113
      %s115 = sphi 0, %s113
      %s116 = sphi 0, %s115
      %s130 = sphi 0, %s116
      %s134 = sphi 0, %s134
      %s136 = sphi 0, %s134
      %s137 = sphi 0, %s136
      %s151 = sphi 0, %s137
      %s155 = sphi 0, %s155
      %s157 = sphi 0, %s155
      %s158 = sphi 0, %s157
      %s172 = sphi 0, %s158
      %s178 = sphi 0, %s180
      %s181 = sphi 0, %s178
      %s182 = sphi 0, %s181
      %s198 = sphi 0, %s182
    $region4: #{tpu_custom_call.1} parent=1 // loop_header_branch
      %19 = sbr.rel (%p17) target = $region8
    $region5: #{tpu_custom_call.1} parent=1 // loop_body
      %s21 = ssub.s32 %s16, 1
      %s22 = ssub.s32 %s16, 2
      %s23 = sadd.s32 %s16, 1
      %s24 = ssub.s32 %s16, %s23
      %p25 = scmp.eq.s32.totalorder %s24, 0
      %s27 = sadd.s32 %s26, 1
      %s28 = scalar_select %p25, %s26, %s27
      %p31 = pneg %p25
      %p32 = scmp.eq.s32.totalorder %s16, 1
      %p33 = por %p31, %p32
      %p34 = scmp.ne.s32.totalorder %s26, %s29
      %p35 = scmp.eq.s32.totalorder %s16, 0
      %p36 = por %p34, %p35
      %p37 = scmp.ne.s32.totalorder %s26, %s29
      %p38 = scmp.eq.s32.totalorder %s21, 1
      %p39 = por %p37, %p38
      %p40 = scmp.ne.s32.totalorder %s29, %s30
      %p41 = scmp.eq.s32.totalorder %s21, 0
      %p42 = por %p40, %p41
      %p43 = scmp.ne.s32.totalorder %s29, %s30
      %p44 = scmp.eq.s32.totalorder %s22, 1
      %p45 = por %p43, %p44
      %p47 = scmp.ne.s32.totalorder %s30, %s46
      %p48 = scmp.eq.s32.totalorder %s22, 0
      %p49 = por %p47, %p48
      %s51 = sadd.s32 %s50, 1
      %p54 = scmp.eq.s32.totalorder %s16, 1
      %p55 = scmp.ne.s32.totalorder %s50, %s52
      %p56 = scmp.eq.s32.totalorder %s16, 0
      %p57 = por %p55, %p56
      %p58 = scmp.ne.s32.totalorder %s50, %s52
      %p59 = scmp.eq.s32.totalorder %s21, 1
      %p60 = por %p58, %p59
      %p61 = scmp.ne.s32.totalorder %s52, %s53
      %p62 = scmp.eq.s32.totalorder %s21, 0
      %p63 = por %p61, %p62
      %p64 = scmp.ne.s32.totalorder %s52, %s53
      %p65 = scmp.eq.s32.totalorder %s22, 1
      %p66 = por %p64, %p65
      %p68 = scmp.ne.s32.totalorder %s53, %s67
      %p69 = scmp.eq.s32.totalorder %s22, 0
      %p70 = por %p68, %p69
      %s72 = sadd.s32 %s71, 1
      %p75 = scmp.eq.s32.totalorder %s16, 1
      %p76 = scmp.ne.s32.totalorder %s71, %s73
      %p77 = scmp.eq.s32.totalorder %s16, 0
      %p78 = por %p76, %p77
      %p79 = scmp.ne.s32.totalorder %s71, %s73
      %p80 = scmp.eq.s32.totalorder %s21, 1
      %p81 = por %p79, %p80
      %p82 = scmp.ne.s32.totalorder %s73, %s74
      %p83 = scmp.eq.s32.totalorder %s21, 0
      %p84 = por %p82, %p83
      %p85 = scmp.ne.s32.totalorder %s73, %s74
      %p86 = scmp.eq.s32.totalorder %s22, 1
      %p87 = por %p85, %p86
      %p89 = scmp.ne.s32.totalorder %s74, %s88
      %p90 = scmp.eq.s32.totalorder %s22, 0
      %p91 = por %p89, %p90
      %s93 = sadd.s32 %s92, 1
      %p96 = scmp.eq.s32.totalorder %s16, 1
      %p97 = scmp.ne.s32.totalorder %s92, %s94
      %p98 = scmp.eq.s32.totalorder %s16, 0
      %p99 = por %p97, %p98
      %p100 = scmp.ne.s32.totalorder %s92, %s94
      %p101 = scmp.eq.s32.totalorder %s21, 1
      %p102 = por %p100, %p101
      %p103 = scmp.ne.s32.totalorder %s94, %s95
      %p104 = scmp.eq.s32.totalorder %s21, 0
      %p105 = por %p103, %p104
      %p106 = scmp.ne.s32.totalorder %s94, %s95
      %p107 = scmp.eq.s32.totalorder %s22, 1
      %p108 = por %p106, %p107
      %p110 = scmp.ne.s32.totalorder %s95, %s109
      %p111 = scmp.eq.s32.totalorder %s22, 0
      %p112 = por %p110, %p111
      %s114 = sadd.s32 %s113, 1
      %p117 = scmp.eq.s32.totalorder %s16, 1
      %p118 = scmp.ne.s32.totalorder %s113, %s115
      %p119 = scmp.eq.s32.totalorder %s16, 0
      %p120 = por %p118, %p119
      %p121 = scmp.ne.s32.totalorder %s113, %s115
      %p122 = scmp.eq.s32.totalorder %s21, 1
      %p123 = por %p121, %p122
      %p124 = scmp.ne.s32.totalorder %s115, %s116
      %p125 = scmp.eq.s32.totalorder %s21, 0
      %p126 = por %p124, %p125
      %p127 = scmp.ne.s32.totalorder %s115, %s116
      %p128 = scmp.eq.s32.totalorder %s22, 1
      %p129 = por %p127, %p128
      %p131 = scmp.ne.s32.totalorder %s116, %s130
      %p132 = scmp.eq.s32.totalorder %s22, 0
      %p133 = por %p131, %p132
      %s135 = sadd.s32 %s134, 1
      %p138 = scmp.eq.s32.totalorder %s16, 1
      %p139 = scmp.ne.s32.totalorder %s134, %s136
      %p140 = scmp.eq.s32.totalorder %s16, 0
      %p141 = por %p139, %p140
      %p142 = scmp.ne.s32.totalorder %s134, %s136
      %p143 = scmp.eq.s32.totalorder %s21, 1
      %p144 = por %p142, %p143
      %p145 = scmp.ne.s32.totalorder %s136, %s137
      %p146 = scmp.eq.s32.totalorder %s21, 0
      %p147 = por %p145, %p146
      %p148 = scmp.ne.s32.totalorder %s136, %s137
      %p149 = scmp.eq.s32.totalorder %s22, 1
      %p150 = por %p148, %p149
      %p152 = scmp.ne.s32.totalorder %s137, %s151
      %p153 = scmp.eq.s32.totalorder %s22, 0
      %p154 = por %p152, %p153
      %s156 = sadd.s32 %s155, 1
      %p159 = scmp.eq.s32.totalorder %s16, 1
      %p160 = scmp.ne.s32.totalorder %s155, %s157
      %p161 = scmp.eq.s32.totalorder %s16, 0
      %p162 = por %p160, %p161
      %p163 = scmp.ne.s32.totalorder %s155, %s157
      %p164 = scmp.eq.s32.totalorder %s21, 1
      %p165 = por %p163, %p164
      %p166 = scmp.ne.s32.totalorder %s157, %s158
      %p167 = scmp.eq.s32.totalorder %s21, 0
      %p168 = por %p166, %p167
      %p169 = scmp.ne.s32.totalorder %s157, %s158
      %p170 = scmp.eq.s32.totalorder %s22, 1
      %p171 = por %p169, %p170
      %p173 = scmp.ne.s32.totalorder %s158, %s172
      %p174 = scmp.eq.s32.totalorder %s22, 0
      %p175 = por %p173, %p174
      %s176 = ssub.s32 %s16, %s23
      %p177 = scmp.eq.s32.totalorder %s176, 0
      %s179 = sadd.s32 %s178, 1
      %s180 = scalar_select %p177, %s178, %s179
      %p183 = pneg %p177
      %p184 = scmp.eq.s32.totalorder %s16, 1
      %p185 = por %p183, %p184
      %p186 = scmp.ne.s32.totalorder %s178, %s181
      %p187 = scmp.eq.s32.totalorder %s16, 0
      %p188 = por %p186, %p187
      %p189 = scmp.ne.s32.totalorder %s178, %s181
      %p190 = scmp.eq.s32.totalorder %s21, 1
      %p191 = por %p189, %p190
      %p192 = scmp.ne.s32.totalorder %s181, %s182
      %p193 = scmp.eq.s32.totalorder %s21, 0
      %p194 = por %p192, %p193
      %p195 = scmp.ne.s32.totalorder %s181, %s182
      %p196 = scmp.eq.s32.totalorder %s22, 1
      %p197 = por %p195, %p196
      %p199 = scmp.ne.s32.totalorder %s182, %s198
      %p200 = scmp.eq.s32.totalorder %s22, 0
      %p201 = por %p199, %p200
      %p202 = scmp.le.s32.totalorder 1, %s16
      %p203 = scmp.lt.s32.totalorder %s16, 3
      %p204 = pnand %p202, %p203
      %p205 = pneg %p204
      // Predicated region
      $region9: #{tpu_custom_call.1} parent=5 // pred_check
        _
      $region10: #{tpu_custom_call.1} parent=5 // pred_check_branch
        %207 = sbr.rel (%p204) target = $region12
      $region11: #{tpu_custom_call.1} parent=5 // pred_region
        %s208 = ssub.s32 %s16, 1
        // Predicated region
        $region13: #{tpu_custom_call.1} parent=11 // pred_check
          %p209 = pneg %p63
        $region14: #{tpu_custom_call.1} parent=11 // pred_check_branch
          %211 = sbr.rel (%p209) target = $region16
        $region15: #{tpu_custom_call.1} parent=11 // pred_region
          _
        $region16: #{tpu_custom_call.1} parent=11 // pred_fallthru
          _
        // Predicated region
        $region17: #{tpu_custom_call.1} parent=11 // pred_check
          %p212 = pneg %p84
        $region18: #{tpu_custom_call.1} parent=11 // pred_check_branch
          %214 = sbr.rel (%p212) target = $region20
        $region19: #{tpu_custom_call.1} parent=11 // pred_region
          _
        $region20: #{tpu_custom_call.1} parent=11 // pred_fallthru
          _
        // Predicated region
        $region21: #{tpu_custom_call.1} parent=11 // pred_check
          %p215 = pneg %p105
        $region22: #{tpu_custom_call.1} parent=11 // pred_check_branch
          %217 = sbr.rel (%p215) target = $region24
        $region23: #{tpu_custom_call.1} parent=11 // pred_region
          _
        $region24: #{tpu_custom_call.1} parent=11 // pred_fallthru
          _
        // Predicated region
        $region25: #{tpu_custom_call.1} parent=11 // pred_check
          %p218 = pneg %p126
        $region26: #{tpu_custom_call.1} parent=11 // pred_check_branch
          %220 = sbr.rel (%p218) target = $region28
        $region27: #{tpu_custom_call.1} parent=11 // pred_region
          _
        $region28: #{tpu_custom_call.1} parent=11 // pred_fallthru
          _
        // Predicated region
        $region29: #{tpu_custom_call.1} parent=11 // pred_check
          %p221 = pneg %p147
        $region30: #{tpu_custom_call.1} parent=11 // pred_check_branch
          %223 = sbr.rel (%p221) target = $region32
        $region31: #{tpu_custom_call.1} parent=11 // pred_region
          _
        $region32: #{tpu_custom_call.1} parent=11 // pred_fallthru
          _
        // Predicated region
        $region33: #{tpu_custom_call.1} parent=11 // pred_check
          %p224 = pneg %p168
        $region34: #{tpu_custom_call.1} parent=11 // pred_check_branch
          %226 = sbr.rel (%p224) target = $region36
        $region35: #{tpu_custom_call.1} parent=11 // pred_region
          _
        $region36: #{tpu_custom_call.1} parent=11 // pred_fallthru
          _
      $region12: #{tpu_custom_call.1} parent=5 // pred_fallthru
        _
      %p227 = scmp.lt.s32.totalorder %s16, 2
      // Predicated region
      $region37: #{tpu_custom_call.1} parent=5 // pred_check
        %p228 = pneg %p227
      $region38: #{tpu_custom_call.1} parent=5 // pred_check_branch
        %230 = sbr.rel (%p228) target = $region40
      $region39: #{tpu_custom_call.1} parent=5 // pred_region
        // Predicated region
        $region41: #{tpu_custom_call.1} parent=39 // pred_check
          %p231 = pneg %p36
        $region42: #{tpu_custom_call.1} parent=39 // pred_check_branch
          %233 = sbr.rel (%p231) target = $region44
        $region43: #{tpu_custom_call.1} parent=39 // pred_region
          %s234 = smul.u32 2, %s16
          %p235 = scmp.lt.s32.totalorder %s234, 3
          %s236 = scalar_select %p235, %s234, 3
          %s237 = smul.addr %s236, 54
          %s238 = smul.addr %s237, 4
          %s239 = scalar_lea.vmem %s0, %s238
          %s240 = smul.u32 2, %s16
        $region44: #{tpu_custom_call.1} parent=39 // pred_fallthru
          _
      $region40: #{tpu_custom_call.1} parent=5 // pred_fallthru
        _
      %p241 = scmp.le.s32.totalorder 1, %s16
      %p242 = scmp.lt.s32.totalorder %s16, 3
      %p243 = pnand %p241, %p242
      %p244 = pneg %p243
      // Predicated region
      $region45: #{tpu_custom_call.1} parent=5 // pred_check
        _
      $region46: #{tpu_custom_call.1} parent=5 // pred_check_branch
        %246 = sbr.rel (%p243) target = $region48
      $region47: #{tpu_custom_call.1} parent=5 // pred_region
        %s247 = ssub.s32 %s16, 1
        %s248 = smul.u32 2, %s21
        %p249 = scmp.lt.s32.totalorder %s248, 3
        %s250 = scalar_select %p249, %s248, 3
        %s251 = smul.addr %s250, 54
        %s252 = smul.addr %s251, 4
        %s253 = scalar_lea.vmem %s0, %s252
        %p254 = pneg %p42
        %p255 = pneg %p39
        %p256 = pneg %p63
        %p257 = pneg %p60
        %p258 = pneg %p84
        %p259 = pneg %p81
        %p260 = pneg %p105
        %p261 = pneg %p102
        %p262 = pneg %p126
        %p263 = pneg %p123
        %p264 = pneg %p147
        %p265 = pneg %p144
        %p266 = pneg %p168
        %p267 = pneg %p165
        %p268 = pneg %p194
        %p269 = pneg %p191
        %s270 = sand.u32 %s181, 1
        %s271 = scalar_lea.sflag [#allocation4], %s270
        %s272 = sand.u32 %s181, 1
        %s273 = smul.addr %s272, 256
        %s274 = scalar_lea.vmem [#allocation3], %s273
        %s275 = smul.u32 2, %s21
        %p276 = scmp.lt.s32.totalorder %s275, 3
        %s277 = scalar_select %p276, %s275, 3
        %s278 = smul.addr %s277, 54
        %s279 = smul.addr %s278, 4
        %s280 = scalar_lea.vmem %s0, %s279
        %s281 = smul.u32 2, %s21
        %s282 = smul.u32 2, %s21
        %v284 = vld [vmem:[%s280] sm:$0xf]
        %v285 = vld [vmem:[%s280 + $0x4] sm:$0xf]
        %v286 = vld [vmem:[%s280 + $0xc] sm:$0xf]
        %v287 = vld [vmem:[%s280 + $0x10] sm:$0xf]
        %v288 = vld [vmem:[%s280 + $0x18] sm:$0xf]
        %v289 = vld [vmem:[%s280 + $0x1c] sm:$0xf]
        %v290 = vld [vmem:[%s280 + $0x24] sm:$0xf]
        %v291 = vld [vmem:[%s280 + $0x28] sm:$0xf]
        %v292 = vld [vmem:[%s280 + $0x30] sm:$0xf]
        %v293 = vld [vmem:[%s280 + $0x34] sm:$0xf]
        %v294 = vld [vmem:[%s280 + $0x3c] sm:$0xf]
        %v295 = vld [vmem:[%s280 + $0x40] sm:$0xf]
        %v296 = vld [vmem:[%s280 + $0x48] sm:$0xf]
        %v297 = vld [vmem:[%s280 + $0x4c] sm:$0xf]
        %v298 = vld [vmem:[%s280 + $0x54] sm:$0xf]
        %v299 = vld [vmem:[%s280 + $0x58] sm:$0xf]
        %v300 = vld [vmem:[%s280 + $0x60] sm:$0xf]
        %v301 = vld [vmem:[%s280 + $0x64] sm:$0xf]
        %v302 = vld [vmem:[%s280 + $0x6c] sm:$0xf]
        %v303 = vld [vmem:[%s280 + $0x70] sm:$0xf]
        %v304 = vld [vmem:[%s280 + $0x78] sm:$0xf]
        %v305 = vld [vmem:[%s280 + $0x7c] sm:$0xf]
        %v306 = vld [vmem:[%s280 + $0x84] sm:$0xf]
        %v307 = vld [vmem:[%s280 + $0x88] sm:$0xf]
        %v308 = vld [vmem:[%s280 + $0x90] sm:$0xf]
        %v309 = vld [vmem:[%s280 + $0x94] sm:$0xf]
        %v310 = vld [vmem:[%s280 + $0x9c] sm:$0xf]
        %v311 = vld [vmem:[%s280 + $0xa0] sm:$0xf]
        %v312 = vld [vmem:[%s280 + $0xa8] sm:$0xf]
        %v313 = vld [vmem:[%s280 + $0xac] sm:$0xf]
        %v314 = vld [vmem:[%s280 + $0xb4] sm:$0xf]
        %v315 = vld [vmem:[%s280 + $0xb8] sm:$0xf]
        %v316 = vld [vmem:[%s280 + $0xc0] sm:$0xf]
        %v317 = vld [vmem:[%s280 + $0xc4] sm:$0xf]
        %v318 = vld [vmem:[%s280 + $0xcc] sm:$0xf]
        %v319 = vld [vmem:[%s280 + $0xd0] sm:$0xf]
        %v320 = vld [vmem:[%s280 + $0xd8] sm:$0xf]
        %v321 = vld [vmem:[%s280 + $0xdc] sm:$0xf]
        %v322 = vld [vmem:[%s280 + $0xe4] sm:$0xf]
        %v323 = vld [vmem:[%s280 + $0xe8] sm:$0xf]
        %v324 = vld [vmem:[%s280 + $0xf0] sm:$0xf]
        %v325 = vld [vmem:[%s280 + $0xf4] sm:$0xf]
        %v326 = vld [vmem:[%s280 + $0xfc] sm:$0xf]
        %v327 = vld [vmem:[%s280 + $0x100] sm:$0xf]
        %v328 = vld [vmem:[%s280 + $0x108] sm:$0xf]
        %v329 = vld [vmem:[%s280 + $0x10c] sm:$0xf]
        %v330 = vld [vmem:[%s280 + $0x114] sm:$0xf]
        %v331 = vld [vmem:[%s280 + $0x118] sm:$0xf]
        %v332 = vld [vmem:[%s280 + $0x120] sm:$0xf]
        %v333 = vld [vmem:[%s280 + $0x124] sm:$0xf]
        %v334 = vld [vmem:[%s280 + $0x12c] sm:$0xf]
        %v335 = vld [vmem:[%s280 + $0x130] sm:$0xf]
        %v336 = vld [vmem:[%s280 + $0x138] sm:$0xf]
        %v337 = vld [vmem:[%s280 + $0x13c] sm:$0xf]
        %v338 = vld [vmem:[%s280 + $0x144] sm:$0xf]
        %v339 = vld [vmem:[%s280 + $0x148] sm:$0xf]
        %v340 = vld [vmem:[%s280 + $0x150] sm:$0xf]
        %v341 = vld [vmem:[%s280 + $0x154] sm:$0xf]
        %v342 = vld [vmem:[%s280 + $0x15c] sm:$0xf]
        %v343 = vld [vmem:[%s280 + $0x160] sm:$0xf]
        %v344 = vld [vmem:[%s280 + $0x168] sm:$0xf]
        %v345 = vld [vmem:[%s280 + $0x16c] sm:$0xf]
        %v346 = vld [vmem:[%s280 + $0x174] sm:$0xf]
        %v347 = vld [vmem:[%s280 + $0x178] sm:$0xf]
        %v348 = vld [vmem:[%s280 + $0x180] sm:$0xf]
        %v349 = vld [vmem:[%s280 + $0x184] sm:$0xf]
        %v350 = vld [vmem:[%s280 + $0x18c] sm:$0xf]
        %v351 = vld [vmem:[%s280 + $0x190] sm:$0xf]
        %v352 = vld [vmem:[%s280 + $0x198] sm:$0xf]
        %v353 = vld [vmem:[%s280 + $0x19c] sm:$0xf]
        %v354 = vld [vmem:[%s280 + $0x1a4] sm:$0xf]
        %v355 = vld [vmem:[%s280 + $0x1a8] sm:$0xf]
        %v356 = vld [vmem:[%s280 + $0x8] sm:$0x1]
        %v357 = vld [vmem:[%s280 + $0x14] sm:$0x1]
        %v358 = vld [vmem:[%s280 + $0x20] sm:$0x1]
        %v359 = vld [vmem:[%s280 + $0x2c] sm:$0x1]
        %v360 = vld [vmem:[%s280 + $0x38] sm:$0x1]
        %v361 = vld [vmem:[%s280 + $0x44] sm:$0x1]
        %v362 = vld [vmem:[%s280 + $0x50] sm:$0x1]
        %v363 = vld [vmem:[%s280 + $0x5c] sm:$0x1]
        %v364 = vld [vmem:[%s280 + $0x68] sm:$0x1]
        %v365 = vld [vmem:[%s280 + $0x74] sm:$0x1]
        %v366 = vld [vmem:[%s280 + $0x80] sm:$0x1]
        %v367 = vld [vmem:[%s280 + $0x8c] sm:$0x1]
        %v368 = vld [vmem:[%s280 + $0x98] sm:$0x1]
        %v369 = vld [vmem:[%s280 + $0xa4] sm:$0x1]
        %v370 = vld [vmem:[%s280 + $0xb0] sm:$0x1]
        %v371 = vld [vmem:[%s280 + $0xbc] sm:$0x1]
        %v372 = vld [vmem:[%s280 + $0xc8] sm:$0x1]
        %v373 = vld [vmem:[%s280 + $0xd4] sm:$0x1]
        %v374 = vld [vmem:[%s280 + $0xe0] sm:$0x1]
        %v375 = vld [vmem:[%s280 + $0xec] sm:$0x1]
        %v376 = vld [vmem:[%s280 + $0xf8] sm:$0x1]
        %v377 = vld [vmem:[%s280 + $0x104] sm:$0x1]
        %v378 = vld [vmem:[%s280 + $0x110] sm:$0x1]
        %v379 = vld [vmem:[%s280 + $0x11c] sm:$0x1]
        %v380 = vld [vmem:[%s280 + $0x128] sm:$0x1]
        %v381 = vld [vmem:[%s280 + $0x134] sm:$0x1]
        %v382 = vld [vmem:[%s280 + $0x140] sm:$0x1]
        %v383 = vld [vmem:[%s280 + $0x14c] sm:$0x1]
        %v384 = vld [vmem:[%s280 + $0x158] sm:$0x1]
        %v385 = vld [vmem:[%s280 + $0x164] sm:$0x1]
        %v386 = vld [vmem:[%s280 + $0x170] sm:$0x1]
        %v387 = vld [vmem:[%s280 + $0x17c] sm:$0x1]
        %v388 = vld [vmem:[%s280 + $0x188] sm:$0x1]
        %v389 = vld [vmem:[%s280 + $0x194] sm:$0x1]
        %v390 = vld [vmem:[%s280 + $0x1a0] sm:$0x1]
        %v391 = vld [vmem:[%s280 + $0x1ac] sm:$0x1]
        %v392 = vld [vmem:[%s280] sm:$0xe]
        %v393 = vld [vmem:[%s280 + $0xc] sm:$0xe]
        %v394 = vld [vmem:[%s280 + $0x18] sm:$0xe]
        %v395 = vld [vmem:[%s280 + $0x24] sm:$0xe]
        %v396 = vld [vmem:[%s280 + $0x30] sm:$0xe]
        %v397 = vld [vmem:[%s280 + $0x3c] sm:$0xe]
        %v398 = vld [vmem:[%s280 + $0x48] sm:$0xe]
        %v399 = vld [vmem:[%s280 + $0x54] sm:$0xe]
        %v400 = vld [vmem:[%s280 + $0x60] sm:$0xe]
        %v401 = vld [vmem:[%s280 + $0x6c] sm:$0xe]
        %v402 = vld [vmem:[%s280 + $0x78] sm:$0xe]
        %v403 = vld [vmem:[%s280 + $0x84] sm:$0xe]
        %v404 = vld [vmem:[%s280 + $0x90] sm:$0xe]
        %v405 = vld [vmem:[%s280 + $0x9c] sm:$0xe]
        %v406 = vld [vmem:[%s280 + $0xa8] sm:$0xe]
        %v407 = vld [vmem:[%s280 + $0xb4] sm:$0xe]
        %v408 = vld [vmem:[%s280 + $0xc0] sm:$0xe]
        %v409 = vld [vmem:[%s280 + $0xcc] sm:$0xe]
        %v410 = vld [vmem:[%s280 + $0xd8] sm:$0xe]
        %v411 = vld [vmem:[%s280 + $0xe4] sm:$0xe]
        %v412 = vld [vmem:[%s280 + $0xf0] sm:$0xe]
        %v413 = vld [vmem:[%s280 + $0xfc] sm:$0xe]
        %v414 = vld [vmem:[%s280 + $0x108] sm:$0xe]
        %v415 = vld [vmem:[%s280 + $0x114] sm:$0xe]
        %v416 = vld [vmem:[%s280 + $0x120] sm:$0xe]
        %v417 = vld [vmem:[%s280 + $0x12c] sm:$0xe]
        %v418 = vld [vmem:[%s280 + $0x138] sm:$0xe]
        %v419 = vld [vmem:[%s280 + $0x144] sm:$0xe]
        %v420 = vld [vmem:[%s280 + $0x150] sm:$0xe]
        %v421 = vld [vmem:[%s280 + $0x15c] sm:$0xe]
        %v422 = vld [vmem:[%s280 + $0x168] sm:$0xe]
        %v423 = vld [vmem:[%s280 + $0x174] sm:$0xe]
        %v424 = vld [vmem:[%s280 + $0x180] sm:$0xe]
        %v425 = vld [vmem:[%s280 + $0x18c] sm:$0xe]
        %v426 = vld [vmem:[%s280 + $0x198] sm:$0xe]
        %v427 = vld [vmem:[%s280 + $0x1a4] sm:$0xe]
        %v428 = vld [vmem:[%s1] sm:$0xf]
        %v429 = vld [vmem:[%s1 + $0x4] sm:$0xf]
        %v430 = vld [vmem:[%s1 + $0x8] sm:$0xf]
        %v431 = vld [vmem:[%s1 + $0xc] sm:$0xf]
        %v432 = vld [vmem:[%s1 + $0x10] sm:$0xf]
        %v433 = vld [vmem:[%s1 + $0x14] sm:$0xf]
        %v434 = vld [vmem:[%s1 + $0x18] sm:$0xf]
        %v435 = vld [vmem:[%s1 + $0x1c] sm:$0xf]
        %v436 = vld [vmem:[%s1 + $0x20] sm:$0xf]
        %v437 = vld [vmem:[%s1 + $0x24] sm:$0xf]
        %v438 = vld [vmem:[%s1 + $0x28] sm:$0xf]
        %v439 = vld [vmem:[%s1 + $0x2c] sm:$0xf]
        %v440 = vld [vmem:[%s1 + $0x30] sm:$0xf]
        %v441 = vld [vmem:[%s1 + $0x34] sm:$0xf]
        %v442 = vld [vmem:[%s1 + $0x38] sm:$0xf]
        %v443 = vld [vmem:[%s1 + $0x3c] sm:$0xf]
        %vm444 = vsmask.f32 3328
        %vm445 = vsmask.f32 7440
        %vm446 = vmor %vm444, %vm445
        %v448 = vshrl.u32 %v284, 16
        %v450 = vrot.slane %v448, 4
        %v451 = vshll.u32 %v284, 16
        %v453 = vrot.slane %v451, 5
        %v454 = vor.u32 %v450, %v453
        %v455 = vrot.slane %v454, 4
        %v457 = vshll.u32 %v285, 16
        %v459 = vrot.slane %v457, 5
        %v460 = vsel %vm446, %v455, %v459
        %v461 = vshrl.u32 %v285, 16
        %v463 = vrot.slane %v461, 4
        %v464 = vor.u32 %v463, %v459
        %v465 = vrot.slane %v464, 4
        %v467 = vshll.u32 %v356, 16
        %v469 = vrot.slane %v467, 5
        %v470 = vsel %vm446, %v465, %v469
        %v472 = vshrl.u32 %v286, 16
        %v474 = vrot.slane %v472, 4
        %v475 = vshll.u32 %v286, 16
        %v477 = vrot.slane %v475, 5
        %v478 = vor.u32 %v474, %v477
        %v479 = vrot.slane %v478, 4
        %v481 = vshll.u32 %v287, 16
        %v483 = vrot.slane %v481, 5
        %v484 = vsel %vm446, %v479, %v483
        %v485 = vshrl.u32 %v287, 16
        %v487 = vrot.slane %v485, 4
        %v488 = vor.u32 %v487, %v483
        %v489 = vrot.slane %v488, 4
        %v491 = vshll.u32 %v357, 16
        %v493 = vrot.slane %v491, 5
        %v494 = vsel %vm446, %v489, %v493
        %v496 = vshrl.u32 %v288, 16
        %v498 = vrot.slane %v496, 4
        %v499 = vshll.u32 %v288, 16
        %v501 = vrot.slane %v499, 5
        %v502 = vor.u32 %v498, %v501
        %v503 = vrot.slane %v502, 4
        %v505 = vshll.u32 %v289, 16
        %v507 = vrot.slane %v505, 5
        %v508 = vsel %vm446, %v503, %v507
        %v509 = vshrl.u32 %v289, 16
        %v511 = vrot.slane %v509, 4
        %v512 = vor.u32 %v511, %v507
        %v513 = vrot.slane %v512, 4
        %v515 = vshll.u32 %v358, 16
        %v517 = vrot.slane %v515, 5
        %v518 = vsel %vm446, %v513, %v517
        %v520 = vshrl.u32 %v290, 16
        %v522 = vrot.slane %v520, 4
        %v523 = vshll.u32 %v290, 16
        %v525 = vrot.slane %v523, 5
        %v526 = vor.u32 %v522, %v525
        %v527 = vrot.slane %v526, 4
        %v529 = vshll.u32 %v291, 16
        %v531 = vrot.slane %v529, 5
        %v532 = vsel %vm446, %v527, %v531
        %v533 = vshrl.u32 %v291, 16
        %v535 = vrot.slane %v533, 4
        %v536 = vor.u32 %v535, %v531
        %v537 = vrot.slane %v536, 4
        %v539 = vshll.u32 %v359, 16
        %v541 = vrot.slane %v539, 5
        %v542 = vsel %vm446, %v537, %v541
        %v544 = vshrl.u32 %v292, 16
        %v546 = vrot.slane %v544, 4
        %v547 = vshll.u32 %v292, 16
        %v549 = vrot.slane %v547, 5
        %v550 = vor.u32 %v546, %v549
        %v551 = vrot.slane %v550, 4
        %v553 = vshll.u32 %v293, 16
        %v555 = vrot.slane %v553, 5
        %v556 = vsel %vm446, %v551, %v555
        %v557 = vshrl.u32 %v293, 16
        %v559 = vrot.slane %v557, 4
        %v560 = vor.u32 %v559, %v555
        %v561 = vrot.slane %v560, 4
        %v563 = vshll.u32 %v360, 16
        %v565 = vrot.slane %v563, 5
        %v566 = vsel %vm446, %v561, %v565
        %v568 = vshrl.u32 %v294, 16
        %v570 = vrot.slane %v568, 4
        %v571 = vshll.u32 %v294, 16
        %v573 = vrot.slane %v571, 5
        %v574 = vor.u32 %v570, %v573
        %v575 = vrot.slane %v574, 4
        %v577 = vshll.u32 %v295, 16
        %v579 = vrot.slane %v577, 5
        %v580 = vsel %vm446, %v575, %v579
        %v581 = vshrl.u32 %v295, 16
        %v583 = vrot.slane %v581, 4
        %v584 = vor.u32 %v583, %v579
        %v585 = vrot.slane %v584, 4
        %v587 = vshll.u32 %v361, 16
        %v589 = vrot.slane %v587, 5
        %v590 = vsel %vm446, %v585, %v589
        %v592 = vshrl.u32 %v296, 16
        %v594 = vrot.slane %v592, 4
        %v595 = vshll.u32 %v296, 16
        %v597 = vrot.slane %v595, 5
        %v598 = vor.u32 %v594, %v597
        %v599 = vrot.slane %v598, 4
        %v601 = vshll.u32 %v297, 16
        %v603 = vrot.slane %v601, 5
        %v604 = vsel %vm446, %v599, %v603
        %v605 = vshrl.u32 %v297, 16
        %v607 = vrot.slane %v605, 4
        %v608 = vor.u32 %v607, %v603
        %v609 = vrot.slane %v608, 4
        %v611 = vshll.u32 %v362, 16
        %v613 = vrot.slane %v611, 5
        %v614 = vsel %vm446, %v609, %v613
        %v616 = vshrl.u32 %v298, 16
        %v618 = vrot.slane %v616, 4
        %v619 = vshll.u32 %v298, 16
        %v621 = vrot.slane %v619, 5
        %v622 = vor.u32 %v618, %v621
        %v623 = vrot.slane %v622, 4
        %v625 = vshll.u32 %v299, 16
        %v627 = vrot.slane %v625, 5
        %v628 = vsel %vm446, %v623, %v627
        %v629 = vshrl.u32 %v299, 16
        %v631 = vrot.slane %v629, 4
        %v632 = vor.u32 %v631, %v627
        %v633 = vrot.slane %v632, 4
        %v635 = vshll.u32 %v363, 16
        %v637 = vrot.slane %v635, 5
        %v638 = vsel %vm446, %v633, %v637
        %v640 = vshrl.u32 %v300, 16
        %v642 = vrot.slane %v640, 4
        %v643 = vshll.u32 %v300, 16
        %v645 = vrot.slane %v643, 5
        %v646 = vor.u32 %v642, %v645
        %v647 = vrot.slane %v646, 4
        %v649 = vshll.u32 %v301, 16
        %v651 = vrot.slane %v649, 5
        %v652 = vsel %vm446, %v647, %v651
        %v653 = vshrl.u32 %v301, 16
        %v655 = vrot.slane %v653, 4
        %v656 = vor.u32 %v655, %v651
        %v657 = vrot.slane %v656, 4
        %v659 = vshll.u32 %v364, 16
        %v661 = vrot.slane %v659, 5
        %v662 = vsel %vm446, %v657, %v661
        %v664 = vshrl.u32 %v302, 16
        %v666 = vrot.slane %v664, 4
        %v667 = vshll.u32 %v302, 16
        %v669 = vrot.slane %v667, 5
        %v670 = vor.u32 %v666, %v669
        %v671 = vrot.slane %v670, 4
        %v673 = vshll.u32 %v303, 16
        %v675 = vrot.slane %v673, 5
        %v676 = vsel %vm446, %v671, %v675
        %v677 = vshrl.u32 %v303, 16
        %v679 = vrot.slane %v677, 4
        %v680 = vor.u32 %v679, %v675
        %v681 = vrot.slane %v680, 4
        %v683 = vshll.u32 %v365, 16
        %v685 = vrot.slane %v683, 5
        %v686 = vsel %vm446, %v681, %v685
        %v688 = vshrl.u32 %v304, 16
        %v690 = vrot.slane %v688, 4
        %v691 = vshll.u32 %v304, 16
        %v693 = vrot.slane %v691, 5
        %v694 = vor.u32 %v690, %v693
        %v695 = vrot.slane %v694, 4
        %v697 = vshll.u32 %v305, 16
        %v699 = vrot.slane %v697, 5
        %v700 = vsel %vm446, %v695, %v699
        %v701 = vshrl.u32 %v305, 16
        %v703 = vrot.slane %v701, 4
        %v704 = vor.u32 %v703, %v699
        %v705 = vrot.slane %v704, 4
        %v707 = vshll.u32 %v366, 16
        %v709 = vrot.slane %v707, 5
        %v710 = vsel %vm446, %v705, %v709
        %v712 = vshrl.u32 %v306, 16
        %v714 = vrot.slane %v712, 4
        %v715 = vshll.u32 %v306, 16
        %v717 = vrot.slane %v715, 5
        %v718 = vor.u32 %v714, %v717
        %v719 = vrot.slane %v718, 4
        %v721 = vshll.u32 %v307, 16
        %v723 = vrot.slane %v721, 5
        %v724 = vsel %vm446, %v719, %v723
        %v725 = vshrl.u32 %v307, 16
        %v727 = vrot.slane %v725, 4
        %v728 = vor.u32 %v727, %v723
        %v729 = vrot.slane %v728, 4
        %v731 = vshll.u32 %v367, 16
        %v733 = vrot.slane %v731, 5
        %v734 = vsel %vm446, %v729, %v733
        %v736 = vshrl.u32 %v308, 16
        %v738 = vrot.slane %v736, 4
        %v739 = vshll.u32 %v308, 16
        %v741 = vrot.slane %v739, 5
        %v742 = vor.u32 %v738, %v741
        %v743 = vrot.slane %v742, 4
        %v745 = vshll.u32 %v309, 16
        %v747 = vrot.slane %v745, 5
        %v748 = vsel %vm446, %v743, %v747
        %v749 = vshrl.u32 %v309, 16
        %v751 = vrot.slane %v749, 4
        %v752 = vor.u32 %v751, %v747
        %v753 = vrot.slane %v752, 4
        %v755 = vshll.u32 %v368, 16
        %v757 = vrot.slane %v755, 5
        %v758 = vsel %vm446, %v753, %v757
        %v760 = vshrl.u32 %v310, 16
        %v762 = vrot.slane %v760, 4
        %v763 = vshll.u32 %v310, 16
        %v765 = vrot.slane %v763, 5
        %v766 = vor.u32 %v762, %v765
        %v767 = vrot.slane %v766, 4
        %v769 = vshll.u32 %v311, 16
        %v771 = vrot.slane %v769, 5
        %v772 = vsel %vm446, %v767, %v771
        %v773 = vshrl.u32 %v311, 16
        %v775 = vrot.slane %v773, 4
        %v776 = vor.u32 %v775, %v771
        %v777 = vrot.slane %v776, 4
        %v779 = vshll.u32 %v369, 16
        %v781 = vrot.slane %v779, 5
        %v782 = vsel %vm446, %v777, %v781
        %v784 = vshrl.u32 %v312, 16
        %v786 = vrot.slane %v784, 4
        %v787 = vshll.u32 %v312, 16
        %v789 = vrot.slane %v787, 5
        %v790 = vor.u32 %v786, %v789
        %v791 = vrot.slane %v790, 4
        %v793 = vshll.u32 %v313, 16
        %v795 = vrot.slane %v793, 5
        %v796 = vsel %vm446, %v791, %v795
        %v797 = vshrl.u32 %v313, 16
        %v799 = vrot.slane %v797, 4
        %v800 = vor.u32 %v799, %v795
        %v801 = vrot.slane %v800, 4
        %v803 = vshll.u32 %v370, 16
        %v805 = vrot.slane %v803, 5
        %v806 = vsel %vm446, %v801, %v805
        %v808 = vshrl.u32 %v314, 16
        %v810 = vrot.slane %v808, 4
        %v811 = vshll.u32 %v314, 16
        %v813 = vrot.slane %v811, 5
        %v814 = vor.u32 %v810, %v813
        %v815 = vrot.slane %v814, 4
        %v817 = vshll.u32 %v315, 16
        %v819 = vrot.slane %v817, 5
        %v820 = vsel %vm446, %v815, %v819
        %v821 = vshrl.u32 %v315, 16
        %v823 = vrot.slane %v821, 4
        %v824 = vor.u32 %v823, %v819
        %v825 = vrot.slane %v824, 4
        %v827 = vshll.u32 %v371, 16
        %v829 = vrot.slane %v827, 5
        %v830 = vsel %vm446, %v825, %v829
        %v832 = vshrl.u32 %v320, 16
        %v834 = vrot.slane %v832, 4
        %v835 = vshll.u32 %v320, 16
        %v837 = vrot.slane %v835, 5
        %v838 = vor.u32 %v834, %v837
        %v839 = vrot.slane %v838, 4
        %v841 = vshll.u32 %v321, 16
        %v843 = vrot.slane %v841, 5
        %v844 = vsel %vm446, %v839, %v843
        %v845 = vshrl.u32 %v321, 16
        %v847 = vrot.slane %v845, 4
        %v848 = vor.u32 %v847, %v843
        %v849 = vrot.slane %v848, 4
        %v851 = vshll.u32 %v374, 16
        %v853 = vrot.slane %v851, 5
        %v854 = vsel %vm446, %v849, %v853
        %v856 = vshrl.u32 %v322, 16
        %v858 = vrot.slane %v856, 4
        %v859 = vshll.u32 %v322, 16
        %v861 = vrot.slane %v859, 5
        %v862 = vor.u32 %v858, %v861
        %v863 = vrot.slane %v862, 4
        %v865 = vshll.u32 %v323, 16
        %v867 = vrot.slane %v865, 5
        %v868 = vsel %vm446, %v863, %v867
        %v869 = vshrl.u32 %v323, 16
        %v871 = vrot.slane %v869, 4
        %v872 = vor.u32 %v871, %v867
        %v873 = vrot.slane %v872, 4
        %v875 = vshll.u32 %v375, 16
        %v877 = vrot.slane %v875, 5
        %v878 = vsel %vm446, %v873, %v877
        %v880 = vshrl.u32 %v324, 16
        %v882 = vrot.slane %v880, 4
        %v883 = vshll.u32 %v324, 16
        %v885 = vrot.slane %v883, 5
        %v886 = vor.u32 %v882, %v885
        %v887 = vrot.slane %v886, 4
        %v889 = vshll.u32 %v325, 16
        %v891 = vrot.slane %v889, 5
        %v892 = vsel %vm446, %v887, %v891
        %v893 = vshrl.u32 %v325, 16
        %v895 = vrot.slane %v893, 4
        %v896 = vor.u32 %v895, %v891
        %v897 = vrot.slane %v896, 4
        %v899 = vshll.u32 %v376, 16
        %v901 = vrot.slane %v899, 5
        %v902 = vsel %vm446, %v897, %v901
        %v904 = vshrl.u32 %v326, 16
        %v906 = vrot.slane %v904, 4
        %v907 = vshll.u32 %v326, 16
        %v909 = vrot.slane %v907, 5
        %v910 = vor.u32 %v906, %v909
        %v911 = vrot.slane %v910, 4
        %v913 = vshll.u32 %v327, 16
        %v915 = vrot.slane %v913, 5
        %v916 = vsel %vm446, %v911, %v915
        %v917 = vshrl.u32 %v327, 16
        %v919 = vrot.slane %v917, 4
        %v920 = vor.u32 %v919, %v915
        %v921 = vrot.slane %v920, 4
        %v923 = vshll.u32 %v377, 16
        %v925 = vrot.slane %v923, 5
        %v926 = vsel %vm446, %v921, %v925
        %v928 = vshrl.u32 %v328, 16
        %v930 = vrot.slane %v928, 4
        %v931 = vshll.u32 %v328, 16
        %v933 = vrot.slane %v931, 5
        %v934 = vor.u32 %v930, %v933
        %v935 = vrot.slane %v934, 4
        %v937 = vshll.u32 %v329, 16
        %v939 = vrot.slane %v937, 5
        %v940 = vsel %vm446, %v935, %v939
        %v941 = vshrl.u32 %v329, 16
        %v943 = vrot.slane %v941, 4
        %v944 = vor.u32 %v943, %v939
        %v945 = vrot.slane %v944, 4
        %v947 = vshll.u32 %v378, 16
        %v949 = vrot.slane %v947, 5
        %v950 = vsel %vm446, %v945, %v949
        %v952 = vshrl.u32 %v330, 16
        %v954 = vrot.slane %v952, 4
        %v955 = vshll.u32 %v330, 16
        %v957 = vrot.slane %v955, 5
        %v958 = vor.u32 %v954, %v957
        %v959 = vrot.slane %v958, 4
        %v961 = vshll.u32 %v331, 16
        %v963 = vrot.slane %v961, 5
        %v964 = vsel %vm446, %v959, %v963
        %v965 = vshrl.u32 %v331, 16
        %v967 = vrot.slane %v965, 4
        %v968 = vor.u32 %v967, %v963
        %v969 = vrot.slane %v968, 4
        %v971 = vshll.u32 %v379, 16
        %v973 = vrot.slane %v971, 5
        %v974 = vsel %vm446, %v969, %v973
        %v976 = vshrl.u32 %v332, 16
        %v978 = vrot.slane %v976, 4
        %v979 = vshll.u32 %v332, 16
        %v981 = vrot.slane %v979, 5
        %v982 = vor.u32 %v978, %v981
        %v983 = vrot.slane %v982, 4
        %v985 = vshll.u32 %v333, 16
        %v987 = vrot.slane %v985, 5
        %v988 = vsel %vm446, %v983, %v987
        %v989 = vshrl.u32 %v333, 16
        %v991 = vrot.slane %v989, 4
        %v992 = vor.u32 %v991, %v987
        %v993 = vrot.slane %v992, 4
        %v995 = vshll.u32 %v380, 16
        %v997 = vrot.slane %v995, 5
        %v998 = vsel %vm446, %v993, %v997
        %v1000 = vshrl.u32 %v334, 16
        %v1002 = vrot.slane %v1000, 4
        %v1003 = vshll.u32 %v334, 16
        %v1005 = vrot.slane %v1003, 5
        %v1006 = vor.u32 %v1002, %v1005
        %v1007 = vrot.slane %v1006, 4
        %v1009 = vshll.u32 %v335, 16
        %v1011 = vrot.slane %v1009, 5
        %v1012 = vsel %vm446, %v1007, %v1011
        %v1013 = vshrl.u32 %v335, 16
        %v1015 = vrot.slane %v1013, 4
        %v1016 = vor.u32 %v1015, %v1011
        %v1017 = vrot.slane %v1016, 4
        %v1019 = vshll.u32 %v381, 16
        %v1021 = vrot.slane %v1019, 5
        %v1022 = vsel %vm446, %v1017, %v1021
        %v1024 = vshrl.u32 %v336, 16
        %v1026 = vrot.slane %v1024, 4
        %v1027 = vshll.u32 %v336, 16
        %v1029 = vrot.slane %v1027, 5
        %v1030 = vor.u32 %v1026, %v1029
        %v1031 = vrot.slane %v1030, 4
        %v1033 = vshll.u32 %v337, 16
        %v1035 = vrot.slane %v1033, 5
        %v1036 = vsel %vm446, %v1031, %v1035
        %v1037 = vshrl.u32 %v337, 16
        %v1039 = vrot.slane %v1037, 4
        %v1040 = vor.u32 %v1039, %v1035
        %v1041 = vrot.slane %v1040, 4
        %v1043 = vshll.u32 %v382, 16
        %v1045 = vrot.slane %v1043, 5
        %v1046 = vsel %vm446, %v1041, %v1045
        %v1048 = vshrl.u32 %v338, 16
        %v1050 = vrot.slane %v1048, 4
        %v1051 = vshll.u32 %v338, 16
        %v1053 = vrot.slane %v1051, 5
        %v1054 = vor.u32 %v1050, %v1053
        %v1055 = vrot.slane %v1054, 4
        %v1057 = vshll.u32 %v339, 16
        %v1059 = vrot.slane %v1057, 5
        %v1060 = vsel %vm446, %v1055, %v1059
        %v1061 = vshrl.u32 %v339, 16
        %v1063 = vrot.slane %v1061, 4
        %v1064 = vor.u32 %v1063, %v1059
        %v1065 = vrot.slane %v1064, 4
        %v1067 = vshll.u32 %v383, 16
        %v1069 = vrot.slane %v1067, 5
        %v1070 = vsel %vm446, %v1065, %v1069
        %v1072 = vshrl.u32 %v340, 16
        %v1074 = vrot.slane %v1072, 4
        %v1075 = vshll.u32 %v340, 16
        %v1077 = vrot.slane %v1075, 5
        %v1078 = vor.u32 %v1074, %v1077
        %v1079 = vrot.slane %v1078, 4
        %v1081 = vshll.u32 %v341, 16
        %v1083 = vrot.slane %v1081, 5
        %v1084 = vsel %vm446, %v1079, %v1083
        %v1085 = vshrl.u32 %v341, 16
        %v1087 = vrot.slane %v1085, 4
        %v1088 = vor.u32 %v1087, %v1083
        %v1089 = vrot.slane %v1088, 4
        %v1091 = vshll.u32 %v384, 16
        %v1093 = vrot.slane %v1091, 5
        %v1094 = vsel %vm446, %v1089, %v1093
        %v1096 = vshrl.u32 %v342, 16
        %v1098 = vrot.slane %v1096, 4
        %v1099 = vshll.u32 %v342, 16
        %v1101 = vrot.slane %v1099, 5
        %v1102 = vor.u32 %v1098, %v1101
        %v1103 = vrot.slane %v1102, 4
        %v1105 = vshll.u32 %v343, 16
        %v1107 = vrot.slane %v1105, 5
        %v1108 = vsel %vm446, %v1103, %v1107
        %v1109 = vshrl.u32 %v343, 16
        %v1111 = vrot.slane %v1109, 4
        %v1112 = vor.u32 %v1111, %v1107
        %v1113 = vrot.slane %v1112, 4
        %v1115 = vshll.u32 %v385, 16
        %v1117 = vrot.slane %v1115, 5
        %v1118 = vsel %vm446, %v1113, %v1117
        %v1120 = vshrl.u32 %v344, 16
        %v1122 = vrot.slane %v1120, 4
        %v1123 = vshll.u32 %v344, 16
        %v1125 = vrot.slane %v1123, 5
        %v1126 = vor.u32 %v1122, %v1125
        %v1127 = vrot.slane %v1126, 4
        %v1129 = vshll.u32 %v345, 16
        %v1131 = vrot.slane %v1129, 5
        %v1132 = vsel %vm446, %v1127, %v1131
        %v1133 = vshrl.u32 %v345, 16
        %v1135 = vrot.slane %v1133, 4
        %v1136 = vor.u32 %v1135, %v1131
        %v1137 = vrot.slane %v1136, 4
        %v1139 = vshll.u32 %v386, 16
        %v1141 = vrot.slane %v1139, 5
        %v1142 = vsel %vm446, %v1137, %v1141
        %v1144 = vshrl.u32 %v346, 16
        %v1146 = vrot.slane %v1144, 4
        %v1147 = vshll.u32 %v346, 16
        %v1149 = vrot.slane %v1147, 5
        %v1150 = vor.u32 %v1146, %v1149
        %v1151 = vrot.slane %v1150, 4
        %v1153 = vshll.u32 %v347, 16
        %v1155 = vrot.slane %v1153, 5
        %v1156 = vsel %vm446, %v1151, %v1155
        %v1157 = vshrl.u32 %v347, 16
        %v1159 = vrot.slane %v1157, 4
        %v1160 = vor.u32 %v1159, %v1155
        %v1161 = vrot.slane %v1160, 4
        %v1163 = vshll.u32 %v387, 16
        %v1165 = vrot.slane %v1163, 5
        %v1166 = vsel %vm446, %v1161, %v1165
        %v1168 = vshrl.u32 %v348, 16
        %v1170 = vrot.slane %v1168, 4
        %v1171 = vshll.u32 %v348, 16
        %v1173 = vrot.slane %v1171, 5
        %v1174 = vor.u32 %v1170, %v1173
        %v1175 = vrot.slane %v1174, 4
        %v1177 = vshll.u32 %v349, 16
        %v1179 = vrot.slane %v1177, 5
        %v1180 = vsel %vm446, %v1175, %v1179
        %v1181 = vshrl.u32 %v349, 16
        %v1183 = vrot.slane %v1181, 4
        %v1184 = vor.u32 %v1183, %v1179
        %v1185 = vrot.slane %v1184, 4
        %v1187 = vshll.u32 %v388, 16
        %v1189 = vrot.slane %v1187, 5
        %v1190 = vsel %vm446, %v1185, %v1189
        %v1192 = vshrl.u32 %v350, 16
        %v1194 = vrot.slane %v1192, 4
        %v1195 = vshll.u32 %v350, 16
        %v1197 = vrot.slane %v1195, 5
        %v1198 = vor.u32 %v1194, %v1197
        %v1199 = vrot.slane %v1198, 4
        %v1201 = vshll.u32 %v351, 16
        %v1203 = vrot.slane %v1201, 5
        %v1204 = vsel %vm446, %v1199, %v1203
        %v1205 = vshrl.u32 %v351, 16
        %v1207 = vrot.slane %v1205, 4
        %v1208 = vor.u32 %v1207, %v1203
        %v1209 = vrot.slane %v1208, 4
        %v1211 = vshll.u32 %v389, 16
        %v1213 = vrot.slane %v1211, 5
        %v1214 = vsel %vm446, %v1209, %v1213
        %s1215 = scalar_lea.vmem %s1, 64
        %v1216 = vld [vmem:[%s1215] sm:$0xf]
        %v1217 = vld [vmem:[%s1215 + $0x4] sm:$0xf]
        %v1218 = vld [vmem:[%s1215 + $0x8] sm:$0xf]
        %v1219 = vld [vmem:[%s1215 + $0xc] sm:$0xf]
        %v1220 = vld [vmem:[%s1215 + $0x10] sm:$0xf]
        %v1221 = vld [vmem:[%s1215 + $0x14] sm:$0xf]
        %v1222 = vld [vmem:[%s1215 + $0x18] sm:$0xf]
        %v1223 = vld [vmem:[%s1215 + $0x1c] sm:$0xf]
        %v1224 = vld [vmem:[%s1215 + $0x20] sm:$0xf]
        %v1225 = vld [vmem:[%s1215 + $0x24] sm:$0xf]
        %v1226 = vld [vmem:[%s1215 + $0x28] sm:$0xf]
        %v1227 = vld [vmem:[%s1215 + $0x2c] sm:$0xf]
        %v1228 = vld [vmem:[%s1215 + $0x30] sm:$0xf]
        %v1229 = vld [vmem:[%s1215 + $0x34] sm:$0xf]
        %v1230 = vld [vmem:[%s1215 + $0x38] sm:$0xf]
        %v1231 = vld [vmem:[%s1215 + $0x3c] sm:$0xf]
        %v1232 = vunpack.c.l.b16 %v460
        %v1233 = vunpack.c.l.b16 %v470
        %v1234 = vunpack.c.l.b16 %v484
        %v1235 = vunpack.c.l.b16 %v494
        %v1236 = vunpack.c.l.b16 %v508
        %v1237 = vunpack.c.l.b16 %v518
        %v1238 = vunpack.c.l.b16 %v532
        %v1239 = vunpack.c.l.b16 %v542
        %v1240 = vunpack.c.l.b16 %v556
        %v1241 = vunpack.c.l.b16 %v566
        %v1242 = vunpack.c.l.b16 %v580
        %v1243 = vunpack.c.l.b16 %v590
        %v1244 = vunpack.c.l.b16 %v604
        %v1245 = vunpack.c.l.b16 %v614
        %v1246 = vunpack.c.l.b16 %v628
        %v1247 = vunpack.c.l.b16 %v638
        %v1248 = vunpack.c.l.b16 %v652
        %v1249 = vunpack.c.l.b16 %v662
        %v1250 = vunpack.c.l.b16 %v676
        %v1251 = vunpack.c.l.b16 %v686
        %v1252 = vunpack.c.l.b16 %v700
        %v1253 = vunpack.c.l.b16 %v710
        %v1254 = vunpack.c.l.b16 %v724
        %v1255 = vunpack.c.l.b16 %v734
        %v1256 = vunpack.c.l.b16 %v748
        %v1257 = vunpack.c.l.b16 %v758
        %v1258 = vunpack.c.l.b16 %v772
        %v1259 = vunpack.c.l.b16 %v782
        %v1260 = vunpack.c.l.b16 %v796
        %v1261 = vunpack.c.l.b16 %v806
        %v1262 = vunpack.c.l.b16 %v820
        %v1263 = vunpack.c.l.b16 %v830
        %v1264 = vunpack.c.l.b16 %v844
        %v1265 = vunpack.c.l.b16 %v854
        %v1266 = vunpack.c.l.b16 %v868
        %v1267 = vunpack.c.l.b16 %v878
        %v1268 = vunpack.c.l.b16 %v892
        %v1269 = vunpack.c.l.b16 %v902
        %v1270 = vunpack.c.l.b16 %v916
        %v1271 = vunpack.c.l.b16 %v926
        %v1272 = vunpack.c.l.b16 %v940
        %v1273 = vunpack.c.l.b16 %v950
        %v1274 = vunpack.c.l.b16 %v964
        %v1275 = vunpack.c.l.b16 %v974
        %v1276 = vunpack.c.l.b16 %v988
        %v1277 = vunpack.c.l.b16 %v998
        %v1278 = vunpack.c.l.b16 %v1012
        %v1279 = vunpack.c.l.b16 %v1022
        %v1280 = vunpack.c.l.b16 %v1036
        %v1281 = vunpack.c.l.b16 %v1046
        %v1282 = vunpack.c.l.b16 %v1060
        %v1283 = vunpack.c.l.b16 %v1070
        %v1284 = vunpack.c.l.b16 %v1084
        %v1285 = vunpack.c.l.b16 %v1094
        %v1286 = vunpack.c.l.b16 %v1108
        %v1287 = vunpack.c.l.b16 %v1118
        %v1288 = vunpack.c.l.b16 %v1132
        %v1289 = vunpack.c.l.b16 %v1142
        %v1290 = vunpack.c.l.b16 %v1156
        %v1291 = vunpack.c.l.b16 %v1166
        %v1292 = vunpack.c.l.b16 %v1180
        %v1293 = vunpack.c.l.b16 %v1190
        %v1294 = vunpack.c.l.b16 %v1204
        %v1295 = vunpack.c.l.b16 %v1214
        %v1296 = vpack.c.b16 %v1233, %v1232
        %v1297 = vpack.c.b16 %v1235, %v1234
        %v1298 = vpack.c.b16 %v1237, %v1236
        %v1299 = vpack.c.b16 %v1239, %v1238
        %v1300 = vpack.c.b16 %v1241, %v1240
        %v1301 = vpack.c.b16 %v1243, %v1242
        %v1302 = vpack.c.b16 %v1245, %v1244
        %v1303 = vpack.c.b16 %v1247, %v1246
        %v1304 = vpack.c.b16 %v1249, %v1248
        %v1305 = vpack.c.b16 %v1251, %v1250
        %v1306 = vpack.c.b16 %v1253, %v1252
        %v1307 = vpack.c.b16 %v1255, %v1254
        %v1308 = vpack.c.b16 %v1257, %v1256
        %v1309 = vpack.c.b16 %v1259, %v1258
        %v1310 = vpack.c.b16 %v1261, %v1260
        %v1311 = vpack.c.b16 %v1263, %v1262
        %v1312 = vpack.c.b16 %v1265, %v1264
        %v1313 = vpack.c.b16 %v1267, %v1266
        %v1314 = vpack.c.b16 %v1269, %v1268
        %v1315 = vpack.c.b16 %v1271, %v1270
        %v1316 = vpack.c.b16 %v1273, %v1272
        %v1317 = vpack.c.b16 %v1275, %v1274
        %v1318 = vpack.c.b16 %v1277, %v1276
        %v1319 = vpack.c.b16 %v1279, %v1278
        %v1320 = vpack.c.b16 %v1281, %v1280
        %v1321 = vpack.c.b16 %v1283, %v1282
        %v1322 = vpack.c.b16 %v1285, %v1284
        %v1323 = vpack.c.b16 %v1287, %v1286
        %v1324 = vpack.c.b16 %v1289, %v1288
        %v1325 = vpack.c.b16 %v1291, %v1290
        %v1326 = vpack.c.b16 %v1293, %v1292
        %v1327 = vpack.c.b16 %v1295, %v1294
        %v1376 = vunpack.c.l.b16 %v1216
        %v1377 = vunpack.c.l.b16 %v1217
        %v1378 = vunpack.c.l.b16 %v1218
        %v1379 = vunpack.c.l.b16 %v1219
        %v1380 = vunpack.c.l.b16 %v1220
        %v1381 = vunpack.c.l.b16 %v1221
        %v1382 = vunpack.c.l.b16 %v1222
        %v1383 = vunpack.c.l.b16 %v1223
        %v1384 = vunpack.c.l.b16 %v1224
        %v1385 = vunpack.c.l.b16 %v1225
        %v1386 = vunpack.c.l.b16 %v1226
        %v1387 = vunpack.c.l.b16 %v1227
        %v1388 = vunpack.c.l.b16 %v1228
        %v1389 = vunpack.c.l.b16 %v1229
        %v1390 = vunpack.c.l.b16 %v1230
        %v1391 = vunpack.c.l.b16 %v1231
        %v1392 = vpack.c.b16 %v1377, %v1376
        %v1393 = vpack.c.b16 %v1379, %v1378
        %v1394 = vpack.c.b16 %v1381, %v1380
        %v1395 = vpack.c.b16 %v1383, %v1382
        %v1396 = vpack.c.b16 %v1385, %v1384
        %v1397 = vpack.c.b16 %v1387, %v1386
        %v1398 = vpack.c.b16 %v1389, %v1388
        %v1399 = vpack.c.b16 %v1391, %v1390
        %1408 = vmatpush.bf16.msra.mxu0 %v1399
        %1409 = vmatpush.bf16.msra.mxu0 %v1398
        %1410 = vmatpush.bf16.msra.mxu0 %v1397
        %1411 = vmatpush.bf16.msra.mxu0 %v1396
        %1412 = vmatpush.bf16.msra.mxu0 %v1395
        %1413 = vmatpush.bf16.msra.mxu0 %v1394
        %1414 = vmatpush.bf16.msra.mxu0 %v1393
        %1415 = vmatpush.bf16.msra.mxu0 %v1392
        %1416 = vmatmul.bf16.gmra.mxu0 %v1296
        %v1417 = vpop.f32.mrf.mxu0
        %v1418 = vadd.f32 0.0, %v1417
        %v1419 = vpop.f32.mrf.mxu0
        %v1420 = vadd.f32 0.0, %v1419
        %1421 = vmatmul.bf16.gmra.mxu0 %v1297
        %v1422 = vpop.f32.mrf.mxu0
        %v1423 = vadd.f32 0.0, %v1422
        %v1424 = vpop.f32.mrf.mxu0
        %v1425 = vadd.f32 0.0, %v1424
        %1426 = vmatmul.bf16.gmra.mxu0 %v1298
        %v1427 = vpop.f32.mrf.mxu0
        %v1428 = vadd.f32 0.0, %v1427
        %v1429 = vpop.f32.mrf.mxu0
        %v1430 = vadd.f32 0.0, %v1429
        %1431 = vmatmul.bf16.gmra.mxu0 %v1299
        %v1432 = vpop.f32.mrf.mxu0
        %v1433 = vadd.f32 0.0, %v1432
        %v1434 = vpop.f32.mrf.mxu0
        %v1435 = vadd.f32 0.0, %v1434
        %1436 = vmatmul.bf16.gmra.mxu0 %v1300
        %v1437 = vpop.f32.mrf.mxu0
        %v1438 = vadd.f32 0.0, %v1437
        %v1439 = vpop.f32.mrf.mxu0
        %v1440 = vadd.f32 0.0, %v1439
        %1441 = vmatmul.bf16.gmra.mxu0 %v1301
        %v1442 = vpop.f32.mrf.mxu0
        %v1443 = vadd.f32 0.0, %v1442
        %v1444 = vpop.f32.mrf.mxu0
        %v1445 = vadd.f32 0.0, %v1444
        %1446 = vmatmul.bf16.gmra.mxu0 %v1302
        %v1447 = vpop.f32.mrf.mxu0
        %v1448 = vadd.f32 0.0, %v1447
        %v1449 = vpop.f32.mrf.mxu0
        %v1450 = vadd.f32 0.0, %v1449
        %1451 = vmatmul.bf16.gmra.mxu0 %v1303
        %v1452 = vpop.f32.mrf.mxu0
        %v1453 = vadd.f32 0.0, %v1452
        %v1454 = vpop.f32.mrf.mxu0
        %v1455 = vadd.f32 0.0, %v1454
        %1456 = vmatmul.bf16.gmra.mxu0 %v1304
        %v1457 = vpop.f32.mrf.mxu0
        %v1458 = vadd.f32 0.0, %v1457
        %v1459 = vpop.f32.mrf.mxu0
        %v1460 = vadd.f32 0.0, %v1459
        %1461 = vmatmul.bf16.gmra.mxu0 %v1305
        %v1462 = vpop.f32.mrf.mxu0
        %v1463 = vadd.f32 0.0, %v1462
        %v1464 = vpop.f32.mrf.mxu0
        %v1465 = vadd.f32 0.0, %v1464
        %1466 = vmatmul.bf16.gmra.mxu0 %v1306
        %v1467 = vpop.f32.mrf.mxu0
        %v1468 = vadd.f32 0.0, %v1467
        %v1469 = vpop.f32.mrf.mxu0
        %v1470 = vadd.f32 0.0, %v1469
        %1471 = vmatmul.bf16.gmra.mxu0 %v1307
        %v1472 = vpop.f32.mrf.mxu0
        %v1473 = vadd.f32 0.0, %v1472
        %v1474 = vpop.f32.mrf.mxu0
        %v1475 = vadd.f32 0.0, %v1474
        %1476 = vmatmul.bf16.gmra.mxu0 %v1308
        %v1477 = vpop.f32.mrf.mxu0
        %v1478 = vadd.f32 0.0, %v1477
        %v1479 = vpop.f32.mrf.mxu0
        %v1480 = vadd.f32 0.0, %v1479
        %1481 = vmatmul.bf16.gmra.mxu0 %v1309
        %v1482 = vpop.f32.mrf.mxu0
        %v1483 = vadd.f32 0.0, %v1482
        %v1484 = vpop.f32.mrf.mxu0
        %v1485 = vadd.f32 0.0, %v1484
        %1486 = vmatmul.bf16.gmra.mxu0 %v1310
        %v1487 = vpop.f32.mrf.mxu0
        %v1488 = vadd.f32 0.0, %v1487
        %v1489 = vpop.f32.mrf.mxu0
        %v1490 = vadd.f32 0.0, %v1489
        %1491 = vmatmul.bf16.gmra.mxu0 %v1311
        %v1492 = vpop.f32.mrf.mxu0
        %v1493 = vadd.f32 0.0, %v1492
        %v1494 = vpop.f32.mrf.mxu0
        %v1495 = vadd.f32 0.0, %v1494
        %1496 = vmatmul.bf16.gmra.mxu0 %v1312
        %v1497 = vpop.f32.mrf.mxu0
        %v1498 = vadd.f32 0.0, %v1497
        %v1499 = vpop.f32.mrf.mxu0
        %v1500 = vadd.f32 0.0, %v1499
        %1501 = vmatmul.bf16.gmra.mxu0 %v1313
        %v1502 = vpop.f32.mrf.mxu0
        %v1503 = vadd.f32 0.0, %v1502
        %v1504 = vpop.f32.mrf.mxu0
        %v1505 = vadd.f32 0.0, %v1504
        %1506 = vmatmul.bf16.gmra.mxu0 %v1314
        %v1507 = vpop.f32.mrf.mxu0
        %v1508 = vadd.f32 0.0, %v1507
        %v1509 = vpop.f32.mrf.mxu0
        %v1510 = vadd.f32 0.0, %v1509
        %1511 = vmatmul.bf16.gmra.mxu0 %v1315
        %v1512 = vpop.f32.mrf.mxu0
        %v1513 = vadd.f32 0.0, %v1512
        %v1514 = vpop.f32.mrf.mxu0
        %v1515 = vadd.f32 0.0, %v1514
        %1516 = vmatmul.bf16.gmra.mxu0 %v1316
        %v1517 = vpop.f32.mrf.mxu0
        %v1518 = vadd.f32 0.0, %v1517
        %v1519 = vpop.f32.mrf.mxu0
        %v1520 = vadd.f32 0.0, %v1519
        %1521 = vmatmul.bf16.gmra.mxu0 %v1317
        %v1522 = vpop.f32.mrf.mxu0
        %v1523 = vadd.f32 0.0, %v1522
        %v1524 = vpop.f32.mrf.mxu0
        %v1525 = vadd.f32 0.0, %v1524
        %1526 = vmatmul.bf16.gmra.mxu0 %v1318
        %v1527 = vpop.f32.mrf.mxu0
        %v1528 = vadd.f32 0.0, %v1527
        %v1529 = vpop.f32.mrf.mxu0
        %v1530 = vadd.f32 0.0, %v1529
        %1531 = vmatmul.bf16.gmra.mxu0 %v1319
        %v1532 = vpop.f32.mrf.mxu0
        %v1533 = vadd.f32 0.0, %v1532
        %v1534 = vpop.f32.mrf.mxu0
        %v1535 = vadd.f32 0.0, %v1534
        %1536 = vmatmul.bf16.gmra.mxu0 %v1320
        %v1537 = vpop.f32.mrf.mxu0
        %v1538 = vadd.f32 0.0, %v1537
        %v1539 = vpop.f32.mrf.mxu0
        %v1540 = vadd.f32 0.0, %v1539
        %1541 = vmatmul.bf16.gmra.mxu0 %v1321
        %v1542 = vpop.f32.mrf.mxu0
        %v1543 = vadd.f32 0.0, %v1542
        %v1544 = vpop.f32.mrf.mxu0
        %v1545 = vadd.f32 0.0, %v1544
        %1546 = vmatmul.bf16.gmra.mxu0 %v1322
        %v1547 = vpop.f32.mrf.mxu0
        %v1548 = vadd.f32 0.0, %v1547
        %v1549 = vpop.f32.mrf.mxu0
        %v1550 = vadd.f32 0.0, %v1549
        %1551 = vmatmul.bf16.gmra.mxu0 %v1323
        %v1552 = vpop.f32.mrf.mxu0
        %v1553 = vadd.f32 0.0, %v1552
        %v1554 = vpop.f32.mrf.mxu0
        %v1555 = vadd.f32 0.0, %v1554
        %1556 = vmatmul.bf16.gmra.mxu0 %v1324
        %v1557 = vpop.f32.mrf.mxu0
        %v1558 = vadd.f32 0.0, %v1557
        %v1559 = vpop.f32.mrf.mxu0
        %v1560 = vadd.f32 0.0, %v1559
        %1561 = vmatmul.bf16.gmra.mxu0 %v1325
        %v1562 = vpop.f32.mrf.mxu0
        %v1563 = vadd.f32 0.0, %v1562
        %v1564 = vpop.f32.mrf.mxu0
        %v1565 = vadd.f32 0.0, %v1564
        %1566 = vmatmul.bf16.gmra.mxu0 %v1326
        %v1567 = vpop.f32.mrf.mxu0
        %v1568 = vadd.f32 0.0, %v1567
        %v1569 = vpop.f32.mrf.mxu0
        %v1570 = vadd.f32 0.0, %v1569
        %1571 = vmatmul.bf16.gmra.mxu0 %v1327
        %v1572 = vpop.f32.mrf.mxu0
        %v1573 = vadd.f32 0.0, %v1572
        %v1574 = vpop.f32.mrf.mxu0
        %v1575 = vadd.f32 0.0, %v1574
        %1576 = vdwg.mxu0
        %v1641 = vunpack.c.l.b16 %v284
        %v1642 = vunpack.c.l.b16 %v285
        %v1643 = vunpack.c.l.b16 %v286
        %v1644 = vunpack.c.l.b16 %v287
        %v1645 = vunpack.c.l.b16 %v288
        %v1646 = vunpack.c.l.b16 %v289
        %v1647 = vunpack.c.l.b16 %v290
        %v1648 = vunpack.c.l.b16 %v291
        %v1649 = vunpack.c.l.b16 %v292
        %v1650 = vunpack.c.l.b16 %v293
        %v1651 = vunpack.c.l.b16 %v294
        %v1652 = vunpack.c.l.b16 %v295
        %v1653 = vunpack.c.l.b16 %v296
        %v1654 = vunpack.c.l.b16 %v297
        %v1655 = vunpack.c.l.b16 %v298
        %v1656 = vunpack.c.l.b16 %v299
        %v1657 = vunpack.c.l.b16 %v300
        %v1658 = vunpack.c.l.b16 %v301
        %v1659 = vunpack.c.l.b16 %v302
        %v1660 = vunpack.c.l.b16 %v303
        %v1661 = vunpack.c.l.b16 %v304
        %v1662 = vunpack.c.l.b16 %v305
        %v1663 = vunpack.c.l.b16 %v306
        %v1664 = vunpack.c.l.b16 %v307
        %v1665 = vunpack.c.l.b16 %v308
        %v1666 = vunpack.c.l.b16 %v309
        %v1667 = vunpack.c.l.b16 %v310
        %v1668 = vunpack.c.l.b16 %v311
        %v1669 = vunpack.c.l.b16 %v312
        %v1670 = vunpack.c.l.b16 %v313
        %v1671 = vunpack.c.l.b16 %v314
        %v1672 = vunpack.c.l.b16 %v315
        %v1673 = vunpack.c.l.b16 %v320
        %v1674 = vunpack.c.l.b16 %v321
        %v1675 = vunpack.c.l.b16 %v322
        %v1676 = vunpack.c.l.b16 %v323
        %v1677 = vunpack.c.l.b16 %v324
        %v1678 = vunpack.c.l.b16 %v325
        %v1679 = vunpack.c.l.b16 %v326
        %v1680 = vunpack.c.l.b16 %v327
        %v1681 = vunpack.c.l.b16 %v328
        %v1682 = vunpack.c.l.b16 %v329
        %v1683 = vunpack.c.l.b16 %v330
        %v1684 = vunpack.c.l.b16 %v331
        %v1685 = vunpack.c.l.b16 %v332
        %v1686 = vunpack.c.l.b16 %v333
        %v1687 = vunpack.c.l.b16 %v334
        %v1688 = vunpack.c.l.b16 %v335
        %v1689 = vunpack.c.l.b16 %v336
        %v1690 = vunpack.c.l.b16 %v337
        %v1691 = vunpack.c.l.b16 %v338
        %v1692 = vunpack.c.l.b16 %v339
        %v1693 = vunpack.c.l.b16 %v340
        %v1694 = vunpack.c.l.b16 %v341
        %v1695 = vunpack.c.l.b16 %v342
        %v1696 = vunpack.c.l.b16 %v343
        %v1697 = vunpack.c.l.b16 %v344
        %v1698 = vunpack.c.l.b16 %v345
        %v1699 = vunpack.c.l.b16 %v346
        %v1700 = vunpack.c.l.b16 %v347
        %v1701 = vunpack.c.l.b16 %v348
        %v1702 = vunpack.c.l.b16 %v349
        %v1703 = vunpack.c.l.b16 %v350
        %v1704 = vunpack.c.l.b16 %v351
        %v1705 = vpack.c.b16 %v1642, %v1641
        %v1706 = vpack.c.b16 %v1644, %v1643
        %v1707 = vpack.c.b16 %v1646, %v1645
        %v1708 = vpack.c.b16 %v1648, %v1647
        %v1709 = vpack.c.b16 %v1650, %v1649
        %v1710 = vpack.c.b16 %v1652, %v1651
        %v1711 = vpack.c.b16 %v1654, %v1653
        %v1712 = vpack.c.b16 %v1656, %v1655
        %v1713 = vpack.c.b16 %v1658, %v1657
        %v1714 = vpack.c.b16 %v1660, %v1659
        %v1715 = vpack.c.b16 %v1662, %v1661
        %v1716 = vpack.c.b16 %v1664, %v1663
        %v1717 = vpack.c.b16 %v1666, %v1665
        %v1718 = vpack.c.b16 %v1668, %v1667
        %v1719 = vpack.c.b16 %v1670, %v1669
        %v1720 = vpack.c.b16 %v1672, %v1671
        %v1721 = vpack.c.b16 %v1674, %v1673
        %v1722 = vpack.c.b16 %v1676, %v1675
        %v1723 = vpack.c.b16 %v1678, %v1677
        %v1724 = vpack.c.b16 %v1680, %v1679
        %v1725 = vpack.c.b16 %v1682, %v1681
        %v1726 = vpack.c.b16 %v1684, %v1683
        %v1727 = vpack.c.b16 %v1686, %v1685
        %v1728 = vpack.c.b16 %v1688, %v1687
        %v1729 = vpack.c.b16 %v1690, %v1689
        %v1730 = vpack.c.b16 %v1692, %v1691
        %v1731 = vpack.c.b16 %v1694, %v1693
        %v1732 = vpack.c.b16 %v1696, %v1695
        %v1733 = vpack.c.b16 %v1698, %v1697
        %v1734 = vpack.c.b16 %v1700, %v1699
        %v1735 = vpack.c.b16 %v1702, %v1701
        %v1736 = vpack.c.b16 %v1704, %v1703
        %v1785 = vunpack.c.l.b16 %v428
        %v1786 = vunpack.c.l.b16 %v429
        %v1787 = vunpack.c.l.b16 %v430
        %v1788 = vunpack.c.l.b16 %v431
        %v1789 = vunpack.c.l.b16 %v432
        %v1790 = vunpack.c.l.b16 %v433
        %v1791 = vunpack.c.l.b16 %v434
        %v1792 = vunpack.c.l.b16 %v435
        %v1793 = vunpack.c.l.b16 %v436
        %v1794 = vunpack.c.l.b16 %v437
        %v1795 = vunpack.c.l.b16 %v438
        %v1796 = vunpack.c.l.b16 %v439
        %v1797 = vunpack.c.l.b16 %v440
        %v1798 = vunpack.c.l.b16 %v441
        %v1799 = vunpack.c.l.b16 %v442
        %v1800 = vunpack.c.l.b16 %v443
        %v1801 = vpack.c.b16 %v1786, %v1785
        %v1802 = vpack.c.b16 %v1788, %v1787
        %v1803 = vpack.c.b16 %v1790, %v1789
        %v1804 = vpack.c.b16 %v1792, %v1791
        %v1805 = vpack.c.b16 %v1794, %v1793
        %v1806 = vpack.c.b16 %v1796, %v1795
        %v1807 = vpack.c.b16 %v1798, %v1797
        %v1808 = vpack.c.b16 %v1800, %v1799
        %1817 = vmatpush.bf16.msra.mxu0 %v1808
        %1818 = vmatpush.bf16.msra.mxu0 %v1807
        %1819 = vmatpush.bf16.msra.mxu0 %v1806
        %1820 = vmatpush.bf16.msra.mxu0 %v1805
        %1821 = vmatpush.bf16.msra.mxu0 %v1804
        %1822 = vmatpush.bf16.msra.mxu0 %v1803
        %1823 = vmatpush.bf16.msra.mxu0 %v1802
        %1824 = vmatpush.bf16.msra.mxu0 %v1801
        %1825 = vmatmul.bf16.gmra.mxu0 %v1705
        %v1826 = vpop.f32.mrf.mxu0
        %v1827 = vadd.f32 %v1418, %v1826
        %v1828 = vpop.f32.mrf.mxu0
        %v1829 = vadd.f32 %v1420, %v1828
        %1830 = vmatmul.bf16.gmra.mxu0 %v1706
        %v1831 = vpop.f32.mrf.mxu0
        %v1832 = vadd.f32 %v1423, %v1831
        %v1833 = vpop.f32.mrf.mxu0
        %v1834 = vadd.f32 %v1425, %v1833
        %1835 = vmatmul.bf16.gmra.mxu0 %v1707
        %v1836 = vpop.f32.mrf.mxu0
        %v1837 = vadd.f32 %v1428, %v1836
        %v1838 = vpop.f32.mrf.mxu0
        %v1839 = vadd.f32 %v1430, %v1838
        %1840 = vmatmul.bf16.gmra.mxu0 %v1708
        %v1841 = vpop.f32.mrf.mxu0
        %v1842 = vadd.f32 %v1433, %v1841
        %v1843 = vpop.f32.mrf.mxu0
        %v1844 = vadd.f32 %v1435, %v1843
        %1845 = vmatmul.bf16.gmra.mxu0 %v1709
        %v1846 = vpop.f32.mrf.mxu0
        %v1847 = vadd.f32 %v1438, %v1846
        %v1848 = vpop.f32.mrf.mxu0
        %v1849 = vadd.f32 %v1440, %v1848
        %1850 = vmatmul.bf16.gmra.mxu0 %v1710
        %v1851 = vpop.f32.mrf.mxu0
        %v1852 = vadd.f32 %v1443, %v1851
        %v1853 = vpop.f32.mrf.mxu0
        %v1854 = vadd.f32 %v1445, %v1853
        %1855 = vmatmul.bf16.gmra.mxu0 %v1711
        %v1856 = vpop.f32.mrf.mxu0
        %v1857 = vadd.f32 %v1448, %v1856
        %v1858 = vpop.f32.mrf.mxu0
        %v1859 = vadd.f32 %v1450, %v1858
        %1860 = vmatmul.bf16.gmra.mxu0 %v1712
        %v1861 = vpop.f32.mrf.mxu0
        %v1862 = vadd.f32 %v1453, %v1861
        %v1863 = vpop.f32.mrf.mxu0
        %v1864 = vadd.f32 %v1455, %v1863
        %1865 = vmatmul.bf16.gmra.mxu0 %v1713
        %v1866 = vpop.f32.mrf.mxu0
        %v1867 = vadd.f32 %v1458, %v1866
        %v1868 = vpop.f32.mrf.mxu0
        %v1869 = vadd.f32 %v1460, %v1868
        %1870 = vmatmul.bf16.gmra.mxu0 %v1714
        %v1871 = vpop.f32.mrf.mxu0
        %v1872 = vadd.f32 %v1463, %v1871
        %v1873 = vpop.f32.mrf.mxu0
        %v1874 = vadd.f32 %v1465, %v1873
        %1875 = vmatmul.bf16.gmra.mxu0 %v1715
        %v1876 = vpop.f32.mrf.mxu0
        %v1877 = vadd.f32 %v1468, %v1876
        %v1878 = vpop.f32.mrf.mxu0
        %v1879 = vadd.f32 %v1470, %v1878
        %1880 = vmatmul.bf16.gmra.mxu0 %v1716
        %v1881 = vpop.f32.mrf.mxu0
        %v1882 = vadd.f32 %v1473, %v1881
        %v1883 = vpop.f32.mrf.mxu0
        %v1884 = vadd.f32 %v1475, %v1883
        %1885 = vmatmul.bf16.gmra.mxu0 %v1717
        %v1886 = vpop.f32.mrf.mxu0
        %v1887 = vadd.f32 %v1478, %v1886
        %v1888 = vpop.f32.mrf.mxu0
        %v1889 = vadd.f32 %v1480, %v1888
        %1890 = vmatmul.bf16.gmra.mxu0 %v1718
        %v1891 = vpop.f32.mrf.mxu0
        %v1892 = vadd.f32 %v1483, %v1891
        %v1893 = vpop.f32.mrf.mxu0
        %v1894 = vadd.f32 %v1485, %v1893
        %1895 = vmatmul.bf16.gmra.mxu0 %v1719
        %v1896 = vpop.f32.mrf.mxu0
        %v1897 = vadd.f32 %v1488, %v1896
        %v1898 = vpop.f32.mrf.mxu0
        %v1899 = vadd.f32 %v1490, %v1898
        %1900 = vmatmul.bf16.gmra.mxu0 %v1720
        %v1901 = vpop.f32.mrf.mxu0
        %v1902 = vadd.f32 %v1493, %v1901
        %v1903 = vpop.f32.mrf.mxu0
        %v1904 = vadd.f32 %v1495, %v1903
        %1905 = vmatmul.bf16.gmra.mxu0 %v1721
        %v1906 = vpop.f32.mrf.mxu0
        %v1907 = vadd.f32 %v1498, %v1906
        %v1908 = vpop.f32.mrf.mxu0
        %v1909 = vadd.f32 %v1500, %v1908
        %1910 = vmatmul.bf16.gmra.mxu0 %v1722
        %v1911 = vpop.f32.mrf.mxu0
        %v1912 = vadd.f32 %v1503, %v1911
        %v1913 = vpop.f32.mrf.mxu0
        %v1914 = vadd.f32 %v1505, %v1913
        %1915 = vmatmul.bf16.gmra.mxu0 %v1723
        %v1916 = vpop.f32.mrf.mxu0
        %v1917 = vadd.f32 %v1508, %v1916
        %v1918 = vpop.f32.mrf.mxu0
        %v1919 = vadd.f32 %v1510, %v1918
        %1920 = vmatmul.bf16.gmra.mxu0 %v1724
        %v1921 = vpop.f32.mrf.mxu0
        %v1922 = vadd.f32 %v1513, %v1921
        %v1923 = vpop.f32.mrf.mxu0
        %v1924 = vadd.f32 %v1515, %v1923
        %1925 = vmatmul.bf16.gmra.mxu0 %v1725
        %v1926 = vpop.f32.mrf.mxu0
        %v1927 = vadd.f32 %v1518, %v1926
        %v1928 = vpop.f32.mrf.mxu0
        %v1929 = vadd.f32 %v1520, %v1928
        %1930 = vmatmul.bf16.gmra.mxu0 %v1726
        %v1931 = vpop.f32.mrf.mxu0
        %v1932 = vadd.f32 %v1523, %v1931
        %v1933 = vpop.f32.mrf.mxu0
        %v1934 = vadd.f32 %v1525, %v1933
        %1935 = vmatmul.bf16.gmra.mxu0 %v1727
        %v1936 = vpop.f32.mrf.mxu0
        %v1937 = vadd.f32 %v1528, %v1936
        %v1938 = vpop.f32.mrf.mxu0
        %v1939 = vadd.f32 %v1530, %v1938
        %1940 = vmatmul.bf16.gmra.mxu0 %v1728
        %v1941 = vpop.f32.mrf.mxu0
        %v1942 = vadd.f32 %v1533, %v1941
        %v1943 = vpop.f32.mrf.mxu0
        %v1944 = vadd.f32 %v1535, %v1943
        %1945 = vmatmul.bf16.gmra.mxu0 %v1729
        %v1946 = vpop.f32.mrf.mxu0
        %v1947 = vadd.f32 %v1538, %v1946
        %v1948 = vpop.f32.mrf.mxu0
        %v1949 = vadd.f32 %v1540, %v1948
        %1950 = vmatmul.bf16.gmra.mxu0 %v1730
        %v1951 = vpop.f32.mrf.mxu0
        %v1952 = vadd.f32 %v1543, %v1951
        %v1953 = vpop.f32.mrf.mxu0
        %v1954 = vadd.f32 %v1545, %v1953
        %1955 = vmatmul.bf16.gmra.mxu0 %v1731
        %v1956 = vpop.f32.mrf.mxu0
        %v1957 = vadd.f32 %v1548, %v1956
        %v1958 = vpop.f32.mrf.mxu0
        %v1959 = vadd.f32 %v1550, %v1958
        %1960 = vmatmul.bf16.gmra.mxu0 %v1732
        %v1961 = vpop.f32.mrf.mxu0
        %v1962 = vadd.f32 %v1553, %v1961
        %v1963 = vpop.f32.mrf.mxu0
        %v1964 = vadd.f32 %v1555, %v1963
        %1965 = vmatmul.bf16.gmra.mxu0 %v1733
        %v1966 = vpop.f32.mrf.mxu0
        %v1967 = vadd.f32 %v1558, %v1966
        %v1968 = vpop.f32.mrf.mxu0
        %v1969 = vadd.f32 %v1560, %v1968
        %1970 = vmatmul.bf16.gmra.mxu0 %v1734
        %v1971 = vpop.f32.mrf.mxu0
        %v1972 = vadd.f32 %v1563, %v1971
        %v1973 = vpop.f32.mrf.mxu0
        %v1974 = vadd.f32 %v1565, %v1973
        %1975 = vmatmul.bf16.gmra.mxu0 %v1735
        %v1976 = vpop.f32.mrf.mxu0
        %v1977 = vadd.f32 %v1568, %v1976
        %v1978 = vpop.f32.mrf.mxu0
        %v1979 = vadd.f32 %v1570, %v1978
        %1980 = vmatmul.bf16.gmra.mxu0 %v1736
        %v1981 = vpop.f32.mrf.mxu0
        %v1982 = vadd.f32 %v1573, %v1981
        %v1983 = vpop.f32.mrf.mxu0
        %v1984 = vadd.f32 %v1575, %v1983
        %1985 = vdwg.mxu0
        %vm2050 = vcmask 1042432
        %vm2051 = vcmask 1046532
        %vm2052 = vmor %vm2050, %vm2051
        %v2053 = vrot.slane %v392, 5
        %v2054 = vrot.slane %v2053, 4
        %v2055 = vrot.slane %v285, 5
        %v2056 = vsel %vm2052, %v2054, %v2055
        %v2057 = vrot.slane %v2055, 4
        %v2058 = vrot.slane %v356, 5
        %v2059 = vsel %vm2052, %v2057, %v2058
        %v2060 = vrot.slane %v393, 5
        %v2061 = vrot.slane %v2060, 4
        %v2062 = vrot.slane %v287, 5
        %v2063 = vsel %vm2052, %v2061, %v2062
        %v2064 = vrot.slane %v2062, 4
        %v2065 = vrot.slane %v357, 5
        %v2066 = vsel %vm2052, %v2064, %v2065
        %v2067 = vrot.slane %v394, 5
        %v2068 = vrot.slane %v2067, 4
        %v2069 = vrot.slane %v289, 5
        %v2070 = vsel %vm2052, %v2068, %v2069
        %v2071 = vrot.slane %v2069, 4
        %v2072 = vrot.slane %v358, 5
        %v2073 = vsel %vm2052, %v2071, %v2072
        %v2074 = vrot.slane %v395, 5
        %v2075 = vrot.slane %v2074, 4
        %v2076 = vrot.slane %v291, 5
        %v2077 = vsel %vm2052, %v2075, %v2076
        %v2078 = vrot.slane %v2076, 4
        %v2079 = vrot.slane %v359, 5
        %v2080 = vsel %vm2052, %v2078, %v2079
        %v2081 = vrot.slane %v396, 5
        %v2082 = vrot.slane %v2081, 4
        %v2083 = vrot.slane %v293, 5
        %v2084 = vsel %vm2052, %v2082, %v2083
        %v2085 = vrot.slane %v2083, 4
        %v2086 = vrot.slane %v360, 5
        %v2087 = vsel %vm2052, %v2085, %v2086
        %v2088 = vrot.slane %v397, 5
        %v2089 = vrot.slane %v2088, 4
        %v2090 = vrot.slane %v295, 5
        %v2091 = vsel %vm2052, %v2089, %v2090
        %v2092 = vrot.slane %v2090, 4
        %v2093 = vrot.slane %v361, 5
        %v2094 = vsel %vm2052, %v2092, %v2093
        %v2095 = vrot.slane %v398, 5
        %v2096 = vrot.slane %v2095, 4
        %v2097 = vrot.slane %v297, 5
        %v2098 = vsel %vm2052, %v2096, %v2097
        %v2099 = vrot.slane %v2097, 4
        %v2100 = vrot.slane %v362, 5
        %v2101 = vsel %vm2052, %v2099, %v2100
        %v2102 = vrot.slane %v399, 5
        %v2103 = vrot.slane %v2102, 4
        %v2104 = vrot.slane %v299, 5
        %v2105 = vsel %vm2052, %v2103, %v2104
        %v2106 = vrot.slane %v2104, 4
        %v2107 = vrot.slane %v363, 5
        %v2108 = vsel %vm2052, %v2106, %v2107
        %v2109 = vrot.slane %v400, 5
        %v2110 = vrot.slane %v2109, 4
        %v2111 = vrot.slane %v301, 5
        %v2112 = vsel %vm2052, %v2110, %v2111
        %v2113 = vrot.slane %v2111, 4
        %v2114 = vrot.slane %v364, 5
        %v2115 = vsel %vm2052, %v2113, %v2114
        %v2116 = vrot.slane %v401, 5
        %v2117 = vrot.slane %v2116, 4
        %v2118 = vrot.slane %v303, 5
        %v2119 = vsel %vm2052, %v2117, %v2118
        %v2120 = vrot.slane %v2118, 4
        %v2121 = vrot.slane %v365, 5
        %v2122 = vsel %vm2052, %v2120, %v2121
        %v2123 = vrot.slane %v402, 5
        %v2124 = vrot.slane %v2123, 4
        %v2125 = vrot.slane %v305, 5
        %v2126 = vsel %vm2052, %v2124, %v2125
        %v2127 = vrot.slane %v2125, 4
        %v2128 = vrot.slane %v366, 5
        %v2129 = vsel %vm2052, %v2127, %v2128
        %v2130 = vrot.slane %v403, 5
        %v2131 = vrot.slane %v2130, 4
        %v2132 = vrot.slane %v307, 5
        %v2133 = vsel %vm2052, %v2131, %v2132
        %v2134 = vrot.slane %v2132, 4
        %v2135 = vrot.slane %v367, 5
        %v2136 = vsel %vm2052, %v2134, %v2135
        %v2137 = vrot.slane %v404, 5
        %v2138 = vrot.slane %v2137, 4
        %v2139 = vrot.slane %v309, 5
        %v2140 = vsel %vm2052, %v2138, %v2139
        %v2141 = vrot.slane %v2139, 4
        %v2142 = vrot.slane %v368, 5
        %v2143 = vsel %vm2052, %v2141, %v2142
        %v2144 = vrot.slane %v405, 5
        %v2145 = vrot.slane %v2144, 4
        %v2146 = vrot.slane %v311, 5
        %v2147 = vsel %vm2052, %v2145, %v2146
        %v2148 = vrot.slane %v2146, 4
        %v2149 = vrot.slane %v369, 5
        %v2150 = vsel %vm2052, %v2148, %v2149
        %v2151 = vrot.slane %v406, 5
        %v2152 = vrot.slane %v2151, 4
        %v2153 = vrot.slane %v313, 5
        %v2154 = vsel %vm2052, %v2152, %v2153
        %v2155 = vrot.slane %v2153, 4
        %v2156 = vrot.slane %v370, 5
        %v2157 = vsel %vm2052, %v2155, %v2156
        %v2158 = vrot.slane %v407, 5
        %v2159 = vrot.slane %v2158, 4
        %v2160 = vrot.slane %v315, 5
        %v2161 = vsel %vm2052, %v2159, %v2160
        %v2162 = vrot.slane %v2160, 4
        %v2163 = vrot.slane %v371, 5
        %v2164 = vsel %vm2052, %v2162, %v2163
        %v2165 = vrot.slane %v410, 5
        %v2166 = vrot.slane %v2165, 4
        %v2167 = vrot.slane %v321, 5
        %v2168 = vsel %vm2052, %v2166, %v2167
        %v2169 = vrot.slane %v2167, 4
        %v2170 = vrot.slane %v374, 5
        %v2171 = vsel %vm2052, %v2169, %v2170
        %v2172 = vrot.slane %v411, 5
        %v2173 = vrot.slane %v2172, 4
        %v2174 = vrot.slane %v323, 5
        %v2175 = vsel %vm2052, %v2173, %v2174
        %v2176 = vrot.slane %v2174, 4
        %v2177 = vrot.slane %v375, 5
        %v2178 = vsel %vm2052, %v2176, %v2177
        %v2179 = vrot.slane %v412, 5
        %v2180 = vrot.slane %v2179, 4
        %v2181 = vrot.slane %v325, 5
        %v2182 = vsel %vm2052, %v2180, %v2181
        %v2183 = vrot.slane %v2181, 4
        %v2184 = vrot.slane %v376, 5
        %v2185 = vsel %vm2052, %v2183, %v2184
        %v2186 = vrot.slane %v413, 5
        %v2187 = vrot.slane %v2186, 4
        %v2188 = vrot.slane %v327, 5
        %v2189 = vsel %vm2052, %v2187, %v2188
        %v2190 = vrot.slane %v2188, 4
        %v2191 = vrot.slane %v377, 5
        %v2192 = vsel %vm2052, %v2190, %v2191
        %v2193 = vrot.slane %v414, 5
        %v2194 = vrot.slane %v2193, 4
        %v2195 = vrot.slane %v329, 5
        %v2196 = vsel %vm2052, %v2194, %v2195
        %v2197 = vrot.slane %v2195, 4
        %v2198 = vrot.slane %v378, 5
        %v2199 = vsel %vm2052, %v2197, %v2198
        %v2200 = vrot.slane %v415, 5
        %v2201 = vrot.slane %v2200, 4
        %v2202 = vrot.slane %v331, 5
        %v2203 = vsel %vm2052, %v2201, %v2202
        %v2204 = vrot.slane %v2202, 4
        %v2205 = vrot.slane %v379, 5
        %v2206 = vsel %vm2052, %v2204, %v2205
        %v2207 = vrot.slane %v416, 5
        %v2208 = vrot.slane %v2207, 4
        %v2209 = vrot.slane %v333, 5
        %v2210 = vsel %vm2052, %v2208, %v2209
        %v2211 = vrot.slane %v2209, 4
        %v2212 = vrot.slane %v380, 5
        %v2213 = vsel %vm2052, %v2211, %v2212
        %v2214 = vrot.slane %v417, 5
        %v2215 = vrot.slane %v2214, 4
        %v2216 = vrot.slane %v335, 5
        %v2217 = vsel %vm2052, %v2215, %v2216
        %v2218 = vrot.slane %v2216, 4
        %v2219 = vrot.slane %v381, 5
        %v2220 = vsel %vm2052, %v2218, %v2219
        %v2221 = vrot.slane %v418, 5
        %v2222 = vrot.slane %v2221, 4
        %v2223 = vrot.slane %v337, 5
        %v2224 = vsel %vm2052, %v2222, %v2223
        %v2225 = vrot.slane %v2223, 4
        %v2226 = vrot.slane %v382, 5
        %v2227 = vsel %vm2052, %v2225, %v2226
        %v2228 = vrot.slane %v419, 5
        %v2229 = vrot.slane %v2228, 4
        %v2230 = vrot.slane %v339, 5
        %v2231 = vsel %vm2052, %v2229, %v2230
        %v2232 = vrot.slane %v2230, 4
        %v2233 = vrot.slane %v383, 5
        %v2234 = vsel %vm2052, %v2232, %v2233
        %v2235 = vrot.slane %v420, 5
        %v2236 = vrot.slane %v2235, 4
        %v2237 = vrot.slane %v341, 5
        %v2238 = vsel %vm2052, %v2236, %v2237
        %v2239 = vrot.slane %v2237, 4
        %v2240 = vrot.slane %v384, 5
        %v2241 = vsel %vm2052, %v2239, %v2240
        %v2242 = vrot.slane %v421, 5
        %v2243 = vrot.slane %v2242, 4
        %v2244 = vrot.slane %v343, 5
        %v2245 = vsel %vm2052, %v2243, %v2244
        %v2246 = vrot.slane %v2244, 4
        %v2247 = vrot.slane %v385, 5
        %v2248 = vsel %vm2052, %v2246, %v2247
        %v2249 = vrot.slane %v422, 5
        %v2250 = vrot.slane %v2249, 4
        %v2251 = vrot.slane %v345, 5
        %v2252 = vsel %vm2052, %v2250, %v2251
        %v2253 = vrot.slane %v2251, 4
        %v2254 = vrot.slane %v386, 5
        %v2255 = vsel %vm2052, %v2253, %v2254
        %v2256 = vrot.slane %v423, 5
        %v2257 = vrot.slane %v2256, 4
        %v2258 = vrot.slane %v347, 5
        %v2259 = vsel %vm2052, %v2257, %v2258
        %v2260 = vrot.slane %v2258, 4
        %v2261 = vrot.slane %v387, 5
        %v2262 = vsel %vm2052, %v2260, %v2261
        %v2263 = vrot.slane %v424, 5
        %v2264 = vrot.slane %v2263, 4
        %v2265 = vrot.slane %v349, 5
        %v2266 = vsel %vm2052, %v2264, %v2265
        %v2267 = vrot.slane %v2265, 4
        %v2268 = vrot.slane %v388, 5
        %v2269 = vsel %vm2052, %v2267, %v2268
        %v2270 = vrot.slane %v425, 5
        %v2271 = vrot.slane %v2270, 4
        %v2272 = vrot.slane %v351, 5
        %v2273 = vsel %vm2052, %v2271, %v2272
        %v2274 = vrot.slane %v2272, 4
        %v2275 = vrot.slane %v389, 5
        %v2276 = vsel %vm2052, %v2274, %v2275
        %s2277 = scalar_lea.vmem %s1, 128
        %v2278 = vld [vmem:[%s2277] sm:$0xf]
        %v2279 = vld [vmem:[%s2277 + $0x4] sm:$0xf]
        %v2280 = vld [vmem:[%s2277 + $0x8] sm:$0xf]
        %v2281 = vld [vmem:[%s2277 + $0xc] sm:$0xf]
        %v2282 = vld [vmem:[%s2277 + $0x10] sm:$0xf]
        %v2283 = vld [vmem:[%s2277 + $0x14] sm:$0xf]
        %v2284 = vld [vmem:[%s2277 + $0x18] sm:$0xf]
        %v2285 = vld [vmem:[%s2277 + $0x1c] sm:$0xf]
        %v2286 = vld [vmem:[%s2277 + $0x20] sm:$0xf]
        %v2287 = vld [vmem:[%s2277 + $0x24] sm:$0xf]
        %v2288 = vld [vmem:[%s2277 + $0x28] sm:$0xf]
        %v2289 = vld [vmem:[%s2277 + $0x2c] sm:$0xf]
        %v2290 = vld [vmem:[%s2277 + $0x30] sm:$0xf]
        %v2291 = vld [vmem:[%s2277 + $0x34] sm:$0xf]
        %v2292 = vld [vmem:[%s2277 + $0x38] sm:$0xf]
        %v2293 = vld [vmem:[%s2277 + $0x3c] sm:$0xf]
        %v2294 = vunpack.c.l.b16 %v2056
        %v2295 = vunpack.c.l.b16 %v2059
        %v2296 = vunpack.c.l.b16 %v2063
        %v2297 = vunpack.c.l.b16 %v2066
        %v2298 = vunpack.c.l.b16 %v2070
        %v2299 = vunpack.c.l.b16 %v2073
        %v2300 = vunpack.c.l.b16 %v2077
        %v2301 = vunpack.c.l.b16 %v2080
        %v2302 = vunpack.c.l.b16 %v2084
        %v2303 = vunpack.c.l.b16 %v2087
        %v2304 = vunpack.c.l.b16 %v2091
        %v2305 = vunpack.c.l.b16 %v2094
        %v2306 = vunpack.c.l.b16 %v2098
        %v2307 = vunpack.c.l.b16 %v2101
        %v2308 = vunpack.c.l.b16 %v2105
        %v2309 = vunpack.c.l.b16 %v2108
        %v2310 = vunpack.c.l.b16 %v2112
        %v2311 = vunpack.c.l.b16 %v2115
        %v2312 = vunpack.c.l.b16 %v2119
        %v2313 = vunpack.c.l.b16 %v2122
        %v2314 = vunpack.c.l.b16 %v2126
        %v2315 = vunpack.c.l.b16 %v2129
        %v2316 = vunpack.c.l.b16 %v2133
        %v2317 = vunpack.c.l.b16 %v2136
        %v2318 = vunpack.c.l.b16 %v2140
        %v2319 = vunpack.c.l.b16 %v2143
        %v2320 = vunpack.c.l.b16 %v2147
        %v2321 = vunpack.c.l.b16 %v2150
        %v2322 = vunpack.c.l.b16 %v2154
        %v2323 = vunpack.c.l.b16 %v2157
        %v2324 = vunpack.c.l.b16 %v2161
        %v2325 = vunpack.c.l.b16 %v2164
        %v2326 = vunpack.c.l.b16 %v2168
        %v2327 = vunpack.c.l.b16 %v2171
        %v2328 = vunpack.c.l.b16 %v2175
        %v2329 = vunpack.c.l.b16 %v2178
        %v2330 = vunpack.c.l.b16 %v2182
        %v2331 = vunpack.c.l.b16 %v2185
        %v2332 = vunpack.c.l.b16 %v2189
        %v2333 = vunpack.c.l.b16 %v2192
        %v2334 = vunpack.c.l.b16 %v2196
        %v2335 = vunpack.c.l.b16 %v2199
        %v2336 = vunpack.c.l.b16 %v2203
        %v2337 = vunpack.c.l.b16 %v2206
        %v2338 = vunpack.c.l.b16 %v2210
        %v2339 = vunpack.c.l.b16 %v2213
        %v2340 = vunpack.c.l.b16 %v2217
        %v2341 = vunpack.c.l.b16 %v2220
        %v2342 = vunpack.c.l.b16 %v2224
        %v2343 = vunpack.c.l.b16 %v2227
        %v2344 = vunpack.c.l.b16 %v2231
        %v2345 = vunpack.c.l.b16 %v2234
        %v2346 = vunpack.c.l.b16 %v2238
        %v2347 = vunpack.c.l.b16 %v2241
        %v2348 = vunpack.c.l.b16 %v2245
        %v2349 = vunpack.c.l.b16 %v2248
        %v2350 = vunpack.c.l.b16 %v2252
        %v2351 = vunpack.c.l.b16 %v2255
        %v2352 = vunpack.c.l.b16 %v2259
        %v2353 = vunpack.c.l.b16 %v2262
        %v2354 = vunpack.c.l.b16 %v2266
        %v2355 = vunpack.c.l.b16 %v2269
        %v2356 = vunpack.c.l.b16 %v2273
        %v2357 = vunpack.c.l.b16 %v2276
        %v2358 = vpack.c.b16 %v2295, %v2294
        %v2359 = vpack.c.b16 %v2297, %v2296
        %v2360 = vpack.c.b16 %v2299, %v2298
        %v2361 = vpack.c.b16 %v2301, %v2300
        %v2362 = vpack.c.b16 %v2303, %v2302
        %v2363 = vpack.c.b16 %v2305, %v2304
        %v2364 = vpack.c.b16 %v2307, %v2306
        %v2365 = vpack.c.b16 %v2309, %v2308
        %v2366 = vpack.c.b16 %v2311, %v2310
        %v2367 = vpack.c.b16 %v2313, %v2312
        %v2368 = vpack.c.b16 %v2315, %v2314
        %v2369 = vpack.c.b16 %v2317, %v2316
        %v2370 = vpack.c.b16 %v2319, %v2318
        %v2371 = vpack.c.b16 %v2321, %v2320
        %v2372 = vpack.c.b16 %v2323, %v2322
        %v2373 = vpack.c.b16 %v2325, %v2324
        %v2374 = vpack.c.b16 %v2327, %v2326
        %v2375 = vpack.c.b16 %v2329, %v2328
        %v2376 = vpack.c.b16 %v2331, %v2330
        %v2377 = vpack.c.b16 %v2333, %v2332
        %v2378 = vpack.c.b16 %v2335, %v2334
        %v2379 = vpack.c.b16 %v2337, %v2336
        %v2380 = vpack.c.b16 %v2339, %v2338
        %v2381 = vpack.c.b16 %v2341, %v2340
        %v2382 = vpack.c.b16 %v2343, %v2342
        %v2383 = vpack.c.b16 %v2345, %v2344
        %v2384 = vpack.c.b16 %v2347, %v2346
        %v2385 = vpack.c.b16 %v2349, %v2348
        %v2386 = vpack.c.b16 %v2351, %v2350
        %v2387 = vpack.c.b16 %v2353, %v2352
        %v2388 = vpack.c.b16 %v2355, %v2354
        %v2389 = vpack.c.b16 %v2357, %v2356
        %v2438 = vunpack.c.l.b16 %v2278
        %v2439 = vunpack.c.l.b16 %v2279
        %v2440 = vunpack.c.l.b16 %v2280
        %v2441 = vunpack.c.l.b16 %v2281
        %v2442 = vunpack.c.l.b16 %v2282
        %v2443 = vunpack.c.l.b16 %v2283
        %v2444 = vunpack.c.l.b16 %v2284
        %v2445 = vunpack.c.l.b16 %v2285
        %v2446 = vunpack.c.l.b16 %v2286
        %v2447 = vunpack.c.l.b16 %v2287
        %v2448 = vunpack.c.l.b16 %v2288
        %v2449 = vunpack.c.l.b16 %v2289
        %v2450 = vunpack.c.l.b16 %v2290
        %v2451 = vunpack.c.l.b16 %v2291
        %v2452 = vunpack.c.l.b16 %v2292
        %v2453 = vunpack.c.l.b16 %v2293
        %v2454 = vpack.c.b16 %v2439, %v2438
        %v2455 = vpack.c.b16 %v2441, %v2440
        %v2456 = vpack.c.b16 %v2443, %v2442
        %v2457 = vpack.c.b16 %v2445, %v2444
        %v2458 = vpack.c.b16 %v2447, %v2446
        %v2459 = vpack.c.b16 %v2449, %v2448
        %v2460 = vpack.c.b16 %v2451, %v2450
        %v2461 = vpack.c.b16 %v2453, %v2452
        %2470 = vmatpush.bf16.msra.mxu0 %v2461
        %2471 = vmatpush.bf16.msra.mxu0 %v2460
        %2472 = vmatpush.bf16.msra.mxu0 %v2459
        %2473 = vmatpush.bf16.msra.mxu0 %v2458
        %2474 = vmatpush.bf16.msra.mxu0 %v2457
        %2475 = vmatpush.bf16.msra.mxu0 %v2456
        %2476 = vmatpush.bf16.msra.mxu0 %v2455
        %2477 = vmatpush.bf16.msra.mxu0 %v2454
        %2478 = vmatmul.bf16.gmra.mxu0 %v2358
        %v2479 = vpop.f32.mrf.mxu0
        %v2480 = vadd.f32 0.0, %v2479
        %v2481 = vpop.f32.mrf.mxu0
        %v2482 = vadd.f32 0.0, %v2481
        %2483 = vmatmul.bf16.gmra.mxu0 %v2359
        %v2484 = vpop.f32.mrf.mxu0
        %v2485 = vadd.f32 0.0, %v2484
        %v2486 = vpop.f32.mrf.mxu0
        %v2487 = vadd.f32 0.0, %v2486
        %2488 = vmatmul.bf16.gmra.mxu0 %v2360
        %v2489 = vpop.f32.mrf.mxu0
        %v2490 = vadd.f32 0.0, %v2489
        %v2491 = vpop.f32.mrf.mxu0
        %v2492 = vadd.f32 0.0, %v2491
        %2493 = vmatmul.bf16.gmra.mxu0 %v2361
        %v2494 = vpop.f32.mrf.mxu0
        %v2495 = vadd.f32 0.0, %v2494
        %v2496 = vpop.f32.mrf.mxu0
        %v2497 = vadd.f32 0.0, %v2496
        %2498 = vmatmul.bf16.gmra.mxu0 %v2362
        %v2499 = vpop.f32.mrf.mxu0
        %v2500 = vadd.f32 0.0, %v2499
        %v2501 = vpop.f32.mrf.mxu0
        %v2502 = vadd.f32 0.0, %v2501
        %2503 = vmatmul.bf16.gmra.mxu0 %v2363
        %v2504 = vpop.f32.mrf.mxu0
        %v2505 = vadd.f32 0.0, %v2504
        %v2506 = vpop.f32.mrf.mxu0
        %v2507 = vadd.f32 0.0, %v2506
        %2508 = vmatmul.bf16.gmra.mxu0 %v2364
        %v2509 = vpop.f32.mrf.mxu0
        %v2510 = vadd.f32 0.0, %v2509
        %v2511 = vpop.f32.mrf.mxu0
        %v2512 = vadd.f32 0.0, %v2511
        %2513 = vmatmul.bf16.gmra.mxu0 %v2365
        %v2514 = vpop.f32.mrf.mxu0
        %v2515 = vadd.f32 0.0, %v2514
        %v2516 = vpop.f32.mrf.mxu0
        %v2517 = vadd.f32 0.0, %v2516
        %2518 = vmatmul.bf16.gmra.mxu0 %v2366
        %v2519 = vpop.f32.mrf.mxu0
        %v2520 = vadd.f32 0.0, %v2519
        %v2521 = vpop.f32.mrf.mxu0
        %v2522 = vadd.f32 0.0, %v2521
        %2523 = vmatmul.bf16.gmra.mxu0 %v2367
        %v2524 = vpop.f32.mrf.mxu0
        %v2525 = vadd.f32 0.0, %v2524
        %v2526 = vpop.f32.mrf.mxu0
        %v2527 = vadd.f32 0.0, %v2526
        %2528 = vmatmul.bf16.gmra.mxu0 %v2368
        %v2529 = vpop.f32.mrf.mxu0
        %v2530 = vadd.f32 0.0, %v2529
        %v2531 = vpop.f32.mrf.mxu0
        %v2532 = vadd.f32 0.0, %v2531
        %2533 = vmatmul.bf16.gmra.mxu0 %v2369
        %v2534 = vpop.f32.mrf.mxu0
        %v2535 = vadd.f32 0.0, %v2534
        %v2536 = vpop.f32.mrf.mxu0
        %v2537 = vadd.f32 0.0, %v2536
        %2538 = vmatmul.bf16.gmra.mxu0 %v2370
        %v2539 = vpop.f32.mrf.mxu0
        %v2540 = vadd.f32 0.0, %v2539
        %v2541 = vpop.f32.mrf.mxu0
        %v2542 = vadd.f32 0.0, %v2541
        %2543 = vmatmul.bf16.gmra.mxu0 %v2371
        %v2544 = vpop.f32.mrf.mxu0
        %v2545 = vadd.f32 0.0, %v2544
        %v2546 = vpop.f32.mrf.mxu0
        %v2547 = vadd.f32 0.0, %v2546
        %2548 = vmatmul.bf16.gmra.mxu0 %v2372
        %v2549 = vpop.f32.mrf.mxu0
        %v2550 = vadd.f32 0.0, %v2549
        %v2551 = vpop.f32.mrf.mxu0
        %v2552 = vadd.f32 0.0, %v2551
        %2553 = vmatmul.bf16.gmra.mxu0 %v2373
        %v2554 = vpop.f32.mrf.mxu0
        %v2555 = vadd.f32 0.0, %v2554
        %v2556 = vpop.f32.mrf.mxu0
        %v2557 = vadd.f32 0.0, %v2556
        %2558 = vmatmul.bf16.gmra.mxu0 %v2374
        %v2559 = vpop.f32.mrf.mxu0
        %v2560 = vadd.f32 0.0, %v2559
        %v2561 = vpop.f32.mrf.mxu0
        %v2562 = vadd.f32 0.0, %v2561
        %2563 = vmatmul.bf16.gmra.mxu0 %v2375
        %v2564 = vpop.f32.mrf.mxu0
        %v2565 = vadd.f32 0.0, %v2564
        %v2566 = vpop.f32.mrf.mxu0
        %v2567 = vadd.f32 0.0, %v2566
        %2568 = vmatmul.bf16.gmra.mxu0 %v2376
        %v2569 = vpop.f32.mrf.mxu0
        %v2570 = vadd.f32 0.0, %v2569
        %v2571 = vpop.f32.mrf.mxu0
        %v2572 = vadd.f32 0.0, %v2571
        %2573 = vmatmul.bf16.gmra.mxu0 %v2377
        %v2574 = vpop.f32.mrf.mxu0
        %v2575 = vadd.f32 0.0, %v2574
        %v2576 = vpop.f32.mrf.mxu0
        %v2577 = vadd.f32 0.0, %v2576
        %2578 = vmatmul.bf16.gmra.mxu0 %v2378
        %v2579 = vpop.f32.mrf.mxu0
        %v2580 = vadd.f32 0.0, %v2579
        %v2581 = vpop.f32.mrf.mxu0
        %v2582 = vadd.f32 0.0, %v2581
        %2583 = vmatmul.bf16.gmra.mxu0 %v2379
        %v2584 = vpop.f32.mrf.mxu0
        %v2585 = vadd.f32 0.0, %v2584
        %v2586 = vpop.f32.mrf.mxu0
        %v2587 = vadd.f32 0.0, %v2586
        %2588 = vmatmul.bf16.gmra.mxu0 %v2380
        %v2589 = vpop.f32.mrf.mxu0
        %v2590 = vadd.f32 0.0, %v2589
        %v2591 = vpop.f32.mrf.mxu0
        %v2592 = vadd.f32 0.0, %v2591
        %2593 = vmatmul.bf16.gmra.mxu0 %v2381
        %v2594 = vpop.f32.mrf.mxu0
        %v2595 = vadd.f32 0.0, %v2594
        %v2596 = vpop.f32.mrf.mxu0
        %v2597 = vadd.f32 0.0, %v2596
        %2598 = vmatmul.bf16.gmra.mxu0 %v2382
        %v2599 = vpop.f32.mrf.mxu0
        %v2600 = vadd.f32 0.0, %v2599
        %v2601 = vpop.f32.mrf.mxu0
        %v2602 = vadd.f32 0.0, %v2601
        %2603 = vmatmul.bf16.gmra.mxu0 %v2383
        %v2604 = vpop.f32.mrf.mxu0
        %v2605 = vadd.f32 0.0, %v2604
        %v2606 = vpop.f32.mrf.mxu0
        %v2607 = vadd.f32 0.0, %v2606
        %2608 = vmatmul.bf16.gmra.mxu0 %v2384
        %v2609 = vpop.f32.mrf.mxu0
        %v2610 = vadd.f32 0.0, %v2609
        %v2611 = vpop.f32.mrf.mxu0
        %v2612 = vadd.f32 0.0, %v2611
        %2613 = vmatmul.bf16.gmra.mxu0 %v2385
        %v2614 = vpop.f32.mrf.mxu0
        %v2615 = vadd.f32 0.0, %v2614
        %v2616 = vpop.f32.mrf.mxu0
        %v2617 = vadd.f32 0.0, %v2616
        %2618 = vmatmul.bf16.gmra.mxu0 %v2386
        %v2619 = vpop.f32.mrf.mxu0
        %v2620 = vadd.f32 0.0, %v2619
        %v2621 = vpop.f32.mrf.mxu0
        %v2622 = vadd.f32 0.0, %v2621
        %2623 = vmatmul.bf16.gmra.mxu0 %v2387
        %v2624 = vpop.f32.mrf.mxu0
        %v2625 = vadd.f32 0.0, %v2624
        %v2626 = vpop.f32.mrf.mxu0
        %v2627 = vadd.f32 0.0, %v2626
        %2628 = vmatmul.bf16.gmra.mxu0 %v2388
        %v2629 = vpop.f32.mrf.mxu0
        %v2630 = vadd.f32 0.0, %v2629
        %v2631 = vpop.f32.mrf.mxu0
        %v2632 = vadd.f32 0.0, %v2631
        %2633 = vmatmul.bf16.gmra.mxu0 %v2389
        %v2634 = vpop.f32.mrf.mxu0
        %v2635 = vadd.f32 0.0, %v2634
        %v2636 = vpop.f32.mrf.mxu0
        %v2637 = vadd.f32 0.0, %v2636
        %2638 = vdwg.mxu0
        %v2639 = vadd.f32 %v1827, %v2480
        %v2640 = vadd.f32 %v1829, %v2482
        %v2641 = vadd.f32 %v1832, %v2485
        %v2642 = vadd.f32 %v1834, %v2487
        %v2643 = vadd.f32 %v1837, %v2490
        %v2644 = vadd.f32 %v1839, %v2492
        %v2645 = vadd.f32 %v1842, %v2495
        %v2646 = vadd.f32 %v1844, %v2497
        %v2647 = vadd.f32 %v1847, %v2500
        %v2648 = vadd.f32 %v1849, %v2502
        %v2649 = vadd.f32 %v1852, %v2505
        %v2650 = vadd.f32 %v1854, %v2507
        %v2651 = vadd.f32 %v1857, %v2510
        %v2652 = vadd.f32 %v1859, %v2512
        %v2653 = vadd.f32 %v1862, %v2515
        %v2654 = vadd.f32 %v1864, %v2517
        %v2655 = vadd.f32 %v1867, %v2520
        %v2656 = vadd.f32 %v1869, %v2522
        %v2657 = vadd.f32 %v1872, %v2525
        %v2658 = vadd.f32 %v1874, %v2527
        %v2659 = vadd.f32 %v1877, %v2530
        %v2660 = vadd.f32 %v1879, %v2532
        %v2661 = vadd.f32 %v1882, %v2535
        %v2662 = vadd.f32 %v1884, %v2537
        %v2663 = vadd.f32 %v1887, %v2540
        %v2664 = vadd.f32 %v1889, %v2542
        %v2665 = vadd.f32 %v1892, %v2545
        %v2666 = vadd.f32 %v1894, %v2547
        %v2667 = vadd.f32 %v1897, %v2550
        %v2668 = vadd.f32 %v1899, %v2552
        %v2669 = vadd.f32 %v1902, %v2555
        %v2670 = vadd.f32 %v1904, %v2557
        %v2671 = vadd.f32 %v1907, %v2560
        %v2672 = vadd.f32 %v1909, %v2562
        %v2673 = vadd.f32 %v1912, %v2565
        %v2674 = vadd.f32 %v1914, %v2567
        %v2675 = vadd.f32 %v1917, %v2570
        %v2676 = vadd.f32 %v1919, %v2572
        %v2677 = vadd.f32 %v1922, %v2575
        %v2678 = vadd.f32 %v1924, %v2577
        %v2679 = vadd.f32 %v1927, %v2580
        %v2680 = vadd.f32 %v1929, %v2582
        %v2681 = vadd.f32 %v1932, %v2585
        %v2682 = vadd.f32 %v1934, %v2587
        %v2683 = vadd.f32 %v1937, %v2590
        %v2684 = vadd.f32 %v1939, %v2592
        %v2685 = vadd.f32 %v1942, %v2595
        %v2686 = vadd.f32 %v1944, %v2597
        %v2687 = vadd.f32 %v1947, %v2600
        %v2688 = vadd.f32 %v1949, %v2602
        %v2689 = vadd.f32 %v1952, %v2605
        %v2690 = vadd.f32 %v1954, %v2607
        %v2691 = vadd.f32 %v1957, %v2610
        %v2692 = vadd.f32 %v1959, %v2612
        %v2693 = vadd.f32 %v1962, %v2615
        %v2694 = vadd.f32 %v1964, %v2617
        %v2695 = vadd.f32 %v1967, %v2620
        %v2696 = vadd.f32 %v1969, %v2622
        %v2697 = vadd.f32 %v1972, %v2625
        %v2698 = vadd.f32 %v1974, %v2627
        %v2699 = vadd.f32 %v1977, %v2630
        %v2700 = vadd.f32 %v1979, %v2632
        %v2701 = vadd.f32 %v1982, %v2635
        %v2702 = vadd.f32 %v1984, %v2637
        %s2703 = scalar_lea.vmem %s1, 192
        %v2704 = vld [vmem:[%s2703] sm:$0xf]
        %v2705 = vld [vmem:[%s2703 + $0x4] sm:$0xf]
        %v2706 = vld [vmem:[%s2703 + $0x8] sm:$0xf]
        %v2707 = vld [vmem:[%s2703 + $0xc] sm:$0xf]
        %v2708 = vld [vmem:[%s2703 + $0x10] sm:$0xf]
        %v2709 = vld [vmem:[%s2703 + $0x14] sm:$0xf]
        %v2710 = vld [vmem:[%s2703 + $0x18] sm:$0xf]
        %v2711 = vld [vmem:[%s2703 + $0x1c] sm:$0xf]
        %v2712 = vld [vmem:[%s2703 + $0x20] sm:$0xf]
        %v2713 = vld [vmem:[%s2703 + $0x24] sm:$0xf]
        %v2714 = vld [vmem:[%s2703 + $0x28] sm:$0xf]
        %v2715 = vld [vmem:[%s2703 + $0x2c] sm:$0xf]
        %v2716 = vld [vmem:[%s2703 + $0x30] sm:$0xf]
        %v2717 = vld [vmem:[%s2703 + $0x34] sm:$0xf]
        %v2718 = vld [vmem:[%s2703 + $0x38] sm:$0xf]
        %v2719 = vld [vmem:[%s2703 + $0x3c] sm:$0xf]
        %v2724 = vunpack.c.l.b16 %v316
        %v2725 = vunpack.c.l.b16 %v317
        %v2726 = vunpack.c.l.b16 %v352
        %v2727 = vunpack.c.l.b16 %v353
        %v2728 = vpack.c.b16 %v2725, %v2724
        %v2729 = vpack.c.b16 %v2727, %v2726
        %v2748 = vunpack.c.l.b16 %v2704
        %v2749 = vunpack.c.l.b16 %v2705
        %v2750 = vunpack.c.l.b16 %v2706
        %v2751 = vunpack.c.l.b16 %v2707
        %v2752 = vunpack.c.l.b16 %v2708
        %v2753 = vunpack.c.l.b16 %v2709
        %v2754 = vunpack.c.l.b16 %v2710
        %v2755 = vunpack.c.l.b16 %v2711
        %v2756 = vunpack.c.l.b16 %v2712
        %v2757 = vunpack.c.l.b16 %v2713
        %v2758 = vunpack.c.l.b16 %v2714
        %v2759 = vunpack.c.l.b16 %v2715
        %v2760 = vunpack.c.l.b16 %v2716
        %v2761 = vunpack.c.l.b16 %v2717
        %v2762 = vunpack.c.l.b16 %v2718
        %v2763 = vunpack.c.l.b16 %v2719
        %v2764 = vpack.c.b16 %v2749, %v2748
        %v2765 = vpack.c.b16 %v2751, %v2750
        %v2766 = vpack.c.b16 %v2753, %v2752
        %v2767 = vpack.c.b16 %v2755, %v2754
        %v2768 = vpack.c.b16 %v2757, %v2756
        %v2769 = vpack.c.b16 %v2759, %v2758
        %v2770 = vpack.c.b16 %v2761, %v2760
        %v2771 = vpack.c.b16 %v2763, %v2762
        %2780 = vmatpush.bf16.msra.mxu0 %v2771
        %2781 = vmatpush.bf16.msra.mxu0 %v2770
        %2782 = vmatpush.bf16.msra.mxu0 %v2769
        %2783 = vmatpush.bf16.msra.mxu0 %v2768
        %2784 = vmatpush.bf16.msra.mxu0 %v2767
        %2785 = vmatpush.bf16.msra.mxu0 %v2766
        %2786 = vmatpush.bf16.msra.mxu0 %v2765
        %2787 = vmatpush.bf16.msra.mxu0 %v2764
        %2788 = vmatmul.bf16.gmra.mxu0 %v1706
        %v2789 = vpop.f32.mrf.mxu0
        %v2790 = vadd.f32 0.0, %v2789
        %v2791 = vpop.f32.mrf.mxu0
        %v2792 = vadd.f32 0.0, %v2791
        %2793 = vmatmul.bf16.gmra.mxu0 %v1707
        %v2794 = vpop.f32.mrf.mxu0
        %v2795 = vadd.f32 0.0, %v2794
        %v2796 = vpop.f32.mrf.mxu0
        %v2797 = vadd.f32 0.0, %v2796
        %2798 = vmatmul.bf16.gmra.mxu0 %v1708
        %v2799 = vpop.f32.mrf.mxu0
        %v2800 = vadd.f32 0.0, %v2799
        %v2801 = vpop.f32.mrf.mxu0
        %v2802 = vadd.f32 0.0, %v2801
        %2803 = vmatmul.bf16.gmra.mxu0 %v1709
        %v2804 = vpop.f32.mrf.mxu0
        %v2805 = vadd.f32 0.0, %v2804
        %v2806 = vpop.f32.mrf.mxu0
        %v2807 = vadd.f32 0.0, %v2806
        %2808 = vmatmul.bf16.gmra.mxu0 %v1710
        %v2809 = vpop.f32.mrf.mxu0
        %v2810 = vadd.f32 0.0, %v2809
        %v2811 = vpop.f32.mrf.mxu0
        %v2812 = vadd.f32 0.0, %v2811
        %2813 = vmatmul.bf16.gmra.mxu0 %v1711
        %v2814 = vpop.f32.mrf.mxu0
        %v2815 = vadd.f32 0.0, %v2814
        %v2816 = vpop.f32.mrf.mxu0
        %v2817 = vadd.f32 0.0, %v2816
        %2818 = vmatmul.bf16.gmra.mxu0 %v1712
        %v2819 = vpop.f32.mrf.mxu0
        %v2820 = vadd.f32 0.0, %v2819
        %v2821 = vpop.f32.mrf.mxu0
        %v2822 = vadd.f32 0.0, %v2821
        %2823 = vmatmul.bf16.gmra.mxu0 %v1713
        %v2824 = vpop.f32.mrf.mxu0
        %v2825 = vadd.f32 0.0, %v2824
        %v2826 = vpop.f32.mrf.mxu0
        %v2827 = vadd.f32 0.0, %v2826
        %2828 = vmatmul.bf16.gmra.mxu0 %v1714
        %v2829 = vpop.f32.mrf.mxu0
        %v2830 = vadd.f32 0.0, %v2829
        %v2831 = vpop.f32.mrf.mxu0
        %v2832 = vadd.f32 0.0, %v2831
        %2833 = vmatmul.bf16.gmra.mxu0 %v1715
        %v2834 = vpop.f32.mrf.mxu0
        %v2835 = vadd.f32 0.0, %v2834
        %v2836 = vpop.f32.mrf.mxu0
        %v2837 = vadd.f32 0.0, %v2836
        %2838 = vmatmul.bf16.gmra.mxu0 %v1716
        %v2839 = vpop.f32.mrf.mxu0
        %v2840 = vadd.f32 0.0, %v2839
        %v2841 = vpop.f32.mrf.mxu0
        %v2842 = vadd.f32 0.0, %v2841
        %2843 = vmatmul.bf16.gmra.mxu0 %v1717
        %v2844 = vpop.f32.mrf.mxu0
        %v2845 = vadd.f32 0.0, %v2844
        %v2846 = vpop.f32.mrf.mxu0
        %v2847 = vadd.f32 0.0, %v2846
        %2848 = vmatmul.bf16.gmra.mxu0 %v1718
        %v2849 = vpop.f32.mrf.mxu0
        %v2850 = vadd.f32 0.0, %v2849
        %v2851 = vpop.f32.mrf.mxu0
        %v2852 = vadd.f32 0.0, %v2851
        %2853 = vmatmul.bf16.gmra.mxu0 %v1719
        %v2854 = vpop.f32.mrf.mxu0
        %v2855 = vadd.f32 0.0, %v2854
        %v2856 = vpop.f32.mrf.mxu0
        %v2857 = vadd.f32 0.0, %v2856
        %2858 = vmatmul.bf16.gmra.mxu0 %v1720
        %v2859 = vpop.f32.mrf.mxu0
        %v2860 = vadd.f32 0.0, %v2859
        %v2861 = vpop.f32.mrf.mxu0
        %v2862 = vadd.f32 0.0, %v2861
        %2863 = vmatmul.bf16.gmra.mxu0 %v2728
        %v2864 = vpop.f32.mrf.mxu0
        %v2865 = vadd.f32 0.0, %v2864
        %v2866 = vpop.f32.mrf.mxu0
        %v2867 = vadd.f32 0.0, %v2866
        %2868 = vmatmul.bf16.gmra.mxu0 %v1722
        %v2869 = vpop.f32.mrf.mxu0
        %v2870 = vadd.f32 0.0, %v2869
        %v2871 = vpop.f32.mrf.mxu0
        %v2872 = vadd.f32 0.0, %v2871
        %2873 = vmatmul.bf16.gmra.mxu0 %v1723
        %v2874 = vpop.f32.mrf.mxu0
        %v2875 = vadd.f32 0.0, %v2874
        %v2876 = vpop.f32.mrf.mxu0
        %v2877 = vadd.f32 0.0, %v2876
        %2878 = vmatmul.bf16.gmra.mxu0 %v1724
        %v2879 = vpop.f32.mrf.mxu0
        %v2880 = vadd.f32 0.0, %v2879
        %v2881 = vpop.f32.mrf.mxu0
        %v2882 = vadd.f32 0.0, %v2881
        %2883 = vmatmul.bf16.gmra.mxu0 %v1725
        %v2884 = vpop.f32.mrf.mxu0
        %v2885 = vadd.f32 0.0, %v2884
        %v2886 = vpop.f32.mrf.mxu0
        %v2887 = vadd.f32 0.0, %v2886
        %2888 = vmatmul.bf16.gmra.mxu0 %v1726
        %v2889 = vpop.f32.mrf.mxu0
        %v2890 = vadd.f32 0.0, %v2889
        %v2891 = vpop.f32.mrf.mxu0
        %v2892 = vadd.f32 0.0, %v2891
        %2893 = vmatmul.bf16.gmra.mxu0 %v1727
        %v2894 = vpop.f32.mrf.mxu0
        %v2895 = vadd.f32 0.0, %v2894
        %v2896 = vpop.f32.mrf.mxu0
        %v2897 = vadd.f32 0.0, %v2896
        %2898 = vmatmul.bf16.gmra.mxu0 %v1728
        %v2899 = vpop.f32.mrf.mxu0
        %v2900 = vadd.f32 0.0, %v2899
        %v2901 = vpop.f32.mrf.mxu0
        %v2902 = vadd.f32 0.0, %v2901
        %2903 = vmatmul.bf16.gmra.mxu0 %v1729
        %v2904 = vpop.f32.mrf.mxu0
        %v2905 = vadd.f32 0.0, %v2904
        %v2906 = vpop.f32.mrf.mxu0
        %v2907 = vadd.f32 0.0, %v2906
        %2908 = vmatmul.bf16.gmra.mxu0 %v1730
        %v2909 = vpop.f32.mrf.mxu0
        %v2910 = vadd.f32 0.0, %v2909
        %v2911 = vpop.f32.mrf.mxu0
        %v2912 = vadd.f32 0.0, %v2911
        %2913 = vmatmul.bf16.gmra.mxu0 %v1731
        %v2914 = vpop.f32.mrf.mxu0
        %v2915 = vadd.f32 0.0, %v2914
        %v2916 = vpop.f32.mrf.mxu0
        %v2917 = vadd.f32 0.0, %v2916
        %2918 = vmatmul.bf16.gmra.mxu0 %v1732
        %v2919 = vpop.f32.mrf.mxu0
        %v2920 = vadd.f32 0.0, %v2919
        %v2921 = vpop.f32.mrf.mxu0
        %v2922 = vadd.f32 0.0, %v2921
        %2923 = vmatmul.bf16.gmra.mxu0 %v1733
        %v2924 = vpop.f32.mrf.mxu0
        %v2925 = vadd.f32 0.0, %v2924
        %v2926 = vpop.f32.mrf.mxu0
        %v2927 = vadd.f32 0.0, %v2926
        %2928 = vmatmul.bf16.gmra.mxu0 %v1734
        %v2929 = vpop.f32.mrf.mxu0
        %v2930 = vadd.f32 0.0, %v2929
        %v2931 = vpop.f32.mrf.mxu0
        %v2932 = vadd.f32 0.0, %v2931
        %2933 = vmatmul.bf16.gmra.mxu0 %v1735
        %v2934 = vpop.f32.mrf.mxu0
        %v2935 = vadd.f32 0.0, %v2934
        %v2936 = vpop.f32.mrf.mxu0
        %v2937 = vadd.f32 0.0, %v2936
        %2938 = vmatmul.bf16.gmra.mxu0 %v1736
        %v2939 = vpop.f32.mrf.mxu0
        %v2940 = vadd.f32 0.0, %v2939
        %v2941 = vpop.f32.mrf.mxu0
        %v2942 = vadd.f32 0.0, %v2941
        %2943 = vmatmul.bf16.gmra.mxu0 %v2729
        %v2944 = vpop.f32.mrf.mxu0
        %v2945 = vadd.f32 0.0, %v2944
        %v2946 = vpop.f32.mrf.mxu0
        %v2947 = vadd.f32 0.0, %v2946
        %2948 = vdwg.mxu0
        %v2949 = vadd.f32 %v2639, %v2790
        %v2950 = vadd.f32 %v2640, %v2792
        %v2951 = vadd.f32 %v2641, %v2795
        %v2952 = vadd.f32 %v2642, %v2797
        %v2953 = vadd.f32 %v2643, %v2800
        %v2954 = vadd.f32 %v2644, %v2802
        %v2955 = vadd.f32 %v2645, %v2805
        %v2956 = vadd.f32 %v2646, %v2807
        %v2957 = vadd.f32 %v2647, %v2810
        %v2958 = vadd.f32 %v2648, %v2812
        %v2959 = vadd.f32 %v2649, %v2815
        %v2960 = vadd.f32 %v2650, %v2817
        %v2961 = vadd.f32 %v2651, %v2820
        %v2962 = vadd.f32 %v2652, %v2822
        %v2963 = vadd.f32 %v2653, %v2825
        %v2964 = vadd.f32 %v2654, %v2827
        %v2965 = vadd.f32 %v2655, %v2830
        %v2966 = vadd.f32 %v2656, %v2832
        %v2967 = vadd.f32 %v2657, %v2835
        %v2968 = vadd.f32 %v2658, %v2837
        %v2969 = vadd.f32 %v2659, %v2840
        %v2970 = vadd.f32 %v2660, %v2842
        %v2971 = vadd.f32 %v2661, %v2845
        %v2972 = vadd.f32 %v2662, %v2847
        %v2973 = vadd.f32 %v2663, %v2850
        %v2974 = vadd.f32 %v2664, %v2852
        %v2975 = vadd.f32 %v2665, %v2855
        %v2976 = vadd.f32 %v2666, %v2857
        %v2977 = vadd.f32 %v2667, %v2860
        %v2978 = vadd.f32 %v2668, %v2862
        %v2979 = vadd.f32 %v2669, %v2865
        %v2980 = vadd.f32 %v2670, %v2867
        %v2981 = vadd.f32 %v2671, %v2870
        %v2982 = vadd.f32 %v2672, %v2872
        %v2983 = vadd.f32 %v2673, %v2875
        %v2984 = vadd.f32 %v2674, %v2877
        %v2985 = vadd.f32 %v2675, %v2880
        %v2986 = vadd.f32 %v2676, %v2882
        %v2987 = vadd.f32 %v2677, %v2885
        %v2988 = vadd.f32 %v2678, %v2887
        %v2989 = vadd.f32 %v2679, %v2890
        %v2990 = vadd.f32 %v2680, %v2892
        %v2991 = vadd.f32 %v2681, %v2895
        %v2992 = vadd.f32 %v2682, %v2897
        %v2993 = vadd.f32 %v2683, %v2900
        %v2994 = vadd.f32 %v2684, %v2902
        %v2995 = vadd.f32 %v2685, %v2905
        %v2996 = vadd.f32 %v2686, %v2907
        %v2997 = vadd.f32 %v2687, %v2910
        %v2998 = vadd.f32 %v2688, %v2912
        %v2999 = vadd.f32 %v2689, %v2915
        %v3000 = vadd.f32 %v2690, %v2917
        %v3001 = vadd.f32 %v2691, %v2920
        %v3002 = vadd.f32 %v2692, %v2922
        %v3003 = vadd.f32 %v2693, %v2925
        %v3004 = vadd.f32 %v2694, %v2927
        %v3005 = vadd.f32 %v2695, %v2930
        %v3006 = vadd.f32 %v2696, %v2932
        %v3007 = vadd.f32 %v2697, %v2935
        %v3008 = vadd.f32 %v2698, %v2937
        %v3009 = vadd.f32 %v2699, %v2940
        %v3010 = vadd.f32 %v2700, %v2942
        %v3011 = vadd.f32 %v2701, %v2945
        %v3012 = vadd.f32 %v2702, %v2947
        %v3014 = vshrl.u32 %v316, 16
        %v3016 = vrot.slane %v3014, 4
        %v3017 = vshll.u32 %v316, 16
        %v3019 = vrot.slane %v3017, 5
        %v3020 = vor.u32 %v3016, %v3019
        %v3021 = vrot.slane %v3020, 4
        %v3023 = vshll.u32 %v317, 16
        %v3025 = vrot.slane %v3023, 5
        %v3026 = vsel %vm446, %v3021, %v3025
        %v3027 = vshrl.u32 %v317, 16
        %v3029 = vrot.slane %v3027, 4
        %v3030 = vor.u32 %v3029, %v3025
        %v3031 = vrot.slane %v3030, 4
        %v3033 = vshll.u32 %v372, 16
        %v3035 = vrot.slane %v3033, 5
        %v3036 = vsel %vm446, %v3031, %v3035
        %v3038 = vshrl.u32 %v352, 16
        %v3040 = vrot.slane %v3038, 4
        %v3041 = vshll.u32 %v352, 16
        %v3043 = vrot.slane %v3041, 5
        %v3044 = vor.u32 %v3040, %v3043
        %v3045 = vrot.slane %v3044, 4
        %v3047 = vshll.u32 %v353, 16
        %v3049 = vrot.slane %v3047, 5
        %v3050 = vsel %vm446, %v3045, %v3049
        %v3051 = vshrl.u32 %v353, 16
        %v3053 = vrot.slane %v3051, 4
        %v3054 = vor.u32 %v3053, %v3049
        %v3055 = vrot.slane %v3054, 4
        %v3057 = vshll.u32 %v390, 16
        %v3059 = vrot.slane %v3057, 5
        %v3060 = vsel %vm446, %v3055, %v3059
        %s3061 = scalar_lea.vmem %s1, 256
        %v3062 = vld [vmem:[%s3061] sm:$0xf]
        %v3063 = vld [vmem:[%s3061 + $0x4] sm:$0xf]
        %v3064 = vld [vmem:[%s3061 + $0x8] sm:$0xf]
        %v3065 = vld [vmem:[%s3061 + $0xc] sm:$0xf]
        %v3066 = vld [vmem:[%s3061 + $0x10] sm:$0xf]
        %v3067 = vld [vmem:[%s3061 + $0x14] sm:$0xf]
        %v3068 = vld [vmem:[%s3061 + $0x18] sm:$0xf]
        %v3069 = vld [vmem:[%s3061 + $0x1c] sm:$0xf]
        %v3070 = vld [vmem:[%s3061 + $0x20] sm:$0xf]
        %v3071 = vld [vmem:[%s3061 + $0x24] sm:$0xf]
        %v3072 = vld [vmem:[%s3061 + $0x28] sm:$0xf]
        %v3073 = vld [vmem:[%s3061 + $0x2c] sm:$0xf]
        %v3074 = vld [vmem:[%s3061 + $0x30] sm:$0xf]
        %v3075 = vld [vmem:[%s3061 + $0x34] sm:$0xf]
        %v3076 = vld [vmem:[%s3061 + $0x38] sm:$0xf]
        %v3077 = vld [vmem:[%s3061 + $0x3c] sm:$0xf]
        %v3078 = vunpack.c.l.b16 %v3026
        %v3079 = vunpack.c.l.b16 %v3036
        %v3080 = vunpack.c.l.b16 %v3050
        %v3081 = vunpack.c.l.b16 %v3060
        %v3082 = vpack.c.b16 %v3079, %v3078
        %v3083 = vpack.c.b16 %v3081, %v3080
        %v3102 = vunpack.c.l.b16 %v3062
        %v3103 = vunpack.c.l.b16 %v3063
        %v3104 = vunpack.c.l.b16 %v3064
        %v3105 = vunpack.c.l.b16 %v3065
        %v3106 = vunpack.c.l.b16 %v3066
        %v3107 = vunpack.c.l.b16 %v3067
        %v3108 = vunpack.c.l.b16 %v3068
        %v3109 = vunpack.c.l.b16 %v3069
        %v3110 = vunpack.c.l.b16 %v3070
        %v3111 = vunpack.c.l.b16 %v3071
        %v3112 = vunpack.c.l.b16 %v3072
        %v3113 = vunpack.c.l.b16 %v3073
        %v3114 = vunpack.c.l.b16 %v3074
        %v3115 = vunpack.c.l.b16 %v3075
        %v3116 = vunpack.c.l.b16 %v3076
        %v3117 = vunpack.c.l.b16 %v3077
        %v3118 = vpack.c.b16 %v3103, %v3102
        %v3119 = vpack.c.b16 %v3105, %v3104
        %v3120 = vpack.c.b16 %v3107, %v3106
        %v3121 = vpack.c.b16 %v3109, %v3108
        %v3122 = vpack.c.b16 %v3111, %v3110
        %v3123 = vpack.c.b16 %v3113, %v3112
        %v3124 = vpack.c.b16 %v3115, %v3114
        %v3125 = vpack.c.b16 %v3117, %v3116
        %3134 = vmatpush.bf16.msra.mxu0 %v3125
        %3135 = vmatpush.bf16.msra.mxu0 %v3124
        %3136 = vmatpush.bf16.msra.mxu0 %v3123
        %3137 = vmatpush.bf16.msra.mxu0 %v3122
        %3138 = vmatpush.bf16.msra.mxu0 %v3121
        %3139 = vmatpush.bf16.msra.mxu0 %v3120
        %3140 = vmatpush.bf16.msra.mxu0 %v3119
        %3141 = vmatpush.bf16.msra.mxu0 %v3118
        %3142 = vmatmul.bf16.gmra.mxu0 %v1297
        %v3143 = vpop.f32.mrf.mxu0
        %v3144 = vadd.f32 0.0, %v3143
        %v3145 = vpop.f32.mrf.mxu0
        %v3146 = vadd.f32 0.0, %v3145
        %3147 = vmatmul.bf16.gmra.mxu0 %v1298
        %v3148 = vpop.f32.mrf.mxu0
        %v3149 = vadd.f32 0.0, %v3148
        %v3150 = vpop.f32.mrf.mxu0
        %v3151 = vadd.f32 0.0, %v3150
        %3152 = vmatmul.bf16.gmra.mxu0 %v1299
        %v3153 = vpop.f32.mrf.mxu0
        %v3154 = vadd.f32 0.0, %v3153
        %v3155 = vpop.f32.mrf.mxu0
        %v3156 = vadd.f32 0.0, %v3155
        %3157 = vmatmul.bf16.gmra.mxu0 %v1300
        %v3158 = vpop.f32.mrf.mxu0
        %v3159 = vadd.f32 0.0, %v3158
        %v3160 = vpop.f32.mrf.mxu0
        %v3161 = vadd.f32 0.0, %v3160
        %3162 = vmatmul.bf16.gmra.mxu0 %v1301
        %v3163 = vpop.f32.mrf.mxu0
        %v3164 = vadd.f32 0.0, %v3163
        %v3165 = vpop.f32.mrf.mxu0
        %v3166 = vadd.f32 0.0, %v3165
        %3167 = vmatmul.bf16.gmra.mxu0 %v1302
        %v3168 = vpop.f32.mrf.mxu0
        %v3169 = vadd.f32 0.0, %v3168
        %v3170 = vpop.f32.mrf.mxu0
        %v3171 = vadd.f32 0.0, %v3170
        %3172 = vmatmul.bf16.gmra.mxu0 %v1303
        %v3173 = vpop.f32.mrf.mxu0
        %v3174 = vadd.f32 0.0, %v3173
        %v3175 = vpop.f32.mrf.mxu0
        %v3176 = vadd.f32 0.0, %v3175
        %3177 = vmatmul.bf16.gmra.mxu0 %v1304
        %v3178 = vpop.f32.mrf.mxu0
        %v3179 = vadd.f32 0.0, %v3178
        %v3180 = vpop.f32.mrf.mxu0
        %v3181 = vadd.f32 0.0, %v3180
        %3182 = vmatmul.bf16.gmra.mxu0 %v1305
        %v3183 = vpop.f32.mrf.mxu0
        %v3184 = vadd.f32 0.0, %v3183
        %v3185 = vpop.f32.mrf.mxu0
        %v3186 = vadd.f32 0.0, %v3185
        %3187 = vmatmul.bf16.gmra.mxu0 %v1306
        %v3188 = vpop.f32.mrf.mxu0
        %v3189 = vadd.f32 0.0, %v3188
        %v3190 = vpop.f32.mrf.mxu0
        %v3191 = vadd.f32 0.0, %v3190
        %3192 = vmatmul.bf16.gmra.mxu0 %v1307
        %v3193 = vpop.f32.mrf.mxu0
        %v3194 = vadd.f32 0.0, %v3193
        %v3195 = vpop.f32.mrf.mxu0
        %v3196 = vadd.f32 0.0, %v3195
        %3197 = vmatmul.bf16.gmra.mxu0 %v1308
        %v3198 = vpop.f32.mrf.mxu0
        %v3199 = vadd.f32 0.0, %v3198
        %v3200 = vpop.f32.mrf.mxu0
        %v3201 = vadd.f32 0.0, %v3200
        %3202 = vmatmul.bf16.gmra.mxu0 %v1309
        %v3203 = vpop.f32.mrf.mxu0
        %v3204 = vadd.f32 0.0, %v3203
        %v3205 = vpop.f32.mrf.mxu0
        %v3206 = vadd.f32 0.0, %v3205
        %3207 = vmatmul.bf16.gmra.mxu0 %v1310
        %v3208 = vpop.f32.mrf.mxu0
        %v3209 = vadd.f32 0.0, %v3208
        %v3210 = vpop.f32.mrf.mxu0
        %v3211 = vadd.f32 0.0, %v3210
        %3212 = vmatmul.bf16.gmra.mxu0 %v1311
        %v3213 = vpop.f32.mrf.mxu0
        %v3214 = vadd.f32 0.0, %v3213
        %v3215 = vpop.f32.mrf.mxu0
        %v3216 = vadd.f32 0.0, %v3215
        %3217 = vmatmul.bf16.gmra.mxu0 %v3082
        %v3218 = vpop.f32.mrf.mxu0
        %v3219 = vadd.f32 0.0, %v3218
        %v3220 = vpop.f32.mrf.mxu0
        %v3221 = vadd.f32 0.0, %v3220
        %3222 = vmatmul.bf16.gmra.mxu0 %v1313
        %v3223 = vpop.f32.mrf.mxu0
        %v3224 = vadd.f32 0.0, %v3223
        %v3225 = vpop.f32.mrf.mxu0
        %v3226 = vadd.f32 0.0, %v3225
        %3227 = vmatmul.bf16.gmra.mxu0 %v1314
        %v3228 = vpop.f32.mrf.mxu0
        %v3229 = vadd.f32 0.0, %v3228
        %v3230 = vpop.f32.mrf.mxu0
        %v3231 = vadd.f32 0.0, %v3230
        %3232 = vmatmul.bf16.gmra.mxu0 %v1315
        %v3233 = vpop.f32.mrf.mxu0
        %v3234 = vadd.f32 0.0, %v3233
        %v3235 = vpop.f32.mrf.mxu0
        %v3236 = vadd.f32 0.0, %v3235
        %3237 = vmatmul.bf16.gmra.mxu0 %v1316
        %v3238 = vpop.f32.mrf.mxu0
        %v3239 = vadd.f32 0.0, %v3238
        %v3240 = vpop.f32.mrf.mxu0
        %v3241 = vadd.f32 0.0, %v3240
        %3242 = vmatmul.bf16.gmra.mxu0 %v1317
        %v3243 = vpop.f32.mrf.mxu0
        %v3244 = vadd.f32 0.0, %v3243
        %v3245 = vpop.f32.mrf.mxu0
        %v3246 = vadd.f32 0.0, %v3245
        %3247 = vmatmul.bf16.gmra.mxu0 %v1318
        %v3248 = vpop.f32.mrf.mxu0
        %v3249 = vadd.f32 0.0, %v3248
        %v3250 = vpop.f32.mrf.mxu0
        %v3251 = vadd.f32 0.0, %v3250
        %3252 = vmatmul.bf16.gmra.mxu0 %v1319
        %v3253 = vpop.f32.mrf.mxu0
        %v3254 = vadd.f32 0.0, %v3253
        %v3255 = vpop.f32.mrf.mxu0
        %v3256 = vadd.f32 0.0, %v3255
        %3257 = vmatmul.bf16.gmra.mxu0 %v1320
        %v3258 = vpop.f32.mrf.mxu0
        %v3259 = vadd.f32 0.0, %v3258
        %v3260 = vpop.f32.mrf.mxu0
        %v3261 = vadd.f32 0.0, %v3260
        %3262 = vmatmul.bf16.gmra.mxu0 %v1321
        %v3263 = vpop.f32.mrf.mxu0
        %v3264 = vadd.f32 0.0, %v3263
        %v3265 = vpop.f32.mrf.mxu0
        %v3266 = vadd.f32 0.0, %v3265
        %3267 = vmatmul.bf16.gmra.mxu0 %v1322
        %v3268 = vpop.f32.mrf.mxu0
        %v3269 = vadd.f32 0.0, %v3268
        %v3270 = vpop.f32.mrf.mxu0
        %v3271 = vadd.f32 0.0, %v3270
        %3272 = vmatmul.bf16.gmra.mxu0 %v1323
        %v3273 = vpop.f32.mrf.mxu0
        %v3274 = vadd.f32 0.0, %v3273
        %v3275 = vpop.f32.mrf.mxu0
        %v3276 = vadd.f32 0.0, %v3275
        %3277 = vmatmul.bf16.gmra.mxu0 %v1324
        %v3278 = vpop.f32.mrf.mxu0
        %v3279 = vadd.f32 0.0, %v3278
        %v3280 = vpop.f32.mrf.mxu0
        %v3281 = vadd.f32 0.0, %v3280
        %3282 = vmatmul.bf16.gmra.mxu0 %v1325
        %v3283 = vpop.f32.mrf.mxu0
        %v3284 = vadd.f32 0.0, %v3283
        %v3285 = vpop.f32.mrf.mxu0
        %v3286 = vadd.f32 0.0, %v3285
        %3287 = vmatmul.bf16.gmra.mxu0 %v1326
        %v3288 = vpop.f32.mrf.mxu0
        %v3289 = vadd.f32 0.0, %v3288
        %v3290 = vpop.f32.mrf.mxu0
        %v3291 = vadd.f32 0.0, %v3290
        %3292 = vmatmul.bf16.gmra.mxu0 %v1327
        %v3293 = vpop.f32.mrf.mxu0
        %v3294 = vadd.f32 0.0, %v3293
        %v3295 = vpop.f32.mrf.mxu0
        %v3296 = vadd.f32 0.0, %v3295
        %3297 = vmatmul.bf16.gmra.mxu0 %v3083
        %v3298 = vpop.f32.mrf.mxu0
        %v3299 = vadd.f32 0.0, %v3298
        %v3300 = vpop.f32.mrf.mxu0
        %v3301 = vadd.f32 0.0, %v3300
        %3302 = vdwg.mxu0
        %v3303 = vadd.f32 %v2949, %v3144
        %v3304 = vadd.f32 %v2950, %v3146
        %v3305 = vadd.f32 %v2951, %v3149
        %v3306 = vadd.f32 %v2952, %v3151
        %v3307 = vadd.f32 %v2953, %v3154
        %v3308 = vadd.f32 %v2954, %v3156
        %v3309 = vadd.f32 %v2955, %v3159
        %v3310 = vadd.f32 %v2956, %v3161
        %v3311 = vadd.f32 %v2957, %v3164
        %v3312 = vadd.f32 %v2958, %v3166
        %v3313 = vadd.f32 %v2959, %v3169
        %v3314 = vadd.f32 %v2960, %v3171
        %v3315 = vadd.f32 %v2961, %v3174
        %v3316 = vadd.f32 %v2962, %v3176
        %v3317 = vadd.f32 %v2963, %v3179
        %v3318 = vadd.f32 %v2964, %v3181
        %v3319 = vadd.f32 %v2965, %v3184
        %v3320 = vadd.f32 %v2966, %v3186
        %v3321 = vadd.f32 %v2967, %v3189
        %v3322 = vadd.f32 %v2968, %v3191
        %v3323 = vadd.f32 %v2969, %v3194
        %v3324 = vadd.f32 %v2970, %v3196
        %v3325 = vadd.f32 %v2971, %v3199
        %v3326 = vadd.f32 %v2972, %v3201
        %v3327 = vadd.f32 %v2973, %v3204
        %v3328 = vadd.f32 %v2974, %v3206
        %v3329 = vadd.f32 %v2975, %v3209
        %v3330 = vadd.f32 %v2976, %v3211
        %v3331 = vadd.f32 %v2977, %v3214
        %v3332 = vadd.f32 %v2978, %v3216
        %v3333 = vadd.f32 %v2979, %v3219
        %v3334 = vadd.f32 %v2980, %v3221
        %v3335 = vadd.f32 %v2981, %v3224
        %v3336 = vadd.f32 %v2982, %v3226
        %v3337 = vadd.f32 %v2983, %v3229
        %v3338 = vadd.f32 %v2984, %v3231
        %v3339 = vadd.f32 %v2985, %v3234
        %v3340 = vadd.f32 %v2986, %v3236
        %v3341 = vadd.f32 %v2987, %v3239
        %v3342 = vadd.f32 %v2988, %v3241
        %v3343 = vadd.f32 %v2989, %v3244
        %v3344 = vadd.f32 %v2990, %v3246
        %v3345 = vadd.f32 %v2991, %v3249
        %v3346 = vadd.f32 %v2992, %v3251
        %v3347 = vadd.f32 %v2993, %v3254
        %v3348 = vadd.f32 %v2994, %v3256
        %v3349 = vadd.f32 %v2995, %v3259
        %v3350 = vadd.f32 %v2996, %v3261
        %v3351 = vadd.f32 %v2997, %v3264
        %v3352 = vadd.f32 %v2998, %v3266
        %v3353 = vadd.f32 %v2999, %v3269
        %v3354 = vadd.f32 %v3000, %v3271
        %v3355 = vadd.f32 %v3001, %v3274
        %v3356 = vadd.f32 %v3002, %v3276
        %v3357 = vadd.f32 %v3003, %v3279
        %v3358 = vadd.f32 %v3004, %v3281
        %v3359 = vadd.f32 %v3005, %v3284
        %v3360 = vadd.f32 %v3006, %v3286
        %v3361 = vadd.f32 %v3007, %v3289
        %v3362 = vadd.f32 %v3008, %v3291
        %v3363 = vadd.f32 %v3009, %v3294
        %v3364 = vadd.f32 %v3010, %v3296
        %v3365 = vadd.f32 %v3011, %v3299
        %v3366 = vadd.f32 %v3012, %v3301
        %v3371 = vrot.slane %v408, 5
        %v3372 = vrot.slane %v3371, 4
        %v3373 = vrot.slane %v317, 5
        %v3374 = vsel %vm2052, %v3372, %v3373
        %v3375 = vrot.slane %v3373, 4
        %v3376 = vrot.slane %v372, 5
        %v3377 = vsel %vm2052, %v3375, %v3376
        %v3378 = vrot.slane %v426, 5
        %v3379 = vrot.slane %v3378, 4
        %v3380 = vrot.slane %v353, 5
        %v3381 = vsel %vm2052, %v3379, %v3380
        %v3382 = vrot.slane %v3380, 4
        %v3383 = vrot.slane %v390, 5
        %v3384 = vsel %vm2052, %v3382, %v3383
        %s3385 = scalar_lea.vmem %s1, 320
        %v3386 = vld [vmem:[%s3385] sm:$0xf]
        %v3387 = vld [vmem:[%s3385 + $0x4] sm:$0xf]
        %v3388 = vld [vmem:[%s3385 + $0x8] sm:$0xf]
        %v3389 = vld [vmem:[%s3385 + $0xc] sm:$0xf]
        %v3390 = vld [vmem:[%s3385 + $0x10] sm:$0xf]
        %v3391 = vld [vmem:[%s3385 + $0x14] sm:$0xf]
        %v3392 = vld [vmem:[%s3385 + $0x18] sm:$0xf]
        %v3393 = vld [vmem:[%s3385 + $0x1c] sm:$0xf]
        %v3394 = vld [vmem:[%s3385 + $0x20] sm:$0xf]
        %v3395 = vld [vmem:[%s3385 + $0x24] sm:$0xf]
        %v3396 = vld [vmem:[%s3385 + $0x28] sm:$0xf]
        %v3397 = vld [vmem:[%s3385 + $0x2c] sm:$0xf]
        %v3398 = vld [vmem:[%s3385 + $0x30] sm:$0xf]
        %v3399 = vld [vmem:[%s3385 + $0x34] sm:$0xf]
        %v3400 = vld [vmem:[%s3385 + $0x38] sm:$0xf]
        %v3401 = vld [vmem:[%s3385 + $0x3c] sm:$0xf]
        %v3402 = vunpack.c.l.b16 %v3374
        %v3403 = vunpack.c.l.b16 %v3377
        %v3404 = vunpack.c.l.b16 %v3381
        %v3405 = vunpack.c.l.b16 %v3384
        %v3406 = vpack.c.b16 %v3403, %v3402
        %v3407 = vpack.c.b16 %v3405, %v3404
        %v3426 = vunpack.c.l.b16 %v3386
        %v3427 = vunpack.c.l.b16 %v3387
        %v3428 = vunpack.c.l.b16 %v3388
        %v3429 = vunpack.c.l.b16 %v3389
        %v3430 = vunpack.c.l.b16 %v3390
        %v3431 = vunpack.c.l.b16 %v3391
        %v3432 = vunpack.c.l.b16 %v3392
        %v3433 = vunpack.c.l.b16 %v3393
        %v3434 = vunpack.c.l.b16 %v3394
        %v3435 = vunpack.c.l.b16 %v3395
        %v3436 = vunpack.c.l.b16 %v3396
        %v3437 = vunpack.c.l.b16 %v3397
        %v3438 = vunpack.c.l.b16 %v3398
        %v3439 = vunpack.c.l.b16 %v3399
        %v3440 = vunpack.c.l.b16 %v3400
        %v3441 = vunpack.c.l.b16 %v3401
        %v3442 = vpack.c.b16 %v3427, %v3426
        %v3443 = vpack.c.b16 %v3429, %v3428
        %v3444 = vpack.c.b16 %v3431, %v3430
        %v3445 = vpack.c.b16 %v3433, %v3432
        %v3446 = vpack.c.b16 %v3435, %v3434
        %v3447 = vpack.c.b16 %v3437, %v3436
        %v3448 = vpack.c.b16 %v3439, %v3438
        %v3449 = vpack.c.b16 %v3441, %v3440
        %3458 = vmatpush.bf16.msra.mxu0 %v3449
        %3459 = vmatpush.bf16.msra.mxu0 %v3448
        %3460 = vmatpush.bf16.msra.mxu0 %v3447
        %3461 = vmatpush.bf16.msra.mxu0 %v3446
        %3462 = vmatpush.bf16.msra.mxu0 %v3445
        %3463 = vmatpush.bf16.msra.mxu0 %v3444
        %3464 = vmatpush.bf16.msra.mxu0 %v3443
        %3465 = vmatpush.bf16.msra.mxu0 %v3442
        %3466 = vmatmul.bf16.gmra.mxu0 %v2359
        %v3467 = vpop.f32.mrf.mxu0
        %v3468 = vadd.f32 0.0, %v3467
        %v3469 = vpop.f32.mrf.mxu0
        %v3470 = vadd.f32 0.0, %v3469
        %3471 = vmatmul.bf16.gmra.mxu0 %v2360
        %v3472 = vpop.f32.mrf.mxu0
        %v3473 = vadd.f32 0.0, %v3472
        %v3474 = vpop.f32.mrf.mxu0
        %v3475 = vadd.f32 0.0, %v3474
        %3476 = vmatmul.bf16.gmra.mxu0 %v2361
        %v3477 = vpop.f32.mrf.mxu0
        %v3478 = vadd.f32 0.0, %v3477
        %v3479 = vpop.f32.mrf.mxu0
        %v3480 = vadd.f32 0.0, %v3479
        %3481 = vmatmul.bf16.gmra.mxu0 %v2362
        %v3482 = vpop.f32.mrf.mxu0
        %v3483 = vadd.f32 0.0, %v3482
        %v3484 = vpop.f32.mrf.mxu0
        %v3485 = vadd.f32 0.0, %v3484
        %3486 = vmatmul.bf16.gmra.mxu0 %v2363
        %v3487 = vpop.f32.mrf.mxu0
        %v3488 = vadd.f32 0.0, %v3487
        %v3489 = vpop.f32.mrf.mxu0
        %v3490 = vadd.f32 0.0, %v3489
        %3491 = vmatmul.bf16.gmra.mxu0 %v2364
        %v3492 = vpop.f32.mrf.mxu0
        %v3493 = vadd.f32 0.0, %v3492
        %v3494 = vpop.f32.mrf.mxu0
        %v3495 = vadd.f32 0.0, %v3494
        %3496 = vmatmul.bf16.gmra.mxu0 %v2365
        %v3497 = vpop.f32.mrf.mxu0
        %v3498 = vadd.f32 0.0, %v3497
        %v3499 = vpop.f32.mrf.mxu0
        %v3500 = vadd.f32 0.0, %v3499
        %3501 = vmatmul.bf16.gmra.mxu0 %v2366
        %v3502 = vpop.f32.mrf.mxu0
        %v3503 = vadd.f32 0.0, %v3502
        %v3504 = vpop.f32.mrf.mxu0
        %v3505 = vadd.f32 0.0, %v3504
        %3506 = vmatmul.bf16.gmra.mxu0 %v2367
        %v3507 = vpop.f32.mrf.mxu0
        %v3508 = vadd.f32 0.0, %v3507
        %v3509 = vpop.f32.mrf.mxu0
        %v3510 = vadd.f32 0.0, %v3509
        %3511 = vmatmul.bf16.gmra.mxu0 %v2368
        %v3512 = vpop.f32.mrf.mxu0
        %v3513 = vadd.f32 0.0, %v3512
        %v3514 = vpop.f32.mrf.mxu0
        %v3515 = vadd.f32 0.0, %v3514
        %3516 = vmatmul.bf16.gmra.mxu0 %v2369
        %v3517 = vpop.f32.mrf.mxu0
        %v3518 = vadd.f32 0.0, %v3517
        %v3519 = vpop.f32.mrf.mxu0
        %v3520 = vadd.f32 0.0, %v3519
        %3521 = vmatmul.bf16.gmra.mxu0 %v2370
        %v3522 = vpop.f32.mrf.mxu0
        %v3523 = vadd.f32 0.0, %v3522
        %v3524 = vpop.f32.mrf.mxu0
        %v3525 = vadd.f32 0.0, %v3524
        %3526 = vmatmul.bf16.gmra.mxu0 %v2371
        %v3527 = vpop.f32.mrf.mxu0
        %v3528 = vadd.f32 0.0, %v3527
        %v3529 = vpop.f32.mrf.mxu0
        %v3530 = vadd.f32 0.0, %v3529
        %3531 = vmatmul.bf16.gmra.mxu0 %v2372
        %v3532 = vpop.f32.mrf.mxu0
        %v3533 = vadd.f32 0.0, %v3532
        %v3534 = vpop.f32.mrf.mxu0
        %v3535 = vadd.f32 0.0, %v3534
        %3536 = vmatmul.bf16.gmra.mxu0 %v2373
        %v3537 = vpop.f32.mrf.mxu0
        %v3538 = vadd.f32 0.0, %v3537
        %v3539 = vpop.f32.mrf.mxu0
        %v3540 = vadd.f32 0.0, %v3539
        %3541 = vmatmul.bf16.gmra.mxu0 %v3406
        %v3542 = vpop.f32.mrf.mxu0
        %v3543 = vadd.f32 0.0, %v3542
        %v3544 = vpop.f32.mrf.mxu0
        %v3545 = vadd.f32 0.0, %v3544
        %3546 = vmatmul.bf16.gmra.mxu0 %v2375
        %v3547 = vpop.f32.mrf.mxu0
        %v3548 = vadd.f32 0.0, %v3547
        %v3549 = vpop.f32.mrf.mxu0
        %v3550 = vadd.f32 0.0, %v3549
        %3551 = vmatmul.bf16.gmra.mxu0 %v2376
        %v3552 = vpop.f32.mrf.mxu0
        %v3553 = vadd.f32 0.0, %v3552
        %v3554 = vpop.f32.mrf.mxu0
        %v3555 = vadd.f32 0.0, %v3554
        %3556 = vmatmul.bf16.gmra.mxu0 %v2377
        %v3557 = vpop.f32.mrf.mxu0
        %v3558 = vadd.f32 0.0, %v3557
        %v3559 = vpop.f32.mrf.mxu0
        %v3560 = vadd.f32 0.0, %v3559
        %3561 = vmatmul.bf16.gmra.mxu0 %v2378
        %v3562 = vpop.f32.mrf.mxu0
        %v3563 = vadd.f32 0.0, %v3562
        %v3564 = vpop.f32.mrf.mxu0
        %v3565 = vadd.f32 0.0, %v3564
        %3566 = vmatmul.bf16.gmra.mxu0 %v2379
        %v3567 = vpop.f32.mrf.mxu0
        %v3568 = vadd.f32 0.0, %v3567
        %v3569 = vpop.f32.mrf.mxu0
        %v3570 = vadd.f32 0.0, %v3569
        %3571 = vmatmul.bf16.gmra.mxu0 %v2380
        %v3572 = vpop.f32.mrf.mxu0
        %v3573 = vadd.f32 0.0, %v3572
        %v3574 = vpop.f32.mrf.mxu0
        %v3575 = vadd.f32 0.0, %v3574
        %3576 = vmatmul.bf16.gmra.mxu0 %v2381
        %v3577 = vpop.f32.mrf.mxu0
        %v3578 = vadd.f32 0.0, %v3577
        %v3579 = vpop.f32.mrf.mxu0
        %v3580 = vadd.f32 0.0, %v3579
        %3581 = vmatmul.bf16.gmra.mxu0 %v2382
        %v3582 = vpop.f32.mrf.mxu0
        %v3583 = vadd.f32 0.0, %v3582
        %v3584 = vpop.f32.mrf.mxu0
        %v3585 = vadd.f32 0.0, %v3584
        %3586 = vmatmul.bf16.gmra.mxu0 %v2383
        %v3587 = vpop.f32.mrf.mxu0
        %v3588 = vadd.f32 0.0, %v3587
        %v3589 = vpop.f32.mrf.mxu0
        %v3590 = vadd.f32 0.0, %v3589
        %3591 = vmatmul.bf16.gmra.mxu0 %v2384
        %v3592 = vpop.f32.mrf.mxu0
        %v3593 = vadd.f32 0.0, %v3592
        %v3594 = vpop.f32.mrf.mxu0
        %v3595 = vadd.f32 0.0, %v3594
        %3596 = vmatmul.bf16.gmra.mxu0 %v2385
        %v3597 = vpop.f32.mrf.mxu0
        %v3598 = vadd.f32 0.0, %v3597
        %v3599 = vpop.f32.mrf.mxu0
        %v3600 = vadd.f32 0.0, %v3599
        %3601 = vmatmul.bf16.gmra.mxu0 %v2386
        %v3602 = vpop.f32.mrf.mxu0
        %v3603 = vadd.f32 0.0, %v3602
        %v3604 = vpop.f32.mrf.mxu0
        %v3605 = vadd.f32 0.0, %v3604
        %3606 = vmatmul.bf16.gmra.mxu0 %v2387
        %v3607 = vpop.f32.mrf.mxu0
        %v3608 = vadd.f32 0.0, %v3607
        %v3609 = vpop.f32.mrf.mxu0
        %v3610 = vadd.f32 0.0, %v3609
        %3611 = vmatmul.bf16.gmra.mxu0 %v2388
        %v3612 = vpop.f32.mrf.mxu0
        %v3613 = vadd.f32 0.0, %v3612
        %v3614 = vpop.f32.mrf.mxu0
        %v3615 = vadd.f32 0.0, %v3614
        %3616 = vmatmul.bf16.gmra.mxu0 %v2389
        %v3617 = vpop.f32.mrf.mxu0
        %v3618 = vadd.f32 0.0, %v3617
        %v3619 = vpop.f32.mrf.mxu0
        %v3620 = vadd.f32 0.0, %v3619
        %3621 = vmatmul.bf16.gmra.mxu0 %v3407
        %v3622 = vpop.f32.mrf.mxu0
        %v3623 = vadd.f32 0.0, %v3622
        %v3624 = vpop.f32.mrf.mxu0
        %v3625 = vadd.f32 0.0, %v3624
        %3626 = vdwg.mxu0
        %v3627 = vadd.f32 %v3303, %v3468
        %v3628 = vadd.f32 %v3304, %v3470
        %v3629 = vadd.f32 %v3305, %v3473
        %v3630 = vadd.f32 %v3306, %v3475
        %v3631 = vadd.f32 %v3307, %v3478
        %v3632 = vadd.f32 %v3308, %v3480
        %v3633 = vadd.f32 %v3309, %v3483
        %v3634 = vadd.f32 %v3310, %v3485
        %v3635 = vadd.f32 %v3311, %v3488
        %v3636 = vadd.f32 %v3312, %v3490
        %v3637 = vadd.f32 %v3313, %v3493
        %v3638 = vadd.f32 %v3314, %v3495
        %v3639 = vadd.f32 %v3315, %v3498
        %v3640 = vadd.f32 %v3316, %v3500
        %v3641 = vadd.f32 %v3317, %v3503
        %v3642 = vadd.f32 %v3318, %v3505
        %v3643 = vadd.f32 %v3319, %v3508
        %v3644 = vadd.f32 %v3320, %v3510
        %v3645 = vadd.f32 %v3321, %v3513
        %v3646 = vadd.f32 %v3322, %v3515
        %v3647 = vadd.f32 %v3323, %v3518
        %v3648 = vadd.f32 %v3324, %v3520
        %v3649 = vadd.f32 %v3325, %v3523
        %v3650 = vadd.f32 %v3326, %v3525
        %v3651 = vadd.f32 %v3327, %v3528
        %v3652 = vadd.f32 %v3328, %v3530
        %v3653 = vadd.f32 %v3329, %v3533
        %v3654 = vadd.f32 %v3330, %v3535
        %v3655 = vadd.f32 %v3331, %v3538
        %v3656 = vadd.f32 %v3332, %v3540
        %v3657 = vadd.f32 %v3333, %v3543
        %v3658 = vadd.f32 %v3334, %v3545
        %v3659 = vadd.f32 %v3335, %v3548
        %v3660 = vadd.f32 %v3336, %v3550
        %v3661 = vadd.f32 %v3337, %v3553
        %v3662 = vadd.f32 %v3338, %v3555
        %v3663 = vadd.f32 %v3339, %v3558
        %v3664 = vadd.f32 %v3340, %v3560
        %v3665 = vadd.f32 %v3341, %v3563
        %v3666 = vadd.f32 %v3342, %v3565
        %v3667 = vadd.f32 %v3343, %v3568
        %v3668 = vadd.f32 %v3344, %v3570
        %v3669 = vadd.f32 %v3345, %v3573
        %v3670 = vadd.f32 %v3346, %v3575
        %v3671 = vadd.f32 %v3347, %v3578
        %v3672 = vadd.f32 %v3348, %v3580
        %v3673 = vadd.f32 %v3349, %v3583
        %v3674 = vadd.f32 %v3350, %v3585
        %v3675 = vadd.f32 %v3351, %v3588
        %v3676 = vadd.f32 %v3352, %v3590
        %v3677 = vadd.f32 %v3353, %v3593
        %v3678 = vadd.f32 %v3354, %v3595
        %v3679 = vadd.f32 %v3355, %v3598
        %v3680 = vadd.f32 %v3356, %v3600
        %v3681 = vadd.f32 %v3357, %v3603
        %v3682 = vadd.f32 %v3358, %v3605
        %v3683 = vadd.f32 %v3359, %v3608
        %v3684 = vadd.f32 %v3360, %v3610
        %v3685 = vadd.f32 %v3361, %v3613
        %v3686 = vadd.f32 %v3362, %v3615
        %v3687 = vadd.f32 %v3363, %v3618
        %v3688 = vadd.f32 %v3364, %v3620
        %v3689 = vadd.f32 %v3365, %v3623
        %v3690 = vadd.f32 %v3366, %v3625
        %s3691 = scalar_lea.vmem %s1, 384
        %v3692 = vld [vmem:[%s3691] sm:$0xf]
        %v3693 = vld [vmem:[%s3691 + $0x4] sm:$0xf]
        %v3694 = vld [vmem:[%s3691 + $0x8] sm:$0xf]
        %v3695 = vld [vmem:[%s3691 + $0xc] sm:$0xf]
        %v3696 = vld [vmem:[%s3691 + $0x10] sm:$0xf]
        %v3697 = vld [vmem:[%s3691 + $0x14] sm:$0xf]
        %v3698 = vld [vmem:[%s3691 + $0x18] sm:$0xf]
        %v3699 = vld [vmem:[%s3691 + $0x1c] sm:$0xf]
        %v3700 = vld [vmem:[%s3691 + $0x20] sm:$0xf]
        %v3701 = vld [vmem:[%s3691 + $0x24] sm:$0xf]
        %v3702 = vld [vmem:[%s3691 + $0x28] sm:$0xf]
        %v3703 = vld [vmem:[%s3691 + $0x2c] sm:$0xf]
        %v3704 = vld [vmem:[%s3691 + $0x30] sm:$0xf]
        %v3705 = vld [vmem:[%s3691 + $0x34] sm:$0xf]
        %v3706 = vld [vmem:[%s3691 + $0x38] sm:$0xf]
        %v3707 = vld [vmem:[%s3691 + $0x3c] sm:$0xf]
        %v3712 = vunpack.c.l.b16 %v318
        %v3713 = vunpack.c.l.b16 %v319
        %v3714 = vunpack.c.l.b16 %v354
        %v3715 = vunpack.c.l.b16 %v355
        %v3716 = vpack.c.b16 %v3713, %v3712
        %v3717 = vpack.c.b16 %v3715, %v3714
        %v3736 = vunpack.c.l.b16 %v3692
        %v3737 = vunpack.c.l.b16 %v3693
        %v3738 = vunpack.c.l.b16 %v3694
        %v3739 = vunpack.c.l.b16 %v3695
        %v3740 = vunpack.c.l.b16 %v3696
        %v3741 = vunpack.c.l.b16 %v3697
        %v3742 = vunpack.c.l.b16 %v3698
        %v3743 = vunpack.c.l.b16 %v3699
        %v3744 = vunpack.c.l.b16 %v3700
        %v3745 = vunpack.c.l.b16 %v3701
        %v3746 = vunpack.c.l.b16 %v3702
        %v3747 = vunpack.c.l.b16 %v3703
        %v3748 = vunpack.c.l.b16 %v3704
        %v3749 = vunpack.c.l.b16 %v3705
        %v3750 = vunpack.c.l.b16 %v3706
        %v3751 = vunpack.c.l.b16 %v3707
        %v3752 = vpack.c.b16 %v3737, %v3736
        %v3753 = vpack.c.b16 %v3739, %v3738
        %v3754 = vpack.c.b16 %v3741, %v3740
        %v3755 = vpack.c.b16 %v3743, %v3742
        %v3756 = vpack.c.b16 %v3745, %v3744
        %v3757 = vpack.c.b16 %v3747, %v3746
        %v3758 = vpack.c.b16 %v3749, %v3748
        %v3759 = vpack.c.b16 %v3751, %v3750
        %3768 = vmatpush.bf16.msra.mxu0 %v3759
        %3769 = vmatpush.bf16.msra.mxu0 %v3758
        %3770 = vmatpush.bf16.msra.mxu0 %v3757
        %3771 = vmatpush.bf16.msra.mxu0 %v3756
        %3772 = vmatpush.bf16.msra.mxu0 %v3755
        %3773 = vmatpush.bf16.msra.mxu0 %v3754
        %3774 = vmatpush.bf16.msra.mxu0 %v3753
        %3775 = vmatpush.bf16.msra.mxu0 %v3752
        %3776 = vmatmul.bf16.gmra.mxu0 %v1707
        %v3777 = vpop.f32.mrf.mxu0
        %v3778 = vadd.f32 0.0, %v3777
        %v3779 = vpop.f32.mrf.mxu0
        %v3780 = vadd.f32 0.0, %v3779
        %3781 = vmatmul.bf16.gmra.mxu0 %v1708
        %v3782 = vpop.f32.mrf.mxu0
        %v3783 = vadd.f32 0.0, %v3782
        %v3784 = vpop.f32.mrf.mxu0
        %v3785 = vadd.f32 0.0, %v3784
        %3786 = vmatmul.bf16.gmra.mxu0 %v1709
        %v3787 = vpop.f32.mrf.mxu0
        %v3788 = vadd.f32 0.0, %v3787
        %v3789 = vpop.f32.mrf.mxu0
        %v3790 = vadd.f32 0.0, %v3789
        %3791 = vmatmul.bf16.gmra.mxu0 %v1710
        %v3792 = vpop.f32.mrf.mxu0
        %v3793 = vadd.f32 0.0, %v3792
        %v3794 = vpop.f32.mrf.mxu0
        %v3795 = vadd.f32 0.0, %v3794
        %3796 = vmatmul.bf16.gmra.mxu0 %v1711
        %v3797 = vpop.f32.mrf.mxu0
        %v3798 = vadd.f32 0.0, %v3797
        %v3799 = vpop.f32.mrf.mxu0
        %v3800 = vadd.f32 0.0, %v3799
        %3801 = vmatmul.bf16.gmra.mxu0 %v1712
        %v3802 = vpop.f32.mrf.mxu0
        %v3803 = vadd.f32 0.0, %v3802
        %v3804 = vpop.f32.mrf.mxu0
        %v3805 = vadd.f32 0.0, %v3804
        %3806 = vmatmul.bf16.gmra.mxu0 %v1713
        %v3807 = vpop.f32.mrf.mxu0
        %v3808 = vadd.f32 0.0, %v3807
        %v3809 = vpop.f32.mrf.mxu0
        %v3810 = vadd.f32 0.0, %v3809
        %3811 = vmatmul.bf16.gmra.mxu0 %v1714
        %v3812 = vpop.f32.mrf.mxu0
        %v3813 = vadd.f32 0.0, %v3812
        %v3814 = vpop.f32.mrf.mxu0
        %v3815 = vadd.f32 0.0, %v3814
        %3816 = vmatmul.bf16.gmra.mxu0 %v1715
        %v3817 = vpop.f32.mrf.mxu0
        %v3818 = vadd.f32 0.0, %v3817
        %v3819 = vpop.f32.mrf.mxu0
        %v3820 = vadd.f32 0.0, %v3819
        %3821 = vmatmul.bf16.gmra.mxu0 %v1716
        %v3822 = vpop.f32.mrf.mxu0
        %v3823 = vadd.f32 0.0, %v3822
        %v3824 = vpop.f32.mrf.mxu0
        %v3825 = vadd.f32 0.0, %v3824
        %3826 = vmatmul.bf16.gmra.mxu0 %v1717
        %v3827 = vpop.f32.mrf.mxu0
        %v3828 = vadd.f32 0.0, %v3827
        %v3829 = vpop.f32.mrf.mxu0
        %v3830 = vadd.f32 0.0, %v3829
        %3831 = vmatmul.bf16.gmra.mxu0 %v1718
        %v3832 = vpop.f32.mrf.mxu0
        %v3833 = vadd.f32 0.0, %v3832
        %v3834 = vpop.f32.mrf.mxu0
        %v3835 = vadd.f32 0.0, %v3834
        %3836 = vmatmul.bf16.gmra.mxu0 %v1719
        %v3837 = vpop.f32.mrf.mxu0
        %v3838 = vadd.f32 0.0, %v3837
        %v3839 = vpop.f32.mrf.mxu0
        %v3840 = vadd.f32 0.0, %v3839
        %3841 = vmatmul.bf16.gmra.mxu0 %v1720
        %v3842 = vpop.f32.mrf.mxu0
        %v3843 = vadd.f32 0.0, %v3842
        %v3844 = vpop.f32.mrf.mxu0
        %v3845 = vadd.f32 0.0, %v3844
        %3846 = vmatmul.bf16.gmra.mxu0 %v2728
        %v3847 = vpop.f32.mrf.mxu0
        %v3848 = vadd.f32 0.0, %v3847
        %v3849 = vpop.f32.mrf.mxu0
        %v3850 = vadd.f32 0.0, %v3849
        %3851 = vmatmul.bf16.gmra.mxu0 %v3716
        %v3852 = vpop.f32.mrf.mxu0
        %v3853 = vadd.f32 0.0, %v3852
        %v3854 = vpop.f32.mrf.mxu0
        %v3855 = vadd.f32 0.0, %v3854
        %3856 = vmatmul.bf16.gmra.mxu0 %v1723
        %v3857 = vpop.f32.mrf.mxu0
        %v3858 = vadd.f32 0.0, %v3857
        %v3859 = vpop.f32.mrf.mxu0
        %v3860 = vadd.f32 0.0, %v3859
        %3861 = vmatmul.bf16.gmra.mxu0 %v1724
        %v3862 = vpop.f32.mrf.mxu0
        %v3863 = vadd.f32 0.0, %v3862
        %v3864 = vpop.f32.mrf.mxu0
        %v3865 = vadd.f32 0.0, %v3864
        %3866 = vmatmul.bf16.gmra.mxu0 %v1725
        %v3867 = vpop.f32.mrf.mxu0
        %v3868 = vadd.f32 0.0, %v3867
        %v3869 = vpop.f32.mrf.mxu0
        %v3870 = vadd.f32 0.0, %v3869
        %3871 = vmatmul.bf16.gmra.mxu0 %v1726
        %v3872 = vpop.f32.mrf.mxu0
        %v3873 = vadd.f32 0.0, %v3872
        %v3874 = vpop.f32.mrf.mxu0
        %v3875 = vadd.f32 0.0, %v3874
        %3876 = vmatmul.bf16.gmra.mxu0 %v1727
        %v3877 = vpop.f32.mrf.mxu0
        %v3878 = vadd.f32 0.0, %v3877
        %v3879 = vpop.f32.mrf.mxu0
        %v3880 = vadd.f32 0.0, %v3879
        %3881 = vmatmul.bf16.gmra.mxu0 %v1728
        %v3882 = vpop.f32.mrf.mxu0
        %v3883 = vadd.f32 0.0, %v3882
        %v3884 = vpop.f32.mrf.mxu0
        %v3885 = vadd.f32 0.0, %v3884
        %3886 = vmatmul.bf16.gmra.mxu0 %v1729
        %v3887 = vpop.f32.mrf.mxu0
        %v3888 = vadd.f32 0.0, %v3887
        %v3889 = vpop.f32.mrf.mxu0
        %v3890 = vadd.f32 0.0, %v3889
        %3891 = vmatmul.bf16.gmra.mxu0 %v1730
        %v3892 = vpop.f32.mrf.mxu0
        %v3893 = vadd.f32 0.0, %v3892
        %v3894 = vpop.f32.mrf.mxu0
        %v3895 = vadd.f32 0.0, %v3894
        %3896 = vmatmul.bf16.gmra.mxu0 %v1731
        %v3897 = vpop.f32.mrf.mxu0
        %v3898 = vadd.f32 0.0, %v3897
        %v3899 = vpop.f32.mrf.mxu0
        %v3900 = vadd.f32 0.0, %v3899
        %3901 = vmatmul.bf16.gmra.mxu0 %v1732
        %v3902 = vpop.f32.mrf.mxu0
        %v3903 = vadd.f32 0.0, %v3902
        %v3904 = vpop.f32.mrf.mxu0
        %v3905 = vadd.f32 0.0, %v3904
        %3906 = vmatmul.bf16.gmra.mxu0 %v1733
        %v3907 = vpop.f32.mrf.mxu0
        %v3908 = vadd.f32 0.0, %v3907
        %v3909 = vpop.f32.mrf.mxu0
        %v3910 = vadd.f32 0.0, %v3909
        %3911 = vmatmul.bf16.gmra.mxu0 %v1734
        %v3912 = vpop.f32.mrf.mxu0
        %v3913 = vadd.f32 0.0, %v3912
        %v3914 = vpop.f32.mrf.mxu0
        %v3915 = vadd.f32 0.0, %v3914
        %3916 = vmatmul.bf16.gmra.mxu0 %v1735
        %v3917 = vpop.f32.mrf.mxu0
        %v3918 = vadd.f32 0.0, %v3917
        %v3919 = vpop.f32.mrf.mxu0
        %v3920 = vadd.f32 0.0, %v3919
        %3921 = vmatmul.bf16.gmra.mxu0 %v1736
        %v3922 = vpop.f32.mrf.mxu0
        %v3923 = vadd.f32 0.0, %v3922
        %v3924 = vpop.f32.mrf.mxu0
        %v3925 = vadd.f32 0.0, %v3924
        %3926 = vmatmul.bf16.gmra.mxu0 %v2729
        %v3927 = vpop.f32.mrf.mxu0
        %v3928 = vadd.f32 0.0, %v3927
        %v3929 = vpop.f32.mrf.mxu0
        %v3930 = vadd.f32 0.0, %v3929
        %3931 = vmatmul.bf16.gmra.mxu0 %v3717
        %v3932 = vpop.f32.mrf.mxu0
        %v3933 = vadd.f32 0.0, %v3932
        %v3934 = vpop.f32.mrf.mxu0
        %v3935 = vadd.f32 0.0, %v3934
        %3936 = vdwg.mxu0
        %v3937 = vadd.f32 %v3627, %v3778
        %v3938 = vadd.f32 %v3628, %v3780
        %v3939 = vadd.f32 %v3629, %v3783
        %v3940 = vadd.f32 %v3630, %v3785
        %v3941 = vadd.f32 %v3631, %v3788
        %v3942 = vadd.f32 %v3632, %v3790
        %v3943 = vadd.f32 %v3633, %v3793
        %v3944 = vadd.f32 %v3634, %v3795
        %v3945 = vadd.f32 %v3635, %v3798
        %v3946 = vadd.f32 %v3636, %v3800
        %v3947 = vadd.f32 %v3637, %v3803
        %v3948 = vadd.f32 %v3638, %v3805
        %v3949 = vadd.f32 %v3639, %v3808
        %v3950 = vadd.f32 %v3640, %v3810
        %v3951 = vadd.f32 %v3641, %v3813
        %v3952 = vadd.f32 %v3642, %v3815
        %v3953 = vadd.f32 %v3643, %v3818
        %v3954 = vadd.f32 %v3644, %v3820
        %v3955 = vadd.f32 %v3645, %v3823
        %v3956 = vadd.f32 %v3646, %v3825
        %v3957 = vadd.f32 %v3647, %v3828
        %v3958 = vadd.f32 %v3648, %v3830
        %v3959 = vadd.f32 %v3649, %v3833
        %v3960 = vadd.f32 %v3650, %v3835
        %v3961 = vadd.f32 %v3651, %v3838
        %v3962 = vadd.f32 %v3652, %v3840
        %v3963 = vadd.f32 %v3653, %v3843
        %v3964 = vadd.f32 %v3654, %v3845
        %v3965 = vadd.f32 %v3655, %v3848
        %v3966 = vadd.f32 %v3656, %v3850
        %v3967 = vadd.f32 %v3657, %v3853
        %v3968 = vadd.f32 %v3658, %v3855
        %v3969 = vadd.f32 %v3659, %v3858
        %v3970 = vadd.f32 %v3660, %v3860
        %v3971 = vadd.f32 %v3661, %v3863
        %v3972 = vadd.f32 %v3662, %v3865
        %v3973 = vadd.f32 %v3663, %v3868
        %v3974 = vadd.f32 %v3664, %v3870
        %v3975 = vadd.f32 %v3665, %v3873
        %v3976 = vadd.f32 %v3666, %v3875
        %v3977 = vadd.f32 %v3667, %v3878
        %v3978 = vadd.f32 %v3668, %v3880
        %v3979 = vadd.f32 %v3669, %v3883
        %v3980 = vadd.f32 %v3670, %v3885
        %v3981 = vadd.f32 %v3671, %v3888
        %v3982 = vadd.f32 %v3672, %v3890
        %v3983 = vadd.f32 %v3673, %v3893
        %v3984 = vadd.f32 %v3674, %v3895
        %v3985 = vadd.f32 %v3675, %v3898
        %v3986 = vadd.f32 %v3676, %v3900
        %v3987 = vadd.f32 %v3677, %v3903
        %v3988 = vadd.f32 %v3678, %v3905
        %v3989 = vadd.f32 %v3679, %v3908
        %v3990 = vadd.f32 %v3680, %v3910
        %v3991 = vadd.f32 %v3681, %v3913
        %v3992 = vadd.f32 %v3682, %v3915
        %v3993 = vadd.f32 %v3683, %v3918
        %v3994 = vadd.f32 %v3684, %v3920
        %v3995 = vadd.f32 %v3685, %v3923
        %v3996 = vadd.f32 %v3686, %v3925
        %v3997 = vadd.f32 %v3687, %v3928
        %v3998 = vadd.f32 %v3688, %v3930
        %v3999 = vadd.f32 %v3689, %v3933
        %v4000 = vadd.f32 %v3690, %v3935
        %v4002 = vshrl.u32 %v318, 16
        %v4004 = vrot.slane %v4002, 4
        %v4005 = vshll.u32 %v318, 16
        %v4007 = vrot.slane %v4005, 5
        %v4008 = vor.u32 %v4004, %v4007
        %v4009 = vrot.slane %v4008, 4
        %v4011 = vshll.u32 %v319, 16
        %v4013 = vrot.slane %v4011, 5
        %v4014 = vsel %vm446, %v4009, %v4013
        %v4015 = vshrl.u32 %v319, 16
        %v4017 = vrot.slane %v4015, 4
        %v4018 = vor.u32 %v4017, %v4013
        %v4019 = vrot.slane %v4018, 4
        %v4021 = vshll.u32 %v373, 16
        %v4023 = vrot.slane %v4021, 5
        %v4024 = vsel %vm446, %v4019, %v4023
        %v4026 = vshrl.u32 %v354, 16
        %v4028 = vrot.slane %v4026, 4
        %v4029 = vshll.u32 %v354, 16
        %v4031 = vrot.slane %v4029, 5
        %v4032 = vor.u32 %v4028, %v4031
        %v4033 = vrot.slane %v4032, 4
        %v4035 = vshll.u32 %v355, 16
        %v4037 = vrot.slane %v4035, 5
        %v4038 = vsel %vm446, %v4033, %v4037
        %v4039 = vshrl.u32 %v355, 16
        %v4041 = vrot.slane %v4039, 4
        %v4042 = vor.u32 %v4041, %v4037
        %v4043 = vrot.slane %v4042, 4
        %v4045 = vshll.u32 %v391, 16
        %v4047 = vrot.slane %v4045, 5
        %v4048 = vsel %vm446, %v4043, %v4047
        %s4049 = scalar_lea.vmem %s1, 448
        %v4050 = vld [vmem:[%s4049] sm:$0xf]
        %v4051 = vld [vmem:[%s4049 + $0x4] sm:$0xf]
        %v4052 = vld [vmem:[%s4049 + $0x8] sm:$0xf]
        %v4053 = vld [vmem:[%s4049 + $0xc] sm:$0xf]
        %v4054 = vld [vmem:[%s4049 + $0x10] sm:$0xf]
        %v4055 = vld [vmem:[%s4049 + $0x14] sm:$0xf]
        %v4056 = vld [vmem:[%s4049 + $0x18] sm:$0xf]
        %v4057 = vld [vmem:[%s4049 + $0x1c] sm:$0xf]
        %v4058 = vld [vmem:[%s4049 + $0x20] sm:$0xf]
        %v4059 = vld [vmem:[%s4049 + $0x24] sm:$0xf]
        %v4060 = vld [vmem:[%s4049 + $0x28] sm:$0xf]
        %v4061 = vld [vmem:[%s4049 + $0x2c] sm:$0xf]
        %v4062 = vld [vmem:[%s4049 + $0x30] sm:$0xf]
        %v4063 = vld [vmem:[%s4049 + $0x34] sm:$0xf]
        %v4064 = vld [vmem:[%s4049 + $0x38] sm:$0xf]
        %v4065 = vld [vmem:[%s4049 + $0x3c] sm:$0xf]
        %v4066 = vunpack.c.l.b16 %v4014
        %v4067 = vunpack.c.l.b16 %v4024
        %v4068 = vunpack.c.l.b16 %v4038
        %v4069 = vunpack.c.l.b16 %v4048
        %v4070 = vpack.c.b16 %v4067, %v4066
        %v4071 = vpack.c.b16 %v4069, %v4068
        %v4090 = vunpack.c.l.b16 %v4050
        %v4091 = vunpack.c.l.b16 %v4051
        %v4092 = vunpack.c.l.b16 %v4052
        %v4093 = vunpack.c.l.b16 %v4053
        %v4094 = vunpack.c.l.b16 %v4054
        %v4095 = vunpack.c.l.b16 %v4055
        %v4096 = vunpack.c.l.b16 %v4056
        %v4097 = vunpack.c.l.b16 %v4057
        %v4098 = vunpack.c.l.b16 %v4058
        %v4099 = vunpack.c.l.b16 %v4059
        %v4100 = vunpack.c.l.b16 %v4060
        %v4101 = vunpack.c.l.b16 %v4061
        %v4102 = vunpack.c.l.b16 %v4062
        %v4103 = vunpack.c.l.b16 %v4063
        %v4104 = vunpack.c.l.b16 %v4064
        %v4105 = vunpack.c.l.b16 %v4065
        %v4106 = vpack.c.b16 %v4091, %v4090
        %v4107 = vpack.c.b16 %v4093, %v4092
        %v4108 = vpack.c.b16 %v4095, %v4094
        %v4109 = vpack.c.b16 %v4097, %v4096
        %v4110 = vpack.c.b16 %v4099, %v4098
        %v4111 = vpack.c.b16 %v4101, %v4100
        %v4112 = vpack.c.b16 %v4103, %v4102
        %v4113 = vpack.c.b16 %v4105, %v4104
        %4122 = vmatpush.bf16.msra.mxu0 %v4113
        %4123 = vmatpush.bf16.msra.mxu0 %v4112
        %4124 = vmatpush.bf16.msra.mxu0 %v4111
        %4125 = vmatpush.bf16.msra.mxu0 %v4110
        %4126 = vmatpush.bf16.msra.mxu0 %v4109
        %4127 = vmatpush.bf16.msra.mxu0 %v4108
        %4128 = vmatpush.bf16.msra.mxu0 %v4107
        %4129 = vmatpush.bf16.msra.mxu0 %v4106
        %4130 = vmatmul.bf16.gmra.mxu0 %v1298
        %v4131 = vpop.f32.mrf.mxu0
        %v4132 = vadd.f32 0.0, %v4131
        %v4133 = vpop.f32.mrf.mxu0
        %v4134 = vadd.f32 0.0, %v4133
        %4135 = vmatmul.bf16.gmra.mxu0 %v1299
        %v4136 = vpop.f32.mrf.mxu0
        %v4137 = vadd.f32 0.0, %v4136
        %v4138 = vpop.f32.mrf.mxu0
        %v4139 = vadd.f32 0.0, %v4138
        %4140 = vmatmul.bf16.gmra.mxu0 %v1300
        %v4141 = vpop.f32.mrf.mxu0
        %v4142 = vadd.f32 0.0, %v4141
        %v4143 = vpop.f32.mrf.mxu0
        %v4144 = vadd.f32 0.0, %v4143
        %4145 = vmatmul.bf16.gmra.mxu0 %v1301
        %v4146 = vpop.f32.mrf.mxu0
        %v4147 = vadd.f32 0.0, %v4146
        %v4148 = vpop.f32.mrf.mxu0
        %v4149 = vadd.f32 0.0, %v4148
        %4150 = vmatmul.bf16.gmra.mxu0 %v1302
        %v4151 = vpop.f32.mrf.mxu0
        %v4152 = vadd.f32 0.0, %v4151
        %v4153 = vpop.f32.mrf.mxu0
        %v4154 = vadd.f32 0.0, %v4153
        %4155 = vmatmul.bf16.gmra.mxu0 %v1303
        %v4156 = vpop.f32.mrf.mxu0
        %v4157 = vadd.f32 0.0, %v4156
        %v4158 = vpop.f32.mrf.mxu0
        %v4159 = vadd.f32 0.0, %v4158
        %4160 = vmatmul.bf16.gmra.mxu0 %v1304
        %v4161 = vpop.f32.mrf.mxu0
        %v4162 = vadd.f32 0.0, %v4161
        %v4163 = vpop.f32.mrf.mxu0
        %v4164 = vadd.f32 0.0, %v4163
        %4165 = vmatmul.bf16.gmra.mxu0 %v1305
        %v4166 = vpop.f32.mrf.mxu0
        %v4167 = vadd.f32 0.0, %v4166
        %v4168 = vpop.f32.mrf.mxu0
        %v4169 = vadd.f32 0.0, %v4168
        %4170 = vmatmul.bf16.gmra.mxu0 %v1306
        %v4171 = vpop.f32.mrf.mxu0
        %v4172 = vadd.f32 0.0, %v4171
        %v4173 = vpop.f32.mrf.mxu0
        %v4174 = vadd.f32 0.0, %v4173
        %4175 = vmatmul.bf16.gmra.mxu0 %v1307
        %v4176 = vpop.f32.mrf.mxu0
        %v4177 = vadd.f32 0.0, %v4176
        %v4178 = vpop.f32.mrf.mxu0
        %v4179 = vadd.f32 0.0, %v4178
        %4180 = vmatmul.bf16.gmra.mxu0 %v1308
        %v4181 = vpop.f32.mrf.mxu0
        %v4182 = vadd.f32 0.0, %v4181
        %v4183 = vpop.f32.mrf.mxu0
        %v4184 = vadd.f32 0.0, %v4183
        %4185 = vmatmul.bf16.gmra.mxu0 %v1309
        %v4186 = vpop.f32.mrf.mxu0
        %v4187 = vadd.f32 0.0, %v4186
        %v4188 = vpop.f32.mrf.mxu0
        %v4189 = vadd.f32 0.0, %v4188
        %4190 = vmatmul.bf16.gmra.mxu0 %v1310
        %v4191 = vpop.f32.mrf.mxu0
        %v4192 = vadd.f32 0.0, %v4191
        %v4193 = vpop.f32.mrf.mxu0
        %v4194 = vadd.f32 0.0, %v4193
        %4195 = vmatmul.bf16.gmra.mxu0 %v1311
        %v4196 = vpop.f32.mrf.mxu0
        %v4197 = vadd.f32 0.0, %v4196
        %v4198 = vpop.f32.mrf.mxu0
        %v4199 = vadd.f32 0.0, %v4198
        %4200 = vmatmul.bf16.gmra.mxu0 %v3082
        %v4201 = vpop.f32.mrf.mxu0
        %v4202 = vadd.f32 0.0, %v4201
        %v4203 = vpop.f32.mrf.mxu0
        %v4204 = vadd.f32 0.0, %v4203
        %4205 = vmatmul.bf16.gmra.mxu0 %v4070
        %v4206 = vpop.f32.mrf.mxu0
        %v4207 = vadd.f32 0.0, %v4206
        %v4208 = vpop.f32.mrf.mxu0
        %v4209 = vadd.f32 0.0, %v4208
        %4210 = vmatmul.bf16.gmra.mxu0 %v1314
        %v4211 = vpop.f32.mrf.mxu0
        %v4212 = vadd.f32 0.0, %v4211
        %v4213 = vpop.f32.mrf.mxu0
        %v4214 = vadd.f32 0.0, %v4213
        %4215 = vmatmul.bf16.gmra.mxu0 %v1315
        %v4216 = vpop.f32.mrf.mxu0
        %v4217 = vadd.f32 0.0, %v4216
        %v4218 = vpop.f32.mrf.mxu0
        %v4219 = vadd.f32 0.0, %v4218
        %4220 = vmatmul.bf16.gmra.mxu0 %v1316
        %v4221 = vpop.f32.mrf.mxu0
        %v4222 = vadd.f32 0.0, %v4221
        %v4223 = vpop.f32.mrf.mxu0
        %v4224 = vadd.f32 0.0, %v4223
        %4225 = vmatmul.bf16.gmra.mxu0 %v1317
        %v4226 = vpop.f32.mrf.mxu0
        %v4227 = vadd.f32 0.0, %v4226
        %v4228 = vpop.f32.mrf.mxu0
        %v4229 = vadd.f32 0.0, %v4228
        %4230 = vmatmul.bf16.gmra.mxu0 %v1318
        %v4231 = vpop.f32.mrf.mxu0
        %v4232 = vadd.f32 0.0, %v4231
        %v4233 = vpop.f32.mrf.mxu0
        %v4234 = vadd.f32 0.0, %v4233
        %4235 = vmatmul.bf16.gmra.mxu0 %v1319
        %v4236 = vpop.f32.mrf.mxu0
        %v4237 = vadd.f32 0.0, %v4236
        %v4238 = vpop.f32.mrf.mxu0
        %v4239 = vadd.f32 0.0, %v4238
        %4240 = vmatmul.bf16.gmra.mxu0 %v1320
        %v4241 = vpop.f32.mrf.mxu0
        %v4242 = vadd.f32 0.0, %v4241
        %v4243 = vpop.f32.mrf.mxu0
        %v4244 = vadd.f32 0.0, %v4243
        %4245 = vmatmul.bf16.gmra.mxu0 %v1321
        %v4246 = vpop.f32.mrf.mxu0
        %v4247 = vadd.f32 0.0, %v4246
        %v4248 = vpop.f32.mrf.mxu0
        %v4249 = vadd.f32 0.0, %v4248
        %4250 = vmatmul.bf16.gmra.mxu0 %v1322
        %v4251 = vpop.f32.mrf.mxu0
        %v4252 = vadd.f32 0.0, %v4251
        %v4253 = vpop.f32.mrf.mxu0
        %v4254 = vadd.f32 0.0, %v4253
        %4255 = vmatmul.bf16.gmra.mxu0 %v1323
        %v4256 = vpop.f32.mrf.mxu0
        %v4257 = vadd.f32 0.0, %v4256
        %v4258 = vpop.f32.mrf.mxu0
        %v4259 = vadd.f32 0.0, %v4258
        %4260 = vmatmul.bf16.gmra.mxu0 %v1324
        %v4261 = vpop.f32.mrf.mxu0
        %v4262 = vadd.f32 0.0, %v4261
        %v4263 = vpop.f32.mrf.mxu0
        %v4264 = vadd.f32 0.0, %v4263
        %4265 = vmatmul.bf16.gmra.mxu0 %v1325
        %v4266 = vpop.f32.mrf.mxu0
        %v4267 = vadd.f32 0.0, %v4266
        %v4268 = vpop.f32.mrf.mxu0
        %v4269 = vadd.f32 0.0, %v4268
        %4270 = vmatmul.bf16.gmra.mxu0 %v1326
        %v4271 = vpop.f32.mrf.mxu0
        %v4272 = vadd.f32 0.0, %v4271
        %v4273 = vpop.f32.mrf.mxu0
        %v4274 = vadd.f32 0.0, %v4273
        %4275 = vmatmul.bf16.gmra.mxu0 %v1327
        %v4276 = vpop.f32.mrf.mxu0
        %v4277 = vadd.f32 0.0, %v4276
        %v4278 = vpop.f32.mrf.mxu0
        %v4279 = vadd.f32 0.0, %v4278
        %4280 = vmatmul.bf16.gmra.mxu0 %v3083
        %v4281 = vpop.f32.mrf.mxu0
        %v4282 = vadd.f32 0.0, %v4281
        %v4283 = vpop.f32.mrf.mxu0
        %v4284 = vadd.f32 0.0, %v4283
        %4285 = vmatmul.bf16.gmra.mxu0 %v4071
        %v4286 = vpop.f32.mrf.mxu0
        %v4287 = vadd.f32 0.0, %v4286
        %v4288 = vpop.f32.mrf.mxu0
        %v4289 = vadd.f32 0.0, %v4288
        %4290 = vdwg.mxu0
        %v4291 = vadd.f32 %v3937, %v4132
        %v4292 = vadd.f32 %v3938, %v4134
        %v4293 = vadd.f32 %v3939, %v4137
        %v4294 = vadd.f32 %v3940, %v4139
        %v4295 = vadd.f32 %v3941, %v4142
        %v4296 = vadd.f32 %v3942, %v4144
        %v4297 = vadd.f32 %v3943, %v4147
        %v4298 = vadd.f32 %v3944, %v4149
        %v4299 = vadd.f32 %v3945, %v4152
        %v4300 = vadd.f32 %v3946, %v4154
        %v4301 = vadd.f32 %v3947, %v4157
        %v4302 = vadd.f32 %v3948, %v4159
        %v4303 = vadd.f32 %v3949, %v4162
        %v4304 = vadd.f32 %v3950, %v4164
        %v4305 = vadd.f32 %v3951, %v4167
        %v4306 = vadd.f32 %v3952, %v4169
        %v4307 = vadd.f32 %v3953, %v4172
        %v4308 = vadd.f32 %v3954, %v4174
        %v4309 = vadd.f32 %v3955, %v4177
        %v4310 = vadd.f32 %v3956, %v4179
        %v4311 = vadd.f32 %v3957, %v4182
        %v4312 = vadd.f32 %v3958, %v4184
        %v4313 = vadd.f32 %v3959, %v4187
        %v4314 = vadd.f32 %v3960, %v4189
        %v4315 = vadd.f32 %v3961, %v4192
        %v4316 = vadd.f32 %v3962, %v4194
        %v4317 = vadd.f32 %v3963, %v4197
        %v4318 = vadd.f32 %v3964, %v4199
        %v4319 = vadd.f32 %v3965, %v4202
        %v4320 = vadd.f32 %v3966, %v4204
        %v4321 = vadd.f32 %v3967, %v4207
        %v4322 = vadd.f32 %v3968, %v4209
        %v4323 = vadd.f32 %v3969, %v4212
        %v4324 = vadd.f32 %v3970, %v4214
        %v4325 = vadd.f32 %v3971, %v4217
        %v4326 = vadd.f32 %v3972, %v4219
        %v4327 = vadd.f32 %v3973, %v4222
        %v4328 = vadd.f32 %v3974, %v4224
        %v4329 = vadd.f32 %v3975, %v4227
        %v4330 = vadd.f32 %v3976, %v4229
        %v4331 = vadd.f32 %v3977, %v4232
        %v4332 = vadd.f32 %v3978, %v4234
        %v4333 = vadd.f32 %v3979, %v4237
        %v4334 = vadd.f32 %v3980, %v4239
        %v4335 = vadd.f32 %v3981, %v4242
        %v4336 = vadd.f32 %v3982, %v4244
        %v4337 = vadd.f32 %v3983, %v4247
        %v4338 = vadd.f32 %v3984, %v4249
        %v4339 = vadd.f32 %v3985, %v4252
        %v4340 = vadd.f32 %v3986, %v4254
        %v4341 = vadd.f32 %v3987, %v4257
        %v4342 = vadd.f32 %v3988, %v4259
        %v4343 = vadd.f32 %v3989, %v4262
        %v4344 = vadd.f32 %v3990, %v4264
        %v4345 = vadd.f32 %v3991, %v4267
        %v4346 = vadd.f32 %v3992, %v4269
        %v4347 = vadd.f32 %v3993, %v4272
        %v4348 = vadd.f32 %v3994, %v4274
        %v4349 = vadd.f32 %v3995, %v4277
        %v4350 = vadd.f32 %v3996, %v4279
        %v4351 = vadd.f32 %v3997, %v4282
        %v4352 = vadd.f32 %v3998, %v4284
        %v4353 = vadd.f32 %v3999, %v4287
        %v4354 = vadd.f32 %v4000, %v4289
        %v4359 = vrot.slane %v409, 5
        %v4360 = vrot.slane %v4359, 4
        %v4361 = vrot.slane %v319, 5
        %v4362 = vsel %vm2052, %v4360, %v4361
        %v4363 = vrot.slane %v4361, 4
        %v4364 = vrot.slane %v373, 5
        %v4365 = vsel %vm2052, %v4363, %v4364
        %v4366 = vrot.slane %v427, 5
        %v4367 = vrot.slane %v4366, 4
        %v4368 = vrot.slane %v355, 5
        %v4369 = vsel %vm2052, %v4367, %v4368
        %v4370 = vrot.slane %v4368, 4
        %v4371 = vrot.slane %v391, 5
        %v4372 = vsel %vm2052, %v4370, %v4371
        %s4373 = scalar_lea.vmem %s1, 512
        %v4374 = vld [vmem:[%s4373] sm:$0xf]
        %v4375 = vld [vmem:[%s4373 + $0x4] sm:$0xf]
        %v4376 = vld [vmem:[%s4373 + $0x8] sm:$0xf]
        %v4377 = vld [vmem:[%s4373 + $0xc] sm:$0xf]
        %v4378 = vld [vmem:[%s4373 + $0x10] sm:$0xf]
        %v4379 = vld [vmem:[%s4373 + $0x14] sm:$0xf]
        %v4380 = vld [vmem:[%s4373 + $0x18] sm:$0xf]
        %v4381 = vld [vmem:[%s4373 + $0x1c] sm:$0xf]
        %v4382 = vld [vmem:[%s4373 + $0x20] sm:$0xf]
        %v4383 = vld [vmem:[%s4373 + $0x24] sm:$0xf]
        %v4384 = vld [vmem:[%s4373 + $0x28] sm:$0xf]
        %v4385 = vld [vmem:[%s4373 + $0x2c] sm:$0xf]
        %v4386 = vld [vmem:[%s4373 + $0x30] sm:$0xf]
        %v4387 = vld [vmem:[%s4373 + $0x34] sm:$0xf]
        %v4388 = vld [vmem:[%s4373 + $0x38] sm:$0xf]
        %v4389 = vld [vmem:[%s4373 + $0x3c] sm:$0xf]
        %v4390 = vunpack.c.l.b16 %v4362
        %v4391 = vunpack.c.l.b16 %v4365
        %v4392 = vunpack.c.l.b16 %v4369
        %v4393 = vunpack.c.l.b16 %v4372
        %v4394 = vpack.c.b16 %v4391, %v4390
        %v4395 = vpack.c.b16 %v4393, %v4392
        %v4414 = vunpack.c.l.b16 %v4374
        %v4415 = vunpack.c.l.b16 %v4375
        %v4416 = vunpack.c.l.b16 %v4376
        %v4417 = vunpack.c.l.b16 %v4377
        %v4418 = vunpack.c.l.b16 %v4378
        %v4419 = vunpack.c.l.b16 %v4379
        %v4420 = vunpack.c.l.b16 %v4380
        %v4421 = vunpack.c.l.b16 %v4381
        %v4422 = vunpack.c.l.b16 %v4382
        %v4423 = vunpack.c.l.b16 %v4383
        %v4424 = vunpack.c.l.b16 %v4384
        %v4425 = vunpack.c.l.b16 %v4385
        %v4426 = vunpack.c.l.b16 %v4386
        %v4427 = vunpack.c.l.b16 %v4387
        %v4428 = vunpack.c.l.b16 %v4388
        %v4429 = vunpack.c.l.b16 %v4389
        %v4430 = vpack.c.b16 %v4415, %v4414
        %v4431 = vpack.c.b16 %v4417, %v4416
        %v4432 = vpack.c.b16 %v4419, %v4418
        %v4433 = vpack.c.b16 %v4421, %v4420
        %v4434 = vpack.c.b16 %v4423, %v4422
        %v4435 = vpack.c.b16 %v4425, %v4424
        %v4436 = vpack.c.b16 %v4427, %v4426
        %v4437 = vpack.c.b16 %v4429, %v4428
        %4446 = vmatpush.bf16.msra.mxu0 %v4437
        %4447 = vmatpush.bf16.msra.mxu0 %v4436
        %4448 = vmatpush.bf16.msra.mxu0 %v4435
        %4449 = vmatpush.bf16.msra.mxu0 %v4434
        %4450 = vmatpush.bf16.msra.mxu0 %v4433
        %4451 = vmatpush.bf16.msra.mxu0 %v4432
        %4452 = vmatpush.bf16.msra.mxu0 %v4431
        %4453 = vmatpush.bf16.msra.mxu0 %v4430
        %4454 = vmatmul.bf16.gmra.mxu0 %v2360
        %v4455 = vpop.f32.mrf.mxu0
        %v4456 = vadd.f32 0.0, %v4455
        %v4457 = vpop.f32.mrf.mxu0
        %v4458 = vadd.f32 0.0, %v4457
        %4459 = vmatmul.bf16.gmra.mxu0 %v2361
        %v4460 = vpop.f32.mrf.mxu0
        %v4461 = vadd.f32 0.0, %v4460
        %v4462 = vpop.f32.mrf.mxu0
        %v4463 = vadd.f32 0.0, %v4462
        %4464 = vmatmul.bf16.gmra.mxu0 %v2362
        %v4465 = vpop.f32.mrf.mxu0
        %v4466 = vadd.f32 0.0, %v4465
        %v4467 = vpop.f32.mrf.mxu0
        %v4468 = vadd.f32 0.0, %v4467
        %4469 = vmatmul.bf16.gmra.mxu0 %v2363
        %v4470 = vpop.f32.mrf.mxu0
        %v4471 = vadd.f32 0.0, %v4470
        %v4472 = vpop.f32.mrf.mxu0
        %v4473 = vadd.f32 0.0, %v4472
        %4474 = vmatmul.bf16.gmra.mxu0 %v2364
        %v4475 = vpop.f32.mrf.mxu0
        %v4476 = vadd.f32 0.0, %v4475
        %v4477 = vpop.f32.mrf.mxu0
        %v4478 = vadd.f32 0.0, %v4477
        %4479 = vmatmul.bf16.gmra.mxu0 %v2365
        %v4480 = vpop.f32.mrf.mxu0
        %v4481 = vadd.f32 0.0, %v4480
        %v4482 = vpop.f32.mrf.mxu0
        %v4483 = vadd.f32 0.0, %v4482
        %4484 = vmatmul.bf16.gmra.mxu0 %v2366
        %v4485 = vpop.f32.mrf.mxu0
        %v4486 = vadd.f32 0.0, %v4485
        %v4487 = vpop.f32.mrf.mxu0
        %v4488 = vadd.f32 0.0, %v4487
        %4489 = vmatmul.bf16.gmra.mxu0 %v2367
        %v4490 = vpop.f32.mrf.mxu0
        %v4491 = vadd.f32 0.0, %v4490
        %v4492 = vpop.f32.mrf.mxu0
        %v4493 = vadd.f32 0.0, %v4492
        %4494 = vmatmul.bf16.gmra.mxu0 %v2368
        %v4495 = vpop.f32.mrf.mxu0
        %v4496 = vadd.f32 0.0, %v4495
        %v4497 = vpop.f32.mrf.mxu0
        %v4498 = vadd.f32 0.0, %v4497
        %4499 = vmatmul.bf16.gmra.mxu0 %v2369
        %v4500 = vpop.f32.mrf.mxu0
        %v4501 = vadd.f32 0.0, %v4500
        %v4502 = vpop.f32.mrf.mxu0
        %v4503 = vadd.f32 0.0, %v4502
        %4504 = vmatmul.bf16.gmra.mxu0 %v2370
        %v4505 = vpop.f32.mrf.mxu0
        %v4506 = vadd.f32 0.0, %v4505
        %v4507 = vpop.f32.mrf.mxu0
        %v4508 = vadd.f32 0.0, %v4507
        %4509 = vmatmul.bf16.gmra.mxu0 %v2371
        %v4510 = vpop.f32.mrf.mxu0
        %v4511 = vadd.f32 0.0, %v4510
        %v4512 = vpop.f32.mrf.mxu0
        %v4513 = vadd.f32 0.0, %v4512
        %4514 = vmatmul.bf16.gmra.mxu0 %v2372
        %v4515 = vpop.f32.mrf.mxu0
        %v4516 = vadd.f32 0.0, %v4515
        %v4517 = vpop.f32.mrf.mxu0
        %v4518 = vadd.f32 0.0, %v4517
        %4519 = vmatmul.bf16.gmra.mxu0 %v2373
        %v4520 = vpop.f32.mrf.mxu0
        %v4521 = vadd.f32 0.0, %v4520
        %v4522 = vpop.f32.mrf.mxu0
        %v4523 = vadd.f32 0.0, %v4522
        %4524 = vmatmul.bf16.gmra.mxu0 %v3406
        %v4525 = vpop.f32.mrf.mxu0
        %v4526 = vadd.f32 0.0, %v4525
        %v4527 = vpop.f32.mrf.mxu0
        %v4528 = vadd.f32 0.0, %v4527
        %4529 = vmatmul.bf16.gmra.mxu0 %v4394
        %v4530 = vpop.f32.mrf.mxu0
        %v4531 = vadd.f32 0.0, %v4530
        %v4532 = vpop.f32.mrf.mxu0
        %v4533 = vadd.f32 0.0, %v4532
        %4534 = vmatmul.bf16.gmra.mxu0 %v2376
        %v4535 = vpop.f32.mrf.mxu0
        %v4536 = vadd.f32 0.0, %v4535
        %v4537 = vpop.f32.mrf.mxu0
        %v4538 = vadd.f32 0.0, %v4537
        %4539 = vmatmul.bf16.gmra.mxu0 %v2377
        %v4540 = vpop.f32.mrf.mxu0
        %v4541 = vadd.f32 0.0, %v4540
        %v4542 = vpop.f32.mrf.mxu0
        %v4543 = vadd.f32 0.0, %v4542
        %4544 = vmatmul.bf16.gmra.mxu0 %v2378
        %v4545 = vpop.f32.mrf.mxu0
        %v4546 = vadd.f32 0.0, %v4545
        %v4547 = vpop.f32.mrf.mxu0
        %v4548 = vadd.f32 0.0, %v4547
        %4549 = vmatmul.bf16.gmra.mxu0 %v2379
        %v4550 = vpop.f32.mrf.mxu0
        %v4551 = vadd.f32 0.0, %v4550
        %v4552 = vpop.f32.mrf.mxu0
        %v4553 = vadd.f32 0.0, %v4552
        %4554 = vmatmul.bf16.gmra.mxu0 %v2380
        %v4555 = vpop.f32.mrf.mxu0
        %v4556 = vadd.f32 0.0, %v4555
        %v4557 = vpop.f32.mrf.mxu0
        %v4558 = vadd.f32 0.0, %v4557
        %4559 = vmatmul.bf16.gmra.mxu0 %v2381
        %v4560 = vpop.f32.mrf.mxu0
        %v4561 = vadd.f32 0.0, %v4560
        %v4562 = vpop.f32.mrf.mxu0
        %v4563 = vadd.f32 0.0, %v4562
        %4564 = vmatmul.bf16.gmra.mxu0 %v2382
        %v4565 = vpop.f32.mrf.mxu0
        %v4566 = vadd.f32 0.0, %v4565
        %v4567 = vpop.f32.mrf.mxu0
        %v4568 = vadd.f32 0.0, %v4567
        %4569 = vmatmul.bf16.gmra.mxu0 %v2383
        %v4570 = vpop.f32.mrf.mxu0
        %v4571 = vadd.f32 0.0, %v4570
        %v4572 = vpop.f32.mrf.mxu0
        %v4573 = vadd.f32 0.0, %v4572
        %4574 = vmatmul.bf16.gmra.mxu0 %v2384
        %v4575 = vpop.f32.mrf.mxu0
        %v4576 = vadd.f32 0.0, %v4575
        %v4577 = vpop.f32.mrf.mxu0
        %v4578 = vadd.f32 0.0, %v4577
        %4579 = vmatmul.bf16.gmra.mxu0 %v2385
        %v4580 = vpop.f32.mrf.mxu0
        %v4581 = vadd.f32 0.0, %v4580
        %v4582 = vpop.f32.mrf.mxu0
        %v4583 = vadd.f32 0.0, %v4582
        %4584 = vmatmul.bf16.gmra.mxu0 %v2386
        %v4585 = vpop.f32.mrf.mxu0
        %v4586 = vadd.f32 0.0, %v4585
        %v4587 = vpop.f32.mrf.mxu0
        %v4588 = vadd.f32 0.0, %v4587
        %4589 = vmatmul.bf16.gmra.mxu0 %v2387
        %v4590 = vpop.f32.mrf.mxu0
        %v4591 = vadd.f32 0.0, %v4590
        %v4592 = vpop.f32.mrf.mxu0
        %v4593 = vadd.f32 0.0, %v4592
        %4594 = vmatmul.bf16.gmra.mxu0 %v2388
        %v4595 = vpop.f32.mrf.mxu0
        %v4596 = vadd.f32 0.0, %v4595
        %v4597 = vpop.f32.mrf.mxu0
        %v4598 = vadd.f32 0.0, %v4597
        %4599 = vmatmul.bf16.gmra.mxu0 %v2389
        %v4600 = vpop.f32.mrf.mxu0
        %v4601 = vadd.f32 0.0, %v4600
        %v4602 = vpop.f32.mrf.mxu0
        %v4603 = vadd.f32 0.0, %v4602
        %4604 = vmatmul.bf16.gmra.mxu0 %v3407
        %v4605 = vpop.f32.mrf.mxu0
        %v4606 = vadd.f32 0.0, %v4605
        %v4607 = vpop.f32.mrf.mxu0
        %v4608 = vadd.f32 0.0, %v4607
        %4609 = vmatmul.bf16.gmra.mxu0 %v4395
        %v4610 = vpop.f32.mrf.mxu0
        %v4611 = vadd.f32 0.0, %v4610
        %v4612 = vpop.f32.mrf.mxu0
        %v4613 = vadd.f32 0.0, %v4612
        %4614 = vdwg.mxu0
        %v4615 = vadd.f32 %v4291, %v4456
        %v4616 = vadd.f32 %v4292, %v4458
        %v4617 = vadd.f32 %v4293, %v4461
        %v4618 = vadd.f32 %v4294, %v4463
        %v4619 = vadd.f32 %v4295, %v4466
        %v4620 = vadd.f32 %v4296, %v4468
        %v4621 = vadd.f32 %v4297, %v4471
        %v4622 = vadd.f32 %v4298, %v4473
        %v4623 = vadd.f32 %v4299, %v4476
        %v4624 = vadd.f32 %v4300, %v4478
        %v4625 = vadd.f32 %v4301, %v4481
        %v4626 = vadd.f32 %v4302, %v4483
        %v4627 = vadd.f32 %v4303, %v4486
        %v4628 = vadd.f32 %v4304, %v4488
        %v4629 = vadd.f32 %v4305, %v4491
        %v4630 = vadd.f32 %v4306, %v4493
        %v4631 = vadd.f32 %v4307, %v4496
        %v4632 = vadd.f32 %v4308, %v4498
        %v4633 = vadd.f32 %v4309, %v4501
        %v4634 = vadd.f32 %v4310, %v4503
        %v4635 = vadd.f32 %v4311, %v4506
        %v4636 = vadd.f32 %v4312, %v4508
        %v4637 = vadd.f32 %v4313, %v4511
        %v4638 = vadd.f32 %v4314, %v4513
        %v4639 = vadd.f32 %v4315, %v4516
        %v4640 = vadd.f32 %v4316, %v4518
        %v4641 = vadd.f32 %v4317, %v4521
        %v4642 = vadd.f32 %v4318, %v4523
        %v4643 = vadd.f32 %v4319, %v4526
        %v4644 = vadd.f32 %v4320, %v4528
        %v4645 = vadd.f32 %v4321, %v4531
        %v4646 = vadd.f32 %v4322, %v4533
        %v4647 = vadd.f32 %v4323, %v4536
        %v4648 = vadd.f32 %v4324, %v4538
        %v4649 = vadd.f32 %v4325, %v4541
        %v4650 = vadd.f32 %v4326, %v4543
        %v4651 = vadd.f32 %v4327, %v4546
        %v4652 = vadd.f32 %v4328, %v4548
        %v4653 = vadd.f32 %v4329, %v4551
        %v4654 = vadd.f32 %v4330, %v4553
        %v4655 = vadd.f32 %v4331, %v4556
        %v4656 = vadd.f32 %v4332, %v4558
        %v4657 = vadd.f32 %v4333, %v4561
        %v4658 = vadd.f32 %v4334, %v4563
        %v4659 = vadd.f32 %v4335, %v4566
        %v4660 = vadd.f32 %v4336, %v4568
        %v4661 = vadd.f32 %v4337, %v4571
        %v4662 = vadd.f32 %v4338, %v4573
        %v4663 = vadd.f32 %v4339, %v4576
        %v4664 = vadd.f32 %v4340, %v4578
        %v4665 = vadd.f32 %v4341, %v4581
        %v4666 = vadd.f32 %v4342, %v4583
        %v4667 = vadd.f32 %v4343, %v4586
        %v4668 = vadd.f32 %v4344, %v4588
        %v4669 = vadd.f32 %v4345, %v4591
        %v4670 = vadd.f32 %v4346, %v4593
        %v4671 = vadd.f32 %v4347, %v4596
        %v4672 = vadd.f32 %v4348, %v4598
        %v4673 = vadd.f32 %v4349, %v4601
        %v4674 = vadd.f32 %v4350, %v4603
        %v4675 = vadd.f32 %v4351, %v4606
        %v4676 = vadd.f32 %v4352, %v4608
        %v4677 = vadd.f32 %v4353, %v4611
        %v4678 = vadd.f32 %v4354, %v4613
        %v4679 = vld [vmem:[%s2] sm:$0x1]
        %v4681 = vperm.slane %v4679, 0
        %v4683 = vadd.f32 %v4615, %v4681
        %v4684 = vadd.f32 %v4616, %v4681
        %v4685 = vadd.f32 %v4617, %v4681
        %v4686 = vadd.f32 %v4618, %v4681
        %v4687 = vadd.f32 %v4619, %v4681
        %v4688 = vadd.f32 %v4620, %v4681
        %v4689 = vadd.f32 %v4621, %v4681
        %v4690 = vadd.f32 %v4622, %v4681
        %v4691 = vadd.f32 %v4623, %v4681
        %v4692 = vadd.f32 %v4624, %v4681
        %v4693 = vadd.f32 %v4625, %v4681
        %v4694 = vadd.f32 %v4626, %v4681
        %v4695 = vadd.f32 %v4627, %v4681
        %v4696 = vadd.f32 %v4628, %v4681
        %v4697 = vadd.f32 %v4629, %v4681
        %v4698 = vadd.f32 %v4630, %v4681
        %v4699 = vadd.f32 %v4631, %v4681
        %v4700 = vadd.f32 %v4632, %v4681
        %v4701 = vadd.f32 %v4633, %v4681
        %v4702 = vadd.f32 %v4634, %v4681
        %v4703 = vadd.f32 %v4635, %v4681
        %v4704 = vadd.f32 %v4636, %v4681
        %v4705 = vadd.f32 %v4637, %v4681
        %v4706 = vadd.f32 %v4638, %v4681
        %v4707 = vadd.f32 %v4639, %v4681
        %v4708 = vadd.f32 %v4640, %v4681
        %v4709 = vadd.f32 %v4641, %v4681
        %v4710 = vadd.f32 %v4642, %v4681
        %v4711 = vadd.f32 %v4643, %v4681
        %v4712 = vadd.f32 %v4644, %v4681
        %v4713 = vadd.f32 %v4645, %v4681
        %v4714 = vadd.f32 %v4646, %v4681
        %v4715 = vadd.f32 %v4647, %v4681
        %v4716 = vadd.f32 %v4648, %v4681
        %v4717 = vadd.f32 %v4649, %v4681
        %v4718 = vadd.f32 %v4650, %v4681
        %v4719 = vadd.f32 %v4651, %v4681
        %v4720 = vadd.f32 %v4652, %v4681
        %v4721 = vadd.f32 %v4653, %v4681
        %v4722 = vadd.f32 %v4654, %v4681
        %v4723 = vadd.f32 %v4655, %v4681
        %v4724 = vadd.f32 %v4656, %v4681
        %v4725 = vadd.f32 %v4657, %v4681
        %v4726 = vadd.f32 %v4658, %v4681
        %v4727 = vadd.f32 %v4659, %v4681
        %v4728 = vadd.f32 %v4660, %v4681
        %v4729 = vadd.f32 %v4661, %v4681
        %v4730 = vadd.f32 %v4662, %v4681
        %v4731 = vadd.f32 %v4663, %v4681
        %v4732 = vadd.f32 %v4664, %v4681
        %v4733 = vadd.f32 %v4665, %v4681
        %v4734 = vadd.f32 %v4666, %v4681
        %v4735 = vadd.f32 %v4667, %v4681
        %v4736 = vadd.f32 %v4668, %v4681
        %v4737 = vadd.f32 %v4669, %v4681
        %v4738 = vadd.f32 %v4670, %v4681
        %v4739 = vadd.f32 %v4671, %v4681
        %v4740 = vadd.f32 %v4672, %v4681
        %v4741 = vadd.f32 %v4673, %v4681
        %v4742 = vadd.f32 %v4674, %v4681
        %v4743 = vadd.f32 %v4675, %v4681
        %v4744 = vadd.f32 %v4676, %v4681
        %v4745 = vadd.f32 %v4677, %v4681
        %v4746 = vadd.f32 %v4678, %v4681
        %v4747 = vmax.f32 %v4683, 0.0
        %v4748 = vmax.f32 %v4684, 0.0
        %v4749 = vmax.f32 %v4685, 0.0
        %v4750 = vmax.f32 %v4686, 0.0
        %v4751 = vmax.f32 %v4687, 0.0
        %v4752 = vmax.f32 %v4688, 0.0
        %v4753 = vmax.f32 %v4689, 0.0
        %v4754 = vmax.f32 %v4690, 0.0
        %v4755 = vmax.f32 %v4691, 0.0
        %v4756 = vmax.f32 %v4692, 0.0
        %v4757 = vmax.f32 %v4693, 0.0
        %v4758 = vmax.f32 %v4694, 0.0
        %v4759 = vmax.f32 %v4695, 0.0
        %v4760 = vmax.f32 %v4696, 0.0
        %v4761 = vmax.f32 %v4697, 0.0
        %v4762 = vmax.f32 %v4698, 0.0
        %v4763 = vmax.f32 %v4699, 0.0
        %v4764 = vmax.f32 %v4700, 0.0
        %v4765 = vmax.f32 %v4701, 0.0
        %v4766 = vmax.f32 %v4702, 0.0
        %v4767 = vmax.f32 %v4703, 0.0
        %v4768 = vmax.f32 %v4704, 0.0
        %v4769 = vmax.f32 %v4705, 0.0
        %v4770 = vmax.f32 %v4706, 0.0
        %v4771 = vmax.f32 %v4707, 0.0
        %v4772 = vmax.f32 %v4708, 0.0
        %v4773 = vmax.f32 %v4709, 0.0
        %v4774 = vmax.f32 %v4710, 0.0
        %v4775 = vmax.f32 %v4711, 0.0
        %v4776 = vmax.f32 %v4712, 0.0
        %v4777 = vmax.f32 %v4713, 0.0
        %v4778 = vmax.f32 %v4714, 0.0
        %v4779 = vmax.f32 %v4715, 0.0
        %v4780 = vmax.f32 %v4716, 0.0
        %v4781 = vmax.f32 %v4717, 0.0
        %v4782 = vmax.f32 %v4718, 0.0
        %v4783 = vmax.f32 %v4719, 0.0
        %v4784 = vmax.f32 %v4720, 0.0
        %v4785 = vmax.f32 %v4721, 0.0
        %v4786 = vmax.f32 %v4722, 0.0
        %v4787 = vmax.f32 %v4723, 0.0
        %v4788 = vmax.f32 %v4724, 0.0
        %v4789 = vmax.f32 %v4725, 0.0
        %v4790 = vmax.f32 %v4726, 0.0
        %v4791 = vmax.f32 %v4727, 0.0
        %v4792 = vmax.f32 %v4728, 0.0
        %v4793 = vmax.f32 %v4729, 0.0
        %v4794 = vmax.f32 %v4730, 0.0
        %v4795 = vmax.f32 %v4731, 0.0
        %v4796 = vmax.f32 %v4732, 0.0
        %v4797 = vmax.f32 %v4733, 0.0
        %v4798 = vmax.f32 %v4734, 0.0
        %v4799 = vmax.f32 %v4735, 0.0
        %v4800 = vmax.f32 %v4736, 0.0
        %v4801 = vmax.f32 %v4737, 0.0
        %v4802 = vmax.f32 %v4738, 0.0
        %v4803 = vmax.f32 %v4739, 0.0
        %v4804 = vmax.f32 %v4740, 0.0
        %v4805 = vmax.f32 %v4741, 0.0
        %v4806 = vmax.f32 %v4742, 0.0
        %v4807 = vmax.f32 %v4743, 0.0
        %v4808 = vmax.f32 %v4744, 0.0
        %v4809 = vmax.f32 %v4745, 0.0
        %v4810 = vmax.f32 %v4746, 0.0
        %4811 = vst [vmem:[#allocation2] sm:$0xf] 0
        %4812 = vst [vmem:[#allocation2 + $0x4] sm:$0xf] 0
        %4813 = vst [vmem:[#allocation2 + $0x8] sm:$0x1] 0
        %4814 = vst [vmem:[#allocation2 + $0xd8] sm:$0xf] 0
        %4815 = vst [vmem:[#allocation2 + $0xdc] sm:$0xf] 0
        %4816 = vst [vmem:[#allocation2 + $0xe0] sm:$0x1] 0
        %s4817 = scalar_lea.vmem [#allocation2], 204
        %4818 = vst [vmem:[%s4817] sm:$0xf] 0
        %4819 = vst [vmem:[%s4817 + $0x4] sm:$0xf] 0
        %4820 = vst [vmem:[%s4817 + $0x8] sm:$0x1] 0
        %4821 = vst [vmem:[%s4817 + $0xd8] sm:$0xf] 0
        %4822 = vst [vmem:[%s4817 + $0xdc] sm:$0xf] 0
        %4823 = vst [vmem:[%s4817 + $0xe0] sm:$0x1] 0
        %s4824 = scalar_lea.vmem [#allocation2], 12
        %vm4825 = vcmask 1040384
        %vm4826 = vsmask.f32 256
        %vm4827 = vmand %vm4825, %vm4826
        %v4828 = vld [vmem:[%s4824] sm:$0x1]
        %v4829 = vsel %vm4827, 0, %v4828
        %4830 = vst [vmem:[%s4824] sm:$0x1] %v4829
        %v4831 = vld [vmem:[%s4824 + $0xc] sm:$0x1]
        %v4832 = vsel %vm4827, 0, %v4831
        %4833 = vst [vmem:[%s4824 + $0xc] sm:$0x1] %v4832
        %v4834 = vld [vmem:[%s4824 + $0x18] sm:$0x1]
        %v4835 = vsel %vm4827, 0, %v4834
        %4836 = vst [vmem:[%s4824 + $0x18] sm:$0x1] %v4835
        %v4837 = vld [vmem:[%s4824 + $0x24] sm:$0x1]
        %v4838 = vsel %vm4827, 0, %v4837
        %4839 = vst [vmem:[%s4824 + $0x24] sm:$0x1] %v4838
        %v4840 = vld [vmem:[%s4824 + $0x30] sm:$0x1]
        %v4841 = vsel %vm4827, 0, %v4840
        %4842 = vst [vmem:[%s4824 + $0x30] sm:$0x1] %v4841
        %v4843 = vld [vmem:[%s4824 + $0x3c] sm:$0x1]
        %v4844 = vsel %vm4827, 0, %v4843
        %4845 = vst [vmem:[%s4824 + $0x3c] sm:$0x1] %v4844
        %v4846 = vld [vmem:[%s4824 + $0x48] sm:$0x1]
        %v4847 = vsel %vm4827, 0, %v4846
        %4848 = vst [vmem:[%s4824 + $0x48] sm:$0x1] %v4847
        %v4849 = vld [vmem:[%s4824 + $0x54] sm:$0x1]
        %v4850 = vsel %vm4827, 0, %v4849
        %4851 = vst [vmem:[%s4824 + $0x54] sm:$0x1] %v4850
        %v4852 = vld [vmem:[%s4824 + $0x60] sm:$0x1]
        %v4853 = vsel %vm4827, 0, %v4852
        %4854 = vst [vmem:[%s4824 + $0x60] sm:$0x1] %v4853
        %v4855 = vld [vmem:[%s4824 + $0x6c] sm:$0x1]
        %v4856 = vsel %vm4827, 0, %v4855
        %4857 = vst [vmem:[%s4824 + $0x6c] sm:$0x1] %v4856
        %v4858 = vld [vmem:[%s4824 + $0x78] sm:$0x1]
        %v4859 = vsel %vm4827, 0, %v4858
        %4860 = vst [vmem:[%s4824 + $0x78] sm:$0x1] %v4859
        %v4861 = vld [vmem:[%s4824 + $0x84] sm:$0x1]
        %v4862 = vsel %vm4827, 0, %v4861
        %4863 = vst [vmem:[%s4824 + $0x84] sm:$0x1] %v4862
        %v4864 = vld [vmem:[%s4824 + $0x90] sm:$0x1]
        %v4865 = vsel %vm4827, 0, %v4864
        %4866 = vst [vmem:[%s4824 + $0x90] sm:$0x1] %v4865
        %v4867 = vld [vmem:[%s4824 + $0x9c] sm:$0x1]
        %v4868 = vsel %vm4827, 0, %v4867
        %4869 = vst [vmem:[%s4824 + $0x9c] sm:$0x1] %v4868
        %v4870 = vld [vmem:[%s4824 + $0xa8] sm:$0x1]
        %v4871 = vsel %vm4827, 0, %v4870
        %4872 = vst [vmem:[%s4824 + $0xa8] sm:$0x1] %v4871
        %v4873 = vld [vmem:[%s4824 + $0xb4] sm:$0x1]
        %v4874 = vsel %vm4827, 0, %v4873
        %4875 = vst [vmem:[%s4824 + $0xb4] sm:$0x1] %v4874
        %v4876 = vld [vmem:[%s4824 + $0xd8] sm:$0x1]
        %v4877 = vsel %vm4827, 0, %v4876
        %4878 = vst [vmem:[%s4824 + $0xd8] sm:$0x1] %v4877
        %v4879 = vld [vmem:[%s4824 + $0xe4] sm:$0x1]
        %v4880 = vsel %vm4827, 0, %v4879
        %4881 = vst [vmem:[%s4824 + $0xe4] sm:$0x1] %v4880
        %v4882 = vld [vmem:[%s4824 + $0xf0] sm:$0x1]
        %v4883 = vsel %vm4827, 0, %v4882
        %4884 = vst [vmem:[%s4824 + $0xf0] sm:$0x1] %v4883
        %v4885 = vld [vmem:[%s4824 + $0xfc] sm:$0x1]
        %v4886 = vsel %vm4827, 0, %v4885
        %4887 = vst [vmem:[%s4824 + $0xfc] sm:$0x1] %v4886
        %v4888 = vld [vmem:[%s4824 + $0x108] sm:$0x1]
        %v4889 = vsel %vm4827, 0, %v4888
        %4890 = vst [vmem:[%s4824 + $0x108] sm:$0x1] %v4889
        %v4891 = vld [vmem:[%s4824 + $0x114] sm:$0x1]
        %v4892 = vsel %vm4827, 0, %v4891
        %4893 = vst [vmem:[%s4824 + $0x114] sm:$0x1] %v4892
        %v4894 = vld [vmem:[%s4824 + $0x120] sm:$0x1]
        %v4895 = vsel %vm4827, 0, %v4894
        %4896 = vst [vmem:[%s4824 + $0x120] sm:$0x1] %v4895
        %v4897 = vld [vmem:[%s4824 + $0x12c] sm:$0x1]
        %v4898 = vsel %vm4827, 0, %v4897
        %4899 = vst [vmem:[%s4824 + $0x12c] sm:$0x1] %v4898
        %v4900 = vld [vmem:[%s4824 + $0x138] sm:$0x1]
        %v4901 = vsel %vm4827, 0, %v4900
        %4902 = vst [vmem:[%s4824 + $0x138] sm:$0x1] %v4901
        %v4903 = vld [vmem:[%s4824 + $0x144] sm:$0x1]
        %v4904 = vsel %vm4827, 0, %v4903
        %4905 = vst [vmem:[%s4824 + $0x144] sm:$0x1] %v4904
        %v4906 = vld [vmem:[%s4824 + $0x150] sm:$0x1]
        %v4907 = vsel %vm4827, 0, %v4906
        %4908 = vst [vmem:[%s4824 + $0x150] sm:$0x1] %v4907
        %v4909 = vld [vmem:[%s4824 + $0x15c] sm:$0x1]
        %v4910 = vsel %vm4827, 0, %v4909
        %4911 = vst [vmem:[%s4824 + $0x15c] sm:$0x1] %v4910
        %v4912 = vld [vmem:[%s4824 + $0x168] sm:$0x1]
        %v4913 = vsel %vm4827, 0, %v4912
        %4914 = vst [vmem:[%s4824 + $0x168] sm:$0x1] %v4913
        %v4915 = vld [vmem:[%s4824 + $0x174] sm:$0x1]
        %v4916 = vsel %vm4827, 0, %v4915
        %4917 = vst [vmem:[%s4824 + $0x174] sm:$0x1] %v4916
        %v4918 = vld [vmem:[%s4824 + $0x180] sm:$0x1]
        %v4919 = vsel %vm4827, 0, %v4918
        %4920 = vst [vmem:[%s4824 + $0x180] sm:$0x1] %v4919
        %v4921 = vld [vmem:[%s4824 + $0x18c] sm:$0x1]
        %v4922 = vsel %vm4827, 0, %v4921
        %4923 = vst [vmem:[%s4824 + $0x18c] sm:$0x1] %v4922
        %vm4924 = vsmask.f32 7938
        %vm4925 = vmand %vm4825, %vm4924
        %v4926 = vld [vmem:[%s4824 + $0x8] sm:$0x1]
        %v4927 = vsel %vm4925, 0, %v4926
        %4928 = vst [vmem:[%s4824 + $0x8] sm:$0x1] %v4927
        %v4929 = vld [vmem:[%s4824 + $0x14] sm:$0x1]
        %v4930 = vsel %vm4925, 0, %v4929
        %4931 = vst [vmem:[%s4824 + $0x14] sm:$0x1] %v4930
        %v4932 = vld [vmem:[%s4824 + $0x20] sm:$0x1]
        %v4933 = vsel %vm4925, 0, %v4932
        %4934 = vst [vmem:[%s4824 + $0x20] sm:$0x1] %v4933
        %v4935 = vld [vmem:[%s4824 + $0x2c] sm:$0x1]
        %v4936 = vsel %vm4925, 0, %v4935
        %4937 = vst [vmem:[%s4824 + $0x2c] sm:$0x1] %v4936
        %v4938 = vld [vmem:[%s4824 + $0x38] sm:$0x1]
        %v4939 = vsel %vm4925, 0, %v4938
        %4940 = vst [vmem:[%s4824 + $0x38] sm:$0x1] %v4939
        %v4941 = vld [vmem:[%s4824 + $0x44] sm:$0x1]
        %v4942 = vsel %vm4925, 0, %v4941
        %4943 = vst [vmem:[%s4824 + $0x44] sm:$0x1] %v4942
        %v4944 = vld [vmem:[%s4824 + $0x50] sm:$0x1]
        %v4945 = vsel %vm4925, 0, %v4944
        %4946 = vst [vmem:[%s4824 + $0x50] sm:$0x1] %v4945
        %v4947 = vld [vmem:[%s4824 + $0x5c] sm:$0x1]
        %v4948 = vsel %vm4925, 0, %v4947
        %4949 = vst [vmem:[%s4824 + $0x5c] sm:$0x1] %v4948
        %v4950 = vld [vmem:[%s4824 + $0x68] sm:$0x1]
        %v4951 = vsel %vm4925, 0, %v4950
        %4952 = vst [vmem:[%s4824 + $0x68] sm:$0x1] %v4951
        %v4953 = vld [vmem:[%s4824 + $0x74] sm:$0x1]
        %v4954 = vsel %vm4925, 0, %v4953
        %4955 = vst [vmem:[%s4824 + $0x74] sm:$0x1] %v4954
        %v4956 = vld [vmem:[%s4824 + $0x80] sm:$0x1]
        %v4957 = vsel %vm4925, 0, %v4956
        %4958 = vst [vmem:[%s4824 + $0x80] sm:$0x1] %v4957
        %v4959 = vld [vmem:[%s4824 + $0x8c] sm:$0x1]
        %v4960 = vsel %vm4925, 0, %v4959
        %4961 = vst [vmem:[%s4824 + $0x8c] sm:$0x1] %v4960
        %v4962 = vld [vmem:[%s4824 + $0x98] sm:$0x1]
        %v4963 = vsel %vm4925, 0, %v4962
        %4964 = vst [vmem:[%s4824 + $0x98] sm:$0x1] %v4963
        %v4965 = vld [vmem:[%s4824 + $0xa4] sm:$0x1]
        %v4966 = vsel %vm4925, 0, %v4965
        %4967 = vst [vmem:[%s4824 + $0xa4] sm:$0x1] %v4966
        %v4968 = vld [vmem:[%s4824 + $0xb0] sm:$0x1]
        %v4969 = vsel %vm4925, 0, %v4968
        %4970 = vst [vmem:[%s4824 + $0xb0] sm:$0x1] %v4969
        %v4971 = vld [vmem:[%s4824 + $0xbc] sm:$0x1]
        %v4972 = vsel %vm4925, 0, %v4971
        %4973 = vst [vmem:[%s4824 + $0xbc] sm:$0x1] %v4972
        %v4974 = vld [vmem:[%s4824 + $0xe0] sm:$0x1]
        %v4975 = vsel %vm4925, 0, %v4974
        %4976 = vst [vmem:[%s4824 + $0xe0] sm:$0x1] %v4975
        %v4977 = vld [vmem:[%s4824 + $0xec] sm:$0x1]
        %v4978 = vsel %vm4925, 0, %v4977
        %4979 = vst [vmem:[%s4824 + $0xec] sm:$0x1] %v4978
        %v4980 = vld [vmem:[%s4824 + $0xf8] sm:$0x1]
        %v4981 = vsel %vm4925, 0, %v4980
        %4982 = vst [vmem:[%s4824 + $0xf8] sm:$0x1] %v4981
        %v4983 = vld [vmem:[%s4824 + $0x104] sm:$0x1]
        %v4984 = vsel %vm4925, 0, %v4983
        %4985 = vst [vmem:[%s4824 + $0x104] sm:$0x1] %v4984
        %v4986 = vld [vmem:[%s4824 + $0x110] sm:$0x1]
        %v4987 = vsel %vm4925, 0, %v4986
        %4988 = vst [vmem:[%s4824 + $0x110] sm:$0x1] %v4987
        %v4989 = vld [vmem:[%s4824 + $0x11c] sm:$0x1]
        %v4990 = vsel %vm4925, 0, %v4989
        %4991 = vst [vmem:[%s4824 + $0x11c] sm:$0x1] %v4990
        %v4992 = vld [vmem:[%s4824 + $0x128] sm:$0x1]
        %v4993 = vsel %vm4925, 0, %v4992
        %4994 = vst [vmem:[%s4824 + $0x128] sm:$0x1] %v4993
        %v4995 = vld [vmem:[%s4824 + $0x134] sm:$0x1]
        %v4996 = vsel %vm4925, 0, %v4995
        %4997 = vst [vmem:[%s4824 + $0x134] sm:$0x1] %v4996
        %v4998 = vld [vmem:[%s4824 + $0x140] sm:$0x1]
        %v4999 = vsel %vm4925, 0, %v4998
        %5000 = vst [vmem:[%s4824 + $0x140] sm:$0x1] %v4999
        %v5001 = vld [vmem:[%s4824 + $0x14c] sm:$0x1]
        %v5002 = vsel %vm4925, 0, %v5001
        %5003 = vst [vmem:[%s4824 + $0x14c] sm:$0x1] %v5002
        %v5004 = vld [vmem:[%s4824 + $0x158] sm:$0x1]
        %v5005 = vsel %vm4925, 0, %v5004
        %5006 = vst [vmem:[%s4824 + $0x158] sm:$0x1] %v5005
        %v5007 = vld [vmem:[%s4824 + $0x164] sm:$0x1]
        %v5008 = vsel %vm4925, 0, %v5007
        %5009 = vst [vmem:[%s4824 + $0x164] sm:$0x1] %v5008
        %v5010 = vld [vmem:[%s4824 + $0x170] sm:$0x1]
        %v5011 = vsel %vm4925, 0, %v5010
        %5012 = vst [vmem:[%s4824 + $0x170] sm:$0x1] %v5011
        %v5013 = vld [vmem:[%s4824 + $0x17c] sm:$0x1]
        %v5014 = vsel %vm4925, 0, %v5013
        %5015 = vst [vmem:[%s4824 + $0x17c] sm:$0x1] %v5014
        %v5016 = vld [vmem:[%s4824 + $0x188] sm:$0x1]
        %v5017 = vsel %vm4925, 0, %v5016
        %5018 = vst [vmem:[%s4824 + $0x188] sm:$0x1] %v5017
        %v5019 = vld [vmem:[%s4824 + $0x194] sm:$0x1]
        %v5020 = vsel %vm4925, 0, %v5019
        %5021 = vst [vmem:[%s4824 + $0x194] sm:$0x1] %v5020
        %v5022 = vpack.c.bf16 %v4747, %v4747
        %v5023 = vpack.c.bf16 %v4748, %v4748
        %v5024 = vpack.c.bf16 %v4749, %v4749
        %v5025 = vpack.c.bf16 %v4750, %v4750
        %v5026 = vpack.c.bf16 %v4751, %v4751
        %v5027 = vpack.c.bf16 %v4752, %v4752
        %v5028 = vpack.c.bf16 %v4753, %v4753
        %v5029 = vpack.c.bf16 %v4754, %v4754
        %v5030 = vpack.c.bf16 %v4755, %v4755
        %v5031 = vpack.c.bf16 %v4756, %v4756
        %v5032 = vpack.c.bf16 %v4757, %v4757
        %v5033 = vpack.c.bf16 %v4758, %v4758
        %v5034 = vpack.c.bf16 %v4759, %v4759
        %v5035 = vpack.c.bf16 %v4760, %v4760
        %v5036 = vpack.c.bf16 %v4761, %v4761
        %v5037 = vpack.c.bf16 %v4762, %v4762
        %v5038 = vpack.c.bf16 %v4763, %v4763
        %v5039 = vpack.c.bf16 %v4764, %v4764
        %v5040 = vpack.c.bf16 %v4765, %v4765
        %v5041 = vpack.c.bf16 %v4766, %v4766
        %v5042 = vpack.c.bf16 %v4767, %v4767
        %v5043 = vpack.c.bf16 %v4768, %v4768
        %v5044 = vpack.c.bf16 %v4769, %v4769
        %v5045 = vpack.c.bf16 %v4770, %v4770
        %v5046 = vpack.c.bf16 %v4771, %v4771
        %v5047 = vpack.c.bf16 %v4772, %v4772
        %v5048 = vpack.c.bf16 %v4773, %v4773
        %v5049 = vpack.c.bf16 %v4774, %v4774
        %v5050 = vpack.c.bf16 %v4775, %v4775
        %v5051 = vpack.c.bf16 %v4776, %v4776
        %v5052 = vpack.c.bf16 %v4777, %v4777
        %v5053 = vpack.c.bf16 %v4778, %v4778
        %v5054 = vpack.c.bf16 %v4779, %v4779
        %v5055 = vpack.c.bf16 %v4780, %v4780
        %v5056 = vpack.c.bf16 %v4781, %v4781
        %v5057 = vpack.c.bf16 %v4782, %v4782
        %v5058 = vpack.c.bf16 %v4783, %v4783
        %v5059 = vpack.c.bf16 %v4784, %v4784
        %v5060 = vpack.c.bf16 %v4785, %v4785
        %v5061 = vpack.c.bf16 %v4786, %v4786
        %v5062 = vpack.c.bf16 %v4787, %v4787
        %v5063 = vpack.c.bf16 %v4788, %v4788
        %v5064 = vpack.c.bf16 %v4789, %v4789
        %v5065 = vpack.c.bf16 %v4790, %v4790
        %v5066 = vpack.c.bf16 %v4791, %v4791
        %v5067 = vpack.c.bf16 %v4792, %v4792
        %v5068 = vpack.c.bf16 %v4793, %v4793
        %v5069 = vpack.c.bf16 %v4794, %v4794
        %v5070 = vpack.c.bf16 %v4795, %v4795
        %v5071 = vpack.c.bf16 %v4796, %v4796
        %v5072 = vpack.c.bf16 %v4797, %v4797
        %v5073 = vpack.c.bf16 %v4798, %v4798
        %v5074 = vpack.c.bf16 %v4799, %v4799
        %v5075 = vpack.c.bf16 %v4800, %v4800
        %v5076 = vpack.c.bf16 %v4801, %v4801
        %v5077 = vpack.c.bf16 %v4802, %v4802
        %v5078 = vpack.c.bf16 %v4803, %v4803
        %v5079 = vpack.c.bf16 %v4804, %v4804
        %v5080 = vpack.c.bf16 %v4805, %v4805
        %v5081 = vpack.c.bf16 %v4806, %v4806
        %v5082 = vpack.c.bf16 %v4807, %v4807
        %v5083 = vpack.c.bf16 %v4808, %v4808
        %v5084 = vpack.c.bf16 %v4809, %v4809
        %v5085 = vpack.c.bf16 %v4810, %v4810
        %vm5086 = vsmask.f32 4368
        %vm5087 = vmor %vm4826, %vm5086
        %v5089 = vshrl.u32 %v5022, 16
        %v5091 = vrot.slane %v5089, 7
        %v5092 = vshll.u32 %v5022, 16
        %v5094 = vor.u32 %v5091, %v5092
        %v5095 = vrot.slane %v5091, 4
        %v5097 = vshrl.u32 %v5023, 16
        %v5099 = vrot.slane %v5097, 7
        %v5100 = vshll.u32 %v5023, 16
        %v5102 = vor.u32 %v5099, %v5100
        %v5103 = vsel %vm5087, %v5095, %v5102
        %v5104 = vrot.slane %v5099, 4
        %v5106 = vshrl.u32 %v5024, 16
        %v5108 = vrot.slane %v5106, 7
        %v5109 = vshll.u32 %v5024, 16
        %v5111 = vor.u32 %v5108, %v5109
        %v5112 = vrot.slane %v5108, 4
        %v5114 = vshrl.u32 %v5025, 16
        %v5116 = vrot.slane %v5114, 7
        %v5117 = vshll.u32 %v5025, 16
        %v5119 = vor.u32 %v5116, %v5117
        %v5120 = vsel %vm5087, %v5112, %v5119
        %v5121 = vrot.slane %v5116, 4
        %v5123 = vshrl.u32 %v5026, 16
        %v5125 = vrot.slane %v5123, 7
        %v5126 = vshll.u32 %v5026, 16
        %v5128 = vor.u32 %v5125, %v5126
        %v5129 = vrot.slane %v5125, 4
        %v5131 = vshrl.u32 %v5027, 16
        %v5133 = vrot.slane %v5131, 7
        %v5134 = vshll.u32 %v5027, 16
        %v5136 = vor.u32 %v5133, %v5134
        %v5137 = vsel %vm5087, %v5129, %v5136
        %v5138 = vrot.slane %v5133, 4
        %v5140 = vshrl.u32 %v5028, 16
        %v5142 = vrot.slane %v5140, 7
        %v5143 = vshll.u32 %v5028, 16
        %v5145 = vor.u32 %v5142, %v5143
        %v5146 = vrot.slane %v5142, 4
        %v5148 = vshrl.u32 %v5029, 16
        %v5150 = vrot.slane %v5148, 7
        %v5151 = vshll.u32 %v5029, 16
        %v5153 = vor.u32 %v5150, %v5151
        %v5154 = vsel %vm5087, %v5146, %v5153
        %v5155 = vrot.slane %v5150, 4
        %v5157 = vshrl.u32 %v5030, 16
        %v5159 = vrot.slane %v5157, 7
        %v5160 = vshll.u32 %v5030, 16
        %v5162 = vor.u32 %v5159, %v5160
        %v5163 = vrot.slane %v5159, 4
        %v5165 = vshrl.u32 %v5031, 16
        %v5167 = vrot.slane %v5165, 7
        %v5168 = vshll.u32 %v5031, 16
        %v5170 = vor.u32 %v5167, %v5168
        %v5171 = vsel %vm5087, %v5163, %v5170
        %v5172 = vrot.slane %v5167, 4
        %v5174 = vshrl.u32 %v5032, 16
        %v5176 = vrot.slane %v5174, 7
        %v5177 = vshll.u32 %v5032, 16
        %v5179 = vor.u32 %v5176, %v5177
        %v5180 = vrot.slane %v5176, 4
        %v5182 = vshrl.u32 %v5033, 16
        %v5184 = vrot.slane %v5182, 7
        %v5185 = vshll.u32 %v5033, 16
        %v5187 = vor.u32 %v5184, %v5185
        %v5188 = vsel %vm5087, %v5180, %v5187
        %v5189 = vrot.slane %v5184, 4
        %v5191 = vshrl.u32 %v5034, 16
        %v5193 = vrot.slane %v5191, 7
        %v5194 = vshll.u32 %v5034, 16
        %v5196 = vor.u32 %v5193, %v5194
        %v5197 = vrot.slane %v5193, 4
        %v5199 = vshrl.u32 %v5035, 16
        %v5201 = vrot.slane %v5199, 7
        %v5202 = vshll.u32 %v5035, 16
        %v5204 = vor.u32 %v5201, %v5202
        %v5205 = vsel %vm5087, %v5197, %v5204
        %v5206 = vrot.slane %v5201, 4
        %v5208 = vshrl.u32 %v5036, 16
        %v5210 = vrot.slane %v5208, 7
        %v5211 = vshll.u32 %v5036, 16
        %v5213 = vor.u32 %v5210, %v5211
        %v5214 = vrot.slane %v5210, 4
        %v5216 = vshrl.u32 %v5037, 16
        %v5218 = vrot.slane %v5216, 7
        %v5219 = vshll.u32 %v5037, 16
        %v5221 = vor.u32 %v5218, %v5219
        %v5222 = vsel %vm5087, %v5214, %v5221
        %v5223 = vrot.slane %v5218, 4
        %v5225 = vshrl.u32 %v5038, 16
        %v5227 = vrot.slane %v5225, 7
        %v5228 = vshll.u32 %v5038, 16
        %v5230 = vor.u32 %v5227, %v5228
        %v5231 = vrot.slane %v5227, 4
        %v5233 = vshrl.u32 %v5039, 16
        %v5235 = vrot.slane %v5233, 7
        %v5236 = vshll.u32 %v5039, 16
        %v5238 = vor.u32 %v5235, %v5236
        %v5239 = vsel %vm5087, %v5231, %v5238
        %v5240 = vrot.slane %v5235, 4
        %v5242 = vshrl.u32 %v5040, 16
        %v5244 = vrot.slane %v5242, 7
        %v5245 = vshll.u32 %v5040, 16
        %v5247 = vor.u32 %v5244, %v5245
        %v5248 = vrot.slane %v5244, 4
        %v5250 = vshrl.u32 %v5041, 16
        %v5252 = vrot.slane %v5250, 7
        %v5253 = vshll.u32 %v5041, 16
        %v5255 = vor.u32 %v5252, %v5253
        %v5256 = vsel %vm5087, %v5248, %v5255
        %v5257 = vrot.slane %v5252, 4
        %v5259 = vshrl.u32 %v5042, 16
        %v5261 = vrot.slane %v5259, 7
        %v5262 = vshll.u32 %v5042, 16
        %v5264 = vor.u32 %v5261, %v5262
        %v5265 = vrot.slane %v5261, 4
        %v5267 = vshrl.u32 %v5043, 16
        %v5269 = vrot.slane %v5267, 7
        %v5270 = vshll.u32 %v5043, 16
        %v5272 = vor.u32 %v5269, %v5270
        %v5273 = vsel %vm5087, %v5265, %v5272
        %v5274 = vrot.slane %v5269, 4
        %v5276 = vshrl.u32 %v5044, 16
        %v5278 = vrot.slane %v5276, 7
        %v5279 = vshll.u32 %v5044, 16
        %v5281 = vor.u32 %v5278, %v5279
        %v5282 = vrot.slane %v5278, 4
        %v5284 = vshrl.u32 %v5045, 16
        %v5286 = vrot.slane %v5284, 7
        %v5287 = vshll.u32 %v5045, 16
        %v5289 = vor.u32 %v5286, %v5287
        %v5290 = vsel %vm5087, %v5282, %v5289
        %v5291 = vrot.slane %v5286, 4
        %v5293 = vshrl.u32 %v5046, 16
        %v5295 = vrot.slane %v5293, 7
        %v5296 = vshll.u32 %v5046, 16
        %v5298 = vor.u32 %v5295, %v5296
        %v5299 = vrot.slane %v5295, 4
        %v5301 = vshrl.u32 %v5047, 16
        %v5303 = vrot.slane %v5301, 7
        %v5304 = vshll.u32 %v5047, 16
        %v5306 = vor.u32 %v5303, %v5304
        %v5307 = vsel %vm5087, %v5299, %v5306
        %v5308 = vrot.slane %v5303, 4
        %v5310 = vshrl.u32 %v5048, 16
        %v5312 = vrot.slane %v5310, 7
        %v5313 = vshll.u32 %v5048, 16
        %v5315 = vor.u32 %v5312, %v5313
        %v5316 = vrot.slane %v5312, 4
        %v5318 = vshrl.u32 %v5049, 16
        %v5320 = vrot.slane %v5318, 7
        %v5321 = vshll.u32 %v5049, 16
        %v5323 = vor.u32 %v5320, %v5321
        %v5324 = vsel %vm5087, %v5316, %v5323
        %v5325 = vrot.slane %v5320, 4
        %v5327 = vshrl.u32 %v5050, 16
        %v5329 = vrot.slane %v5327, 7
        %v5330 = vshll.u32 %v5050, 16
        %v5332 = vor.u32 %v5329, %v5330
        %v5333 = vrot.slane %v5329, 4
        %v5335 = vshrl.u32 %v5051, 16
        %v5337 = vrot.slane %v5335, 7
        %v5338 = vshll.u32 %v5051, 16
        %v5340 = vor.u32 %v5337, %v5338
        %v5341 = vsel %vm5087, %v5333, %v5340
        %v5342 = vrot.slane %v5337, 4
        %v5344 = vshrl.u32 %v5052, 16
        %v5346 = vrot.slane %v5344, 7
        %v5347 = vshll.u32 %v5052, 16
        %v5349 = vor.u32 %v5346, %v5347
        %v5350 = vrot.slane %v5346, 4
        %v5352 = vshrl.u32 %v5053, 16
        %v5354 = vrot.slane %v5352, 7
        %v5355 = vshll.u32 %v5053, 16
        %v5357 = vor.u32 %v5354, %v5355
        %v5358 = vsel %vm5087, %v5350, %v5357
        %v5359 = vrot.slane %v5354, 4
        %v5361 = vshrl.u32 %v5054, 16
        %v5363 = vrot.slane %v5361, 7
        %v5364 = vshll.u32 %v5054, 16
        %v5366 = vor.u32 %v5363, %v5364
        %v5367 = vrot.slane %v5363, 4
        %v5369 = vshrl.u32 %v5055, 16
        %v5371 = vrot.slane %v5369, 7
        %v5372 = vshll.u32 %v5055, 16
        %v5374 = vor.u32 %v5371, %v5372
        %v5375 = vsel %vm5087, %v5367, %v5374
        %v5376 = vrot.slane %v5371, 4
        %v5378 = vshrl.u32 %v5056, 16
        %v5380 = vrot.slane %v5378, 7
        %v5381 = vshll.u32 %v5056, 16
        %v5383 = vor.u32 %v5380, %v5381
        %v5384 = vrot.slane %v5380, 4
        %v5386 = vshrl.u32 %v5057, 16
        %v5388 = vrot.slane %v5386, 7
        %v5389 = vshll.u32 %v5057, 16
        %v5391 = vor.u32 %v5388, %v5389
        %v5392 = vsel %vm5087, %v5384, %v5391
        %v5393 = vrot.slane %v5388, 4
        %v5395 = vshrl.u32 %v5058, 16
        %v5397 = vrot.slane %v5395, 7
        %v5398 = vshll.u32 %v5058, 16
        %v5400 = vor.u32 %v5397, %v5398
        %v5401 = vrot.slane %v5397, 4
        %v5403 = vshrl.u32 %v5059, 16
        %v5405 = vrot.slane %v5403, 7
        %v5406 = vshll.u32 %v5059, 16
        %v5408 = vor.u32 %v5405, %v5406
        %v5409 = vsel %vm5087, %v5401, %v5408
        %v5410 = vrot.slane %v5405, 4
        %v5412 = vshrl.u32 %v5060, 16
        %v5414 = vrot.slane %v5412, 7
        %v5415 = vshll.u32 %v5060, 16
        %v5417 = vor.u32 %v5414, %v5415
        %v5418 = vrot.slane %v5414, 4
        %v5420 = vshrl.u32 %v5061, 16
        %v5422 = vrot.slane %v5420, 7
        %v5423 = vshll.u32 %v5061, 16
        %v5425 = vor.u32 %v5422, %v5423
        %v5426 = vsel %vm5087, %v5418, %v5425
        %v5427 = vrot.slane %v5422, 4
        %v5429 = vshrl.u32 %v5062, 16
        %v5431 = vrot.slane %v5429, 7
        %v5432 = vshll.u32 %v5062, 16
        %v5434 = vor.u32 %v5431, %v5432
        %v5435 = vrot.slane %v5431, 4
        %v5437 = vshrl.u32 %v5063, 16
        %v5439 = vrot.slane %v5437, 7
        %v5440 = vshll.u32 %v5063, 16
        %v5442 = vor.u32 %v5439, %v5440
        %v5443 = vsel %vm5087, %v5435, %v5442
        %v5444 = vrot.slane %v5439, 4
        %v5446 = vshrl.u32 %v5064, 16
        %v5448 = vrot.slane %v5446, 7
        %v5449 = vshll.u32 %v5064, 16
        %v5451 = vor.u32 %v5448, %v5449
        %v5452 = vrot.slane %v5448, 4
        %v5454 = vshrl.u32 %v5065, 16
        %v5456 = vrot.slane %v5454, 7
        %v5457 = vshll.u32 %v5065, 16
        %v5459 = vor.u32 %v5456, %v5457
        %v5460 = vsel %vm5087, %v5452, %v5459
        %v5461 = vrot.slane %v5456, 4
        %v5463 = vshrl.u32 %v5066, 16
        %v5465 = vrot.slane %v5463, 7
        %v5466 = vshll.u32 %v5066, 16
        %v5468 = vor.u32 %v5465, %v5466
        %v5469 = vrot.slane %v5465, 4
        %v5471 = vshrl.u32 %v5067, 16
        %v5473 = vrot.slane %v5471, 7
        %v5474 = vshll.u32 %v5067, 16
        %v5476 = vor.u32 %v5473, %v5474
        %v5477 = vsel %vm5087, %v5469, %v5476
        %v5478 = vrot.slane %v5473, 4
        %v5480 = vshrl.u32 %v5068, 16
        %v5482 = vrot.slane %v5480, 7
        %v5483 = vshll.u32 %v5068, 16
        %v5485 = vor.u32 %v5482, %v5483
        %v5486 = vrot.slane %v5482, 4
        %v5488 = vshrl.u32 %v5069, 16
        %v5490 = vrot.slane %v5488, 7
        %v5491 = vshll.u32 %v5069, 16
        %v5493 = vor.u32 %v5490, %v5491
        %v5494 = vsel %vm5087, %v5486, %v5493
        %v5495 = vrot.slane %v5490, 4
        %v5497 = vshrl.u32 %v5070, 16
        %v5499 = vrot.slane %v5497, 7
        %v5500 = vshll.u32 %v5070, 16
        %v5502 = vor.u32 %v5499, %v5500
        %v5503 = vrot.slane %v5499, 4
        %v5505 = vshrl.u32 %v5071, 16
        %v5507 = vrot.slane %v5505, 7
        %v5508 = vshll.u32 %v5071, 16
        %v5510 = vor.u32 %v5507, %v5508
        %v5511 = vsel %vm5087, %v5503, %v5510
        %v5512 = vrot.slane %v5507, 4
        %v5514 = vshrl.u32 %v5072, 16
        %v5516 = vrot.slane %v5514, 7
        %v5517 = vshll.u32 %v5072, 16
        %v5519 = vor.u32 %v5516, %v5517
        %v5520 = vrot.slane %v5516, 4
        %v5522 = vshrl.u32 %v5073, 16
        %v5524 = vrot.slane %v5522, 7
        %v5525 = vshll.u32 %v5073, 16
        %v5527 = vor.u32 %v5524, %v5525
        %v5528 = vsel %vm5087, %v5520, %v5527
        %v5529 = vrot.slane %v5524, 4
        %v5531 = vshrl.u32 %v5074, 16
        %v5533 = vrot.slane %v5531, 7
        %v5534 = vshll.u32 %v5074, 16
        %v5536 = vor.u32 %v5533, %v5534
        %v5537 = vrot.slane %v5533, 4
        %v5539 = vshrl.u32 %v5075, 16
        %v5541 = vrot.slane %v5539, 7
        %v5542 = vshll.u32 %v5075, 16
        %v5544 = vor.u32 %v5541, %v5542
        %v5545 = vsel %vm5087, %v5537, %v5544
        %v5546 = vrot.slane %v5541, 4
        %v5548 = vshrl.u32 %v5076, 16
        %v5550 = vrot.slane %v5548, 7
        %v5551 = vshll.u32 %v5076, 16
        %v5553 = vor.u32 %v5550, %v5551
        %v5554 = vrot.slane %v5550, 4
        %v5556 = vshrl.u32 %v5077, 16
        %v5558 = vrot.slane %v5556, 7
        %v5559 = vshll.u32 %v5077, 16
        %v5561 = vor.u32 %v5558, %v5559
        %v5562 = vsel %vm5087, %v5554, %v5561
        %v5563 = vrot.slane %v5558, 4
        %v5565 = vshrl.u32 %v5078, 16
        %v5567 = vrot.slane %v5565, 7
        %v5568 = vshll.u32 %v5078, 16
        %v5570 = vor.u32 %v5567, %v5568
        %v5571 = vrot.slane %v5567, 4
        %v5573 = vshrl.u32 %v5079, 16
        %v5575 = vrot.slane %v5573, 7
        %v5576 = vshll.u32 %v5079, 16
        %v5578 = vor.u32 %v5575, %v5576
        %v5579 = vsel %vm5087, %v5571, %v5578
        %v5580 = vrot.slane %v5575, 4
        %v5582 = vshrl.u32 %v5080, 16
        %v5584 = vrot.slane %v5582, 7
        %v5585 = vshll.u32 %v5080, 16
        %v5587 = vor.u32 %v5584, %v5585
        %v5588 = vrot.slane %v5584, 4
        %v5590 = vshrl.u32 %v5081, 16
        %v5592 = vrot.slane %v5590, 7
        %v5593 = vshll.u32 %v5081, 16
        %v5595 = vor.u32 %v5592, %v5593
        %v5596 = vsel %vm5087, %v5588, %v5595
        %v5597 = vrot.slane %v5592, 4
        %v5599 = vshrl.u32 %v5082, 16
        %v5601 = vrot.slane %v5599, 7
        %v5602 = vshll.u32 %v5082, 16
        %v5604 = vor.u32 %v5601, %v5602
        %v5605 = vrot.slane %v5601, 4
        %v5607 = vshrl.u32 %v5083, 16
        %v5609 = vrot.slane %v5607, 7
        %v5610 = vshll.u32 %v5083, 16
        %v5612 = vor.u32 %v5609, %v5610
        %v5613 = vsel %vm5087, %v5605, %v5612
        %v5614 = vrot.slane %v5609, 4
        %v5616 = vshrl.u32 %v5084, 16
        %v5618 = vrot.slane %v5616, 7
        %v5619 = vshll.u32 %v5084, 16
        %v5621 = vor.u32 %v5618, %v5619
        %v5622 = vrot.slane %v5618, 4
        %v5624 = vshrl.u32 %v5085, 16
        %v5626 = vrot.slane %v5624, 7
        %v5627 = vshll.u32 %v5085, 16
        %v5629 = vor.u32 %v5626, %v5627
        %v5630 = vsel %vm5087, %v5622, %v5629
        %v5631 = vrot.slane %v5626, 4
        %vm5728 = vcmask 1043456
        %vm5729 = vmand %vm5728, %vm4924
        %v5730 = vld [vmem:[%s4824] sm:$0xf]
        %v5731 = vsel %vm5729, %v5094, %v5730
        %5732 = vst [vmem:[%s4824] sm:$0xf] %v5731
        %5733 = vst [vmem:[%s4824 + $0x4] sm:$0xf] %v5103
        %v5734 = vld [vmem:[%s4824 + $0x8] sm:$0x1]
        %v5735 = vsel %vm4827, %v5104, %v5734
        %5736 = vst [vmem:[%s4824 + $0x8] sm:$0x1] %v5735
        %v5737 = vld [vmem:[%s4824 + $0xc] sm:$0xf]
        %v5738 = vsel %vm5729, %v5111, %v5737
        %5739 = vst [vmem:[%s4824 + $0xc] sm:$0xf] %v5738
        %5740 = vst [vmem:[%s4824 + $0x10] sm:$0xf] %v5120
        %v5741 = vld [vmem:[%s4824 + $0x14] sm:$0x1]
        %v5742 = vsel %vm4827, %v5121, %v5741
        %5743 = vst [vmem:[%s4824 + $0x14] sm:$0x1] %v5742
        %v5744 = vld [vmem:[%s4824 + $0x18] sm:$0xf]
        %v5745 = vsel %vm5729, %v5128, %v5744
        %5746 = vst [vmem:[%s4824 + $0x18] sm:$0xf] %v5745
        %5747 = vst [vmem:[%s4824 + $0x1c] sm:$0xf] %v5137
        %v5748 = vld [vmem:[%s4824 + $0x20] sm:$0x1]
        %v5749 = vsel %vm4827, %v5138, %v5748
        %5750 = vst [vmem:[%s4824 + $0x20] sm:$0x1] %v5749
        %v5751 = vld [vmem:[%s4824 + $0x24] sm:$0xf]
        %v5752 = vsel %vm5729, %v5145, %v5751
        %5753 = vst [vmem:[%s4824 + $0x24] sm:$0xf] %v5752
        %5754 = vst [vmem:[%s4824 + $0x28] sm:$0xf] %v5154
        %v5755 = vld [vmem:[%s4824 + $0x2c] sm:$0x1]
        %v5756 = vsel %vm4827, %v5155, %v5755
        %5757 = vst [vmem:[%s4824 + $0x2c] sm:$0x1] %v5756
        %v5758 = vld [vmem:[%s4824 + $0x30] sm:$0xf]
        %v5759 = vsel %vm5729, %v5162, %v5758
        %5760 = vst [vmem:[%s4824 + $0x30] sm:$0xf] %v5759
        %5761 = vst [vmem:[%s4824 + $0x34] sm:$0xf] %v5171
        %v5762 = vld [vmem:[%s4824 + $0x38] sm:$0x1]
        %v5763 = vsel %vm4827, %v5172, %v5762
        %5764 = vst [vmem:[%s4824 + $0x38] sm:$0x1] %v5763
        %v5765 = vld [vmem:[%s4824 + $0x3c] sm:$0xf]
        %v5766 = vsel %vm5729, %v5179, %v5765
        %5767 = vst [vmem:[%s4824 + $0x3c] sm:$0xf] %v5766
        %5768 = vst [vmem:[%s4824 + $0x40] sm:$0xf] %v5188
        %v5769 = vld [vmem:[%s4824 + $0x44] sm:$0x1]
        %v5770 = vsel %vm4827, %v5189, %v5769
        %5771 = vst [vmem:[%s4824 + $0x44] sm:$0x1] %v5770
        %v5772 = vld [vmem:[%s4824 + $0x48] sm:$0xf]
        %v5773 = vsel %vm5729, %v5196, %v5772
        %5774 = vst [vmem:[%s4824 + $0x48] sm:$0xf] %v5773
        %5775 = vst [vmem:[%s4824 + $0x4c] sm:$0xf] %v5205
        %v5776 = vld [vmem:[%s4824 + $0x50] sm:$0x1]
        %v5777 = vsel %vm4827, %v5206, %v5776
        %5778 = vst [vmem:[%s4824 + $0x50] sm:$0x1] %v5777
        %v5779 = vld [vmem:[%s4824 + $0x54] sm:$0xf]
        %v5780 = vsel %vm5729, %v5213, %v5779
        %5781 = vst [vmem:[%s4824 + $0x54] sm:$0xf] %v5780
        %5782 = vst [vmem:[%s4824 + $0x58] sm:$0xf] %v5222
        %v5783 = vld [vmem:[%s4824 + $0x5c] sm:$0x1]
        %v5784 = vsel %vm4827, %v5223, %v5783
        %5785 = vst [vmem:[%s4824 + $0x5c] sm:$0x1] %v5784
        %v5786 = vld [vmem:[%s4824 + $0x60] sm:$0xf]
        %v5787 = vsel %vm5729, %v5230, %v5786
        %5788 = vst [vmem:[%s4824 + $0x60] sm:$0xf] %v5787
        %5789 = vst [vmem:[%s4824 + $0x64] sm:$0xf] %v5239
        %v5790 = vld [vmem:[%s4824 + $0x68] sm:$0x1]
        %v5791 = vsel %vm4827, %v5240, %v5790
        %5792 = vst [vmem:[%s4824 + $0x68] sm:$0x1] %v5791
        %v5793 = vld [vmem:[%s4824 + $0x6c] sm:$0xf]
        %v5794 = vsel %vm5729, %v5247, %v5793
        %5795 = vst [vmem:[%s4824 + $0x6c] sm:$0xf] %v5794
        %5796 = vst [vmem:[%s4824 + $0x70] sm:$0xf] %v5256
        %v5797 = vld [vmem:[%s4824 + $0x74] sm:$0x1]
        %v5798 = vsel %vm4827, %v5257, %v5797
        %5799 = vst [vmem:[%s4824 + $0x74] sm:$0x1] %v5798
        %v5800 = vld [vmem:[%s4824 + $0x78] sm:$0xf]
        %v5801 = vsel %vm5729, %v5264, %v5800
        %5802 = vst [vmem:[%s4824 + $0x78] sm:$0xf] %v5801
        %5803 = vst [vmem:[%s4824 + $0x7c] sm:$0xf] %v5273
        %v5804 = vld [vmem:[%s4824 + $0x80] sm:$0x1]
        %v5805 = vsel %vm4827, %v5274, %v5804
        %5806 = vst [vmem:[%s4824 + $0x80] sm:$0x1] %v5805
        %v5807 = vld [vmem:[%s4824 + $0x84] sm:$0xf]
        %v5808 = vsel %vm5729, %v5281, %v5807
        %5809 = vst [vmem:[%s4824 + $0x84] sm:$0xf] %v5808
        %5810 = vst [vmem:[%s4824 + $0x88] sm:$0xf] %v5290
        %v5811 = vld [vmem:[%s4824 + $0x8c] sm:$0x1]
        %v5812 = vsel %vm4827, %v5291, %v5811
        %5813 = vst [vmem:[%s4824 + $0x8c] sm:$0x1] %v5812
        %v5814 = vld [vmem:[%s4824 + $0x90] sm:$0xf]
        %v5815 = vsel %vm5729, %v5298, %v5814
        %5816 = vst [vmem:[%s4824 + $0x90] sm:$0xf] %v5815
        %5817 = vst [vmem:[%s4824 + $0x94] sm:$0xf] %v5307
        %v5818 = vld [vmem:[%s4824 + $0x98] sm:$0x1]
        %v5819 = vsel %vm4827, %v5308, %v5818
        %5820 = vst [vmem:[%s4824 + $0x98] sm:$0x1] %v5819
        %v5821 = vld [vmem:[%s4824 + $0x9c] sm:$0xf]
        %v5822 = vsel %vm5729, %v5315, %v5821
        %5823 = vst [vmem:[%s4824 + $0x9c] sm:$0xf] %v5822
        %5824 = vst [vmem:[%s4824 + $0xa0] sm:$0xf] %v5324
        %v5825 = vld [vmem:[%s4824 + $0xa4] sm:$0x1]
        %v5826 = vsel %vm4827, %v5325, %v5825
        %5827 = vst [vmem:[%s4824 + $0xa4] sm:$0x1] %v5826
        %v5828 = vld [vmem:[%s4824 + $0xa8] sm:$0xf]
        %v5829 = vsel %vm5729, %v5332, %v5828
        %5830 = vst [vmem:[%s4824 + $0xa8] sm:$0xf] %v5829
        %5831 = vst [vmem:[%s4824 + $0xac] sm:$0xf] %v5341
        %v5832 = vld [vmem:[%s4824 + $0xb0] sm:$0x1]
        %v5833 = vsel %vm4827, %v5342, %v5832
        %5834 = vst [vmem:[%s4824 + $0xb0] sm:$0x1] %v5833
        %v5835 = vld [vmem:[%s4824 + $0xb4] sm:$0xf]
        %v5836 = vsel %vm5729, %v5349, %v5835
        %5837 = vst [vmem:[%s4824 + $0xb4] sm:$0xf] %v5836
        %5838 = vst [vmem:[%s4824 + $0xb8] sm:$0xf] %v5358
        %v5839 = vld [vmem:[%s4824 + $0xbc] sm:$0x1]
        %v5840 = vsel %vm4827, %v5359, %v5839
        %5841 = vst [vmem:[%s4824 + $0xbc] sm:$0x1] %v5840
        %v5842 = vld [vmem:[%s4824 + $0xd8] sm:$0xf]
        %v5843 = vsel %vm5729, %v5366, %v5842
        %5844 = vst [vmem:[%s4824 + $0xd8] sm:$0xf] %v5843
        %5845 = vst [vmem:[%s4824 + $0xdc] sm:$0xf] %v5375
        %v5846 = vld [vmem:[%s4824 + $0xe0] sm:$0x1]
        %v5847 = vsel %vm4827, %v5376, %v5846
        %5848 = vst [vmem:[%s4824 + $0xe0] sm:$0x1] %v5847
        %v5849 = vld [vmem:[%s4824 + $0xe4] sm:$0xf]
        %v5850 = vsel %vm5729, %v5383, %v5849
        %5851 = vst [vmem:[%s4824 + $0xe4] sm:$0xf] %v5850
        %5852 = vst [vmem:[%s4824 + $0xe8] sm:$0xf] %v5392
        %v5853 = vld [vmem:[%s4824 + $0xec] sm:$0x1]
        %v5854 = vsel %vm4827, %v5393, %v5853
        %5855 = vst [vmem:[%s4824 + $0xec] sm:$0x1] %v5854
        %v5856 = vld [vmem:[%s4824 + $0xf0] sm:$0xf]
        %v5857 = vsel %vm5729, %v5400, %v5856
        %5858 = vst [vmem:[%s4824 + $0xf0] sm:$0xf] %v5857
        %5859 = vst [vmem:[%s4824 + $0xf4] sm:$0xf] %v5409
        %v5860 = vld [vmem:[%s4824 + $0xf8] sm:$0x1]
        %v5861 = vsel %vm4827, %v5410, %v5860
        %5862 = vst [vmem:[%s4824 + $0xf8] sm:$0x1] %v5861
        %v5863 = vld [vmem:[%s4824 + $0xfc] sm:$0xf]
        %v5864 = vsel %vm5729, %v5417, %v5863
        %5865 = vst [vmem:[%s4824 + $0xfc] sm:$0xf] %v5864
        %5866 = vst [vmem:[%s4824 + $0x100] sm:$0xf] %v5426
        %v5867 = vld [vmem:[%s4824 + $0x104] sm:$0x1]
        %v5868 = vsel %vm4827, %v5427, %v5867
        %5869 = vst [vmem:[%s4824 + $0x104] sm:$0x1] %v5868
        %v5870 = vld [vmem:[%s4824 + $0x108] sm:$0xf]
        %v5871 = vsel %vm5729, %v5434, %v5870
        %5872 = vst [vmem:[%s4824 + $0x108] sm:$0xf] %v5871
        %5873 = vst [vmem:[%s4824 + $0x10c] sm:$0xf] %v5443
        %v5874 = vld [vmem:[%s4824 + $0x110] sm:$0x1]
        %v5875 = vsel %vm4827, %v5444, %v5874
        %5876 = vst [vmem:[%s4824 + $0x110] sm:$0x1] %v5875
        %v5877 = vld [vmem:[%s4824 + $0x114] sm:$0xf]
        %v5878 = vsel %vm5729, %v5451, %v5877
        %5879 = vst [vmem:[%s4824 + $0x114] sm:$0xf] %v5878
        %5880 = vst [vmem:[%s4824 + $0x118] sm:$0xf] %v5460
        %v5881 = vld [vmem:[%s4824 + $0x11c] sm:$0x1]
        %v5882 = vsel %vm4827, %v5461, %v5881
        %5883 = vst [vmem:[%s4824 + $0x11c] sm:$0x1] %v5882
        %v5884 = vld [vmem:[%s4824 + $0x120] sm:$0xf]
        %v5885 = vsel %vm5729, %v5468, %v5884
        %5886 = vst [vmem:[%s4824 + $0x120] sm:$0xf] %v5885
        %5887 = vst [vmem:[%s4824 + $0x124] sm:$0xf] %v5477
        %v5888 = vld [vmem:[%s4824 + $0x128] sm:$0x1]
        %v5889 = vsel %vm4827, %v5478, %v5888
        %5890 = vst [vmem:[%s4824 + $0x128] sm:$0x1] %v5889
        %v5891 = vld [vmem:[%s4824 + $0x12c] sm:$0xf]
        %v5892 = vsel %vm5729, %v5485, %v5891
        %5893 = vst [vmem:[%s4824 + $0x12c] sm:$0xf] %v5892
        %5894 = vst [vmem:[%s4824 + $0x130] sm:$0xf] %v5494
        %v5895 = vld [vmem:[%s4824 + $0x134] sm:$0x1]
        %v5896 = vsel %vm4827, %v5495, %v5895
        %5897 = vst [vmem:[%s4824 + $0x134] sm:$0x1] %v5896
        %v5898 = vld [vmem:[%s4824 + $0x138] sm:$0xf]
        %v5899 = vsel %vm5729, %v5502, %v5898
        %5900 = vst [vmem:[%s4824 + $0x138] sm:$0xf] %v5899
        %5901 = vst [vmem:[%s4824 + $0x13c] sm:$0xf] %v5511
        %v5902 = vld [vmem:[%s4824 + $0x140] sm:$0x1]
        %v5903 = vsel %vm4827, %v5512, %v5902
        %5904 = vst [vmem:[%s4824 + $0x140] sm:$0x1] %v5903
        %v5905 = vld [vmem:[%s4824 + $0x144] sm:$0xf]
        %v5906 = vsel %vm5729, %v5519, %v5905
        %5907 = vst [vmem:[%s4824 + $0x144] sm:$0xf] %v5906
        %5908 = vst [vmem:[%s4824 + $0x148] sm:$0xf] %v5528
        %v5909 = vld [vmem:[%s4824 + $0x14c] sm:$0x1]
        %v5910 = vsel %vm4827, %v5529, %v5909
        %5911 = vst [vmem:[%s4824 + $0x14c] sm:$0x1] %v5910
        %v5912 = vld [vmem:[%s4824 + $0x150] sm:$0xf]
        %v5913 = vsel %vm5729, %v5536, %v5912
        %5914 = vst [vmem:[%s4824 + $0x150] sm:$0xf] %v5913
        %5915 = vst [vmem:[%s4824 + $0x154] sm:$0xf] %v5545
        %v5916 = vld [vmem:[%s4824 + $0x158] sm:$0x1]
        %v5917 = vsel %vm4827, %v5546, %v5916
        %5918 = vst [vmem:[%s4824 + $0x158] sm:$0x1] %v5917
        %v5919 = vld [vmem:[%s4824 + $0x15c] sm:$0xf]
        %v5920 = vsel %vm5729, %v5553, %v5919
        %5921 = vst [vmem:[%s4824 + $0x15c] sm:$0xf] %v5920
        %5922 = vst [vmem:[%s4824 + $0x160] sm:$0xf] %v5562
        %v5923 = vld [vmem:[%s4824 + $0x164] sm:$0x1]
        %v5924 = vsel %vm4827, %v5563, %v5923
        %5925 = vst [vmem:[%s4824 + $0x164] sm:$0x1] %v5924
        %v5926 = vld [vmem:[%s4824 + $0x168] sm:$0xf]
        %v5927 = vsel %vm5729, %v5570, %v5926
        %5928 = vst [vmem:[%s4824 + $0x168] sm:$0xf] %v5927
        %5929 = vst [vmem:[%s4824 + $0x16c] sm:$0xf] %v5579
        %v5930 = vld [vmem:[%s4824 + $0x170] sm:$0x1]
        %v5931 = vsel %vm4827, %v5580, %v5930
        %5932 = vst [vmem:[%s4824 + $0x170] sm:$0x1] %v5931
        %v5933 = vld [vmem:[%s4824 + $0x174] sm:$0xf]
        %v5934 = vsel %vm5729, %v5587, %v5933
        %5935 = vst [vmem:[%s4824 + $0x174] sm:$0xf] %v5934
        %5936 = vst [vmem:[%s4824 + $0x178] sm:$0xf] %v5596
        %v5937 = vld [vmem:[%s4824 + $0x17c] sm:$0x1]
        %v5938 = vsel %vm4827, %v5597, %v5937
        %5939 = vst [vmem:[%s4824 + $0x17c] sm:$0x1] %v5938
        %v5940 = vld [vmem:[%s4824 + $0x180] sm:$0xf]
        %v5941 = vsel %vm5729, %v5604, %v5940
        %5942 = vst [vmem:[%s4824 + $0x180] sm:$0xf] %v5941
        %5943 = vst [vmem:[%s4824 + $0x184] sm:$0xf] %v5613
        %v5944 = vld [vmem:[%s4824 + $0x188] sm:$0x1]
        %v5945 = vsel %vm4827, %v5614, %v5944
        %5946 = vst [vmem:[%s4824 + $0x188] sm:$0x1] %v5945
        %v5947 = vld [vmem:[%s4824 + $0x18c] sm:$0xf]
        %v5948 = vsel %vm5729, %v5621, %v5947
        %5949 = vst [vmem:[%s4824 + $0x18c] sm:$0xf] %v5948
        %5950 = vst [vmem:[%s4824 + $0x190] sm:$0xf] %v5630
        %v5951 = vld [vmem:[%s4824 + $0x194] sm:$0x1]
        %v5952 = vsel %vm4827, %v5631, %v5951
        %5953 = vst [vmem:[%s4824 + $0x194] sm:$0x1] %v5952
        %v5954 = vld [vmem:[#allocation2] sm:$0xf]
        %v5955 = vld [vmem:[#allocation2 + $0x4] sm:$0xf]
        %v5956 = vld [vmem:[#allocation2 + $0xc] sm:$0xf]
        %v5957 = vld [vmem:[#allocation2 + $0x10] sm:$0xf]
        %v5958 = vld [vmem:[#allocation2 + $0x18] sm:$0xf]
        %v5959 = vld [vmem:[#allocation2 + $0x1c] sm:$0xf]
        %v5960 = vld [vmem:[#allocation2 + $0x24] sm:$0xf]
        %v5961 = vld [vmem:[#allocation2 + $0x28] sm:$0xf]
        %v5962 = vld [vmem:[#allocation2 + $0x30] sm:$0xf]
        %v5963 = vld [vmem:[#allocation2 + $0x34] sm:$0xf]
        %v5964 = vld [vmem:[#allocation2 + $0x3c] sm:$0xf]
        %v5965 = vld [vmem:[#allocation2 + $0x40] sm:$0xf]
        %v5966 = vld [vmem:[#allocation2 + $0x48] sm:$0xf]
        %v5967 = vld [vmem:[#allocation2 + $0x4c] sm:$0xf]
        %v5968 = vld [vmem:[#allocation2 + $0x54] sm:$0xf]
        %v5969 = vld [vmem:[#allocation2 + $0x58] sm:$0xf]
        %v5970 = vld [vmem:[#allocation2 + $0x60] sm:$0xf]
        %v5971 = vld [vmem:[#allocation2 + $0x64] sm:$0xf]
        %v5972 = vld [vmem:[#allocation2 + $0x6c] sm:$0xf]
        %v5973 = vld [vmem:[#allocation2 + $0x70] sm:$0xf]
        %v5974 = vld [vmem:[#allocation2 + $0x78] sm:$0xf]
        %v5975 = vld [vmem:[#allocation2 + $0x7c] sm:$0xf]
        %v5976 = vld [vmem:[#allocation2 + $0x84] sm:$0xf]
        %v5977 = vld [vmem:[#allocation2 + $0x88] sm:$0xf]
        %v5978 = vld [vmem:[#allocation2 + $0x90] sm:$0xf]
        %v5979 = vld [vmem:[#allocation2 + $0x94] sm:$0xf]
        %v5980 = vld [vmem:[#allocation2 + $0x9c] sm:$0xf]
        %v5981 = vld [vmem:[#allocation2 + $0xa0] sm:$0xf]
        %v5982 = vld [vmem:[#allocation2 + $0xa8] sm:$0xf]
        %v5983 = vld [vmem:[#allocation2 + $0xac] sm:$0xf]
        %v5984 = vld [vmem:[#allocation2 + $0xb4] sm:$0xf]
        %v5985 = vld [vmem:[#allocation2 + $0xb8] sm:$0xf]
        %v5986 = vld [vmem:[#allocation2 + $0xc0] sm:$0xf]
        %v5987 = vld [vmem:[#allocation2 + $0xc4] sm:$0xf]
        %v5988 = vld [vmem:[#allocation2 + $0xcc] sm:$0xf]
        %v5989 = vld [vmem:[#allocation2 + $0xd0] sm:$0xf]
        %v5990 = vld [vmem:[#allocation2 + $0xd8] sm:$0xf]
        %v5991 = vld [vmem:[#allocation2 + $0xdc] sm:$0xf]
        %v5992 = vld [vmem:[#allocation2 + $0xe4] sm:$0xf]
        %v5993 = vld [vmem:[#allocation2 + $0xe8] sm:$0xf]
        %v5994 = vld [vmem:[#allocation2 + $0xf0] sm:$0xf]
        %v5995 = vld [vmem:[#allocation2 + $0xf4] sm:$0xf]
        %v5996 = vld [vmem:[#allocation2 + $0xfc] sm:$0xf]
        %v5997 = vld [vmem:[#allocation2 + $0x100] sm:$0xf]
        %v5998 = vld [vmem:[#allocation2 + $0x108] sm:$0xf]
        %v5999 = vld [vmem:[#allocation2 + $0x10c] sm:$0xf]
        %v6000 = vld [vmem:[#allocation2 + $0x114] sm:$0xf]
        %v6001 = vld [vmem:[#allocation2 + $0x118] sm:$0xf]
        %v6002 = vld [vmem:[#allocation2 + $0x120] sm:$0xf]
        %v6003 = vld [vmem:[#allocation2 + $0x124] sm:$0xf]
        %v6004 = vld [vmem:[#allocation2 + $0x12c] sm:$0xf]
        %v6005 = vld [vmem:[#allocation2 + $0x130] sm:$0xf]
        %v6006 = vld [vmem:[#allocation2 + $0x138] sm:$0xf]
        %v6007 = vld [vmem:[#allocation2 + $0x13c] sm:$0xf]
        %v6008 = vld [vmem:[#allocation2 + $0x144] sm:$0xf]
        %v6009 = vld [vmem:[#allocation2 + $0x148] sm:$0xf]
        %v6010 = vld [vmem:[#allocation2 + $0x150] sm:$0xf]
        %v6011 = vld [vmem:[#allocation2 + $0x154] sm:$0xf]
        %v6012 = vld [vmem:[#allocation2 + $0x15c] sm:$0xf]
        %v6013 = vld [vmem:[#allocation2 + $0x160] sm:$0xf]
        %v6014 = vld [vmem:[#allocation2 + $0x168] sm:$0xf]
        %v6015 = vld [vmem:[#allocation2 + $0x16c] sm:$0xf]
        %v6016 = vld [vmem:[#allocation2 + $0x174] sm:$0xf]
        %v6017 = vld [vmem:[#allocation2 + $0x178] sm:$0xf]
        %v6018 = vld [vmem:[#allocation2 + $0x180] sm:$0xf]
        %v6019 = vld [vmem:[#allocation2 + $0x184] sm:$0xf]
        %v6020 = vld [vmem:[#allocation2 + $0x18c] sm:$0xf]
        %v6021 = vld [vmem:[#allocation2 + $0x190] sm:$0xf]
        %v6022 = vld [vmem:[#allocation2 + $0x198] sm:$0xf]
        %v6023 = vld [vmem:[#allocation2 + $0x19c] sm:$0xf]
        %v6024 = vld [vmem:[#allocation2 + $0x1a4] sm:$0xf]
        %v6025 = vld [vmem:[#allocation2 + $0x1a8] sm:$0xf]
        %v6026 = vld [vmem:[#allocation2 + $0x8] sm:$0x1]
        %v6027 = vld [vmem:[#allocation2 + $0x14] sm:$0x1]
        %v6028 = vld [vmem:[#allocation2 + $0x20] sm:$0x1]
        %v6029 = vld [vmem:[#allocation2 + $0x2c] sm:$0x1]
        %v6030 = vld [vmem:[#allocation2 + $0x38] sm:$0x1]
        %v6031 = vld [vmem:[#allocation2 + $0x44] sm:$0x1]
        %v6032 = vld [vmem:[#allocation2 + $0x50] sm:$0x1]
        %v6033 = vld [vmem:[#allocation2 + $0x5c] sm:$0x1]
        %v6034 = vld [vmem:[#allocation2 + $0x68] sm:$0x1]
        %v6035 = vld [vmem:[#allocation2 + $0x74] sm:$0x1]
        %v6036 = vld [vmem:[#allocation2 + $0x80] sm:$0x1]
        %v6037 = vld [vmem:[#allocation2 + $0x8c] sm:$0x1]
        %v6038 = vld [vmem:[#allocation2 + $0x98] sm:$0x1]
        %v6039 = vld [vmem:[#allocation2 + $0xa4] sm:$0x1]
        %v6040 = vld [vmem:[#allocation2 + $0xb0] sm:$0x1]
        %v6041 = vld [vmem:[#allocation2 + $0xbc] sm:$0x1]
        %v6042 = vld [vmem:[#allocation2 + $0xc8] sm:$0x1]
        %v6043 = vld [vmem:[#allocation2 + $0xd4] sm:$0x1]
        %v6044 = vld [vmem:[#allocation2 + $0xe0] sm:$0x1]
        %v6045 = vld [vmem:[#allocation2 + $0xec] sm:$0x1]
        %v6046 = vld [vmem:[#allocation2 + $0xf8] sm:$0x1]
        %v6047 = vld [vmem:[#allocation2 + $0x104] sm:$0x1]
        %v6048 = vld [vmem:[#allocation2 + $0x110] sm:$0x1]
        %v6049 = vld [vmem:[#allocation2 + $0x11c] sm:$0x1]
        %v6050 = vld [vmem:[#allocation2 + $0x128] sm:$0x1]
        %v6051 = vld [vmem:[#allocation2 + $0x134] sm:$0x1]
        %v6052 = vld [vmem:[#allocation2 + $0x140] sm:$0x1]
        %v6053 = vld [vmem:[#allocation2 + $0x14c] sm:$0x1]
        %v6054 = vld [vmem:[#allocation2 + $0x158] sm:$0x1]
        %v6055 = vld [vmem:[#allocation2 + $0x164] sm:$0x1]
        %v6056 = vld [vmem:[#allocation2 + $0x170] sm:$0x1]
        %v6057 = vld [vmem:[#allocation2 + $0x17c] sm:$0x1]
        %v6058 = vld [vmem:[#allocation2 + $0x188] sm:$0x1]
        %v6059 = vld [vmem:[#allocation2 + $0x194] sm:$0x1]
        %v6060 = vld [vmem:[#allocation2 + $0x1a0] sm:$0x1]
        %v6061 = vld [vmem:[#allocation2 + $0x1ac] sm:$0x1]
        %v6062 = vld [vmem:[#allocation2] sm:$0xe]
        %v6063 = vld [vmem:[#allocation2 + $0xc] sm:$0xe]
        %v6064 = vld [vmem:[#allocation2 + $0x18] sm:$0xe]
        %v6065 = vld [vmem:[#allocation2 + $0x24] sm:$0xe]
        %v6066 = vld [vmem:[#allocation2 + $0x30] sm:$0xe]
        %v6067 = vld [vmem:[#allocation2 + $0x3c] sm:$0xe]
        %v6068 = vld [vmem:[#allocation2 + $0x48] sm:$0xe]
        %v6069 = vld [vmem:[#allocation2 + $0x54] sm:$0xe]
        %v6070 = vld [vmem:[#allocation2 + $0x60] sm:$0xe]
        %v6071 = vld [vmem:[#allocation2 + $0x6c] sm:$0xe]
        %v6072 = vld [vmem:[#allocation2 + $0x78] sm:$0xe]
        %v6073 = vld [vmem:[#allocation2 + $0x84] sm:$0xe]
        %v6074 = vld [vmem:[#allocation2 + $0x90] sm:$0xe]
        %v6075 = vld [vmem:[#allocation2 + $0x9c] sm:$0xe]
        %v6076 = vld [vmem:[#allocation2 + $0xa8] sm:$0xe]
        %v6077 = vld [vmem:[#allocation2 + $0xb4] sm:$0xe]
        %v6078 = vld [vmem:[#allocation2 + $0xc0] sm:$0xe]
        %v6079 = vld [vmem:[#allocation2 + $0xcc] sm:$0xe]
        %v6080 = vld [vmem:[#allocation2 + $0xd8] sm:$0xe]
        %v6081 = vld [vmem:[#allocation2 + $0xe4] sm:$0xe]
        %v6082 = vld [vmem:[#allocation2 + $0xf0] sm:$0xe]
        %v6083 = vld [vmem:[#allocation2 + $0xfc] sm:$0xe]
        %v6084 = vld [vmem:[#allocation2 + $0x108] sm:$0xe]
        %v6085 = vld [vmem:[#allocation2 + $0x114] sm:$0xe]
        %v6086 = vld [vmem:[#allocation2 + $0x120] sm:$0xe]
        %v6087 = vld [vmem:[#allocation2 + $0x12c] sm:$0xe]
        %v6088 = vld [vmem:[#allocation2 + $0x138] sm:$0xe]
        %v6089 = vld [vmem:[#allocation2 + $0x144] sm:$0xe]
        %v6090 = vld [vmem:[#allocation2 + $0x150] sm:$0xe]
        %v6091 = vld [vmem:[#allocation2 + $0x15c] sm:$0xe]
        %v6092 = vld [vmem:[#allocation2 + $0x168] sm:$0xe]
        %v6093 = vld [vmem:[#allocation2 + $0x174] sm:$0xe]
        %v6094 = vld [vmem:[#allocation2 + $0x180] sm:$0xe]
        %v6095 = vld [vmem:[#allocation2 + $0x18c] sm:$0xe]
        %v6096 = vld [vmem:[#allocation2 + $0x198] sm:$0xe]
        %v6097 = vld [vmem:[#allocation2 + $0x1a4] sm:$0xe]
        %v6098 = vld [vmem:[%s3] sm:$0xf]
        %v6099 = vld [vmem:[%s3 + $0x4] sm:$0xf]
        %v6100 = vld [vmem:[%s3 + $0x8] sm:$0xf]
        %v6101 = vld [vmem:[%s3 + $0xc] sm:$0xf]
        %v6102 = vld [vmem:[%s3 + $0x10] sm:$0xf]
        %v6103 = vld [vmem:[%s3 + $0x14] sm:$0xf]
        %v6104 = vld [vmem:[%s3 + $0x18] sm:$0xf]
        %v6105 = vld [vmem:[%s3 + $0x1c] sm:$0xf]
        %v6106 = vld [vmem:[%s3 + $0x20] sm:$0xf]
        %v6107 = vld [vmem:[%s3 + $0x24] sm:$0xf]
        %v6108 = vld [vmem:[%s3 + $0x28] sm:$0xf]
        %v6109 = vld [vmem:[%s3 + $0x2c] sm:$0xf]
        %v6110 = vld [vmem:[%s3 + $0x30] sm:$0xf]
        %v6111 = vld [vmem:[%s3 + $0x34] sm:$0xf]
        %v6112 = vld [vmem:[%s3 + $0x38] sm:$0xf]
        %v6113 = vld [vmem:[%s3 + $0x3c] sm:$0xf]
        %v6115 = vshrl.u32 %v5954, 16
        %v6117 = vrot.slane %v6115, 4
        %v6118 = vshll.u32 %v5954, 16
        %v6120 = vrot.slane %v6118, 5
        %v6121 = vor.u32 %v6117, %v6120
        %v6122 = vrot.slane %v6121, 4
        %v6124 = vshll.u32 %v5955, 16
        %v6126 = vrot.slane %v6124, 5
        %v6127 = vsel %vm446, %v6122, %v6126
        %v6128 = vshrl.u32 %v5955, 16
        %v6130 = vrot.slane %v6128, 4
        %v6131 = vor.u32 %v6130, %v6126
        %v6132 = vrot.slane %v6131, 4
        %v6134 = vshll.u32 %v6026, 16
        %v6136 = vrot.slane %v6134, 5
        %v6137 = vsel %vm446, %v6132, %v6136
        %v6139 = vshrl.u32 %v5956, 16
        %v6141 = vrot.slane %v6139, 4
        %v6142 = vshll.u32 %v5956, 16
        %v6144 = vrot.slane %v6142, 5
        %v6145 = vor.u32 %v6141, %v6144
        %v6146 = vrot.slane %v6145, 4
        %v6148 = vshll.u32 %v5957, 16
        %v6150 = vrot.slane %v6148, 5
        %v6151 = vsel %vm446, %v6146, %v6150
        %v6152 = vshrl.u32 %v5957, 16
        %v6154 = vrot.slane %v6152, 4
        %v6155 = vor.u32 %v6154, %v6150
        %v6156 = vrot.slane %v6155, 4
        %v6158 = vshll.u32 %v6027, 16
        %v6160 = vrot.slane %v6158, 5
        %v6161 = vsel %vm446, %v6156, %v6160
        %v6163 = vshrl.u32 %v5958, 16
        %v6165 = vrot.slane %v6163, 4
        %v6166 = vshll.u32 %v5958, 16
        %v6168 = vrot.slane %v6166, 5
        %v6169 = vor.u32 %v6165, %v6168
        %v6170 = vrot.slane %v6169, 4
        %v6172 = vshll.u32 %v5959, 16
        %v6174 = vrot.slane %v6172, 5
        %v6175 = vsel %vm446, %v6170, %v6174
        %v6176 = vshrl.u32 %v5959, 16
        %v6178 = vrot.slane %v6176, 4
        %v6179 = vor.u32 %v6178, %v6174
        %v6180 = vrot.slane %v6179, 4
        %v6182 = vshll.u32 %v6028, 16
        %v6184 = vrot.slane %v6182, 5
        %v6185 = vsel %vm446, %v6180, %v6184
        %v6187 = vshrl.u32 %v5960, 16
        %v6189 = vrot.slane %v6187, 4
        %v6190 = vshll.u32 %v5960, 16
        %v6192 = vrot.slane %v6190, 5
        %v6193 = vor.u32 %v6189, %v6192
        %v6194 = vrot.slane %v6193, 4
        %v6196 = vshll.u32 %v5961, 16
        %v6198 = vrot.slane %v6196, 5
        %v6199 = vsel %vm446, %v6194, %v6198
        %v6200 = vshrl.u32 %v5961, 16
        %v6202 = vrot.slane %v6200, 4
        %v6203 = vor.u32 %v6202, %v6198
        %v6204 = vrot.slane %v6203, 4
        %v6206 = vshll.u32 %v6029, 16
        %v6208 = vrot.slane %v6206, 5
        %v6209 = vsel %vm446, %v6204, %v6208
        %v6211 = vshrl.u32 %v5962, 16
        %v6213 = vrot.slane %v6211, 4
        %v6214 = vshll.u32 %v5962, 16
        %v6216 = vrot.slane %v6214, 5
        %v6217 = vor.u32 %v6213, %v6216
        %v6218 = vrot.slane %v6217, 4
        %v6220 = vshll.u32 %v5963, 16
        %v6222 = vrot.slane %v6220, 5
        %v6223 = vsel %vm446, %v6218, %v6222
        %v6224 = vshrl.u32 %v5963, 16
        %v6226 = vrot.slane %v6224, 4
        %v6227 = vor.u32 %v6226, %v6222
        %v6228 = vrot.slane %v6227, 4
        %v6230 = vshll.u32 %v6030, 16
        %v6232 = vrot.slane %v6230, 5
        %v6233 = vsel %vm446, %v6228, %v6232
        %v6235 = vshrl.u32 %v5964, 16
        %v6237 = vrot.slane %v6235, 4
        %v6238 = vshll.u32 %v5964, 16
        %v6240 = vrot.slane %v6238, 5
        %v6241 = vor.u32 %v6237, %v6240
        %v6242 = vrot.slane %v6241, 4
        %v6244 = vshll.u32 %v5965, 16
        %v6246 = vrot.slane %v6244, 5
        %v6247 = vsel %vm446, %v6242, %v6246
        %v6248 = vshrl.u32 %v5965, 16
        %v6250 = vrot.slane %v6248, 4
        %v6251 = vor.u32 %v6250, %v6246
        %v6252 = vrot.slane %v6251, 4
        %v6254 = vshll.u32 %v6031, 16
        %v6256 = vrot.slane %v6254, 5
        %v6257 = vsel %vm446, %v6252, %v6256
        %v6259 = vshrl.u32 %v5966, 16
        %v6261 = vrot.slane %v6259, 4
        %v6262 = vshll.u32 %v5966, 16
        %v6264 = vrot.slane %v6262, 5
        %v6265 = vor.u32 %v6261, %v6264
        %v6266 = vrot.slane %v6265, 4
        %v6268 = vshll.u32 %v5967, 16
        %v6270 = vrot.slane %v6268, 5
        %v6271 = vsel %vm446, %v6266, %v6270
        %v6272 = vshrl.u32 %v5967, 16
        %v6274 = vrot.slane %v6272, 4
        %v6275 = vor.u32 %v6274, %v6270
        %v6276 = vrot.slane %v6275, 4
        %v6278 = vshll.u32 %v6032, 16
        %v6280 = vrot.slane %v6278, 5
        %v6281 = vsel %vm446, %v6276, %v6280
        %v6283 = vshrl.u32 %v5968, 16
        %v6285 = vrot.slane %v6283, 4
        %v6286 = vshll.u32 %v5968, 16
        %v6288 = vrot.slane %v6286, 5
        %v6289 = vor.u32 %v6285, %v6288
        %v6290 = vrot.slane %v6289, 4
        %v6292 = vshll.u32 %v5969, 16
        %v6294 = vrot.slane %v6292, 5
        %v6295 = vsel %vm446, %v6290, %v6294
        %v6296 = vshrl.u32 %v5969, 16
        %v6298 = vrot.slane %v6296, 4
        %v6299 = vor.u32 %v6298, %v6294
        %v6300 = vrot.slane %v6299, 4
        %v6302 = vshll.u32 %v6033, 16
        %v6304 = vrot.slane %v6302, 5
        %v6305 = vsel %vm446, %v6300, %v6304
        %v6307 = vshrl.u32 %v5970, 16
        %v6309 = vrot.slane %v6307, 4
        %v6310 = vshll.u32 %v5970, 16
        %v6312 = vrot.slane %v6310, 5
        %v6313 = vor.u32 %v6309, %v6312
        %v6314 = vrot.slane %v6313, 4
        %v6316 = vshll.u32 %v5971, 16
        %v6318 = vrot.slane %v6316, 5
        %v6319 = vsel %vm446, %v6314, %v6318
        %v6320 = vshrl.u32 %v5971, 16
        %v6322 = vrot.slane %v6320, 4
        %v6323 = vor.u32 %v6322, %v6318
        %v6324 = vrot.slane %v6323, 4
        %v6326 = vshll.u32 %v6034, 16
        %v6328 = vrot.slane %v6326, 5
        %v6329 = vsel %vm446, %v6324, %v6328
        %v6331 = vshrl.u32 %v5972, 16
        %v6333 = vrot.slane %v6331, 4
        %v6334 = vshll.u32 %v5972, 16
        %v6336 = vrot.slane %v6334, 5
        %v6337 = vor.u32 %v6333, %v6336
        %v6338 = vrot.slane %v6337, 4
        %v6340 = vshll.u32 %v5973, 16
        %v6342 = vrot.slane %v6340, 5
        %v6343 = vsel %vm446, %v6338, %v6342
        %v6344 = vshrl.u32 %v5973, 16
        %v6346 = vrot.slane %v6344, 4
        %v6347 = vor.u32 %v6346, %v6342
        %v6348 = vrot.slane %v6347, 4
        %v6350 = vshll.u32 %v6035, 16
        %v6352 = vrot.slane %v6350, 5
        %v6353 = vsel %vm446, %v6348, %v6352
        %v6355 = vshrl.u32 %v5974, 16
        %v6357 = vrot.slane %v6355, 4
        %v6358 = vshll.u32 %v5974, 16
        %v6360 = vrot.slane %v6358, 5
        %v6361 = vor.u32 %v6357, %v6360
        %v6362 = vrot.slane %v6361, 4
        %v6364 = vshll.u32 %v5975, 16
        %v6366 = vrot.slane %v6364, 5
        %v6367 = vsel %vm446, %v6362, %v6366
        %v6368 = vshrl.u32 %v5975, 16
        %v6370 = vrot.slane %v6368, 4
        %v6371 = vor.u32 %v6370, %v6366
        %v6372 = vrot.slane %v6371, 4
        %v6374 = vshll.u32 %v6036, 16
        %v6376 = vrot.slane %v6374, 5
        %v6377 = vsel %vm446, %v6372, %v6376
        %v6379 = vshrl.u32 %v5976, 16
        %v6381 = vrot.slane %v6379, 4
        %v6382 = vshll.u32 %v5976, 16
        %v6384 = vrot.slane %v6382, 5
        %v6385 = vor.u32 %v6381, %v6384
        %v6386 = vrot.slane %v6385, 4
        %v6388 = vshll.u32 %v5977, 16
        %v6390 = vrot.slane %v6388, 5
        %v6391 = vsel %vm446, %v6386, %v6390
        %v6392 = vshrl.u32 %v5977, 16
        %v6394 = vrot.slane %v6392, 4
        %v6395 = vor.u32 %v6394, %v6390
        %v6396 = vrot.slane %v6395, 4
        %v6398 = vshll.u32 %v6037, 16
        %v6400 = vrot.slane %v6398, 5
        %v6401 = vsel %vm446, %v6396, %v6400
        %v6403 = vshrl.u32 %v5978, 16
        %v6405 = vrot.slane %v6403, 4
        %v6406 = vshll.u32 %v5978, 16
        %v6408 = vrot.slane %v6406, 5
        %v6409 = vor.u32 %v6405, %v6408
        %v6410 = vrot.slane %v6409, 4
        %v6412 = vshll.u32 %v5979, 16
        %v6414 = vrot.slane %v6412, 5
        %v6415 = vsel %vm446, %v6410, %v6414
        %v6416 = vshrl.u32 %v5979, 16
        %v6418 = vrot.slane %v6416, 4
        %v6419 = vor.u32 %v6418, %v6414
        %v6420 = vrot.slane %v6419, 4
        %v6422 = vshll.u32 %v6038, 16
        %v6424 = vrot.slane %v6422, 5
        %v6425 = vsel %vm446, %v6420, %v6424
        %v6427 = vshrl.u32 %v5980, 16
        %v6429 = vrot.slane %v6427, 4
        %v6430 = vshll.u32 %v5980, 16
        %v6432 = vrot.slane %v6430, 5
        %v6433 = vor.u32 %v6429, %v6432
        %v6434 = vrot.slane %v6433, 4
        %v6436 = vshll.u32 %v5981, 16
        %v6438 = vrot.slane %v6436, 5
        %v6439 = vsel %vm446, %v6434, %v6438
        %v6440 = vshrl.u32 %v5981, 16
        %v6442 = vrot.slane %v6440, 4
        %v6443 = vor.u32 %v6442, %v6438
        %v6444 = vrot.slane %v6443, 4
        %v6446 = vshll.u32 %v6039, 16
        %v6448 = vrot.slane %v6446, 5
        %v6449 = vsel %vm446, %v6444, %v6448
        %v6451 = vshrl.u32 %v5982, 16
        %v6453 = vrot.slane %v6451, 4
        %v6454 = vshll.u32 %v5982, 16
        %v6456 = vrot.slane %v6454, 5
        %v6457 = vor.u32 %v6453, %v6456
        %v6458 = vrot.slane %v6457, 4
        %v6460 = vshll.u32 %v5983, 16
        %v6462 = vrot.slane %v6460, 5
        %v6463 = vsel %vm446, %v6458, %v6462
        %v6464 = vshrl.u32 %v5983, 16
        %v6466 = vrot.slane %v6464, 4
        %v6467 = vor.u32 %v6466, %v6462
        %v6468 = vrot.slane %v6467, 4
        %v6470 = vshll.u32 %v6040, 16
        %v6472 = vrot.slane %v6470, 5
        %v6473 = vsel %vm446, %v6468, %v6472
        %v6475 = vshrl.u32 %v5984, 16
        %v6477 = vrot.slane %v6475, 4
        %v6478 = vshll.u32 %v5984, 16
        %v6480 = vrot.slane %v6478, 5
        %v6481 = vor.u32 %v6477, %v6480
        %v6482 = vrot.slane %v6481, 4
        %v6484 = vshll.u32 %v5985, 16
        %v6486 = vrot.slane %v6484, 5
        %v6487 = vsel %vm446, %v6482, %v6486
        %v6488 = vshrl.u32 %v5985, 16
        %v6490 = vrot.slane %v6488, 4
        %v6491 = vor.u32 %v6490, %v6486
        %v6492 = vrot.slane %v6491, 4
        %v6494 = vshll.u32 %v6041, 16
        %v6496 = vrot.slane %v6494, 5
        %v6497 = vsel %vm446, %v6492, %v6496
        %v6499 = vshrl.u32 %v5990, 16
        %v6501 = vrot.slane %v6499, 4
        %v6502 = vshll.u32 %v5990, 16
        %v6504 = vrot.slane %v6502, 5
        %v6505 = vor.u32 %v6501, %v6504
        %v6506 = vrot.slane %v6505, 4
        %v6508 = vshll.u32 %v5991, 16
        %v6510 = vrot.slane %v6508, 5
        %v6511 = vsel %vm446, %v6506, %v6510
        %v6512 = vshrl.u32 %v5991, 16
        %v6514 = vrot.slane %v6512, 4
        %v6515 = vor.u32 %v6514, %v6510
        %v6516 = vrot.slane %v6515, 4
        %v6518 = vshll.u32 %v6044, 16
        %v6520 = vrot.slane %v6518, 5
        %v6521 = vsel %vm446, %v6516, %v6520
        %v6523 = vshrl.u32 %v5992, 16
        %v6525 = vrot.slane %v6523, 4
        %v6526 = vshll.u32 %v5992, 16
        %v6528 = vrot.slane %v6526, 5
        %v6529 = vor.u32 %v6525, %v6528
        %v6530 = vrot.slane %v6529, 4
        %v6532 = vshll.u32 %v5993, 16
        %v6534 = vrot.slane %v6532, 5
        %v6535 = vsel %vm446, %v6530, %v6534
        %v6536 = vshrl.u32 %v5993, 16
        %v6538 = vrot.slane %v6536, 4
        %v6539 = vor.u32 %v6538, %v6534
        %v6540 = vrot.slane %v6539, 4
        %v6542 = vshll.u32 %v6045, 16
        %v6544 = vrot.slane %v6542, 5
        %v6545 = vsel %vm446, %v6540, %v6544
        %v6547 = vshrl.u32 %v5994, 16
        %v6549 = vrot.slane %v6547, 4
        %v6550 = vshll.u32 %v5994, 16
        %v6552 = vrot.slane %v6550, 5
        %v6553 = vor.u32 %v6549, %v6552
        %v6554 = vrot.slane %v6553, 4
        %v6556 = vshll.u32 %v5995, 16
        %v6558 = vrot.slane %v6556, 5
        %v6559 = vsel %vm446, %v6554, %v6558
        %v6560 = vshrl.u32 %v5995, 16
        %v6562 = vrot.slane %v6560, 4
        %v6563 = vor.u32 %v6562, %v6558
        %v6564 = vrot.slane %v6563, 4
        %v6566 = vshll.u32 %v6046, 16
        %v6568 = vrot.slane %v6566, 5
        %v6569 = vsel %vm446, %v6564, %v6568
        %v6571 = vshrl.u32 %v5996, 16
        %v6573 = vrot.slane %v6571, 4
        %v6574 = vshll.u32 %v5996, 16
        %v6576 = vrot.slane %v6574, 5
        %v6577 = vor.u32 %v6573, %v6576
        %v6578 = vrot.slane %v6577, 4
        %v6580 = vshll.u32 %v5997, 16
        %v6582 = vrot.slane %v6580, 5
        %v6583 = vsel %vm446, %v6578, %v6582
        %v6584 = vshrl.u32 %v5997, 16
        %v6586 = vrot.slane %v6584, 4
        %v6587 = vor.u32 %v6586, %v6582
        %v6588 = vrot.slane %v6587, 4
        %v6590 = vshll.u32 %v6047, 16
        %v6592 = vrot.slane %v6590, 5
        %v6593 = vsel %vm446, %v6588, %v6592
        %v6595 = vshrl.u32 %v5998, 16
        %v6597 = vrot.slane %v6595, 4
        %v6598 = vshll.u32 %v5998, 16
        %v6600 = vrot.slane %v6598, 5
        %v6601 = vor.u32 %v6597, %v6600
        %v6602 = vrot.slane %v6601, 4
        %v6604 = vshll.u32 %v5999, 16
        %v6606 = vrot.slane %v6604, 5
        %v6607 = vsel %vm446, %v6602, %v6606
        %v6608 = vshrl.u32 %v5999, 16
        %v6610 = vrot.slane %v6608, 4
        %v6611 = vor.u32 %v6610, %v6606
        %v6612 = vrot.slane %v6611, 4
        %v6614 = vshll.u32 %v6048, 16
        %v6616 = vrot.slane %v6614, 5
        %v6617 = vsel %vm446, %v6612, %v6616
        %v6619 = vshrl.u32 %v6000, 16
        %v6621 = vrot.slane %v6619, 4
        %v6622 = vshll.u32 %v6000, 16
        %v6624 = vrot.slane %v6622, 5
        %v6625 = vor.u32 %v6621, %v6624
        %v6626 = vrot.slane %v6625, 4
        %v6628 = vshll.u32 %v6001, 16
        %v6630 = vrot.slane %v6628, 5
        %v6631 = vsel %vm446, %v6626, %v6630
        %v6632 = vshrl.u32 %v6001, 16
        %v6634 = vrot.slane %v6632, 4
        %v6635 = vor.u32 %v6634, %v6630
        %v6636 = vrot.slane %v6635, 4
        %v6638 = vshll.u32 %v6049, 16
        %v6640 = vrot.slane %v6638, 5
        %v6641 = vsel %vm446, %v6636, %v6640
        %v6643 = vshrl.u32 %v6002, 16
        %v6645 = vrot.slane %v6643, 4
        %v6646 = vshll.u32 %v6002, 16
        %v6648 = vrot.slane %v6646, 5
        %v6649 = vor.u32 %v6645, %v6648
        %v6650 = vrot.slane %v6649, 4
        %v6652 = vshll.u32 %v6003, 16
        %v6654 = vrot.slane %v6652, 5
        %v6655 = vsel %vm446, %v6650, %v6654
        %v6656 = vshrl.u32 %v6003, 16
        %v6658 = vrot.slane %v6656, 4
        %v6659 = vor.u32 %v6658, %v6654
        %v6660 = vrot.slane %v6659, 4
        %v6662 = vshll.u32 %v6050, 16
        %v6664 = vrot.slane %v6662, 5
        %v6665 = vsel %vm446, %v6660, %v6664
        %v6667 = vshrl.u32 %v6004, 16
        %v6669 = vrot.slane %v6667, 4
        %v6670 = vshll.u32 %v6004, 16
        %v6672 = vrot.slane %v6670, 5
        %v6673 = vor.u32 %v6669, %v6672
        %v6674 = vrot.slane %v6673, 4
        %v6676 = vshll.u32 %v6005, 16
        %v6678 = vrot.slane %v6676, 5
        %v6679 = vsel %vm446, %v6674, %v6678
        %v6680 = vshrl.u32 %v6005, 16
        %v6682 = vrot.slane %v6680, 4
        %v6683 = vor.u32 %v6682, %v6678
        %v6684 = vrot.slane %v6683, 4
        %v6686 = vshll.u32 %v6051, 16
        %v6688 = vrot.slane %v6686, 5
        %v6689 = vsel %vm446, %v6684, %v6688
        %v6691 = vshrl.u32 %v6006, 16
        %v6693 = vrot.slane %v6691, 4
        %v6694 = vshll.u32 %v6006, 16
        %v6696 = vrot.slane %v6694, 5
        %v6697 = vor.u32 %v6693, %v6696
        %v6698 = vrot.slane %v6697, 4
        %v6700 = vshll.u32 %v6007, 16
        %v6702 = vrot.slane %v6700, 5
        %v6703 = vsel %vm446, %v6698, %v6702
        %v6704 = vshrl.u32 %v6007, 16
        %v6706 = vrot.slane %v6704, 4
        %v6707 = vor.u32 %v6706, %v6702
        %v6708 = vrot.slane %v6707, 4
        %v6710 = vshll.u32 %v6052, 16
        %v6712 = vrot.slane %v6710, 5
        %v6713 = vsel %vm446, %v6708, %v6712
        %v6715 = vshrl.u32 %v6008, 16
        %v6717 = vrot.slane %v6715, 4
        %v6718 = vshll.u32 %v6008, 16
        %v6720 = vrot.slane %v6718, 5
        %v6721 = vor.u32 %v6717, %v6720
        %v6722 = vrot.slane %v6721, 4
        %v6724 = vshll.u32 %v6009, 16
        %v6726 = vrot.slane %v6724, 5
        %v6727 = vsel %vm446, %v6722, %v6726
        %v6728 = vshrl.u32 %v6009, 16
        %v6730 = vrot.slane %v6728, 4
        %v6731 = vor.u32 %v6730, %v6726
        %v6732 = vrot.slane %v6731, 4
        %v6734 = vshll.u32 %v6053, 16
        %v6736 = vrot.slane %v6734, 5
        %v6737 = vsel %vm446, %v6732, %v6736
        %v6739 = vshrl.u32 %v6010, 16
        %v6741 = vrot.slane %v6739, 4
        %v6742 = vshll.u32 %v6010, 16
        %v6744 = vrot.slane %v6742, 5
        %v6745 = vor.u32 %v6741, %v6744
        %v6746 = vrot.slane %v6745, 4
        %v6748 = vshll.u32 %v6011, 16
        %v6750 = vrot.slane %v6748, 5
        %v6751 = vsel %vm446, %v6746, %v6750
        %v6752 = vshrl.u32 %v6011, 16
        %v6754 = vrot.slane %v6752, 4
        %v6755 = vor.u32 %v6754, %v6750
        %v6756 = vrot.slane %v6755, 4
        %v6758 = vshll.u32 %v6054, 16
        %v6760 = vrot.slane %v6758, 5
        %v6761 = vsel %vm446, %v6756, %v6760
        %v6763 = vshrl.u32 %v6012, 16
        %v6765 = vrot.slane %v6763, 4
        %v6766 = vshll.u32 %v6012, 16
        %v6768 = vrot.slane %v6766, 5
        %v6769 = vor.u32 %v6765, %v6768
        %v6770 = vrot.slane %v6769, 4
        %v6772 = vshll.u32 %v6013, 16
        %v6774 = vrot.slane %v6772, 5
        %v6775 = vsel %vm446, %v6770, %v6774
        %v6776 = vshrl.u32 %v6013, 16
        %v6778 = vrot.slane %v6776, 4
        %v6779 = vor.u32 %v6778, %v6774
        %v6780 = vrot.slane %v6779, 4
        %v6782 = vshll.u32 %v6055, 16
        %v6784 = vrot.slane %v6782, 5
        %v6785 = vsel %vm446, %v6780, %v6784
        %v6787 = vshrl.u32 %v6014, 16
        %v6789 = vrot.slane %v6787, 4
        %v6790 = vshll.u32 %v6014, 16
        %v6792 = vrot.slane %v6790, 5
        %v6793 = vor.u32 %v6789, %v6792
        %v6794 = vrot.slane %v6793, 4
        %v6796 = vshll.u32 %v6015, 16
        %v6798 = vrot.slane %v6796, 5
        %v6799 = vsel %vm446, %v6794, %v6798
        %v6800 = vshrl.u32 %v6015, 16
        %v6802 = vrot.slane %v6800, 4
        %v6803 = vor.u32 %v6802, %v6798
        %v6804 = vrot.slane %v6803, 4
        %v6806 = vshll.u32 %v6056, 16
        %v6808 = vrot.slane %v6806, 5
        %v6809 = vsel %vm446, %v6804, %v6808
        %v6811 = vshrl.u32 %v6016, 16
        %v6813 = vrot.slane %v6811, 4
        %v6814 = vshll.u32 %v6016, 16
        %v6816 = vrot.slane %v6814, 5
        %v6817 = vor.u32 %v6813, %v6816
        %v6818 = vrot.slane %v6817, 4
        %v6820 = vshll.u32 %v6017, 16
        %v6822 = vrot.slane %v6820, 5
        %v6823 = vsel %vm446, %v6818, %v6822
        %v6824 = vshrl.u32 %v6017, 16
        %v6826 = vrot.slane %v6824, 4
        %v6827 = vor.u32 %v6826, %v6822
        %v6828 = vrot.slane %v6827, 4
        %v6830 = vshll.u32 %v6057, 16
        %v6832 = vrot.slane %v6830, 5
        %v6833 = vsel %vm446, %v6828, %v6832
        %v6835 = vshrl.u32 %v6018, 16
        %v6837 = vrot.slane %v6835, 4
        %v6838 = vshll.u32 %v6018, 16
        %v6840 = vrot.slane %v6838, 5
        %v6841 = vor.u32 %v6837, %v6840
        %v6842 = vrot.slane %v6841, 4
        %v6844 = vshll.u32 %v6019, 16
        %v6846 = vrot.slane %v6844, 5
        %v6847 = vsel %vm446, %v6842, %v6846
        %v6848 = vshrl.u32 %v6019, 16
        %v6850 = vrot.slane %v6848, 4
        %v6851 = vor.u32 %v6850, %v6846
        %v6852 = vrot.slane %v6851, 4
        %v6854 = vshll.u32 %v6058, 16
        %v6856 = vrot.slane %v6854, 5
        %v6857 = vsel %vm446, %v6852, %v6856
        %v6859 = vshrl.u32 %v6020, 16
        %v6861 = vrot.slane %v6859, 4
        %v6862 = vshll.u32 %v6020, 16
        %v6864 = vrot.slane %v6862, 5
        %v6865 = vor.u32 %v6861, %v6864
        %v6866 = vrot.slane %v6865, 4
        %v6868 = vshll.u32 %v6021, 16
        %v6870 = vrot.slane %v6868, 5
        %v6871 = vsel %vm446, %v6866, %v6870
        %v6872 = vshrl.u32 %v6021, 16
        %v6874 = vrot.slane %v6872, 4
        %v6875 = vor.u32 %v6874, %v6870
        %v6876 = vrot.slane %v6875, 4
        %v6878 = vshll.u32 %v6059, 16
        %v6880 = vrot.slane %v6878, 5
        %v6881 = vsel %vm446, %v6876, %v6880
        %s6882 = scalar_lea.vmem %s3, 64
        %v6883 = vld [vmem:[%s6882] sm:$0xf]
        %v6884 = vld [vmem:[%s6882 + $0x4] sm:$0xf]
        %v6885 = vld [vmem:[%s6882 + $0x8] sm:$0xf]
        %v6886 = vld [vmem:[%s6882 + $0xc] sm:$0xf]
        %v6887 = vld [vmem:[%s6882 + $0x10] sm:$0xf]
        %v6888 = vld [vmem:[%s6882 + $0x14] sm:$0xf]
        %v6889 = vld [vmem:[%s6882 + $0x18] sm:$0xf]
        %v6890 = vld [vmem:[%s6882 + $0x1c] sm:$0xf]
        %v6891 = vld [vmem:[%s6882 + $0x20] sm:$0xf]
        %v6892 = vld [vmem:[%s6882 + $0x24] sm:$0xf]
        %v6893 = vld [vmem:[%s6882 + $0x28] sm:$0xf]
        %v6894 = vld [vmem:[%s6882 + $0x2c] sm:$0xf]
        %v6895 = vld [vmem:[%s6882 + $0x30] sm:$0xf]
        %v6896 = vld [vmem:[%s6882 + $0x34] sm:$0xf]
        %v6897 = vld [vmem:[%s6882 + $0x38] sm:$0xf]
        %v6898 = vld [vmem:[%s6882 + $0x3c] sm:$0xf]
        %v6899 = vunpack.c.l.b16 %v6127
        %v6900 = vunpack.c.l.b16 %v6137
        %v6901 = vunpack.c.l.b16 %v6151
        %v6902 = vunpack.c.l.b16 %v6161
        %v6903 = vunpack.c.l.b16 %v6175
        %v6904 = vunpack.c.l.b16 %v6185
        %v6905 = vunpack.c.l.b16 %v6199
        %v6906 = vunpack.c.l.b16 %v6209
        %v6907 = vunpack.c.l.b16 %v6223
        %v6908 = vunpack.c.l.b16 %v6233
        %v6909 = vunpack.c.l.b16 %v6247
        %v6910 = vunpack.c.l.b16 %v6257
        %v6911 = vunpack.c.l.b16 %v6271
        %v6912 = vunpack.c.l.b16 %v6281
        %v6913 = vunpack.c.l.b16 %v6295
        %v6914 = vunpack.c.l.b16 %v6305
        %v6915 = vunpack.c.l.b16 %v6319
        %v6916 = vunpack.c.l.b16 %v6329
        %v6917 = vunpack.c.l.b16 %v6343
        %v6918 = vunpack.c.l.b16 %v6353
        %v6919 = vunpack.c.l.b16 %v6367
        %v6920 = vunpack.c.l.b16 %v6377
        %v6921 = vunpack.c.l.b16 %v6391
        %v6922 = vunpack.c.l.b16 %v6401
        %v6923 = vunpack.c.l.b16 %v6415
        %v6924 = vunpack.c.l.b16 %v6425
        %v6925 = vunpack.c.l.b16 %v6439
        %v6926 = vunpack.c.l.b16 %v6449
        %v6927 = vunpack.c.l.b16 %v6463
        %v6928 = vunpack.c.l.b16 %v6473
        %v6929 = vunpack.c.l.b16 %v6487
        %v6930 = vunpack.c.l.b16 %v6497
        %v6931 = vunpack.c.l.b16 %v6511
        %v6932 = vunpack.c.l.b16 %v6521
        %v6933 = vunpack.c.l.b16 %v6535
        %v6934 = vunpack.c.l.b16 %v6545
        %v6935 = vunpack.c.l.b16 %v6559
        %v6936 = vunpack.c.l.b16 %v6569
        %v6937 = vunpack.c.l.b16 %v6583
        %v6938 = vunpack.c.l.b16 %v6593
        %v6939 = vunpack.c.l.b16 %v6607
        %v6940 = vunpack.c.l.b16 %v6617
        %v6941 = vunpack.c.l.b16 %v6631
        %v6942 = vunpack.c.l.b16 %v6641
        %v6943 = vunpack.c.l.b16 %v6655
        %v6944 = vunpack.c.l.b16 %v6665
        %v6945 = vunpack.c.l.b16 %v6679
        %v6946 = vunpack.c.l.b16 %v6689
        %v6947 = vunpack.c.l.b16 %v6703
        %v6948 = vunpack.c.l.b16 %v6713
        %v6949 = vunpack.c.l.b16 %v6727
        %v6950 = vunpack.c.l.b16 %v6737
        %v6951 = vunpack.c.l.b16 %v6751
        %v6952 = vunpack.c.l.b16 %v6761
        %v6953 = vunpack.c.l.b16 %v6775
        %v6954 = vunpack.c.l.b16 %v6785
        %v6955 = vunpack.c.l.b16 %v6799
        %v6956 = vunpack.c.l.b16 %v6809
        %v6957 = vunpack.c.l.b16 %v6823
        %v6958 = vunpack.c.l.b16 %v6833
        %v6959 = vunpack.c.l.b16 %v6847
        %v6960 = vunpack.c.l.b16 %v6857
        %v6961 = vunpack.c.l.b16 %v6871
        %v6962 = vunpack.c.l.b16 %v6881
        %v6963 = vpack.c.b16 %v6900, %v6899
        %v6964 = vpack.c.b16 %v6902, %v6901
        %v6965 = vpack.c.b16 %v6904, %v6903
        %v6966 = vpack.c.b16 %v6906, %v6905
        %v6967 = vpack.c.b16 %v6908, %v6907
        %v6968 = vpack.c.b16 %v6910, %v6909
        %v6969 = vpack.c.b16 %v6912, %v6911
        %v6970 = vpack.c.b16 %v6914, %v6913
        %v6971 = vpack.c.b16 %v6916, %v6915
        %v6972 = vpack.c.b16 %v6918, %v6917
        %v6973 = vpack.c.b16 %v6920, %v6919
        %v6974 = vpack.c.b16 %v6922, %v6921
        %v6975 = vpack.c.b16 %v6924, %v6923
        %v6976 = vpack.c.b16 %v6926, %v6925
        %v6977 = vpack.c.b16 %v6928, %v6927
        %v6978 = vpack.c.b16 %v6930, %v6929
        %v6979 = vpack.c.b16 %v6932, %v6931
        %v6980 = vpack.c.b16 %v6934, %v6933
        %v6981 = vpack.c.b16 %v6936, %v6935
        %v6982 = vpack.c.b16 %v6938, %v6937
        %v6983 = vpack.c.b16 %v6940, %v6939
        %v6984 = vpack.c.b16 %v6942, %v6941
        %v6985 = vpack.c.b16 %v6944, %v6943
        %v6986 = vpack.c.b16 %v6946, %v6945
        %v6987 = vpack.c.b16 %v6948, %v6947
        %v6988 = vpack.c.b16 %v6950, %v6949
        %v6989 = vpack.c.b16 %v6952, %v6951
        %v6990 = vpack.c.b16 %v6954, %v6953
        %v6991 = vpack.c.b16 %v6956, %v6955
        %v6992 = vpack.c.b16 %v6958, %v6957
        %v6993 = vpack.c.b16 %v6960, %v6959
        %v6994 = vpack.c.b16 %v6962, %v6961
        %v7043 = vunpack.c.l.b16 %v6883
        %v7044 = vunpack.c.l.b16 %v6884
        %v7045 = vunpack.c.l.b16 %v6885
        %v7046 = vunpack.c.l.b16 %v6886
        %v7047 = vunpack.c.l.b16 %v6887
        %v7048 = vunpack.c.l.b16 %v6888
        %v7049 = vunpack.c.l.b16 %v6889
        %v7050 = vunpack.c.l.b16 %v6890
        %v7051 = vunpack.c.l.b16 %v6891
        %v7052 = vunpack.c.l.b16 %v6892
        %v7053 = vunpack.c.l.b16 %v6893
        %v7054 = vunpack.c.l.b16 %v6894
        %v7055 = vunpack.c.l.b16 %v6895
        %v7056 = vunpack.c.l.b16 %v6896
        %v7057 = vunpack.c.l.b16 %v6897
        %v7058 = vunpack.c.l.b16 %v6898
        %v7059 = vpack.c.b16 %v7044, %v7043
        %v7060 = vpack.c.b16 %v7046, %v7045
        %v7061 = vpack.c.b16 %v7048, %v7047
        %v7062 = vpack.c.b16 %v7050, %v7049
        %v7063 = vpack.c.b16 %v7052, %v7051
        %v7064 = vpack.c.b16 %v7054, %v7053
        %v7065 = vpack.c.b16 %v7056, %v7055
        %v7066 = vpack.c.b16 %v7058, %v7057
        %7075 = vmatpush.bf16.msra.mxu0 %v7066
        %7076 = vmatpush.bf16.msra.mxu0 %v7065
        %7077 = vmatpush.bf16.msra.mxu0 %v7064
        %7078 = vmatpush.bf16.msra.mxu0 %v7063
        %7079 = vmatpush.bf16.msra.mxu0 %v7062
        %7080 = vmatpush.bf16.msra.mxu0 %v7061
        %7081 = vmatpush.bf16.msra.mxu0 %v7060
        %7082 = vmatpush.bf16.msra.mxu0 %v7059
        %7083 = vmatmul.bf16.gmra.mxu0 %v6963
        %v7084 = vpop.f32.mrf.mxu0
        %v7085 = vadd.f32 0.0, %v7084
        %v7086 = vpop.f32.mrf.mxu0
        %v7087 = vadd.f32 0.0, %v7086
        %7088 = vmatmul.bf16.gmra.mxu0 %v6964
        %v7089 = vpop.f32.mrf.mxu0
        %v7090 = vadd.f32 0.0, %v7089
        %v7091 = vpop.f32.mrf.mxu0
        %v7092 = vadd.f32 0.0, %v7091
        %7093 = vmatmul.bf16.gmra.mxu0 %v6965
        %v7094 = vpop.f32.mrf.mxu0
        %v7095 = vadd.f32 0.0, %v7094
        %v7096 = vpop.f32.mrf.mxu0
        %v7097 = vadd.f32 0.0, %v7096
        %7098 = vmatmul.bf16.gmra.mxu0 %v6966
        %v7099 = vpop.f32.mrf.mxu0
        %v7100 = vadd.f32 0.0, %v7099
        %v7101 = vpop.f32.mrf.mxu0
        %v7102 = vadd.f32 0.0, %v7101
        %7103 = vmatmul.bf16.gmra.mxu0 %v6967
        %v7104 = vpop.f32.mrf.mxu0
        %v7105 = vadd.f32 0.0, %v7104
        %v7106 = vpop.f32.mrf.mxu0
        %v7107 = vadd.f32 0.0, %v7106
        %7108 = vmatmul.bf16.gmra.mxu0 %v6968
        %v7109 = vpop.f32.mrf.mxu0
        %v7110 = vadd.f32 0.0, %v7109
        %v7111 = vpop.f32.mrf.mxu0
        %v7112 = vadd.f32 0.0, %v7111
        %7113 = vmatmul.bf16.gmra.mxu0 %v6969
        %v7114 = vpop.f32.mrf.mxu0
        %v7115 = vadd.f32 0.0, %v7114
        %v7116 = vpop.f32.mrf.mxu0
        %v7117 = vadd.f32 0.0, %v7116
        %7118 = vmatmul.bf16.gmra.mxu0 %v6970
        %v7119 = vpop.f32.mrf.mxu0
        %v7120 = vadd.f32 0.0, %v7119
        %v7121 = vpop.f32.mrf.mxu0
        %v7122 = vadd.f32 0.0, %v7121
        %7123 = vmatmul.bf16.gmra.mxu0 %v6971
        %v7124 = vpop.f32.mrf.mxu0
        %v7125 = vadd.f32 0.0, %v7124
        %v7126 = vpop.f32.mrf.mxu0
        %v7127 = vadd.f32 0.0, %v7126
        %7128 = vmatmul.bf16.gmra.mxu0 %v6972
        %v7129 = vpop.f32.mrf.mxu0
        %v7130 = vadd.f32 0.0, %v7129
        %v7131 = vpop.f32.mrf.mxu0
        %v7132 = vadd.f32 0.0, %v7131
        %7133 = vmatmul.bf16.gmra.mxu0 %v6973
        %v7134 = vpop.f32.mrf.mxu0
        %v7135 = vadd.f32 0.0, %v7134
        %v7136 = vpop.f32.mrf.mxu0
        %v7137 = vadd.f32 0.0, %v7136
        %7138 = vmatmul.bf16.gmra.mxu0 %v6974
        %v7139 = vpop.f32.mrf.mxu0
        %v7140 = vadd.f32 0.0, %v7139
        %v7141 = vpop.f32.mrf.mxu0
        %v7142 = vadd.f32 0.0, %v7141
        %7143 = vmatmul.bf16.gmra.mxu0 %v6975
        %v7144 = vpop.f32.mrf.mxu0
        %v7145 = vadd.f32 0.0, %v7144
        %v7146 = vpop.f32.mrf.mxu0
        %v7147 = vadd.f32 0.0, %v7146
        %7148 = vmatmul.bf16.gmra.mxu0 %v6976
        %v7149 = vpop.f32.mrf.mxu0
        %v7150 = vadd.f32 0.0, %v7149
        %v7151 = vpop.f32.mrf.mxu0
        %v7152 = vadd.f32 0.0, %v7151
        %7153 = vmatmul.bf16.gmra.mxu0 %v6977
        %v7154 = vpop.f32.mrf.mxu0
        %v7155 = vadd.f32 0.0, %v7154
        %v7156 = vpop.f32.mrf.mxu0
        %v7157 = vadd.f32 0.0, %v7156
        %7158 = vmatmul.bf16.gmra.mxu0 %v6978
        %v7159 = vpop.f32.mrf.mxu0
        %v7160 = vadd.f32 0.0, %v7159
        %v7161 = vpop.f32.mrf.mxu0
        %v7162 = vadd.f32 0.0, %v7161
        %7163 = vmatmul.bf16.gmra.mxu0 %v6979
        %v7164 = vpop.f32.mrf.mxu0
        %v7165 = vadd.f32 0.0, %v7164
        %v7166 = vpop.f32.mrf.mxu0
        %v7167 = vadd.f32 0.0, %v7166
        %7168 = vmatmul.bf16.gmra.mxu0 %v6980
        %v7169 = vpop.f32.mrf.mxu0
        %v7170 = vadd.f32 0.0, %v7169
        %v7171 = vpop.f32.mrf.mxu0
        %v7172 = vadd.f32 0.0, %v7171
        %7173 = vmatmul.bf16.gmra.mxu0 %v6981
        %v7174 = vpop.f32.mrf.mxu0
        %v7175 = vadd.f32 0.0, %v7174
        %v7176 = vpop.f32.mrf.mxu0
        %v7177 = vadd.f32 0.0, %v7176
        %7178 = vmatmul.bf16.gmra.mxu0 %v6982
        %v7179 = vpop.f32.mrf.mxu0
        %v7180 = vadd.f32 0.0, %v7179
        %v7181 = vpop.f32.mrf.mxu0
        %v7182 = vadd.f32 0.0, %v7181
        %7183 = vmatmul.bf16.gmra.mxu0 %v6983
        %v7184 = vpop.f32.mrf.mxu0
        %v7185 = vadd.f32 0.0, %v7184
        %v7186 = vpop.f32.mrf.mxu0
        %v7187 = vadd.f32 0.0, %v7186
        %7188 = vmatmul.bf16.gmra.mxu0 %v6984
        %v7189 = vpop.f32.mrf.mxu0
        %v7190 = vadd.f32 0.0, %v7189
        %v7191 = vpop.f32.mrf.mxu0
        %v7192 = vadd.f32 0.0, %v7191
        %7193 = vmatmul.bf16.gmra.mxu0 %v6985
        %v7194 = vpop.f32.mrf.mxu0
        %v7195 = vadd.f32 0.0, %v7194
        %v7196 = vpop.f32.mrf.mxu0
        %v7197 = vadd.f32 0.0, %v7196
        %7198 = vmatmul.bf16.gmra.mxu0 %v6986
        %v7199 = vpop.f32.mrf.mxu0
        %v7200 = vadd.f32 0.0, %v7199
        %v7201 = vpop.f32.mrf.mxu0
        %v7202 = vadd.f32 0.0, %v7201
        %7203 = vmatmul.bf16.gmra.mxu0 %v6987
        %v7204 = vpop.f32.mrf.mxu0
        %v7205 = vadd.f32 0.0, %v7204
        %v7206 = vpop.f32.mrf.mxu0
        %v7207 = vadd.f32 0.0, %v7206
        %7208 = vmatmul.bf16.gmra.mxu0 %v6988
        %v7209 = vpop.f32.mrf.mxu0
        %v7210 = vadd.f32 0.0, %v7209
        %v7211 = vpop.f32.mrf.mxu0
        %v7212 = vadd.f32 0.0, %v7211
        %7213 = vmatmul.bf16.gmra.mxu0 %v6989
        %v7214 = vpop.f32.mrf.mxu0
        %v7215 = vadd.f32 0.0, %v7214
        %v7216 = vpop.f32.mrf.mxu0
        %v7217 = vadd.f32 0.0, %v7216
        %7218 = vmatmul.bf16.gmra.mxu0 %v6990
        %v7219 = vpop.f32.mrf.mxu0
        %v7220 = vadd.f32 0.0, %v7219
        %v7221 = vpop.f32.mrf.mxu0
        %v7222 = vadd.f32 0.0, %v7221
        %7223 = vmatmul.bf16.gmra.mxu0 %v6991
        %v7224 = vpop.f32.mrf.mxu0
        %v7225 = vadd.f32 0.0, %v7224
        %v7226 = vpop.f32.mrf.mxu0
        %v7227 = vadd.f32 0.0, %v7226
        %7228 = vmatmul.bf16.gmra.mxu0 %v6992
        %v7229 = vpop.f32.mrf.mxu0
        %v7230 = vadd.f32 0.0, %v7229
        %v7231 = vpop.f32.mrf.mxu0
        %v7232 = vadd.f32 0.0, %v7231
        %7233 = vmatmul.bf16.gmra.mxu0 %v6993
        %v7234 = vpop.f32.mrf.mxu0
        %v7235 = vadd.f32 0.0, %v7234
        %v7236 = vpop.f32.mrf.mxu0
        %v7237 = vadd.f32 0.0, %v7236
        %7238 = vmatmul.bf16.gmra.mxu0 %v6994
        %v7239 = vpop.f32.mrf.mxu0
        %v7240 = vadd.f32 0.0, %v7239
        %v7241 = vpop.f32.mrf.mxu0
        %v7242 = vadd.f32 0.0, %v7241
        %7243 = vdwg.mxu0
        %v7308 = vunpack.c.l.b16 %v5954
        %v7309 = vunpack.c.l.b16 %v5955
        %v7310 = vunpack.c.l.b16 %v5956
        %v7311 = vunpack.c.l.b16 %v5957
        %v7312 = vunpack.c.l.b16 %v5958
        %v7313 = vunpack.c.l.b16 %v5959
        %v7314 = vunpack.c.l.b16 %v5960
        %v7315 = vunpack.c.l.b16 %v5961
        %v7316 = vunpack.c.l.b16 %v5962
        %v7317 = vunpack.c.l.b16 %v5963
        %v7318 = vunpack.c.l.b16 %v5964
        %v7319 = vunpack.c.l.b16 %v5965
        %v7320 = vunpack.c.l.b16 %v5966
        %v7321 = vunpack.c.l.b16 %v5967
        %v7322 = vunpack.c.l.b16 %v5968
        %v7323 = vunpack.c.l.b16 %v5969
        %v7324 = vunpack.c.l.b16 %v5970
        %v7325 = vunpack.c.l.b16 %v5971
        %v7326 = vunpack.c.l.b16 %v5972
        %v7327 = vunpack.c.l.b16 %v5973
        %v7328 = vunpack.c.l.b16 %v5974
        %v7329 = vunpack.c.l.b16 %v5975
        %v7330 = vunpack.c.l.b16 %v5976
        %v7331 = vunpack.c.l.b16 %v5977
        %v7332 = vunpack.c.l.b16 %v5978
        %v7333 = vunpack.c.l.b16 %v5979
        %v7334 = vunpack.c.l.b16 %v5980
        %v7335 = vunpack.c.l.b16 %v5981
        %v7336 = vunpack.c.l.b16 %v5982
        %v7337 = vunpack.c.l.b16 %v5983
        %v7338 = vunpack.c.l.b16 %v5984
        %v7339 = vunpack.c.l.b16 %v5985
        %v7340 = vunpack.c.l.b16 %v5990
        %v7341 = vunpack.c.l.b16 %v5991
        %v7342 = vunpack.c.l.b16 %v5992
        %v7343 = vunpack.c.l.b16 %v5993
        %v7344 = vunpack.c.l.b16 %v5994
        %v7345 = vunpack.c.l.b16 %v5995
        %v7346 = vunpack.c.l.b16 %v5996
        %v7347 = vunpack.c.l.b16 %v5997
        %v7348 = vunpack.c.l.b16 %v5998
        %v7349 = vunpack.c.l.b16 %v5999
        %v7350 = vunpack.c.l.b16 %v6000
        %v7351 = vunpack.c.l.b16 %v6001
        %v7352 = vunpack.c.l.b16 %v6002
        %v7353 = vunpack.c.l.b16 %v6003
        %v7354 = vunpack.c.l.b16 %v6004
        %v7355 = vunpack.c.l.b16 %v6005
        %v7356 = vunpack.c.l.b16 %v6006
        %v7357 = vunpack.c.l.b16 %v6007
        %v7358 = vunpack.c.l.b16 %v6008
        %v7359 = vunpack.c.l.b16 %v6009
        %v7360 = vunpack.c.l.b16 %v6010
        %v7361 = vunpack.c.l.b16 %v6011
        %v7362 = vunpack.c.l.b16 %v6012
        %v7363 = vunpack.c.l.b16 %v6013
        %v7364 = vunpack.c.l.b16 %v6014
        %v7365 = vunpack.c.l.b16 %v6015
        %v7366 = vunpack.c.l.b16 %v6016
        %v7367 = vunpack.c.l.b16 %v6017
        %v7368 = vunpack.c.l.b16 %v6018
        %v7369 = vunpack.c.l.b16 %v6019
        %v7370 = vunpack.c.l.b16 %v6020
        %v7371 = vunpack.c.l.b16 %v6021
        %v7372 = vpack.c.b16 %v7309, %v7308
        %v7373 = vpack.c.b16 %v7311, %v7310
        %v7374 = vpack.c.b16 %v7313, %v7312
        %v7375 = vpack.c.b16 %v7315, %v7314
        %v7376 = vpack.c.b16 %v7317, %v7316
        %v7377 = vpack.c.b16 %v7319, %v7318
        %v7378 = vpack.c.b16 %v7321, %v7320
        %v7379 = vpack.c.b16 %v7323, %v7322
        %v7380 = vpack.c.b16 %v7325, %v7324
        %v7381 = vpack.c.b16 %v7327, %v7326
        %v7382 = vpack.c.b16 %v7329, %v7328
        %v7383 = vpack.c.b16 %v7331, %v7330
        %v7384 = vpack.c.b16 %v7333, %v7332
        %v7385 = vpack.c.b16 %v7335, %v7334
        %v7386 = vpack.c.b16 %v7337, %v7336
        %v7387 = vpack.c.b16 %v7339, %v7338
        %v7388 = vpack.c.b16 %v7341, %v7340
        %v7389 = vpack.c.b16 %v7343, %v7342
        %v7390 = vpack.c.b16 %v7345, %v7344
        %v7391 = vpack.c.b16 %v7347, %v7346
        %v7392 = vpack.c.b16 %v7349, %v7348
        %v7393 = vpack.c.b16 %v7351, %v7350
        %v7394 = vpack.c.b16 %v7353, %v7352
        %v7395 = vpack.c.b16 %v7355, %v7354
        %v7396 = vpack.c.b16 %v7357, %v7356
        %v7397 = vpack.c.b16 %v7359, %v7358
        %v7398 = vpack.c.b16 %v7361, %v7360
        %v7399 = vpack.c.b16 %v7363, %v7362
        %v7400 = vpack.c.b16 %v7365, %v7364
        %v7401 = vpack.c.b16 %v7367, %v7366
        %v7402 = vpack.c.b16 %v7369, %v7368
        %v7403 = vpack.c.b16 %v7371, %v7370
        %v7452 = vunpack.c.l.b16 %v6098
        %v7453 = vunpack.c.l.b16 %v6099
        %v7454 = vunpack.c.l.b16 %v6100
        %v7455 = vunpack.c.l.b16 %v6101
        %v7456 = vunpack.c.l.b16 %v6102
        %v7457 = vunpack.c.l.b16 %v6103
        %v7458 = vunpack.c.l.b16 %v6104
        %v7459 = vunpack.c.l.b16 %v6105
        %v7460 = vunpack.c.l.b16 %v6106
        %v7461 = vunpack.c.l.b16 %v6107
        %v7462 = vunpack.c.l.b16 %v6108
        %v7463 = vunpack.c.l.b16 %v6109
        %v7464 = vunpack.c.l.b16 %v6110
        %v7465 = vunpack.c.l.b16 %v6111
        %v7466 = vunpack.c.l.b16 %v6112
        %v7467 = vunpack.c.l.b16 %v6113
        %v7468 = vpack.c.b16 %v7453, %v7452
        %v7469 = vpack.c.b16 %v7455, %v7454
        %v7470 = vpack.c.b16 %v7457, %v7456
        %v7471 = vpack.c.b16 %v7459, %v7458
        %v7472 = vpack.c.b16 %v7461, %v7460
        %v7473 = vpack.c.b16 %v7463, %v7462
        %v7474 = vpack.c.b16 %v7465, %v7464
        %v7475 = vpack.c.b16 %v7467, %v7466
        %7484 = vmatpush.bf16.msra.mxu0 %v7475
        %7485 = vmatpush.bf16.msra.mxu0 %v7474
        %7486 = vmatpush.bf16.msra.mxu0 %v7473
        %7487 = vmatpush.bf16.msra.mxu0 %v7472
        %7488 = vmatpush.bf16.msra.mxu0 %v7471
        %7489 = vmatpush.bf16.msra.mxu0 %v7470
        %7490 = vmatpush.bf16.msra.mxu0 %v7469
        %7491 = vmatpush.bf16.msra.mxu0 %v7468
        %7492 = vmatmul.bf16.gmra.mxu0 %v7372
        %v7493 = vpop.f32.mrf.mxu0
        %v7494 = vadd.f32 %v7085, %v7493
        %v7495 = vpop.f32.mrf.mxu0
        %v7496 = vadd.f32 %v7087, %v7495
        %7497 = vmatmul.bf16.gmra.mxu0 %v7373
        %v7498 = vpop.f32.mrf.mxu0
        %v7499 = vadd.f32 %v7090, %v7498
        %v7500 = vpop.f32.mrf.mxu0
        %v7501 = vadd.f32 %v7092, %v7500
        %7502 = vmatmul.bf16.gmra.mxu0 %v7374
        %v7503 = vpop.f32.mrf.mxu0
        %v7504 = vadd.f32 %v7095, %v7503
        %v7505 = vpop.f32.mrf.mxu0
        %v7506 = vadd.f32 %v7097, %v7505
        %7507 = vmatmul.bf16.gmra.mxu0 %v7375
        %v7508 = vpop.f32.mrf.mxu0
        %v7509 = vadd.f32 %v7100, %v7508
        %v7510 = vpop.f32.mrf.mxu0
        %v7511 = vadd.f32 %v7102, %v7510
        %7512 = vmatmul.bf16.gmra.mxu0 %v7376
        %v7513 = vpop.f32.mrf.mxu0
        %v7514 = vadd.f32 %v7105, %v7513
        %v7515 = vpop.f32.mrf.mxu0
        %v7516 = vadd.f32 %v7107, %v7515
        %7517 = vmatmul.bf16.gmra.mxu0 %v7377
        %v7518 = vpop.f32.mrf.mxu0
        %v7519 = vadd.f32 %v7110, %v7518
        %v7520 = vpop.f32.mrf.mxu0
        %v7521 = vadd.f32 %v7112, %v7520
        %7522 = vmatmul.bf16.gmra.mxu0 %v7378
        %v7523 = vpop.f32.mrf.mxu0
        %v7524 = vadd.f32 %v7115, %v7523
        %v7525 = vpop.f32.mrf.mxu0
        %v7526 = vadd.f32 %v7117, %v7525
        %7527 = vmatmul.bf16.gmra.mxu0 %v7379
        %v7528 = vpop.f32.mrf.mxu0
        %v7529 = vadd.f32 %v7120, %v7528
        %v7530 = vpop.f32.mrf.mxu0
        %v7531 = vadd.f32 %v7122, %v7530
        %7532 = vmatmul.bf16.gmra.mxu0 %v7380
        %v7533 = vpop.f32.mrf.mxu0
        %v7534 = vadd.f32 %v7125, %v7533
        %v7535 = vpop.f32.mrf.mxu0
        %v7536 = vadd.f32 %v7127, %v7535
        %7537 = vmatmul.bf16.gmra.mxu0 %v7381
        %v7538 = vpop.f32.mrf.mxu0
        %v7539 = vadd.f32 %v7130, %v7538
        %v7540 = vpop.f32.mrf.mxu0
        %v7541 = vadd.f32 %v7132, %v7540
        %7542 = vmatmul.bf16.gmra.mxu0 %v7382
        %v7543 = vpop.f32.mrf.mxu0
        %v7544 = vadd.f32 %v7135, %v7543
        %v7545 = vpop.f32.mrf.mxu0
        %v7546 = vadd.f32 %v7137, %v7545
        %7547 = vmatmul.bf16.gmra.mxu0 %v7383
        %v7548 = vpop.f32.mrf.mxu0
        %v7549 = vadd.f32 %v7140, %v7548
        %v7550 = vpop.f32.mrf.mxu0
        %v7551 = vadd.f32 %v7142, %v7550
        %7552 = vmatmul.bf16.gmra.mxu0 %v7384
        %v7553 = vpop.f32.mrf.mxu0
        %v7554 = vadd.f32 %v7145, %v7553
        %v7555 = vpop.f32.mrf.mxu0
        %v7556 = vadd.f32 %v7147, %v7555
        %7557 = vmatmul.bf16.gmra.mxu0 %v7385
        %v7558 = vpop.f32.mrf.mxu0
        %v7559 = vadd.f32 %v7150, %v7558
        %v7560 = vpop.f32.mrf.mxu0
        %v7561 = vadd.f32 %v7152, %v7560
        %7562 = vmatmul.bf16.gmra.mxu0 %v7386
        %v7563 = vpop.f32.mrf.mxu0
        %v7564 = vadd.f32 %v7155, %v7563
        %v7565 = vpop.f32.mrf.mxu0
        %v7566 = vadd.f32 %v7157, %v7565
        %7567 = vmatmul.bf16.gmra.mxu0 %v7387
        %v7568 = vpop.f32.mrf.mxu0
        %v7569 = vadd.f32 %v7160, %v7568
        %v7570 = vpop.f32.mrf.mxu0
        %v7571 = vadd.f32 %v7162, %v7570
        %7572 = vmatmul.bf16.gmra.mxu0 %v7388
        %v7573 = vpop.f32.mrf.mxu0
        %v7574 = vadd.f32 %v7165, %v7573
        %v7575 = vpop.f32.mrf.mxu0
        %v7576 = vadd.f32 %v7167, %v7575
        %7577 = vmatmul.bf16.gmra.mxu0 %v7389
        %v7578 = vpop.f32.mrf.mxu0
        %v7579 = vadd.f32 %v7170, %v7578
        %v7580 = vpop.f32.mrf.mxu0
        %v7581 = vadd.f32 %v7172, %v7580
        %7582 = vmatmul.bf16.gmra.mxu0 %v7390
        %v7583 = vpop.f32.mrf.mxu0
        %v7584 = vadd.f32 %v7175, %v7583
        %v7585 = vpop.f32.mrf.mxu0
        %v7586 = vadd.f32 %v7177, %v7585
        %7587 = vmatmul.bf16.gmra.mxu0 %v7391
        %v7588 = vpop.f32.mrf.mxu0
        %v7589 = vadd.f32 %v7180, %v7588
        %v7590 = vpop.f32.mrf.mxu0
        %v7591 = vadd.f32 %v7182, %v7590
        %7592 = vmatmul.bf16.gmra.mxu0 %v7392
        %v7593 = vpop.f32.mrf.mxu0
        %v7594 = vadd.f32 %v7185, %v7593
        %v7595 = vpop.f32.mrf.mxu0
        %v7596 = vadd.f32 %v7187, %v7595
        %7597 = vmatmul.bf16.gmra.mxu0 %v7393
        %v7598 = vpop.f32.mrf.mxu0
        %v7599 = vadd.f32 %v7190, %v7598
        %v7600 = vpop.f32.mrf.mxu0
        %v7601 = vadd.f32 %v7192, %v7600
        %7602 = vmatmul.bf16.gmra.mxu0 %v7394
        %v7603 = vpop.f32.mrf.mxu0
        %v7604 = vadd.f32 %v7195, %v7603
        %v7605 = vpop.f32.mrf.mxu0
        %v7606 = vadd.f32 %v7197, %v7605
        %7607 = vmatmul.bf16.gmra.mxu0 %v7395
        %v7608 = vpop.f32.mrf.mxu0
        %v7609 = vadd.f32 %v7200, %v7608
        %v7610 = vpop.f32.mrf.mxu0
        %v7611 = vadd.f32 %v7202, %v7610
        %7612 = vmatmul.bf16.gmra.mxu0 %v7396
        %v7613 = vpop.f32.mrf.mxu0
        %v7614 = vadd.f32 %v7205, %v7613
        %v7615 = vpop.f32.mrf.mxu0
        %v7616 = vadd.f32 %v7207, %v7615
        %7617 = vmatmul.bf16.gmra.mxu0 %v7397
        %v7618 = vpop.f32.mrf.mxu0
        %v7619 = vadd.f32 %v7210, %v7618
        %v7620 = vpop.f32.mrf.mxu0
        %v7621 = vadd.f32 %v7212, %v7620
        %7622 = vmatmul.bf16.gmra.mxu0 %v7398
        %v7623 = vpop.f32.mrf.mxu0
        %v7624 = vadd.f32 %v7215, %v7623
        %v7625 = vpop.f32.mrf.mxu0
        %v7626 = vadd.f32 %v7217, %v7625
        %7627 = vmatmul.bf16.gmra.mxu0 %v7399
        %v7628 = vpop.f32.mrf.mxu0
        %v7629 = vadd.f32 %v7220, %v7628
        %v7630 = vpop.f32.mrf.mxu0
        %v7631 = vadd.f32 %v7222, %v7630
        %7632 = vmatmul.bf16.gmra.mxu0 %v7400
        %v7633 = vpop.f32.mrf.mxu0
        %v7634 = vadd.f32 %v7225, %v7633
        %v7635 = vpop.f32.mrf.mxu0
        %v7636 = vadd.f32 %v7227, %v7635
        %7637 = vmatmul.bf16.gmra.mxu0 %v7401
        %v7638 = vpop.f32.mrf.mxu0
        %v7639 = vadd.f32 %v7230, %v7638
        %v7640 = vpop.f32.mrf.mxu0
        %v7641 = vadd.f32 %v7232, %v7640
        %7642 = vmatmul.bf16.gmra.mxu0 %v7402
        %v7643 = vpop.f32.mrf.mxu0
        %v7644 = vadd.f32 %v7235, %v7643
        %v7645 = vpop.f32.mrf.mxu0
        %v7646 = vadd.f32 %v7237, %v7645
        %7647 = vmatmul.bf16.gmra.mxu0 %v7403
        %v7648 = vpop.f32.mrf.mxu0
        %v7649 = vadd.f32 %v7240, %v7648
        %v7650 = vpop.f32.mrf.mxu0
        %v7651 = vadd.f32 %v7242, %v7650
        %7652 = vdwg.mxu0
        %v7717 = vrot.slane %v6062, 5
        %v7718 = vrot.slane %v7717, 4
        %v7719 = vrot.slane %v5955, 5
        %v7720 = vsel %vm2052, %v7718, %v7719
        %v7721 = vrot.slane %v7719, 4
        %v7722 = vrot.slane %v6026, 5
        %v7723 = vsel %vm2052, %v7721, %v7722
        %v7724 = vrot.slane %v6063, 5
        %v7725 = vrot.slane %v7724, 4
        %v7726 = vrot.slane %v5957, 5
        %v7727 = vsel %vm2052, %v7725, %v7726
        %v7728 = vrot.slane %v7726, 4
        %v7729 = vrot.slane %v6027, 5
        %v7730 = vsel %vm2052, %v7728, %v7729
        %v7731 = vrot.slane %v6064, 5
        %v7732 = vrot.slane %v7731, 4
        %v7733 = vrot.slane %v5959, 5
        %v7734 = vsel %vm2052, %v7732, %v7733
        %v7735 = vrot.slane %v7733, 4
        %v7736 = vrot.slane %v6028, 5
        %v7737 = vsel %vm2052, %v7735, %v7736
        %v7738 = vrot.slane %v6065, 5
        %v7739 = vrot.slane %v7738, 4
        %v7740 = vrot.slane %v5961, 5
        %v7741 = vsel %vm2052, %v7739, %v7740
        %v7742 = vrot.slane %v7740, 4
        %v7743 = vrot.slane %v6029, 5
        %v7744 = vsel %vm2052, %v7742, %v7743
        %v7745 = vrot.slane %v6066, 5
        %v7746 = vrot.slane %v7745, 4
        %v7747 = vrot.slane %v5963, 5
        %v7748 = vsel %vm2052, %v7746, %v7747
        %v7749 = vrot.slane %v7747, 4
        %v7750 = vrot.slane %v6030, 5
        %v7751 = vsel %vm2052, %v7749, %v7750
        %v7752 = vrot.slane %v6067, 5
        %v7753 = vrot.slane %v7752, 4
        %v7754 = vrot.slane %v5965, 5
        %v7755 = vsel %vm2052, %v7753, %v7754
        %v7756 = vrot.slane %v7754, 4
        %v7757 = vrot.slane %v6031, 5
        %v7758 = vsel %vm2052, %v7756, %v7757
        %v7759 = vrot.slane %v6068, 5
        %v7760 = vrot.slane %v7759, 4
        %v7761 = vrot.slane %v5967, 5
        %v7762 = vsel %vm2052, %v7760, %v7761
        %v7763 = vrot.slane %v7761, 4
        %v7764 = vrot.slane %v6032, 5
        %v7765 = vsel %vm2052, %v7763, %v7764
        %v7766 = vrot.slane %v6069, 5
        %v7767 = vrot.slane %v7766, 4
        %v7768 = vrot.slane %v5969, 5
        %v7769 = vsel %vm2052, %v7767, %v7768
        %v7770 = vrot.slane %v7768, 4
        %v7771 = vrot.slane %v6033, 5
        %v7772 = vsel %vm2052, %v7770, %v7771
        %v7773 = vrot.slane %v6070, 5
        %v7774 = vrot.slane %v7773, 4
        %v7775 = vrot.slane %v5971, 5
        %v7776 = vsel %vm2052, %v7774, %v7775
        %v7777 = vrot.slane %v7775, 4
        %v7778 = vrot.slane %v6034, 5
        %v7779 = vsel %vm2052, %v7777, %v7778
        %v7780 = vrot.slane %v6071, 5
        %v7781 = vrot.slane %v7780, 4
        %v7782 = vrot.slane %v5973, 5
        %v7783 = vsel %vm2052, %v7781, %v7782
        %v7784 = vrot.slane %v7782, 4
        %v7785 = vrot.slane %v6035, 5
        %v7786 = vsel %vm2052, %v7784, %v7785
        %v7787 = vrot.slane %v6072, 5
        %v7788 = vrot.slane %v7787, 4
        %v7789 = vrot.slane %v5975, 5
        %v7790 = vsel %vm2052, %v7788, %v7789
        %v7791 = vrot.slane %v7789, 4
        %v7792 = vrot.slane %v6036, 5
        %v7793 = vsel %vm2052, %v7791, %v7792
        %v7794 = vrot.slane %v6073, 5
        %v7795 = vrot.slane %v7794, 4
        %v7796 = vrot.slane %v5977, 5
        %v7797 = vsel %vm2052, %v7795, %v7796
        %v7798 = vrot.slane %v7796, 4
        %v7799 = vrot.slane %v6037, 5
        %v7800 = vsel %vm2052, %v7798, %v7799
        %v7801 = vrot.slane %v6074, 5
        %v7802 = vrot.slane %v7801, 4
        %v7803 = vrot.slane %v5979, 5
        %v7804 = vsel %vm2052, %v7802, %v7803
        %v7805 = vrot.slane %v7803, 4
        %v7806 = vrot.slane %v6038, 5
        %v7807 = vsel %vm2052, %v7805, %v7806
        %v7808 = vrot.slane %v6075, 5
        %v7809 = vrot.slane %v7808, 4
        %v7810 = vrot.slane %v5981, 5
        %v7811 = vsel %vm2052, %v7809, %v7810
        %v7812 = vrot.slane %v7810, 4
        %v7813 = vrot.slane %v6039, 5
        %v7814 = vsel %vm2052, %v7812, %v7813
        %v7815 = vrot.slane %v6076, 5
        %v7816 = vrot.slane %v7815, 4
        %v7817 = vrot.slane %v5983, 5
        %v7818 = vsel %vm2052, %v7816, %v7817
        %v7819 = vrot.slane %v7817, 4
        %v7820 = vrot.slane %v6040, 5
        %v7821 = vsel %vm2052, %v7819, %v7820
        %v7822 = vrot.slane %v6077, 5
        %v7823 = vrot.slane %v7822, 4
        %v7824 = vrot.slane %v5985, 5
        %v7825 = vsel %vm2052, %v7823, %v7824
        %v7826 = vrot.slane %v7824, 4
        %v7827 = vrot.slane %v6041, 5
        %v7828 = vsel %vm2052, %v7826, %v7827
        %v7829 = vrot.slane %v6080, 5
        %v7830 = vrot.slane %v7829, 4
        %v7831 = vrot.slane %v5991, 5
        %v7832 = vsel %vm2052, %v7830, %v7831
        %v7833 = vrot.slane %v7831, 4
        %v7834 = vrot.slane %v6044, 5
        %v7835 = vsel %vm2052, %v7833, %v7834
        %v7836 = vrot.slane %v6081, 5
        %v7837 = vrot.slane %v7836, 4
        %v7838 = vrot.slane %v5993, 5
        %v7839 = vsel %vm2052, %v7837, %v7838
        %v7840 = vrot.slane %v7838, 4
        %v7841 = vrot.slane %v6045, 5
        %v7842 = vsel %vm2052, %v7840, %v7841
        %v7843 = vrot.slane %v6082, 5
        %v7844 = vrot.slane %v7843, 4
        %v7845 = vrot.slane %v5995, 5
        %v7846 = vsel %vm2052, %v7844, %v7845
        %v7847 = vrot.slane %v7845, 4
        %v7848 = vrot.slane %v6046, 5
        %v7849 = vsel %vm2052, %v7847, %v7848
        %v7850 = vrot.slane %v6083, 5
        %v7851 = vrot.slane %v7850, 4
        %v7852 = vrot.slane %v5997, 5
        %v7853 = vsel %vm2052, %v7851, %v7852
        %v7854 = vrot.slane %v7852, 4
        %v7855 = vrot.slane %v6047, 5
        %v7856 = vsel %vm2052, %v7854, %v7855
        %v7857 = vrot.slane %v6084, 5
        %v7858 = vrot.slane %v7857, 4
        %v7859 = vrot.slane %v5999, 5
        %v7860 = vsel %vm2052, %v7858, %v7859
        %v7861 = vrot.slane %v7859, 4
        %v7862 = vrot.slane %v6048, 5
        %v7863 = vsel %vm2052, %v7861, %v7862
        %v7864 = vrot.slane %v6085, 5
        %v7865 = vrot.slane %v7864, 4
        %v7866 = vrot.slane %v6001, 5
        %v7867 = vsel %vm2052, %v7865, %v7866
        %v7868 = vrot.slane %v7866, 4
        %v7869 = vrot.slane %v6049, 5
        %v7870 = vsel %vm2052, %v7868, %v7869
        %v7871 = vrot.slane %v6086, 5
        %v7872 = vrot.slane %v7871, 4
        %v7873 = vrot.slane %v6003, 5
        %v7874 = vsel %vm2052, %v7872, %v7873
        %v7875 = vrot.slane %v7873, 4
        %v7876 = vrot.slane %v6050, 5
        %v7877 = vsel %vm2052, %v7875, %v7876
        %v7878 = vrot.slane %v6087, 5
        %v7879 = vrot.slane %v7878, 4
        %v7880 = vrot.slane %v6005, 5
        %v7881 = vsel %vm2052, %v7879, %v7880
        %v7882 = vrot.slane %v7880, 4
        %v7883 = vrot.slane %v6051, 5
        %v7884 = vsel %vm2052, %v7882, %v7883
        %v7885 = vrot.slane %v6088, 5
        %v7886 = vrot.slane %v7885, 4
        %v7887 = vrot.slane %v6007, 5
        %v7888 = vsel %vm2052, %v7886, %v7887
        %v7889 = vrot.slane %v7887, 4
        %v7890 = vrot.slane %v6052, 5
        %v7891 = vsel %vm2052, %v7889, %v7890
        %v7892 = vrot.slane %v6089, 5
        %v7893 = vrot.slane %v7892, 4
        %v7894 = vrot.slane %v6009, 5
        %v7895 = vsel %vm2052, %v7893, %v7894
        %v7896 = vrot.slane %v7894, 4
        %v7897 = vrot.slane %v6053, 5
        %v7898 = vsel %vm2052, %v7896, %v7897
        %v7899 = vrot.slane %v6090, 5
        %v7900 = vrot.slane %v7899, 4
        %v7901 = vrot.slane %v6011, 5
        %v7902 = vsel %vm2052, %v7900, %v7901
        %v7903 = vrot.slane %v7901, 4
        %v7904 = vrot.slane %v6054, 5
        %v7905 = vsel %vm2052, %v7903, %v7904
        %v7906 = vrot.slane %v6091, 5
        %v7907 = vrot.slane %v7906, 4
        %v7908 = vrot.slane %v6013, 5
        %v7909 = vsel %vm2052, %v7907, %v7908
        %v7910 = vrot.slane %v7908, 4
        %v7911 = vrot.slane %v6055, 5
        %v7912 = vsel %vm2052, %v7910, %v7911
        %v7913 = vrot.slane %v6092, 5
        %v7914 = vrot.slane %v7913, 4
        %v7915 = vrot.slane %v6015, 5
        %v7916 = vsel %vm2052, %v7914, %v7915
        %v7917 = vrot.slane %v7915, 4
        %v7918 = vrot.slane %v6056, 5
        %v7919 = vsel %vm2052, %v7917, %v7918
        %v7920 = vrot.slane %v6093, 5
        %v7921 = vrot.slane %v7920, 4
        %v7922 = vrot.slane %v6017, 5
        %v7923 = vsel %vm2052, %v7921, %v7922
        %v7924 = vrot.slane %v7922, 4
        %v7925 = vrot.slane %v6057, 5
        %v7926 = vsel %vm2052, %v7924, %v7925
        %v7927 = vrot.slane %v6094, 5
        %v7928 = vrot.slane %v7927, 4
        %v7929 = vrot.slane %v6019, 5
        %v7930 = vsel %vm2052, %v7928, %v7929
        %v7931 = vrot.slane %v7929, 4
        %v7932 = vrot.slane %v6058, 5
        %v7933 = vsel %vm2052, %v7931, %v7932
        %v7934 = vrot.slane %v6095, 5
        %v7935 = vrot.slane %v7934, 4
        %v7936 = vrot.slane %v6021, 5
        %v7937 = vsel %vm2052, %v7935, %v7936
        %v7938 = vrot.slane %v7936, 4
        %v7939 = vrot.slane %v6059, 5
        %v7940 = vsel %vm2052, %v7938, %v7939
        %s7941 = scalar_lea.vmem %s3, 128
        %v7942 = vld [vmem:[%s7941] sm:$0xf]
        %v7943 = vld [vmem:[%s7941 + $0x4] sm:$0xf]
        %v7944 = vld [vmem:[%s7941 + $0x8] sm:$0xf]
        %v7945 = vld [vmem:[%s7941 + $0xc] sm:$0xf]
        %v7946 = vld [vmem:[%s7941 + $0x10] sm:$0xf]
        %v7947 = vld [vmem:[%s7941 + $0x14] sm:$0xf]
        %v7948 = vld [vmem:[%s7941 + $0x18] sm:$0xf]
        %v7949 = vld [vmem:[%s7941 + $0x1c] sm:$0xf]
        %v7950 = vld [vmem:[%s7941 + $0x20] sm:$0xf]
        %v7951 = vld [vmem:[%s7941 + $0x24] sm:$0xf]
        %v7952 = vld [vmem:[%s7941 + $0x28] sm:$0xf]
        %v7953 = vld [vmem:[%s7941 + $0x2c] sm:$0xf]
        %v7954 = vld [vmem:[%s7941 + $0x30] sm:$0xf]
        %v7955 = vld [vmem:[%s7941 + $0x34] sm:$0xf]
        %v7956 = vld [vmem:[%s7941 + $0x38] sm:$0xf]
        %v7957 = vld [vmem:[%s7941 + $0x3c] sm:$0xf]
        %v7958 = vunpack.c.l.b16 %v7720
        %v7959 = vunpack.c.l.b16 %v7723
        %v7960 = vunpack.c.l.b16 %v7727
        %v7961 = vunpack.c.l.b16 %v7730
        %v7962 = vunpack.c.l.b16 %v7734
        %v7963 = vunpack.c.l.b16 %v7737
        %v7964 = vunpack.c.l.b16 %v7741
        %v7965 = vunpack.c.l.b16 %v7744
        %v7966 = vunpack.c.l.b16 %v7748
        %v7967 = vunpack.c.l.b16 %v7751
        %v7968 = vunpack.c.l.b16 %v7755
        %v7969 = vunpack.c.l.b16 %v7758
        %v7970 = vunpack.c.l.b16 %v7762
        %v7971 = vunpack.c.l.b16 %v7765
        %v7972 = vunpack.c.l.b16 %v7769
        %v7973 = vunpack.c.l.b16 %v7772
        %v7974 = vunpack.c.l.b16 %v7776
        %v7975 = vunpack.c.l.b16 %v7779
        %v7976 = vunpack.c.l.b16 %v7783
        %v7977 = vunpack.c.l.b16 %v7786
        %v7978 = vunpack.c.l.b16 %v7790
        %v7979 = vunpack.c.l.b16 %v7793
        %v7980 = vunpack.c.l.b16 %v7797
        %v7981 = vunpack.c.l.b16 %v7800
        %v7982 = vunpack.c.l.b16 %v7804
        %v7983 = vunpack.c.l.b16 %v7807
        %v7984 = vunpack.c.l.b16 %v7811
        %v7985 = vunpack.c.l.b16 %v7814
        %v7986 = vunpack.c.l.b16 %v7818
        %v7987 = vunpack.c.l.b16 %v7821
        %v7988 = vunpack.c.l.b16 %v7825
        %v7989 = vunpack.c.l.b16 %v7828
        %v7990 = vunpack.c.l.b16 %v7832
        %v7991 = vunpack.c.l.b16 %v7835
        %v7992 = vunpack.c.l.b16 %v7839
        %v7993 = vunpack.c.l.b16 %v7842
        %v7994 = vunpack.c.l.b16 %v7846
        %v7995 = vunpack.c.l.b16 %v7849
        %v7996 = vunpack.c.l.b16 %v7853
        %v7997 = vunpack.c.l.b16 %v7856
        %v7998 = vunpack.c.l.b16 %v7860
        %v7999 = vunpack.c.l.b16 %v7863
        %v8000 = vunpack.c.l.b16 %v7867
        %v8001 = vunpack.c.l.b16 %v7870
        %v8002 = vunpack.c.l.b16 %v7874
        %v8003 = vunpack.c.l.b16 %v7877
        %v8004 = vunpack.c.l.b16 %v7881
        %v8005 = vunpack.c.l.b16 %v7884
        %v8006 = vunpack.c.l.b16 %v7888
        %v8007 = vunpack.c.l.b16 %v7891
        %v8008 = vunpack.c.l.b16 %v7895
        %v8009 = vunpack.c.l.b16 %v7898
        %v8010 = vunpack.c.l.b16 %v7902
        %v8011 = vunpack.c.l.b16 %v7905
        %v8012 = vunpack.c.l.b16 %v7909
        %v8013 = vunpack.c.l.b16 %v7912
        %v8014 = vunpack.c.l.b16 %v7916
        %v8015 = vunpack.c.l.b16 %v7919
        %v8016 = vunpack.c.l.b16 %v7923
        %v8017 = vunpack.c.l.b16 %v7926
        %v8018 = vunpack.c.l.b16 %v7930
        %v8019 = vunpack.c.l.b16 %v7933
        %v8020 = vunpack.c.l.b16 %v7937
        %v8021 = vunpack.c.l.b16 %v7940
        %v8022 = vpack.c.b16 %v7959, %v7958
        %v8023 = vpack.c.b16 %v7961, %v7960
        %v8024 = vpack.c.b16 %v7963, %v7962
        %v8025 = vpack.c.b16 %v7965, %v7964
        %v8026 = vpack.c.b16 %v7967, %v7966
        %v8027 = vpack.c.b16 %v7969, %v7968
        %v8028 = vpack.c.b16 %v7971, %v7970
        %v8029 = vpack.c.b16 %v7973, %v7972
        %v8030 = vpack.c.b16 %v7975, %v7974
        %v8031 = vpack.c.b16 %v7977, %v7976
        %v8032 = vpack.c.b16 %v7979, %v7978
        %v8033 = vpack.c.b16 %v7981, %v7980
        %v8034 = vpack.c.b16 %v7983, %v7982
        %v8035 = vpack.c.b16 %v7985, %v7984
        %v8036 = vpack.c.b16 %v7987, %v7986
        %v8037 = vpack.c.b16 %v7989, %v7988
        %v8038 = vpack.c.b16 %v7991, %v7990
        %v8039 = vpack.c.b16 %v7993, %v7992
        %v8040 = vpack.c.b16 %v7995, %v7994
        %v8041 = vpack.c.b16 %v7997, %v7996
        %v8042 = vpack.c.b16 %v7999, %v7998
        %v8043 = vpack.c.b16 %v8001, %v8000
        %v8044 = vpack.c.b16 %v8003, %v8002
        %v8045 = vpack.c.b16 %v8005, %v8004
        %v8046 = vpack.c.b16 %v8007, %v8006
        %v8047 = vpack.c.b16 %v8009, %v8008
        %v8048 = vpack.c.b16 %v8011, %v8010
        %v8049 = vpack.c.b16 %v8013, %v8012
        %v8050 = vpack.c.b16 %v8015, %v8014
        %v8051 = vpack.c.b16 %v8017, %v8016
        %v8052 = vpack.c.b16 %v8019, %v8018
        %v8053 = vpack.c.b16 %v8021, %v8020
        %v8102 = vunpack.c.l.b16 %v7942
        %v8103 = vunpack.c.l.b16 %v7943
        %v8104 = vunpack.c.l.b16 %v7944
        %v8105 = vunpack.c.l.b16 %v7945
        %v8106 = vunpack.c.l.b16 %v7946
        %v8107 = vunpack.c.l.b16 %v7947
        %v8108 = vunpack.c.l.b16 %v7948
        %v8109 = vunpack.c.l.b16 %v7949
        %v8110 = vunpack.c.l.b16 %v7950
        %v8111 = vunpack.c.l.b16 %v7951
        %v8112 = vunpack.c.l.b16 %v7952
        %v8113 = vunpack.c.l.b16 %v7953
        %v8114 = vunpack.c.l.b16 %v7954
        %v8115 = vunpack.c.l.b16 %v7955
        %v8116 = vunpack.c.l.b16 %v7956
        %v8117 = vunpack.c.l.b16 %v7957
        %v8118 = vpack.c.b16 %v8103, %v8102
        %v8119 = vpack.c.b16 %v8105, %v8104
        %v8120 = vpack.c.b16 %v8107, %v8106
        %v8121 = vpack.c.b16 %v8109, %v8108
        %v8122 = vpack.c.b16 %v8111, %v8110
        %v8123 = vpack.c.b16 %v8113, %v8112
        %v8124 = vpack.c.b16 %v8115, %v8114
        %v8125 = vpack.c.b16 %v8117, %v8116
        %8134 = vmatpush.bf16.msra.mxu0 %v8125
        %8135 = vmatpush.bf16.msra.mxu0 %v8124
        %8136 = vmatpush.bf16.msra.mxu0 %v8123
        %8137 = vmatpush.bf16.msra.mxu0 %v8122
        %8138 = vmatpush.bf16.msra.mxu0 %v8121
        %8139 = vmatpush.bf16.msra.mxu0 %v8120
        %8140 = vmatpush.bf16.msra.mxu0 %v8119
        %8141 = vmatpush.bf16.msra.mxu0 %v8118
        %8142 = vmatmul.bf16.gmra.mxu0 %v8022
        %v8143 = vpop.f32.mrf.mxu0
        %v8144 = vadd.f32 0.0, %v8143
        %v8145 = vpop.f32.mrf.mxu0
        %v8146 = vadd.f32 0.0, %v8145
        %8147 = vmatmul.bf16.gmra.mxu0 %v8023
        %v8148 = vpop.f32.mrf.mxu0
        %v8149 = vadd.f32 0.0, %v8148
        %v8150 = vpop.f32.mrf.mxu0
        %v8151 = vadd.f32 0.0, %v8150
        %8152 = vmatmul.bf16.gmra.mxu0 %v8024
        %v8153 = vpop.f32.mrf.mxu0
        %v8154 = vadd.f32 0.0, %v8153
        %v8155 = vpop.f32.mrf.mxu0
        %v8156 = vadd.f32 0.0, %v8155
        %8157 = vmatmul.bf16.gmra.mxu0 %v8025
        %v8158 = vpop.f32.mrf.mxu0
        %v8159 = vadd.f32 0.0, %v8158
        %v8160 = vpop.f32.mrf.mxu0
        %v8161 = vadd.f32 0.0, %v8160
        %8162 = vmatmul.bf16.gmra.mxu0 %v8026
        %v8163 = vpop.f32.mrf.mxu0
        %v8164 = vadd.f32 0.0, %v8163
        %v8165 = vpop.f32.mrf.mxu0
        %v8166 = vadd.f32 0.0, %v8165
        %8167 = vmatmul.bf16.gmra.mxu0 %v8027
        %v8168 = vpop.f32.mrf.mxu0
        %v8169 = vadd.f32 0.0, %v8168
        %v8170 = vpop.f32.mrf.mxu0
        %v8171 = vadd.f32 0.0, %v8170
        %8172 = vmatmul.bf16.gmra.mxu0 %v8028
        %v8173 = vpop.f32.mrf.mxu0
        %v8174 = vadd.f32 0.0, %v8173
        %v8175 = vpop.f32.mrf.mxu0
        %v8176 = vadd.f32 0.0, %v8175
        %8177 = vmatmul.bf16.gmra.mxu0 %v8029
        %v8178 = vpop.f32.mrf.mxu0
        %v8179 = vadd.f32 0.0, %v8178
        %v8180 = vpop.f32.mrf.mxu0
        %v8181 = vadd.f32 0.0, %v8180
        %8182 = vmatmul.bf16.gmra.mxu0 %v8030
        %v8183 = vpop.f32.mrf.mxu0
        %v8184 = vadd.f32 0.0, %v8183
        %v8185 = vpop.f32.mrf.mxu0
        %v8186 = vadd.f32 0.0, %v8185
        %8187 = vmatmul.bf16.gmra.mxu0 %v8031
        %v8188 = vpop.f32.mrf.mxu0
        %v8189 = vadd.f32 0.0, %v8188
        %v8190 = vpop.f32.mrf.mxu0
        %v8191 = vadd.f32 0.0, %v8190
        %8192 = vmatmul.bf16.gmra.mxu0 %v8032
        %v8193 = vpop.f32.mrf.mxu0
        %v8194 = vadd.f32 0.0, %v8193
        %v8195 = vpop.f32.mrf.mxu0
        %v8196 = vadd.f32 0.0, %v8195
        %8197 = vmatmul.bf16.gmra.mxu0 %v8033
        %v8198 = vpop.f32.mrf.mxu0
        %v8199 = vadd.f32 0.0, %v8198
        %v8200 = vpop.f32.mrf.mxu0
        %v8201 = vadd.f32 0.0, %v8200
        %8202 = vmatmul.bf16.gmra.mxu0 %v8034
        %v8203 = vpop.f32.mrf.mxu0
        %v8204 = vadd.f32 0.0, %v8203
        %v8205 = vpop.f32.mrf.mxu0
        %v8206 = vadd.f32 0.0, %v8205
        %8207 = vmatmul.bf16.gmra.mxu0 %v8035
        %v8208 = vpop.f32.mrf.mxu0
        %v8209 = vadd.f32 0.0, %v8208
        %v8210 = vpop.f32.mrf.mxu0
        %v8211 = vadd.f32 0.0, %v8210
        %8212 = vmatmul.bf16.gmra.mxu0 %v8036
        %v8213 = vpop.f32.mrf.mxu0
        %v8214 = vadd.f32 0.0, %v8213
        %v8215 = vpop.f32.mrf.mxu0
        %v8216 = vadd.f32 0.0, %v8215
        %8217 = vmatmul.bf16.gmra.mxu0 %v8037
        %v8218 = vpop.f32.mrf.mxu0
        %v8219 = vadd.f32 0.0, %v8218
        %v8220 = vpop.f32.mrf.mxu0
        %v8221 = vadd.f32 0.0, %v8220
        %8222 = vmatmul.bf16.gmra.mxu0 %v8038
        %v8223 = vpop.f32.mrf.mxu0
        %v8224 = vadd.f32 0.0, %v8223
        %v8225 = vpop.f32.mrf.mxu0
        %v8226 = vadd.f32 0.0, %v8225
        %8227 = vmatmul.bf16.gmra.mxu0 %v8039
        %v8228 = vpop.f32.mrf.mxu0
        %v8229 = vadd.f32 0.0, %v8228
        %v8230 = vpop.f32.mrf.mxu0
        %v8231 = vadd.f32 0.0, %v8230
        %8232 = vmatmul.bf16.gmra.mxu0 %v8040
        %v8233 = vpop.f32.mrf.mxu0
        %v8234 = vadd.f32 0.0, %v8233
        %v8235 = vpop.f32.mrf.mxu0
        %v8236 = vadd.f32 0.0, %v8235
        %8237 = vmatmul.bf16.gmra.mxu0 %v8041
        %v8238 = vpop.f32.mrf.mxu0
        %v8239 = vadd.f32 0.0, %v8238
        %v8240 = vpop.f32.mrf.mxu0
        %v8241 = vadd.f32 0.0, %v8240
        %8242 = vmatmul.bf16.gmra.mxu0 %v8042
        %v8243 = vpop.f32.mrf.mxu0
        %v8244 = vadd.f32 0.0, %v8243
        %v8245 = vpop.f32.mrf.mxu0
        %v8246 = vadd.f32 0.0, %v8245
        %8247 = vmatmul.bf16.gmra.mxu0 %v8043
        %v8248 = vpop.f32.mrf.mxu0
        %v8249 = vadd.f32 0.0, %v8248
        %v8250 = vpop.f32.mrf.mxu0
        %v8251 = vadd.f32 0.0, %v8250
        %8252 = vmatmul.bf16.gmra.mxu0 %v8044
        %v8253 = vpop.f32.mrf.mxu0
        %v8254 = vadd.f32 0.0, %v8253
        %v8255 = vpop.f32.mrf.mxu0
        %v8256 = vadd.f32 0.0, %v8255
        %8257 = vmatmul.bf16.gmra.mxu0 %v8045
        %v8258 = vpop.f32.mrf.mxu0
        %v8259 = vadd.f32 0.0, %v8258
        %v8260 = vpop.f32.mrf.mxu0
        %v8261 = vadd.f32 0.0, %v8260
        %8262 = vmatmul.bf16.gmra.mxu0 %v8046
        %v8263 = vpop.f32.mrf.mxu0
        %v8264 = vadd.f32 0.0, %v8263
        %v8265 = vpop.f32.mrf.mxu0
        %v8266 = vadd.f32 0.0, %v8265
        %8267 = vmatmul.bf16.gmra.mxu0 %v8047
        %v8268 = vpop.f32.mrf.mxu0
        %v8269 = vadd.f32 0.0, %v8268
        %v8270 = vpop.f32.mrf.mxu0
        %v8271 = vadd.f32 0.0, %v8270
        %8272 = vmatmul.bf16.gmra.mxu0 %v8048
        %v8273 = vpop.f32.mrf.mxu0
        %v8274 = vadd.f32 0.0, %v8273
        %v8275 = vpop.f32.mrf.mxu0
        %v8276 = vadd.f32 0.0, %v8275
        %8277 = vmatmul.bf16.gmra.mxu0 %v8049
        %v8278 = vpop.f32.mrf.mxu0
        %v8279 = vadd.f32 0.0, %v8278
        %v8280 = vpop.f32.mrf.mxu0
        %v8281 = vadd.f32 0.0, %v8280
        %8282 = vmatmul.bf16.gmra.mxu0 %v8050
        %v8283 = vpop.f32.mrf.mxu0
        %v8284 = vadd.f32 0.0, %v8283
        %v8285 = vpop.f32.mrf.mxu0
        %v8286 = vadd.f32 0.0, %v8285
        %8287 = vmatmul.bf16.gmra.mxu0 %v8051
        %v8288 = vpop.f32.mrf.mxu0
        %v8289 = vadd.f32 0.0, %v8288
        %v8290 = vpop.f32.mrf.mxu0
        %v8291 = vadd.f32 0.0, %v8290
        %8292 = vmatmul.bf16.gmra.mxu0 %v8052
        %v8293 = vpop.f32.mrf.mxu0
        %v8294 = vadd.f32 0.0, %v8293
        %v8295 = vpop.f32.mrf.mxu0
        %v8296 = vadd.f32 0.0, %v8295
        %8297 = vmatmul.bf16.gmra.mxu0 %v8053
        %v8298 = vpop.f32.mrf.mxu0
        %v8299 = vadd.f32 0.0, %v8298
        %v8300 = vpop.f32.mrf.mxu0
        %v8301 = vadd.f32 0.0, %v8300
        %8302 = vdwg.mxu0
        %v8303 = vadd.f32 %v7494, %v8144
        %v8304 = vadd.f32 %v7496, %v8146
        %v8305 = vadd.f32 %v7499, %v8149
        %v8306 = vadd.f32 %v7501, %v8151
        %v8307 = vadd.f32 %v7504, %v8154
        %v8308 = vadd.f32 %v7506, %v8156
        %v8309 = vadd.f32 %v7509, %v8159
        %v8310 = vadd.f32 %v7511, %v8161
        %v8311 = vadd.f32 %v7514, %v8164
        %v8312 = vadd.f32 %v7516, %v8166
        %v8313 = vadd.f32 %v7519, %v8169
        %v8314 = vadd.f32 %v7521, %v8171
        %v8315 = vadd.f32 %v7524, %v8174
        %v8316 = vadd.f32 %v7526, %v8176
        %v8317 = vadd.f32 %v7529, %v8179
        %v8318 = vadd.f32 %v7531, %v8181
        %v8319 = vadd.f32 %v7534, %v8184
        %v8320 = vadd.f32 %v7536, %v8186
        %v8321 = vadd.f32 %v7539, %v8189
        %v8322 = vadd.f32 %v7541, %v8191
        %v8323 = vadd.f32 %v7544, %v8194
        %v8324 = vadd.f32 %v7546, %v8196
        %v8325 = vadd.f32 %v7549, %v8199
        %v8326 = vadd.f32 %v7551, %v8201
        %v8327 = vadd.f32 %v7554, %v8204
        %v8328 = vadd.f32 %v7556, %v8206
        %v8329 = vadd.f32 %v7559, %v8209
        %v8330 = vadd.f32 %v7561, %v8211
        %v8331 = vadd.f32 %v7564, %v8214
        %v8332 = vadd.f32 %v7566, %v8216
        %v8333 = vadd.f32 %v7569, %v8219
        %v8334 = vadd.f32 %v7571, %v8221
        %v8335 = vadd.f32 %v7574, %v8224
        %v8336 = vadd.f32 %v7576, %v8226
        %v8337 = vadd.f32 %v7579, %v8229
        %v8338 = vadd.f32 %v7581, %v8231
        %v8339 = vadd.f32 %v7584, %v8234
        %v8340 = vadd.f32 %v7586, %v8236
        %v8341 = vadd.f32 %v7589, %v8239
        %v8342 = vadd.f32 %v7591, %v8241
        %v8343 = vadd.f32 %v7594, %v8244
        %v8344 = vadd.f32 %v7596, %v8246
        %v8345 = vadd.f32 %v7599, %v8249
        %v8346 = vadd.f32 %v7601, %v8251
        %v8347 = vadd.f32 %v7604, %v8254
        %v8348 = vadd.f32 %v7606, %v8256
        %v8349 = vadd.f32 %v7609, %v8259
        %v8350 = vadd.f32 %v7611, %v8261
        %v8351 = vadd.f32 %v7614, %v8264
        %v8352 = vadd.f32 %v7616, %v8266
        %v8353 = vadd.f32 %v7619, %v8269
        %v8354 = vadd.f32 %v7621, %v8271
        %v8355 = vadd.f32 %v7624, %v8274
        %v8356 = vadd.f32 %v7626, %v8276
        %v8357 = vadd.f32 %v7629, %v8279
        %v8358 = vadd.f32 %v7631, %v8281
        %v8359 = vadd.f32 %v7634, %v8284
        %v8360 = vadd.f32 %v7636, %v8286
        %v8361 = vadd.f32 %v7639, %v8289
        %v8362 = vadd.f32 %v7641, %v8291
        %v8363 = vadd.f32 %v7644, %v8294
        %v8364 = vadd.f32 %v7646, %v8296
        %v8365 = vadd.f32 %v7649, %v8299
        %v8366 = vadd.f32 %v7651, %v8301
        %s8367 = scalar_lea.vmem %s3, 192
        %v8368 = vld [vmem:[%s8367] sm:$0xf]
        %v8369 = vld [vmem:[%s8367 + $0x4] sm:$0xf]
        %v8370 = vld [vmem:[%s8367 + $0x8] sm:$0xf]
        %v8371 = vld [vmem:[%s8367 + $0xc] sm:$0xf]
        %v8372 = vld [vmem:[%s8367 + $0x10] sm:$0xf]
        %v8373 = vld [vmem:[%s8367 + $0x14] sm:$0xf]
        %v8374 = vld [vmem:[%s8367 + $0x18] sm:$0xf]
        %v8375 = vld [vmem:[%s8367 + $0x1c] sm:$0xf]
        %v8376 = vld [vmem:[%s8367 + $0x20] sm:$0xf]
        %v8377 = vld [vmem:[%s8367 + $0x24] sm:$0xf]
        %v8378 = vld [vmem:[%s8367 + $0x28] sm:$0xf]
        %v8379 = vld [vmem:[%s8367 + $0x2c] sm:$0xf]
        %v8380 = vld [vmem:[%s8367 + $0x30] sm:$0xf]
        %v8381 = vld [vmem:[%s8367 + $0x34] sm:$0xf]
        %v8382 = vld [vmem:[%s8367 + $0x38] sm:$0xf]
        %v8383 = vld [vmem:[%s8367 + $0x3c] sm:$0xf]
        %v8388 = vunpack.c.l.b16 %v5986
        %v8389 = vunpack.c.l.b16 %v5987
        %v8390 = vunpack.c.l.b16 %v6022
        %v8391 = vunpack.c.l.b16 %v6023
        %v8392 = vpack.c.b16 %v8389, %v8388
        %v8393 = vpack.c.b16 %v8391, %v8390
        %v8412 = vunpack.c.l.b16 %v8368
        %v8413 = vunpack.c.l.b16 %v8369
        %v8414 = vunpack.c.l.b16 %v8370
        %v8415 = vunpack.c.l.b16 %v8371
        %v8416 = vunpack.c.l.b16 %v8372
        %v8417 = vunpack.c.l.b16 %v8373
        %v8418 = vunpack.c.l.b16 %v8374
        %v8419 = vunpack.c.l.b16 %v8375
        %v8420 = vunpack.c.l.b16 %v8376
        %v8421 = vunpack.c.l.b16 %v8377
        %v8422 = vunpack.c.l.b16 %v8378
        %v8423 = vunpack.c.l.b16 %v8379
        %v8424 = vunpack.c.l.b16 %v8380
        %v8425 = vunpack.c.l.b16 %v8381
        %v8426 = vunpack.c.l.b16 %v8382
        %v8427 = vunpack.c.l.b16 %v8383
        %v8428 = vpack.c.b16 %v8413, %v8412
        %v8429 = vpack.c.b16 %v8415, %v8414
        %v8430 = vpack.c.b16 %v8417, %v8416
        %v8431 = vpack.c.b16 %v8419, %v8418
        %v8432 = vpack.c.b16 %v8421, %v8420
        %v8433 = vpack.c.b16 %v8423, %v8422
        %v8434 = vpack.c.b16 %v8425, %v8424
        %v8435 = vpack.c.b16 %v8427, %v8426
        %8444 = vmatpush.bf16.msra.mxu0 %v8435
        %8445 = vmatpush.bf16.msra.mxu0 %v8434
        %8446 = vmatpush.bf16.msra.mxu0 %v8433
        %8447 = vmatpush.bf16.msra.mxu0 %v8432
        %8448 = vmatpush.bf16.msra.mxu0 %v8431
        %8449 = vmatpush.bf16.msra.mxu0 %v8430
        %8450 = vmatpush.bf16.msra.mxu0 %v8429
        %8451 = vmatpush.bf16.msra.mxu0 %v8428
        %8452 = vmatmul.bf16.gmra.mxu0 %v7373
        %v8453 = vpop.f32.mrf.mxu0
        %v8454 = vadd.f32 0.0, %v8453
        %v8455 = vpop.f32.mrf.mxu0
        %v8456 = vadd.f32 0.0, %v8455
        %8457 = vmatmul.bf16.gmra.mxu0 %v7374
        %v8458 = vpop.f32.mrf.mxu0
        %v8459 = vadd.f32 0.0, %v8458
        %v8460 = vpop.f32.mrf.mxu0
        %v8461 = vadd.f32 0.0, %v8460
        %8462 = vmatmul.bf16.gmra.mxu0 %v7375
        %v8463 = vpop.f32.mrf.mxu0
        %v8464 = vadd.f32 0.0, %v8463
        %v8465 = vpop.f32.mrf.mxu0
        %v8466 = vadd.f32 0.0, %v8465
        %8467 = vmatmul.bf16.gmra.mxu0 %v7376
        %v8468 = vpop.f32.mrf.mxu0
        %v8469 = vadd.f32 0.0, %v8468
        %v8470 = vpop.f32.mrf.mxu0
        %v8471 = vadd.f32 0.0, %v8470
        %8472 = vmatmul.bf16.gmra.mxu0 %v7377
        %v8473 = vpop.f32.mrf.mxu0
        %v8474 = vadd.f32 0.0, %v8473
        %v8475 = vpop.f32.mrf.mxu0
        %v8476 = vadd.f32 0.0, %v8475
        %8477 = vmatmul.bf16.gmra.mxu0 %v7378
        %v8478 = vpop.f32.mrf.mxu0
        %v8479 = vadd.f32 0.0, %v8478
        %v8480 = vpop.f32.mrf.mxu0
        %v8481 = vadd.f32 0.0, %v8480
        %8482 = vmatmul.bf16.gmra.mxu0 %v7379
        %v8483 = vpop.f32.mrf.mxu0
        %v8484 = vadd.f32 0.0, %v8483
        %v8485 = vpop.f32.mrf.mxu0
        %v8486 = vadd.f32 0.0, %v8485
        %8487 = vmatmul.bf16.gmra.mxu0 %v7380
        %v8488 = vpop.f32.mrf.mxu0
        %v8489 = vadd.f32 0.0, %v8488
        %v8490 = vpop.f32.mrf.mxu0
        %v8491 = vadd.f32 0.0, %v8490
        %8492 = vmatmul.bf16.gmra.mxu0 %v7381
        %v8493 = vpop.f32.mrf.mxu0
        %v8494 = vadd.f32 0.0, %v8493
        %v8495 = vpop.f32.mrf.mxu0
        %v8496 = vadd.f32 0.0, %v8495
        %8497 = vmatmul.bf16.gmra.mxu0 %v7382
        %v8498 = vpop.f32.mrf.mxu0
        %v8499 = vadd.f32 0.0, %v8498
        %v8500 = vpop.f32.mrf.mxu0
        %v8501 = vadd.f32 0.0, %v8500
        %8502 = vmatmul.bf16.gmra.mxu0 %v7383
        %v8503 = vpop.f32.mrf.mxu0
        %v8504 = vadd.f32 0.0, %v8503
        %v8505 = vpop.f32.mrf.mxu0
        %v8506 = vadd.f32 0.0, %v8505
        %8507 = vmatmul.bf16.gmra.mxu0 %v7384
        %v8508 = vpop.f32.mrf.mxu0
        %v8509 = vadd.f32 0.0, %v8508
        %v8510 = vpop.f32.mrf.mxu0
        %v8511 = vadd.f32 0.0, %v8510
        %8512 = vmatmul.bf16.gmra.mxu0 %v7385
        %v8513 = vpop.f32.mrf.mxu0
        %v8514 = vadd.f32 0.0, %v8513
        %v8515 = vpop.f32.mrf.mxu0
        %v8516 = vadd.f32 0.0, %v8515
        %8517 = vmatmul.bf16.gmra.mxu0 %v7386
        %v8518 = vpop.f32.mrf.mxu0
        %v8519 = vadd.f32 0.0, %v8518
        %v8520 = vpop.f32.mrf.mxu0
        %v8521 = vadd.f32 0.0, %v8520
        %8522 = vmatmul.bf16.gmra.mxu0 %v7387
        %v8523 = vpop.f32.mrf.mxu0
        %v8524 = vadd.f32 0.0, %v8523
        %v8525 = vpop.f32.mrf.mxu0
        %v8526 = vadd.f32 0.0, %v8525
        %8527 = vmatmul.bf16.gmra.mxu0 %v8392
        %v8528 = vpop.f32.mrf.mxu0
        %v8529 = vadd.f32 0.0, %v8528
        %v8530 = vpop.f32.mrf.mxu0
        %v8531 = vadd.f32 0.0, %v8530
        %8532 = vmatmul.bf16.gmra.mxu0 %v7389
        %v8533 = vpop.f32.mrf.mxu0
        %v8534 = vadd.f32 0.0, %v8533
        %v8535 = vpop.f32.mrf.mxu0
        %v8536 = vadd.f32 0.0, %v8535
        %8537 = vmatmul.bf16.gmra.mxu0 %v7390
        %v8538 = vpop.f32.mrf.mxu0
        %v8539 = vadd.f32 0.0, %v8538
        %v8540 = vpop.f32.mrf.mxu0
        %v8541 = vadd.f32 0.0, %v8540
        %8542 = vmatmul.bf16.gmra.mxu0 %v7391
        %v8543 = vpop.f32.mrf.mxu0
        %v8544 = vadd.f32 0.0, %v8543
        %v8545 = vpop.f32.mrf.mxu0
        %v8546 = vadd.f32 0.0, %v8545
        %8547 = vmatmul.bf16.gmra.mxu0 %v7392
        %v8548 = vpop.f32.mrf.mxu0
        %v8549 = vadd.f32 0.0, %v8548
        %v8550 = vpop.f32.mrf.mxu0
        %v8551 = vadd.f32 0.0, %v8550
        %8552 = vmatmul.bf16.gmra.mxu0 %v7393
        %v8553 = vpop.f32.mrf.mxu0
        %v8554 = vadd.f32 0.0, %v8553
        %v8555 = vpop.f32.mrf.mxu0
        %v8556 = vadd.f32 0.0, %v8555
        %8557 = vmatmul.bf16.gmra.mxu0 %v7394
        %v8558 = vpop.f32.mrf.mxu0
        %v8559 = vadd.f32 0.0, %v8558
        %v8560 = vpop.f32.mrf.mxu0
        %v8561 = vadd.f32 0.0, %v8560
        %8562 = vmatmul.bf16.gmra.mxu0 %v7395
        %v8563 = vpop.f32.mrf.mxu0
        %v8564 = vadd.f32 0.0, %v8563
        %v8565 = vpop.f32.mrf.mxu0
        %v8566 = vadd.f32 0.0, %v8565
        %8567 = vmatmul.bf16.gmra.mxu0 %v7396
        %v8568 = vpop.f32.mrf.mxu0
        %v8569 = vadd.f32 0.0, %v8568
        %v8570 = vpop.f32.mrf.mxu0
        %v8571 = vadd.f32 0.0, %v8570
        %8572 = vmatmul.bf16.gmra.mxu0 %v7397
        %v8573 = vpop.f32.mrf.mxu0
        %v8574 = vadd.f32 0.0, %v8573
        %v8575 = vpop.f32.mrf.mxu0
        %v8576 = vadd.f32 0.0, %v8575
        %8577 = vmatmul.bf16.gmra.mxu0 %v7398
        %v8578 = vpop.f32.mrf.mxu0
        %v8579 = vadd.f32 0.0, %v8578
        %v8580 = vpop.f32.mrf.mxu0
        %v8581 = vadd.f32 0.0, %v8580
        %8582 = vmatmul.bf16.gmra.mxu0 %v7399
        %v8583 = vpop.f32.mrf.mxu0
        %v8584 = vadd.f32 0.0, %v8583
        %v8585 = vpop.f32.mrf.mxu0
        %v8586 = vadd.f32 0.0, %v8585
        %8587 = vmatmul.bf16.gmra.mxu0 %v7400
        %v8588 = vpop.f32.mrf.mxu0
        %v8589 = vadd.f32 0.0, %v8588
        %v8590 = vpop.f32.mrf.mxu0
        %v8591 = vadd.f32 0.0, %v8590
        %8592 = vmatmul.bf16.gmra.mxu0 %v7401
        %v8593 = vpop.f32.mrf.mxu0
        %v8594 = vadd.f32 0.0, %v8593
        %v8595 = vpop.f32.mrf.mxu0
        %v8596 = vadd.f32 0.0, %v8595
        %8597 = vmatmul.bf16.gmra.mxu0 %v7402
        %v8598 = vpop.f32.mrf.mxu0
        %v8599 = vadd.f32 0.0, %v8598
        %v8600 = vpop.f32.mrf.mxu0
        %v8601 = vadd.f32 0.0, %v8600
        %8602 = vmatmul.bf16.gmra.mxu0 %v7403
        %v8603 = vpop.f32.mrf.mxu0
        %v8604 = vadd.f32 0.0, %v8603
        %v8605 = vpop.f32.mrf.mxu0
        %v8606 = vadd.f32 0.0, %v8605
        %8607 = vmatmul.bf16.gmra.mxu0 %v8393
        %v8608 = vpop.f32.mrf.mxu0
        %v8609 = vadd.f32 0.0, %v8608
        %v8610 = vpop.f32.mrf.mxu0
        %v8611 = vadd.f32 0.0, %v8610
        %8612 = vdwg.mxu0
        %v8613 = vadd.f32 %v8303, %v8454
        %v8614 = vadd.f32 %v8304, %v8456
        %v8615 = vadd.f32 %v8305, %v8459
        %v8616 = vadd.f32 %v8306, %v8461
        %v8617 = vadd.f32 %v8307, %v8464
        %v8618 = vadd.f32 %v8308, %v8466
        %v8619 = vadd.f32 %v8309, %v8469
        %v8620 = vadd.f32 %v8310, %v8471
        %v8621 = vadd.f32 %v8311, %v8474
        %v8622 = vadd.f32 %v8312, %v8476
        %v8623 = vadd.f32 %v8313, %v8479
        %v8624 = vadd.f32 %v8314, %v8481
        %v8625 = vadd.f32 %v8315, %v8484
        %v8626 = vadd.f32 %v8316, %v8486
        %v8627 = vadd.f32 %v8317, %v8489
        %v8628 = vadd.f32 %v8318, %v8491
        %v8629 = vadd.f32 %v8319, %v8494
        %v8630 = vadd.f32 %v8320, %v8496
        %v8631 = vadd.f32 %v8321, %v8499
        %v8632 = vadd.f32 %v8322, %v8501
        %v8633 = vadd.f32 %v8323, %v8504
        %v8634 = vadd.f32 %v8324, %v8506
        %v8635 = vadd.f32 %v8325, %v8509
        %v8636 = vadd.f32 %v8326, %v8511
        %v8637 = vadd.f32 %v8327, %v8514
        %v8638 = vadd.f32 %v8328, %v8516
        %v8639 = vadd.f32 %v8329, %v8519
        %v8640 = vadd.f32 %v8330, %v8521
        %v8641 = vadd.f32 %v8331, %v8524
        %v8642 = vadd.f32 %v8332, %v8526
        %v8643 = vadd.f32 %v8333, %v8529
        %v8644 = vadd.f32 %v8334, %v8531
        %v8645 = vadd.f32 %v8335, %v8534
        %v8646 = vadd.f32 %v8336, %v8536
        %v8647 = vadd.f32 %v8337, %v8539
        %v8648 = vadd.f32 %v8338, %v8541
        %v8649 = vadd.f32 %v8339, %v8544
        %v8650 = vadd.f32 %v8340, %v8546
        %v8651 = vadd.f32 %v8341, %v8549
        %v8652 = vadd.f32 %v8342, %v8551
        %v8653 = vadd.f32 %v8343, %v8554
        %v8654 = vadd.f32 %v8344, %v8556
        %v8655 = vadd.f32 %v8345, %v8559
        %v8656 = vadd.f32 %v8346, %v8561
        %v8657 = vadd.f32 %v8347, %v8564
        %v8658 = vadd.f32 %v8348, %v8566
        %v8659 = vadd.f32 %v8349, %v8569
        %v8660 = vadd.f32 %v8350, %v8571
        %v8661 = vadd.f32 %v8351, %v8574
        %v8662 = vadd.f32 %v8352, %v8576
        %v8663 = vadd.f32 %v8353, %v8579
        %v8664 = vadd.f32 %v8354, %v8581
        %v8665 = vadd.f32 %v8355, %v8584
        %v8666 = vadd.f32 %v8356, %v8586
        %v8667 = vadd.f32 %v8357, %v8589
        %v8668 = vadd.f32 %v8358, %v8591
        %v8669 = vadd.f32 %v8359, %v8594
        %v8670 = vadd.f32 %v8360, %v8596
        %v8671 = vadd.f32 %v8361, %v8599
        %v8672 = vadd.f32 %v8362, %v8601
        %v8673 = vadd.f32 %v8363, %v8604
        %v8674 = vadd.f32 %v8364, %v8606
        %v8675 = vadd.f32 %v8365, %v8609
        %v8676 = vadd.f32 %v8366, %v8611
        %v8678 = vshrl.u32 %v5986, 16
        %v8680 = vrot.slane %v8678, 4
        %v8681 = vshll.u32 %v5986, 16
        %v8683 = vrot.slane %v8681, 5
        %v8684 = vor.u32 %v8680, %v8683
        %v8685 = vrot.slane %v8684, 4
        %v8687 = vshll.u32 %v5987, 16
        %v8689 = vrot.slane %v8687, 5
        %v8690 = vsel %vm446, %v8685, %v8689
        %v8691 = vshrl.u32 %v5987, 16
        %v8693 = vrot.slane %v8691, 4
        %v8694 = vor.u32 %v8693, %v8689
        %v8695 = vrot.slane %v8694, 4
        %v8697 = vshll.u32 %v6042, 16
        %v8699 = vrot.slane %v8697, 5
        %v8700 = vsel %vm446, %v8695, %v8699
        %v8702 = vshrl.u32 %v6022, 16
        %v8704 = vrot.slane %v8702, 4
        %v8705 = vshll.u32 %v6022, 16
        %v8707 = vrot.slane %v8705, 5
        %v8708 = vor.u32 %v8704, %v8707
        %v8709 = vrot.slane %v8708, 4
        %v8711 = vshll.u32 %v6023, 16
        %v8713 = vrot.slane %v8711, 5
        %v8714 = vsel %vm446, %v8709, %v8713
        %v8715 = vshrl.u32 %v6023, 16
        %v8717 = vrot.slane %v8715, 4
        %v8718 = vor.u32 %v8717, %v8713
        %v8719 = vrot.slane %v8718, 4
        %v8721 = vshll.u32 %v6060, 16
        %v8723 = vrot.slane %v8721, 5
        %v8724 = vsel %vm446, %v8719, %v8723
        %s8725 = scalar_lea.vmem %s3, 256
        %v8726 = vld [vmem:[%s8725] sm:$0xf]
        %v8727 = vld [vmem:[%s8725 + $0x4] sm:$0xf]
        %v8728 = vld [vmem:[%s8725 + $0x8] sm:$0xf]
        %v8729 = vld [vmem:[%s8725 + $0xc] sm:$0xf]
        %v8730 = vld [vmem:[%s8725 + $0x10] sm:$0xf]
        %v8731 = vld [vmem:[%s8725 + $0x14] sm:$0xf]
        %v8732 = vld [vmem:[%s8725 + $0x18] sm:$0xf]
        %v8733 = vld [vmem:[%s8725 + $0x1c] sm:$0xf]
        %v8734 = vld [vmem:[%s8725 + $0x20] sm:$0xf]
        %v8735 = vld [vmem:[%s8725 + $0x24] sm:$0xf]
        %v8736 = vld [vmem:[%s8725 + $0x28] sm:$0xf]
        %v8737 = vld [vmem:[%s8725 + $0x2c] sm:$0xf]
        %v8738 = vld [vmem:[%s8725 + $0x30] sm:$0xf]
        %v8739 = vld [vmem:[%s8725 + $0x34] sm:$0xf]
        %v8740 = vld [vmem:[%s8725 + $0x38] sm:$0xf]
        %v8741 = vld [vmem:[%s8725 + $0x3c] sm:$0xf]
        %v8742 = vunpack.c.l.b16 %v8690
        %v8743 = vunpack.c.l.b16 %v8700
        %v8744 = vunpack.c.l.b16 %v8714
        %v8745 = vunpack.c.l.b16 %v8724
        %v8746 = vpack.c.b16 %v8743, %v8742
        %v8747 = vpack.c.b16 %v8745, %v8744
        %v8766 = vunpack.c.l.b16 %v8726
        %v8767 = vunpack.c.l.b16 %v8727
        %v8768 = vunpack.c.l.b16 %v8728
        %v8769 = vunpack.c.l.b16 %v8729
        %v8770 = vunpack.c.l.b16 %v8730
        %v8771 = vunpack.c.l.b16 %v8731
        %v8772 = vunpack.c.l.b16 %v8732
        %v8773 = vunpack.c.l.b16 %v8733
        %v8774 = vunpack.c.l.b16 %v8734
        %v8775 = vunpack.c.l.b16 %v8735
        %v8776 = vunpack.c.l.b16 %v8736
        %v8777 = vunpack.c.l.b16 %v8737
        %v8778 = vunpack.c.l.b16 %v8738
        %v8779 = vunpack.c.l.b16 %v8739
        %v8780 = vunpack.c.l.b16 %v8740
        %v8781 = vunpack.c.l.b16 %v8741
        %v8782 = vpack.c.b16 %v8767, %v8766
        %v8783 = vpack.c.b16 %v8769, %v8768
        %v8784 = vpack.c.b16 %v8771, %v8770
        %v8785 = vpack.c.b16 %v8773, %v8772
        %v8786 = vpack.c.b16 %v8775, %v8774
        %v8787 = vpack.c.b16 %v8777, %v8776
        %v8788 = vpack.c.b16 %v8779, %v8778
        %v8789 = vpack.c.b16 %v8781, %v8780
        %8798 = vmatpush.bf16.msra.mxu0 %v8789
        %8799 = vmatpush.bf16.msra.mxu0 %v8788
        %8800 = vmatpush.bf16.msra.mxu0 %v8787
        %8801 = vmatpush.bf16.msra.mxu0 %v8786
        %8802 = vmatpush.bf16.msra.mxu0 %v8785
        %8803 = vmatpush.bf16.msra.mxu0 %v8784
        %8804 = vmatpush.bf16.msra.mxu0 %v8783
        %8805 = vmatpush.bf16.msra.mxu0 %v8782
        %8806 = vmatmul.bf16.gmra.mxu0 %v6964
        %v8807 = vpop.f32.mrf.mxu0
        %v8808 = vadd.f32 0.0, %v8807
        %v8809 = vpop.f32.mrf.mxu0
        %v8810 = vadd.f32 0.0, %v8809
        %8811 = vmatmul.bf16.gmra.mxu0 %v6965
        %v8812 = vpop.f32.mrf.mxu0
        %v8813 = vadd.f32 0.0, %v8812
        %v8814 = vpop.f32.mrf.mxu0
        %v8815 = vadd.f32 0.0, %v8814
        %8816 = vmatmul.bf16.gmra.mxu0 %v6966
        %v8817 = vpop.f32.mrf.mxu0
        %v8818 = vadd.f32 0.0, %v8817
        %v8819 = vpop.f32.mrf.mxu0
        %v8820 = vadd.f32 0.0, %v8819
        %8821 = vmatmul.bf16.gmra.mxu0 %v6967
        %v8822 = vpop.f32.mrf.mxu0
        %v8823 = vadd.f32 0.0, %v8822
        %v8824 = vpop.f32.mrf.mxu0
        %v8825 = vadd.f32 0.0, %v8824
        %8826 = vmatmul.bf16.gmra.mxu0 %v6968
        %v8827 = vpop.f32.mrf.mxu0
        %v8828 = vadd.f32 0.0, %v8827
        %v8829 = vpop.f32.mrf.mxu0
        %v8830 = vadd.f32 0.0, %v8829
        %8831 = vmatmul.bf16.gmra.mxu0 %v6969
        %v8832 = vpop.f32.mrf.mxu0
        %v8833 = vadd.f32 0.0, %v8832
        %v8834 = vpop.f32.mrf.mxu0
        %v8835 = vadd.f32 0.0, %v8834
        %8836 = vmatmul.bf16.gmra.mxu0 %v6970
        %v8837 = vpop.f32.mrf.mxu0
        %v8838 = vadd.f32 0.0, %v8837
        %v8839 = vpop.f32.mrf.mxu0
        %v8840 = vadd.f32 0.0, %v8839
        %8841 = vmatmul.bf16.gmra.mxu0 %v6971
        %v8842 = vpop.f32.mrf.mxu0
        %v8843 = vadd.f32 0.0, %v8842
        %v8844 = vpop.f32.mrf.mxu0
        %v8845 = vadd.f32 0.0, %v8844
        %8846 = vmatmul.bf16.gmra.mxu0 %v6972
        %v8847 = vpop.f32.mrf.mxu0
        %v8848 = vadd.f32 0.0, %v8847
        %v8849 = vpop.f32.mrf.mxu0
        %v8850 = vadd.f32 0.0, %v8849
        %8851 = vmatmul.bf16.gmra.mxu0 %v6973
        %v8852 = vpop.f32.mrf.mxu0
        %v8853 = vadd.f32 0.0, %v8852
        %v8854 = vpop.f32.mrf.mxu0
        %v8855 = vadd.f32 0.0, %v8854
        %8856 = vmatmul.bf16.gmra.mxu0 %v6974
        %v8857 = vpop.f32.mrf.mxu0
        %v8858 = vadd.f32 0.0, %v8857
        %v8859 = vpop.f32.mrf.mxu0
        %v8860 = vadd.f32 0.0, %v8859
        %8861 = vmatmul.bf16.gmra.mxu0 %v6975
        %v8862 = vpop.f32.mrf.mxu0
        %v8863 = vadd.f32 0.0, %v8862
        %v8864 = vpop.f32.mrf.mxu0
        %v8865 = vadd.f32 0.0, %v8864
        %8866 = vmatmul.bf16.gmra.mxu0 %v6976
        %v8867 = vpop.f32.mrf.mxu0
        %v8868 = vadd.f32 0.0, %v8867
        %v8869 = vpop.f32.mrf.mxu0
        %v8870 = vadd.f32 0.0, %v8869
        %8871 = vmatmul.bf16.gmra.mxu0 %v6977
        %v8872 = vpop.f32.mrf.mxu0
        %v8873 = vadd.f32 0.0, %v8872
        %v8874 = vpop.f32.mrf.mxu0
        %v8875 = vadd.f32 0.0, %v8874
        %8876 = vmatmul.bf16.gmra.mxu0 %v6978
        %v8877 = vpop.f32.mrf.mxu0
        %v8878 = vadd.f32 0.0, %v8877
        %v8879 = vpop.f32.mrf.mxu0
        %v8880 = vadd.f32 0.0, %v8879
        %8881 = vmatmul.bf16.gmra.mxu0 %v8746
        %v8882 = vpop.f32.mrf.mxu0
        %v8883 = vadd.f32 0.0, %v8882
        %v8884 = vpop.f32.mrf.mxu0
        %v8885 = vadd.f32 0.0, %v8884
        %8886 = vmatmul.bf16.gmra.mxu0 %v6980
        %v8887 = vpop.f32.mrf.mxu0
        %v8888 = vadd.f32 0.0, %v8887
        %v8889 = vpop.f32.mrf.mxu0
        %v8890 = vadd.f32 0.0, %v8889
        %8891 = vmatmul.bf16.gmra.mxu0 %v6981
        %v8892 = vpop.f32.mrf.mxu0
        %v8893 = vadd.f32 0.0, %v8892
        %v8894 = vpop.f32.mrf.mxu0
        %v8895 = vadd.f32 0.0, %v8894
        %8896 = vmatmul.bf16.gmra.mxu0 %v6982
        %v8897 = vpop.f32.mrf.mxu0
        %v8898 = vadd.f32 0.0, %v8897
        %v8899 = vpop.f32.mrf.mxu0
        %v8900 = vadd.f32 0.0, %v8899
        %8901 = vmatmul.bf16.gmra.mxu0 %v6983
        %v8902 = vpop.f32.mrf.mxu0
        %v8903 = vadd.f32 0.0, %v8902
        %v8904 = vpop.f32.mrf.mxu0
        %v8905 = vadd.f32 0.0, %v8904
        %8906 = vmatmul.bf16.gmra.mxu0 %v6984
        %v8907 = vpop.f32.mrf.mxu0
        %v8908 = vadd.f32 0.0, %v8907
        %v8909 = vpop.f32.mrf.mxu0
        %v8910 = vadd.f32 0.0, %v8909
        %8911 = vmatmul.bf16.gmra.mxu0 %v6985
        %v8912 = vpop.f32.mrf.mxu0
        %v8913 = vadd.f32 0.0, %v8912
        %v8914 = vpop.f32.mrf.mxu0
        %v8915 = vadd.f32 0.0, %v8914
        %8916 = vmatmul.bf16.gmra.mxu0 %v6986
        %v8917 = vpop.f32.mrf.mxu0
        %v8918 = vadd.f32 0.0, %v8917
        %v8919 = vpop.f32.mrf.mxu0
        %v8920 = vadd.f32 0.0, %v8919
        %8921 = vmatmul.bf16.gmra.mxu0 %v6987
        %v8922 = vpop.f32.mrf.mxu0
        %v8923 = vadd.f32 0.0, %v8922
        %v8924 = vpop.f32.mrf.mxu0
        %v8925 = vadd.f32 0.0, %v8924
        %8926 = vmatmul.bf16.gmra.mxu0 %v6988
        %v8927 = vpop.f32.mrf.mxu0
        %v8928 = vadd.f32 0.0, %v8927
        %v8929 = vpop.f32.mrf.mxu0
        %v8930 = vadd.f32 0.0, %v8929
        %8931 = vmatmul.bf16.gmra.mxu0 %v6989
        %v8932 = vpop.f32.mrf.mxu0
        %v8933 = vadd.f32 0.0, %v8932
        %v8934 = vpop.f32.mrf.mxu0
        %v8935 = vadd.f32 0.0, %v8934
        %8936 = vmatmul.bf16.gmra.mxu0 %v6990
        %v8937 = vpop.f32.mrf.mxu0
        %v8938 = vadd.f32 0.0, %v8937
        %v8939 = vpop.f32.mrf.mxu0
        %v8940 = vadd.f32 0.0, %v8939
        %8941 = vmatmul.bf16.gmra.mxu0 %v6991
        %v8942 = vpop.f32.mrf.mxu0
        %v8943 = vadd.f32 0.0, %v8942
        %v8944 = vpop.f32.mrf.mxu0
        %v8945 = vadd.f32 0.0, %v8944
        %8946 = vmatmul.bf16.gmra.mxu0 %v6992
        %v8947 = vpop.f32.mrf.mxu0
        %v8948 = vadd.f32 0.0, %v8947
        %v8949 = vpop.f32.mrf.mxu0
        %v8950 = vadd.f32 0.0, %v8949
        %8951 = vmatmul.bf16.gmra.mxu0 %v6993
        %v8952 = vpop.f32.mrf.mxu0
        %v8953 = vadd.f32 0.0, %v8952
        %v8954 = vpop.f32.mrf.mxu0
        %v8955 = vadd.f32 0.0, %v8954
        %8956 = vmatmul.bf16.gmra.mxu0 %v6994
        %v8957 = vpop.f32.mrf.mxu0
        %v8958 = vadd.f32 0.0, %v8957
        %v8959 = vpop.f32.mrf.mxu0
        %v8960 = vadd.f32 0.0, %v8959
        %8961 = vmatmul.bf16.gmra.mxu0 %v8747
        %v8962 = vpop.f32.mrf.mxu0
        %v8963 = vadd.f32 0.0, %v8962
        %v8964 = vpop.f32.mrf.mxu0
        %v8965 = vadd.f32 0.0, %v8964
        %8966 = vdwg.mxu0
        %v8967 = vadd.f32 %v8613, %v8808
        %v8968 = vadd.f32 %v8614, %v8810
        %v8969 = vadd.f32 %v8615, %v8813
        %v8970 = vadd.f32 %v8616, %v8815
        %v8971 = vadd.f32 %v8617, %v8818
        %v8972 = vadd.f32 %v8618, %v8820
        %v8973 = vadd.f32 %v8619, %v8823
        %v8974 = vadd.f32 %v8620, %v8825
        %v8975 = vadd.f32 %v8621, %v8828
        %v8976 = vadd.f32 %v8622, %v8830
        %v8977 = vadd.f32 %v8623, %v8833
        %v8978 = vadd.f32 %v8624, %v8835
        %v8979 = vadd.f32 %v8625, %v8838
        %v8980 = vadd.f32 %v8626, %v8840
        %v8981 = vadd.f32 %v8627, %v8843
        %v8982 = vadd.f32 %v8628, %v8845
        %v8983 = vadd.f32 %v8629, %v8848
        %v8984 = vadd.f32 %v8630, %v8850
        %v8985 = vadd.f32 %v8631, %v8853
        %v8986 = vadd.f32 %v8632, %v8855
        %v8987 = vadd.f32 %v8633, %v8858
        %v8988 = vadd.f32 %v8634, %v8860
        %v8989 = vadd.f32 %v8635, %v8863
        %v8990 = vadd.f32 %v8636, %v8865
        %v8991 = vadd.f32 %v8637, %v8868
        %v8992 = vadd.f32 %v8638, %v8870
        %v8993 = vadd.f32 %v8639, %v8873
        %v8994 = vadd.f32 %v8640, %v8875
        %v8995 = vadd.f32 %v8641, %v8878
        %v8996 = vadd.f32 %v8642, %v8880
        %v8997 = vadd.f32 %v8643, %v8883
        %v8998 = vadd.f32 %v8644, %v8885
        %v8999 = vadd.f32 %v8645, %v8888
        %v9000 = vadd.f32 %v8646, %v8890
        %v9001 = vadd.f32 %v8647, %v8893
        %v9002 = vadd.f32 %v8648, %v8895
        %v9003 = vadd.f32 %v8649, %v8898
        %v9004 = vadd.f32 %v8650, %v8900
        %v9005 = vadd.f32 %v8651, %v8903
        %v9006 = vadd.f32 %v8652, %v8905
        %v9007 = vadd.f32 %v8653, %v8908
        %v9008 = vadd.f32 %v8654, %v8910
        %v9009 = vadd.f32 %v8655, %v8913
        %v9010 = vadd.f32 %v8656, %v8915
        %v9011 = vadd.f32 %v8657, %v8918
        %v9012 = vadd.f32 %v8658, %v8920
        %v9013 = vadd.f32 %v8659, %v8923
        %v9014 = vadd.f32 %v8660, %v8925
        %v9015 = vadd.f32 %v8661, %v8928
        %v9016 = vadd.f32 %v8662, %v8930
        %v9017 = vadd.f32 %v8663, %v8933
        %v9018 = vadd.f32 %v8664, %v8935
        %v9019 = vadd.f32 %v8665, %v8938
        %v9020 = vadd.f32 %v8666, %v8940
        %v9021 = vadd.f32 %v8667, %v8943
        %v9022 = vadd.f32 %v8668, %v8945
        %v9023 = vadd.f32 %v8669, %v8948
        %v9024 = vadd.f32 %v8670, %v8950
        %v9025 = vadd.f32 %v8671, %v8953
        %v9026 = vadd.f32 %v8672, %v8955
        %v9027 = vadd.f32 %v8673, %v8958
        %v9028 = vadd.f32 %v8674, %v8960
        %v9029 = vadd.f32 %v8675, %v8963
        %v9030 = vadd.f32 %v8676, %v8965
        %v9035 = vrot.slane %v6078, 5
        %v9036 = vrot.slane %v9035, 4
        %v9037 = vrot.slane %v5987, 5
        %v9038 = vsel %vm2052, %v9036, %v9037
        %v9039 = vrot.slane %v9037, 4
        %v9040 = vrot.slane %v6042, 5
        %v9041 = vsel %vm2052, %v9039, %v9040
        %v9042 = vrot.slane %v6096, 5
        %v9043 = vrot.slane %v9042, 4
        %v9044 = vrot.slane %v6023, 5
        %v9045 = vsel %vm2052, %v9043, %v9044
        %v9046 = vrot.slane %v9044, 4
        %v9047 = vrot.slane %v6060, 5
        %v9048 = vsel %vm2052, %v9046, %v9047
        %s9049 = scalar_lea.vmem %s3, 320
        %v9050 = vld [vmem:[%s9049] sm:$0xf]
        %v9051 = vld [vmem:[%s9049 + $0x4] sm:$0xf]
        %v9052 = vld [vmem:[%s9049 + $0x8] sm:$0xf]
        %v9053 = vld [vmem:[%s9049 + $0xc] sm:$0xf]
        %v9054 = vld [vmem:[%s9049 + $0x10] sm:$0xf]
        %v9055 = vld [vmem:[%s9049 + $0x14] sm:$0xf]
        %v9056 = vld [vmem:[%s9049 + $0x18] sm:$0xf]
        %v9057 = vld [vmem:[%s9049 + $0x1c] sm:$0xf]
        %v9058 = vld [vmem:[%s9049 + $0x20] sm:$0xf]
        %v9059 = vld [vmem:[%s9049 + $0x24] sm:$0xf]
        %v9060 = vld [vmem:[%s9049 + $0x28] sm:$0xf]
        %v9061 = vld [vmem:[%s9049 + $0x2c] sm:$0xf]
        %v9062 = vld [vmem:[%s9049 + $0x30] sm:$0xf]
        %v9063 = vld [vmem:[%s9049 + $0x34] sm:$0xf]
        %v9064 = vld [vmem:[%s9049 + $0x38] sm:$0xf]
        %v9065 = vld [vmem:[%s9049 + $0x3c] sm:$0xf]
        %v9066 = vunpack.c.l.b16 %v9038
        %v9067 = vunpack.c.l.b16 %v9041
        %v9068 = vunpack.c.l.b16 %v9045
        %v9069 = vunpack.c.l.b16 %v9048
        %v9070 = vpack.c.b16 %v9067, %v9066
        %v9071 = vpack.c.b16 %v9069, %v9068
        %v9090 = vunpack.c.l.b16 %v9050
        %v9091 = vunpack.c.l.b16 %v9051
        %v9092 = vunpack.c.l.b16 %v9052
        %v9093 = vunpack.c.l.b16 %v9053
        %v9094 = vunpack.c.l.b16 %v9054
        %v9095 = vunpack.c.l.b16 %v9055
        %v9096 = vunpack.c.l.b16 %v9056
        %v9097 = vunpack.c.l.b16 %v9057
        %v9098 = vunpack.c.l.b16 %v9058
        %v9099 = vunpack.c.l.b16 %v9059
        %v9100 = vunpack.c.l.b16 %v9060
        %v9101 = vunpack.c.l.b16 %v9061
        %v9102 = vunpack.c.l.b16 %v9062
        %v9103 = vunpack.c.l.b16 %v9063
        %v9104 = vunpack.c.l.b16 %v9064
        %v9105 = vunpack.c.l.b16 %v9065
        %v9106 = vpack.c.b16 %v9091, %v9090
        %v9107 = vpack.c.b16 %v9093, %v9092
        %v9108 = vpack.c.b16 %v9095, %v9094
        %v9109 = vpack.c.b16 %v9097, %v9096
        %v9110 = vpack.c.b16 %v9099, %v9098
        %v9111 = vpack.c.b16 %v9101, %v9100
        %v9112 = vpack.c.b16 %v9103, %v9102
        %v9113 = vpack.c.b16 %v9105, %v9104
        %9122 = vmatpush.bf16.msra.mxu0 %v9113
        %9123 = vmatpush.bf16.msra.mxu0 %v9112
        %9124 = vmatpush.bf16.msra.mxu0 %v9111
        %9125 = vmatpush.bf16.msra.mxu0 %v9110
        %9126 = vmatpush.bf16.msra.mxu0 %v9109
        %9127 = vmatpush.bf16.msra.mxu0 %v9108
        %9128 = vmatpush.bf16.msra.mxu0 %v9107
        %9129 = vmatpush.bf16.msra.mxu0 %v9106
        %9130 = vmatmul.bf16.gmra.mxu0 %v8023
        %v9131 = vpop.f32.mrf.mxu0
        %v9132 = vadd.f32 0.0, %v9131
        %v9133 = vpop.f32.mrf.mxu0
        %v9134 = vadd.f32 0.0, %v9133
        %9135 = vmatmul.bf16.gmra.mxu0 %v8024
        %v9136 = vpop.f32.mrf.mxu0
        %v9137 = vadd.f32 0.0, %v9136
        %v9138 = vpop.f32.mrf.mxu0
        %v9139 = vadd.f32 0.0, %v9138
        %9140 = vmatmul.bf16.gmra.mxu0 %v8025
        %v9141 = vpop.f32.mrf.mxu0
        %v9142 = vadd.f32 0.0, %v9141
        %v9143 = vpop.f32.mrf.mxu0
        %v9144 = vadd.f32 0.0, %v9143
        %9145 = vmatmul.bf16.gmra.mxu0 %v8026
        %v9146 = vpop.f32.mrf.mxu0
        %v9147 = vadd.f32 0.0, %v9146
        %v9148 = vpop.f32.mrf.mxu0
        %v9149 = vadd.f32 0.0, %v9148
        %9150 = vmatmul.bf16.gmra.mxu0 %v8027
        %v9151 = vpop.f32.mrf.mxu0
        %v9152 = vadd.f32 0.0, %v9151
        %v9153 = vpop.f32.mrf.mxu0
        %v9154 = vadd.f32 0.0, %v9153
        %9155 = vmatmul.bf16.gmra.mxu0 %v8028
        %v9156 = vpop.f32.mrf.mxu0
        %v9157 = vadd.f32 0.0, %v9156
        %v9158 = vpop.f32.mrf.mxu0
        %v9159 = vadd.f32 0.0, %v9158
        %9160 = vmatmul.bf16.gmra.mxu0 %v8029
        %v9161 = vpop.f32.mrf.mxu0
        %v9162 = vadd.f32 0.0, %v9161
        %v9163 = vpop.f32.mrf.mxu0
        %v9164 = vadd.f32 0.0, %v9163
        %9165 = vmatmul.bf16.gmra.mxu0 %v8030
        %v9166 = vpop.f32.mrf.mxu0
        %v9167 = vadd.f32 0.0, %v9166
        %v9168 = vpop.f32.mrf.mxu0
        %v9169 = vadd.f32 0.0, %v9168
        %9170 = vmatmul.bf16.gmra.mxu0 %v8031
        %v9171 = vpop.f32.mrf.mxu0
        %v9172 = vadd.f32 0.0, %v9171
        %v9173 = vpop.f32.mrf.mxu0
        %v9174 = vadd.f32 0.0, %v9173
        %9175 = vmatmul.bf16.gmra.mxu0 %v8032
        %v9176 = vpop.f32.mrf.mxu0
        %v9177 = vadd.f32 0.0, %v9176
        %v9178 = vpop.f32.mrf.mxu0
        %v9179 = vadd.f32 0.0, %v9178
        %9180 = vmatmul.bf16.gmra.mxu0 %v8033
        %v9181 = vpop.f32.mrf.mxu0
        %v9182 = vadd.f32 0.0, %v9181
        %v9183 = vpop.f32.mrf.mxu0
        %v9184 = vadd.f32 0.0, %v9183
        %9185 = vmatmul.bf16.gmra.mxu0 %v8034
        %v9186 = vpop.f32.mrf.mxu0
        %v9187 = vadd.f32 0.0, %v9186
        %v9188 = vpop.f32.mrf.mxu0
        %v9189 = vadd.f32 0.0, %v9188
        %9190 = vmatmul.bf16.gmra.mxu0 %v8035
        %v9191 = vpop.f32.mrf.mxu0
        %v9192 = vadd.f32 0.0, %v9191
        %v9193 = vpop.f32.mrf.mxu0
        %v9194 = vadd.f32 0.0, %v9193
        %9195 = vmatmul.bf16.gmra.mxu0 %v8036
        %v9196 = vpop.f32.mrf.mxu0
        %v9197 = vadd.f32 0.0, %v9196
        %v9198 = vpop.f32.mrf.mxu0
        %v9199 = vadd.f32 0.0, %v9198
        %9200 = vmatmul.bf16.gmra.mxu0 %v8037
        %v9201 = vpop.f32.mrf.mxu0
        %v9202 = vadd.f32 0.0, %v9201
        %v9203 = vpop.f32.mrf.mxu0
        %v9204 = vadd.f32 0.0, %v9203
        %9205 = vmatmul.bf16.gmra.mxu0 %v9070
        %v9206 = vpop.f32.mrf.mxu0
        %v9207 = vadd.f32 0.0, %v9206
        %v9208 = vpop.f32.mrf.mxu0
        %v9209 = vadd.f32 0.0, %v9208
        %9210 = vmatmul.bf16.gmra.mxu0 %v8039
        %v9211 = vpop.f32.mrf.mxu0
        %v9212 = vadd.f32 0.0, %v9211
        %v9213 = vpop.f32.mrf.mxu0
        %v9214 = vadd.f32 0.0, %v9213
        %9215 = vmatmul.bf16.gmra.mxu0 %v8040
        %v9216 = vpop.f32.mrf.mxu0
        %v9217 = vadd.f32 0.0, %v9216
        %v9218 = vpop.f32.mrf.mxu0
        %v9219 = vadd.f32 0.0, %v9218
        %9220 = vmatmul.bf16.gmra.mxu0 %v8041
        %v9221 = vpop.f32.mrf.mxu0
        %v9222 = vadd.f32 0.0, %v9221
        %v9223 = vpop.f32.mrf.mxu0
        %v9224 = vadd.f32 0.0, %v9223
        %9225 = vmatmul.bf16.gmra.mxu0 %v8042
        %v9226 = vpop.f32.mrf.mxu0
        %v9227 = vadd.f32 0.0, %v9226
        %v9228 = vpop.f32.mrf.mxu0
        %v9229 = vadd.f32 0.0, %v9228
        %9230 = vmatmul.bf16.gmra.mxu0 %v8043
        %v9231 = vpop.f32.mrf.mxu0
        %v9232 = vadd.f32 0.0, %v9231
        %v9233 = vpop.f32.mrf.mxu0
        %v9234 = vadd.f32 0.0, %v9233
        %9235 = vmatmul.bf16.gmra.mxu0 %v8044
        %v9236 = vpop.f32.mrf.mxu0
        %v9237 = vadd.f32 0.0, %v9236
        %v9238 = vpop.f32.mrf.mxu0
        %v9239 = vadd.f32 0.0, %v9238
        %9240 = vmatmul.bf16.gmra.mxu0 %v8045
        %v9241 = vpop.f32.mrf.mxu0
        %v9242 = vadd.f32 0.0, %v9241
        %v9243 = vpop.f32.mrf.mxu0
        %v9244 = vadd.f32 0.0, %v9243
        %9245 = vmatmul.bf16.gmra.mxu0 %v8046
        %v9246 = vpop.f32.mrf.mxu0
        %v9247 = vadd.f32 0.0, %v9246
        %v9248 = vpop.f32.mrf.mxu0
        %v9249 = vadd.f32 0.0, %v9248
        %9250 = vmatmul.bf16.gmra.mxu0 %v8047
        %v9251 = vpop.f32.mrf.mxu0
        %v9252 = vadd.f32 0.0, %v9251
        %v9253 = vpop.f32.mrf.mxu0
        %v9254 = vadd.f32 0.0, %v9253
        %9255 = vmatmul.bf16.gmra.mxu0 %v8048
        %v9256 = vpop.f32.mrf.mxu0
        %v9257 = vadd.f32 0.0, %v9256
        %v9258 = vpop.f32.mrf.mxu0
        %v9259 = vadd.f32 0.0, %v9258
        %9260 = vmatmul.bf16.gmra.mxu0 %v8049
        %v9261 = vpop.f32.mrf.mxu0
        %v9262 = vadd.f32 0.0, %v9261
        %v9263 = vpop.f32.mrf.mxu0
        %v9264 = vadd.f32 0.0, %v9263
        %9265 = vmatmul.bf16.gmra.mxu0 %v8050
        %v9266 = vpop.f32.mrf.mxu0
        %v9267 = vadd.f32 0.0, %v9266
        %v9268 = vpop.f32.mrf.mxu0
        %v9269 = vadd.f32 0.0, %v9268
        %9270 = vmatmul.bf16.gmra.mxu0 %v8051
        %v9271 = vpop.f32.mrf.mxu0
        %v9272 = vadd.f32 0.0, %v9271
        %v9273 = vpop.f32.mrf.mxu0
        %v9274 = vadd.f32 0.0, %v9273
        %9275 = vmatmul.bf16.gmra.mxu0 %v8052
        %v9276 = vpop.f32.mrf.mxu0
        %v9277 = vadd.f32 0.0, %v9276
        %v9278 = vpop.f32.mrf.mxu0
        %v9279 = vadd.f32 0.0, %v9278
        %9280 = vmatmul.bf16.gmra.mxu0 %v8053
        %v9281 = vpop.f32.mrf.mxu0
        %v9282 = vadd.f32 0.0, %v9281
        %v9283 = vpop.f32.mrf.mxu0
        %v9284 = vadd.f32 0.0, %v9283
        %9285 = vmatmul.bf16.gmra.mxu0 %v9071
        %v9286 = vpop.f32.mrf.mxu0
        %v9287 = vadd.f32 0.0, %v9286
        %v9288 = vpop.f32.mrf.mxu0
        %v9289 = vadd.f32 0.0, %v9288
        %9290 = vdwg.mxu0
        %v9291 = vadd.f32 %v8967, %v9132
        %v9292 = vadd.f32 %v8968, %v9134
        %v9293 = vadd.f32 %v8969, %v9137
        %v9294 = vadd.f32 %v8970, %v9139
        %v9295 = vadd.f32 %v8971, %v9142
        %v9296 = vadd.f32 %v8972, %v9144
        %v9297 = vadd.f32 %v8973, %v9147
        %v9298 = vadd.f32 %v8974, %v9149
        %v9299 = vadd.f32 %v8975, %v9152
        %v9300 = vadd.f32 %v8976, %v9154
        %v9301 = vadd.f32 %v8977, %v9157
        %v9302 = vadd.f32 %v8978, %v9159
        %v9303 = vadd.f32 %v8979, %v9162
        %v9304 = vadd.f32 %v8980, %v9164
        %v9305 = vadd.f32 %v8981, %v9167
        %v9306 = vadd.f32 %v8982, %v9169
        %v9307 = vadd.f32 %v8983, %v9172
        %v9308 = vadd.f32 %v8984, %v9174
        %v9309 = vadd.f32 %v8985, %v9177
        %v9310 = vadd.f32 %v8986, %v9179
        %v9311 = vadd.f32 %v8987, %v9182
        %v9312 = vadd.f32 %v8988, %v9184
        %v9313 = vadd.f32 %v8989, %v9187
        %v9314 = vadd.f32 %v8990, %v9189
        %v9315 = vadd.f32 %v8991, %v9192
        %v9316 = vadd.f32 %v8992, %v9194
        %v9317 = vadd.f32 %v8993, %v9197
        %v9318 = vadd.f32 %v8994, %v9199
        %v9319 = vadd.f32 %v8995, %v9202
        %v9320 = vadd.f32 %v8996, %v9204
        %v9321 = vadd.f32 %v8997, %v9207
        %v9322 = vadd.f32 %v8998, %v9209
        %v9323 = vadd.f32 %v8999, %v9212
        %v9324 = vadd.f32 %v9000, %v9214
        %v9325 = vadd.f32 %v9001, %v9217
        %v9326 = vadd.f32 %v9002, %v9219
        %v9327 = vadd.f32 %v9003, %v9222
        %v9328 = vadd.f32 %v9004, %v9224
        %v9329 = vadd.f32 %v9005, %v9227
        %v9330 = vadd.f32 %v9006, %v9229
        %v9331 = vadd.f32 %v9007, %v9232
        %v9332 = vadd.f32 %v9008, %v9234
        %v9333 = vadd.f32 %v9009, %v9237
        %v9334 = vadd.f32 %v9010, %v9239
        %v9335 = vadd.f32 %v9011, %v9242
        %v9336 = vadd.f32 %v9012, %v9244
        %v9337 = vadd.f32 %v9013, %v9247
        %v9338 = vadd.f32 %v9014, %v9249
        %v9339 = vadd.f32 %v9015, %v9252
        %v9340 = vadd.f32 %v9016, %v9254
        %v9341 = vadd.f32 %v9017, %v9257
        %v9342 = vadd.f32 %v9018, %v9259
        %v9343 = vadd.f32 %v9019, %v9262
        %v9344 = vadd.f32 %v9020, %v9264
        %v9345 = vadd.f32 %v9021, %v9267
        %v9346 = vadd.f32 %v9022, %v9269
        %v9347 = vadd.f32 %v9023, %v9272
        %v9348 = vadd.f32 %v9024, %v9274
        %v9349 = vadd.f32 %v9025, %v9277
        %v9350 = vadd.f32 %v9026, %v9279
        %v9351 = vadd.f32 %v9027, %v9282
        %v9352 = vadd.f32 %v9028, %v9284
        %v9353 = vadd.f32 %v9029, %v9287
        %v9354 = vadd.f32 %v9030, %v9289
        %s9355 = scalar_lea.vmem %s3, 384
        %v9356 = vld [vmem:[%s9355] sm:$0xf]
        %v9357 = vld [vmem:[%s9355 + $0x4] sm:$0xf]
        %v9358 = vld [vmem:[%s9355 + $0x8] sm:$0xf]
        %v9359 = vld [vmem:[%s9355 + $0xc] sm:$0xf]
        %v9360 = vld [vmem:[%s9355 + $0x10] sm:$0xf]
        %v9361 = vld [vmem:[%s9355 + $0x14] sm:$0xf]
        %v9362 = vld [vmem:[%s9355 + $0x18] sm:$0xf]
        %v9363 = vld [vmem:[%s9355 + $0x1c] sm:$0xf]
        %v9364 = vld [vmem:[%s9355 + $0x20] sm:$0xf]
        %v9365 = vld [vmem:[%s9355 + $0x24] sm:$0xf]
        %v9366 = vld [vmem:[%s9355 + $0x28] sm:$0xf]
        %v9367 = vld [vmem:[%s9355 + $0x2c] sm:$0xf]
        %v9368 = vld [vmem:[%s9355 + $0x30] sm:$0xf]
        %v9369 = vld [vmem:[%s9355 + $0x34] sm:$0xf]
        %v9370 = vld [vmem:[%s9355 + $0x38] sm:$0xf]
        %v9371 = vld [vmem:[%s9355 + $0x3c] sm:$0xf]
        %v9376 = vunpack.c.l.b16 %v5988
        %v9377 = vunpack.c.l.b16 %v5989
        %v9378 = vunpack.c.l.b16 %v6024
        %v9379 = vunpack.c.l.b16 %v6025
        %v9380 = vpack.c.b16 %v9377, %v9376
        %v9381 = vpack.c.b16 %v9379, %v9378
        %v9400 = vunpack.c.l.b16 %v9356
        %v9401 = vunpack.c.l.b16 %v9357
        %v9402 = vunpack.c.l.b16 %v9358
        %v9403 = vunpack.c.l.b16 %v9359
        %v9404 = vunpack.c.l.b16 %v9360
        %v9405 = vunpack.c.l.b16 %v9361
        %v9406 = vunpack.c.l.b16 %v9362
        %v9407 = vunpack.c.l.b16 %v9363
        %v9408 = vunpack.c.l.b16 %v9364
        %v9409 = vunpack.c.l.b16 %v9365
        %v9410 = vunpack.c.l.b16 %v9366
        %v9411 = vunpack.c.l.b16 %v9367
        %v9412 = vunpack.c.l.b16 %v9368
        %v9413 = vunpack.c.l.b16 %v9369
        %v9414 = vunpack.c.l.b16 %v9370
        %v9415 = vunpack.c.l.b16 %v9371
        %v9416 = vpack.c.b16 %v9401, %v9400
        %v9417 = vpack.c.b16 %v9403, %v9402
        %v9418 = vpack.c.b16 %v9405, %v9404
        %v9419 = vpack.c.b16 %v9407, %v9406
        %v9420 = vpack.c.b16 %v9409, %v9408
        %v9421 = vpack.c.b16 %v9411, %v9410
        %v9422 = vpack.c.b16 %v9413, %v9412
        %v9423 = vpack.c.b16 %v9415, %v9414
        %9432 = vmatpush.bf16.msra.mxu0 %v9423
        %9433 = vmatpush.bf16.msra.mxu0 %v9422
        %9434 = vmatpush.bf16.msra.mxu0 %v9421
        %9435 = vmatpush.bf16.msra.mxu0 %v9420
        %9436 = vmatpush.bf16.msra.mxu0 %v9419
        %9437 = vmatpush.bf16.msra.mxu0 %v9418
        %9438 = vmatpush.bf16.msra.mxu0 %v9417
        %9439 = vmatpush.bf16.msra.mxu0 %v9416
        %9440 = vmatmul.bf16.gmra.mxu0 %v7374
        %v9441 = vpop.f32.mrf.mxu0
        %v9442 = vadd.f32 0.0, %v9441
        %v9443 = vpop.f32.mrf.mxu0
        %v9444 = vadd.f32 0.0, %v9443
        %9445 = vmatmul.bf16.gmra.mxu0 %v7375
        %v9446 = vpop.f32.mrf.mxu0
        %v9447 = vadd.f32 0.0, %v9446
        %v9448 = vpop.f32.mrf.mxu0
        %v9449 = vadd.f32 0.0, %v9448
        %9450 = vmatmul.bf16.gmra.mxu0 %v7376
        %v9451 = vpop.f32.mrf.mxu0
        %v9452 = vadd.f32 0.0, %v9451
        %v9453 = vpop.f32.mrf.mxu0
        %v9454 = vadd.f32 0.0, %v9453
        %9455 = vmatmul.bf16.gmra.mxu0 %v7377
        %v9456 = vpop.f32.mrf.mxu0
        %v9457 = vadd.f32 0.0, %v9456
        %v9458 = vpop.f32.mrf.mxu0
        %v9459 = vadd.f32 0.0, %v9458
        %9460 = vmatmul.bf16.gmra.mxu0 %v7378
        %v9461 = vpop.f32.mrf.mxu0
        %v9462 = vadd.f32 0.0, %v9461
        %v9463 = vpop.f32.mrf.mxu0
        %v9464 = vadd.f32 0.0, %v9463
        %9465 = vmatmul.bf16.gmra.mxu0 %v7379
        %v9466 = vpop.f32.mrf.mxu0
        %v9467 = vadd.f32 0.0, %v9466
        %v9468 = vpop.f32.mrf.mxu0
        %v9469 = vadd.f32 0.0, %v9468
        %9470 = vmatmul.bf16.gmra.mxu0 %v7380
        %v9471 = vpop.f32.mrf.mxu0
        %v9472 = vadd.f32 0.0, %v9471
        %v9473 = vpop.f32.mrf.mxu0
        %v9474 = vadd.f32 0.0, %v9473
        %9475 = vmatmul.bf16.gmra.mxu0 %v7381
        %v9476 = vpop.f32.mrf.mxu0
        %v9477 = vadd.f32 0.0, %v9476
        %v9478 = vpop.f32.mrf.mxu0
        %v9479 = vadd.f32 0.0, %v9478
        %9480 = vmatmul.bf16.gmra.mxu0 %v7382
        %v9481 = vpop.f32.mrf.mxu0
        %v9482 = vadd.f32 0.0, %v9481
        %v9483 = vpop.f32.mrf.mxu0
        %v9484 = vadd.f32 0.0, %v9483
        %9485 = vmatmul.bf16.gmra.mxu0 %v7383
        %v9486 = vpop.f32.mrf.mxu0
        %v9487 = vadd.f32 0.0, %v9486
        %v9488 = vpop.f32.mrf.mxu0
        %v9489 = vadd.f32 0.0, %v9488
        %9490 = vmatmul.bf16.gmra.mxu0 %v7384
        %v9491 = vpop.f32.mrf.mxu0
        %v9492 = vadd.f32 0.0, %v9491
        %v9493 = vpop.f32.mrf.mxu0
        %v9494 = vadd.f32 0.0, %v9493
        %9495 = vmatmul.bf16.gmra.mxu0 %v7385
        %v9496 = vpop.f32.mrf.mxu0
        %v9497 = vadd.f32 0.0, %v9496
        %v9498 = vpop.f32.mrf.mxu0
        %v9499 = vadd.f32 0.0, %v9498
        %9500 = vmatmul.bf16.gmra.mxu0 %v7386
        %v9501 = vpop.f32.mrf.mxu0
        %v9502 = vadd.f32 0.0, %v9501
        %v9503 = vpop.f32.mrf.mxu0
        %v9504 = vadd.f32 0.0, %v9503
        %9505 = vmatmul.bf16.gmra.mxu0 %v7387
        %v9506 = vpop.f32.mrf.mxu0
        %v9507 = vadd.f32 0.0, %v9506
        %v9508 = vpop.f32.mrf.mxu0
        %v9509 = vadd.f32 0.0, %v9508
        %9510 = vmatmul.bf16.gmra.mxu0 %v8392
        %v9511 = vpop.f32.mrf.mxu0
        %v9512 = vadd.f32 0.0, %v9511
        %v9513 = vpop.f32.mrf.mxu0
        %v9514 = vadd.f32 0.0, %v9513
        %9515 = vmatmul.bf16.gmra.mxu0 %v9380
        %v9516 = vpop.f32.mrf.mxu0
        %v9517 = vadd.f32 0.0, %v9516
        %v9518 = vpop.f32.mrf.mxu0
        %v9519 = vadd.f32 0.0, %v9518
        %9520 = vmatmul.bf16.gmra.mxu0 %v7390
        %v9521 = vpop.f32.mrf.mxu0
        %v9522 = vadd.f32 0.0, %v9521
        %v9523 = vpop.f32.mrf.mxu0
        %v9524 = vadd.f32 0.0, %v9523
        %9525 = vmatmul.bf16.gmra.mxu0 %v7391
        %v9526 = vpop.f32.mrf.mxu0
        %v9527 = vadd.f32 0.0, %v9526
        %v9528 = vpop.f32.mrf.mxu0
        %v9529 = vadd.f32 0.0, %v9528
        %9530 = vmatmul.bf16.gmra.mxu0 %v7392
        %v9531 = vpop.f32.mrf.mxu0
        %v9532 = vadd.f32 0.0, %v9531
        %v9533 = vpop.f32.mrf.mxu0
        %v9534 = vadd.f32 0.0, %v9533
        %9535 = vmatmul.bf16.gmra.mxu0 %v7393
        %v9536 = vpop.f32.mrf.mxu0
        %v9537 = vadd.f32 0.0, %v9536
        %v9538 = vpop.f32.mrf.mxu0
        %v9539 = vadd.f32 0.0, %v9538
        %9540 = vmatmul.bf16.gmra.mxu0 %v7394
        %v9541 = vpop.f32.mrf.mxu0
        %v9542 = vadd.f32 0.0, %v9541
        %v9543 = vpop.f32.mrf.mxu0
        %v9544 = vadd.f32 0.0, %v9543
        %9545 = vmatmul.bf16.gmra.mxu0 %v7395
        %v9546 = vpop.f32.mrf.mxu0
        %v9547 = vadd.f32 0.0, %v9546
        %v9548 = vpop.f32.mrf.mxu0
        %v9549 = vadd.f32 0.0, %v9548
        %9550 = vmatmul.bf16.gmra.mxu0 %v7396
        %v9551 = vpop.f32.mrf.mxu0
        %v9552 = vadd.f32 0.0, %v9551
        %v9553 = vpop.f32.mrf.mxu0
        %v9554 = vadd.f32 0.0, %v9553
        %9555 = vmatmul.bf16.gmra.mxu0 %v7397
        %v9556 = vpop.f32.mrf.mxu0
        %v9557 = vadd.f32 0.0, %v9556
        %v9558 = vpop.f32.mrf.mxu0
        %v9559 = vadd.f32 0.0, %v9558
        %9560 = vmatmul.bf16.gmra.mxu0 %v7398
        %v9561 = vpop.f32.mrf.mxu0
        %v9562 = vadd.f32 0.0, %v9561
        %v9563 = vpop.f32.mrf.mxu0
        %v9564 = vadd.f32 0.0, %v9563
        %9565 = vmatmul.bf16.gmra.mxu0 %v7399
        %v9566 = vpop.f32.mrf.mxu0
        %v9567 = vadd.f32 0.0, %v9566
        %v9568 = vpop.f32.mrf.mxu0
        %v9569 = vadd.f32 0.0, %v9568
        %9570 = vmatmul.bf16.gmra.mxu0 %v7400
        %v9571 = vpop.f32.mrf.mxu0
        %v9572 = vadd.f32 0.0, %v9571
        %v9573 = vpop.f32.mrf.mxu0
        %v9574 = vadd.f32 0.0, %v9573
        %9575 = vmatmul.bf16.gmra.mxu0 %v7401
        %v9576 = vpop.f32.mrf.mxu0
        %v9577 = vadd.f32 0.0, %v9576
        %v9578 = vpop.f32.mrf.mxu0
        %v9579 = vadd.f32 0.0, %v9578
        %9580 = vmatmul.bf16.gmra.mxu0 %v7402
        %v9581 = vpop.f32.mrf.mxu0
        %v9582 = vadd.f32 0.0, %v9581
        %v9583 = vpop.f32.mrf.mxu0
        %v9584 = vadd.f32 0.0, %v9583
        %9585 = vmatmul.bf16.gmra.mxu0 %v7403
        %v9586 = vpop.f32.mrf.mxu0
        %v9587 = vadd.f32 0.0, %v9586
        %v9588 = vpop.f32.mrf.mxu0
        %v9589 = vadd.f32 0.0, %v9588
        %9590 = vmatmul.bf16.gmra.mxu0 %v8393
        %v9591 = vpop.f32.mrf.mxu0
        %v9592 = vadd.f32 0.0, %v9591
        %v9593 = vpop.f32.mrf.mxu0
        %v9594 = vadd.f32 0.0, %v9593
        %9595 = vmatmul.bf16.gmra.mxu0 %v9381
        %v9596 = vpop.f32.mrf.mxu0
        %v9597 = vadd.f32 0.0, %v9596
        %v9598 = vpop.f32.mrf.mxu0
        %v9599 = vadd.f32 0.0, %v9598
        %9600 = vdwg.mxu0
        %v9601 = vadd.f32 %v9291, %v9442
        %v9602 = vadd.f32 %v9292, %v9444
        %v9603 = vadd.f32 %v9293, %v9447
        %v9604 = vadd.f32 %v9294, %v9449
        %v9605 = vadd.f32 %v9295, %v9452
        %v9606 = vadd.f32 %v9296, %v9454
        %v9607 = vadd.f32 %v9297, %v9457
        %v9608 = vadd.f32 %v9298, %v9459
        %v9609 = vadd.f32 %v9299, %v9462
        %v9610 = vadd.f32 %v9300, %v9464
        %v9611 = vadd.f32 %v9301, %v9467
        %v9612 = vadd.f32 %v9302, %v9469
        %v9613 = vadd.f32 %v9303, %v9472
        %v9614 = vadd.f32 %v9304, %v9474
        %v9615 = vadd.f32 %v9305, %v9477
        %v9616 = vadd.f32 %v9306, %v9479
        %v9617 = vadd.f32 %v9307, %v9482
        %v9618 = vadd.f32 %v9308, %v9484
        %v9619 = vadd.f32 %v9309, %v9487
        %v9620 = vadd.f32 %v9310, %v9489
        %v9621 = vadd.f32 %v9311, %v9492
        %v9622 = vadd.f32 %v9312, %v9494
        %v9623 = vadd.f32 %v9313, %v9497
        %v9624 = vadd.f32 %v9314, %v9499
        %v9625 = vadd.f32 %v9315, %v9502
        %v9626 = vadd.f32 %v9316, %v9504
        %v9627 = vadd.f32 %v9317, %v9507
        %v9628 = vadd.f32 %v9318, %v9509
        %v9629 = vadd.f32 %v9319, %v9512
        %v9630 = vadd.f32 %v9320, %v9514
        %v9631 = vadd.f32 %v9321, %v9517
        %v9632 = vadd.f32 %v9322, %v9519
        %v9633 = vadd.f32 %v9323, %v9522
        %v9634 = vadd.f32 %v9324, %v9524
        %v9635 = vadd.f32 %v9325, %v9527
        %v9636 = vadd.f32 %v9326, %v9529
        %v9637 = vadd.f32 %v9327, %v9532
        %v9638 = vadd.f32 %v9328, %v9534
        %v9639 = vadd.f32 %v9329, %v9537
        %v9640 = vadd.f32 %v9330, %v9539
        %v9641 = vadd.f32 %v9331, %v9542
        %v9642 = vadd.f32 %v9332, %v9544
        %v9643 = vadd.f32 %v9333, %v9547
        %v9644 = vadd.f32 %v9334, %v9549
        %v9645 = vadd.f32 %v9335, %v9552
        %v9646 = vadd.f32 %v9336, %v9554
        %v9647 = vadd.f32 %v9337, %v9557
        %v9648 = vadd.f32 %v9338, %v9559
        %v9649 = vadd.f32 %v9339, %v9562
        %v9650 = vadd.f32 %v9340, %v9564
        %v9651 = vadd.f32 %v9341, %v9567
        %v9652 = vadd.f32 %v9342, %v9569
        %v9653 = vadd.f32 %v9343, %v9572
        %v9654 = vadd.f32 %v9344, %v9574
        %v9655 = vadd.f32 %v9345, %v9577
        %v9656 = vadd.f32 %v9346, %v9579
        %v9657 = vadd.f32 %v9347, %v9582
        %v9658 = vadd.f32 %v9348, %v9584
        %v9659 = vadd.f32 %v9349, %v9587
        %v9660 = vadd.f32 %v9350, %v9589
        %v9661 = vadd.f32 %v9351, %v9592
        %v9662 = vadd.f32 %v9352, %v9594
        %v9663 = vadd.f32 %v9353, %v9597
        %v9664 = vadd.f32 %v9354, %v9599
        %v9666 = vshrl.u32 %v5988, 16
        %v9668 = vrot.slane %v9666, 4
        %v9669 = vshll.u32 %v5988, 16
        %v9671 = vrot.slane %v9669, 5
        %v9672 = vor.u32 %v9668, %v9671
        %v9673 = vrot.slane %v9672, 4
        %v9675 = vshll.u32 %v5989, 16
        %v9677 = vrot.slane %v9675, 5
        %v9678 = vsel %vm446, %v9673, %v9677
        %v9679 = vshrl.u32 %v5989, 16
        %v9681 = vrot.slane %v9679, 4
        %v9682 = vor.u32 %v9681, %v9677
        %v9683 = vrot.slane %v9682, 4
        %v9685 = vshll.u32 %v6043, 16
        %v9687 = vrot.slane %v9685, 5
        %v9688 = vsel %vm446, %v9683, %v9687
        %v9690 = vshrl.u32 %v6024, 16
        %v9692 = vrot.slane %v9690, 4
        %v9693 = vshll.u32 %v6024, 16
        %v9695 = vrot.slane %v9693, 5
        %v9696 = vor.u32 %v9692, %v9695
        %v9697 = vrot.slane %v9696, 4
        %v9699 = vshll.u32 %v6025, 16
        %v9701 = vrot.slane %v9699, 5
        %v9702 = vsel %vm446, %v9697, %v9701
        %v9703 = vshrl.u32 %v6025, 16
        %v9705 = vrot.slane %v9703, 4
        %v9706 = vor.u32 %v9705, %v9701
        %v9707 = vrot.slane %v9706, 4
        %v9709 = vshll.u32 %v6061, 16
        %v9711 = vrot.slane %v9709, 5
        %v9712 = vsel %vm446, %v9707, %v9711
        %s9713 = scalar_lea.vmem %s3, 448
        %v9714 = vld [vmem:[%s9713] sm:$0xf]
        %v9715 = vld [vmem:[%s9713 + $0x4] sm:$0xf]
        %v9716 = vld [vmem:[%s9713 + $0x8] sm:$0xf]
        %v9717 = vld [vmem:[%s9713 + $0xc] sm:$0xf]
        %v9718 = vld [vmem:[%s9713 + $0x10] sm:$0xf]
        %v9719 = vld [vmem:[%s9713 + $0x14] sm:$0xf]
        %v9720 = vld [vmem:[%s9713 + $0x18] sm:$0xf]
        %v9721 = vld [vmem:[%s9713 + $0x1c] sm:$0xf]
        %v9722 = vld [vmem:[%s9713 + $0x20] sm:$0xf]
        %v9723 = vld [vmem:[%s9713 + $0x24] sm:$0xf]
        %v9724 = vld [vmem:[%s9713 + $0x28] sm:$0xf]
        %v9725 = vld [vmem:[%s9713 + $0x2c] sm:$0xf]
        %v9726 = vld [vmem:[%s9713 + $0x30] sm:$0xf]
        %v9727 = vld [vmem:[%s9713 + $0x34] sm:$0xf]
        %v9728 = vld [vmem:[%s9713 + $0x38] sm:$0xf]
        %v9729 = vld [vmem:[%s9713 + $0x3c] sm:$0xf]
        %v9730 = vunpack.c.l.b16 %v9678
        %v9731 = vunpack.c.l.b16 %v9688
        %v9732 = vunpack.c.l.b16 %v9702
        %v9733 = vunpack.c.l.b16 %v9712
        %v9734 = vpack.c.b16 %v9731, %v9730
        %v9735 = vpack.c.b16 %v9733, %v9732
        %v9754 = vunpack.c.l.b16 %v9714
        %v9755 = vunpack.c.l.b16 %v9715
        %v9756 = vunpack.c.l.b16 %v9716
        %v9757 = vunpack.c.l.b16 %v9717
        %v9758 = vunpack.c.l.b16 %v9718
        %v9759 = vunpack.c.l.b16 %v9719
        %v9760 = vunpack.c.l.b16 %v9720
        %v9761 = vunpack.c.l.b16 %v9721
        %v9762 = vunpack.c.l.b16 %v9722
        %v9763 = vunpack.c.l.b16 %v9723
        %v9764 = vunpack.c.l.b16 %v9724
        %v9765 = vunpack.c.l.b16 %v9725
        %v9766 = vunpack.c.l.b16 %v9726
        %v9767 = vunpack.c.l.b16 %v9727
        %v9768 = vunpack.c.l.b16 %v9728
        %v9769 = vunpack.c.l.b16 %v9729
        %v9770 = vpack.c.b16 %v9755, %v9754
        %v9771 = vpack.c.b16 %v9757, %v9756
        %v9772 = vpack.c.b16 %v9759, %v9758
        %v9773 = vpack.c.b16 %v9761, %v9760
        %v9774 = vpack.c.b16 %v9763, %v9762
        %v9775 = vpack.c.b16 %v9765, %v9764
        %v9776 = vpack.c.b16 %v9767, %v9766
        %v9777 = vpack.c.b16 %v9769, %v9768
        %9786 = vmatpush.bf16.msra.mxu0 %v9777
        %9787 = vmatpush.bf16.msra.mxu0 %v9776
        %9788 = vmatpush.bf16.msra.mxu0 %v9775
        %9789 = vmatpush.bf16.msra.mxu0 %v9774
        %9790 = vmatpush.bf16.msra.mxu0 %v9773
        %9791 = vmatpush.bf16.msra.mxu0 %v9772
        %9792 = vmatpush.bf16.msra.mxu0 %v9771
        %9793 = vmatpush.bf16.msra.mxu0 %v9770
        %9794 = vmatmul.bf16.gmra.mxu0 %v6965
        %v9795 = vpop.f32.mrf.mxu0
        %v9796 = vadd.f32 0.0, %v9795
        %v9797 = vpop.f32.mrf.mxu0
        %v9798 = vadd.f32 0.0, %v9797
        %9799 = vmatmul.bf16.gmra.mxu0 %v6966
        %v9800 = vpop.f32.mrf.mxu0
        %v9801 = vadd.f32 0.0, %v9800
        %v9802 = vpop.f32.mrf.mxu0
        %v9803 = vadd.f32 0.0, %v9802
        %9804 = vmatmul.bf16.gmra.mxu0 %v6967
        %v9805 = vpop.f32.mrf.mxu0
        %v9806 = vadd.f32 0.0, %v9805
        %v9807 = vpop.f32.mrf.mxu0
        %v9808 = vadd.f32 0.0, %v9807
        %9809 = vmatmul.bf16.gmra.mxu0 %v6968
        %v9810 = vpop.f32.mrf.mxu0
        %v9811 = vadd.f32 0.0, %v9810
        %v9812 = vpop.f32.mrf.mxu0
        %v9813 = vadd.f32 0.0, %v9812
        %9814 = vmatmul.bf16.gmra.mxu0 %v6969
        %v9815 = vpop.f32.mrf.mxu0
        %v9816 = vadd.f32 0.0, %v9815
        %v9817 = vpop.f32.mrf.mxu0
        %v9818 = vadd.f32 0.0, %v9817
        %9819 = vmatmul.bf16.gmra.mxu0 %v6970
        %v9820 = vpop.f32.mrf.mxu0
        %v9821 = vadd.f32 0.0, %v9820
        %v9822 = vpop.f32.mrf.mxu0
        %v9823 = vadd.f32 0.0, %v9822
        %9824 = vmatmul.bf16.gmra.mxu0 %v6971
        %v9825 = vpop.f32.mrf.mxu0
        %v9826 = vadd.f32 0.0, %v9825
        %v9827 = vpop.f32.mrf.mxu0
        %v9828 = vadd.f32 0.0, %v9827
        %9829 = vmatmul.bf16.gmra.mxu0 %v6972
        %v9830 = vpop.f32.mrf.mxu0
        %v9831 = vadd.f32 0.0, %v9830
        %v9832 = vpop.f32.mrf.mxu0
        %v9833 = vadd.f32 0.0, %v9832
        %9834 = vmatmul.bf16.gmra.mxu0 %v6973
        %v9835 = vpop.f32.mrf.mxu0
        %v9836 = vadd.f32 0.0, %v9835
        %v9837 = vpop.f32.mrf.mxu0
        %v9838 = vadd.f32 0.0, %v9837
        %9839 = vmatmul.bf16.gmra.mxu0 %v6974
        %v9840 = vpop.f32.mrf.mxu0
        %v9841 = vadd.f32 0.0, %v9840
        %v9842 = vpop.f32.mrf.mxu0
        %v9843 = vadd.f32 0.0, %v9842
        %9844 = vmatmul.bf16.gmra.mxu0 %v6975
        %v9845 = vpop.f32.mrf.mxu0
        %v9846 = vadd.f32 0.0, %v9845
        %v9847 = vpop.f32.mrf.mxu0
        %v9848 = vadd.f32 0.0, %v9847
        %9849 = vmatmul.bf16.gmra.mxu0 %v6976
        %v9850 = vpop.f32.mrf.mxu0
        %v9851 = vadd.f32 0.0, %v9850
        %v9852 = vpop.f32.mrf.mxu0
        %v9853 = vadd.f32 0.0, %v9852
        %9854 = vmatmul.bf16.gmra.mxu0 %v6977
        %v9855 = vpop.f32.mrf.mxu0
        %v9856 = vadd.f32 0.0, %v9855
        %v9857 = vpop.f32.mrf.mxu0
        %v9858 = vadd.f32 0.0, %v9857
        %9859 = vmatmul.bf16.gmra.mxu0 %v6978
        %v9860 = vpop.f32.mrf.mxu0
        %v9861 = vadd.f32 0.0, %v9860
        %v9862 = vpop.f32.mrf.mxu0
        %v9863 = vadd.f32 0.0, %v9862
        %9864 = vmatmul.bf16.gmra.mxu0 %v8746
        %v9865 = vpop.f32.mrf.mxu0
        %v9866 = vadd.f32 0.0, %v9865
        %v9867 = vpop.f32.mrf.mxu0
        %v9868 = vadd.f32 0.0, %v9867
        %9869 = vmatmul.bf16.gmra.mxu0 %v9734
        %v9870 = vpop.f32.mrf.mxu0
        %v9871 = vadd.f32 0.0, %v9870
        %v9872 = vpop.f32.mrf.mxu0
        %v9873 = vadd.f32 0.0, %v9872
        %9874 = vmatmul.bf16.gmra.mxu0 %v6981
        %v9875 = vpop.f32.mrf.mxu0
        %v9876 = vadd.f32 0.0, %v9875
        %v9877 = vpop.f32.mrf.mxu0
        %v9878 = vadd.f32 0.0, %v9877
        %9879 = vmatmul.bf16.gmra.mxu0 %v6982
        %v9880 = vpop.f32.mrf.mxu0
        %v9881 = vadd.f32 0.0, %v9880
        %v9882 = vpop.f32.mrf.mxu0
        %v9883 = vadd.f32 0.0, %v9882
        %9884 = vmatmul.bf16.gmra.mxu0 %v6983
        %v9885 = vpop.f32.mrf.mxu0
        %v9886 = vadd.f32 0.0, %v9885
        %v9887 = vpop.f32.mrf.mxu0
        %v9888 = vadd.f32 0.0, %v9887
        %9889 = vmatmul.bf16.gmra.mxu0 %v6984
        %v9890 = vpop.f32.mrf.mxu0
        %v9891 = vadd.f32 0.0, %v9890
        %v9892 = vpop.f32.mrf.mxu0
        %v9893 = vadd.f32 0.0, %v9892
        %9894 = vmatmul.bf16.gmra.mxu0 %v6985
        %v9895 = vpop.f32.mrf.mxu0
        %v9896 = vadd.f32 0.0, %v9895
        %v9897 = vpop.f32.mrf.mxu0
        %v9898 = vadd.f32 0.0, %v9897
        %9899 = vmatmul.bf16.gmra.mxu0 %v6986
        %v9900 = vpop.f32.mrf.mxu0
        %v9901 = vadd.f32 0.0, %v9900
        %v9902 = vpop.f32.mrf.mxu0
        %v9903 = vadd.f32 0.0, %v9902
        %9904 = vmatmul.bf16.gmra.mxu0 %v6987
        %v9905 = vpop.f32.mrf.mxu0
        %v9906 = vadd.f32 0.0, %v9905
        %v9907 = vpop.f32.mrf.mxu0
        %v9908 = vadd.f32 0.0, %v9907
        %9909 = vmatmul.bf16.gmra.mxu0 %v6988
        %v9910 = vpop.f32.mrf.mxu0
        %v9911 = vadd.f32 0.0, %v9910
        %v9912 = vpop.f32.mrf.mxu0
        %v9913 = vadd.f32 0.0, %v9912
        %9914 = vmatmul.bf16.gmra.mxu0 %v6989
        %v9915 = vpop.f32.mrf.mxu0
        %v9916 = vadd.f32 0.0, %v9915
        %v9917 = vpop.f32.mrf.mxu0
        %v9918 = vadd.f32 0.0, %v9917
        %9919 = vmatmul.bf16.gmra.mxu0 %v6990
        %v9920 = vpop.f32.mrf.mxu0
        %v9921 = vadd.f32 0.0, %v9920
        %v9922 = vpop.f32.mrf.mxu0
        %v9923 = vadd.f32 0.0, %v9922
        %9924 = vmatmul.bf16.gmra.mxu0 %v6991
        %v9925 = vpop.f32.mrf.mxu0
        %v9926 = vadd.f32 0.0, %v9925
        %v9927 = vpop.f32.mrf.mxu0
        %v9928 = vadd.f32 0.0, %v9927
        %9929 = vmatmul.bf16.gmra.mxu0 %v6992
        %v9930 = vpop.f32.mrf.mxu0
        %v9931 = vadd.f32 0.0, %v9930
        %v9932 = vpop.f32.mrf.mxu0
        %v9933 = vadd.f32 0.0, %v9932
        %9934 = vmatmul.bf16.gmra.mxu0 %v6993
        %v9935 = vpop.f32.mrf.mxu0
        %v9936 = vadd.f32 0.0, %v9935
        %v9937 = vpop.f32.mrf.mxu0
        %v9938 = vadd.f32 0.0, %v9937
        %9939 = vmatmul.bf16.gmra.mxu0 %v6994
        %v9940 = vpop.f32.mrf.mxu0
        %v9941 = vadd.f32 0.0, %v9940
        %v9942 = vpop.f32.mrf.mxu0
        %v9943 = vadd.f32 0.0, %v9942
        %9944 = vmatmul.bf16.gmra.mxu0 %v8747
        %v9945 = vpop.f32.mrf.mxu0
        %v9946 = vadd.f32 0.0, %v9945
        %v9947 = vpop.f32.mrf.mxu0
        %v9948 = vadd.f32 0.0, %v9947
        %9949 = vmatmul.bf16.gmra.mxu0 %v9735
        %v9950 = vpop.f32.mrf.mxu0
        %v9951 = vadd.f32 0.0, %v9950
        %v9952 = vpop.f32.mrf.mxu0
        %v9953 = vadd.f32 0.0, %v9952
        %9954 = vdwg.mxu0
        %v9955 = vadd.f32 %v9601, %v9796
        %v9956 = vadd.f32 %v9602, %v9798
        %v9957 = vadd.f32 %v9603, %v9801
        %v9958 = vadd.f32 %v9604, %v9803
        %v9959 = vadd.f32 %v9605, %v9806
        %v9960 = vadd.f32 %v9606, %v9808
        %v9961 = vadd.f32 %v9607, %v9811
        %v9962 = vadd.f32 %v9608, %v9813
        %v9963 = vadd.f32 %v9609, %v9816
        %v9964 = vadd.f32 %v9610, %v9818
        %v9965 = vadd.f32 %v9611, %v9821
        %v9966 = vadd.f32 %v9612, %v9823
        %v9967 = vadd.f32 %v9613, %v9826
        %v9968 = vadd.f32 %v9614, %v9828
        %v9969 = vadd.f32 %v9615, %v9831
        %v9970 = vadd.f32 %v9616, %v9833
        %v9971 = vadd.f32 %v9617, %v9836
        %v9972 = vadd.f32 %v9618, %v9838
        %v9973 = vadd.f32 %v9619, %v9841
        %v9974 = vadd.f32 %v9620, %v9843
        %v9975 = vadd.f32 %v9621, %v9846
        %v9976 = vadd.f32 %v9622, %v9848
        %v9977 = vadd.f32 %v9623, %v9851
        %v9978 = vadd.f32 %v9624, %v9853
        %v9979 = vadd.f32 %v9625, %v9856
        %v9980 = vadd.f32 %v9626, %v9858
        %v9981 = vadd.f32 %v9627, %v9861
        %v9982 = vadd.f32 %v9628, %v9863
        %v9983 = vadd.f32 %v9629, %v9866
        %v9984 = vadd.f32 %v9630, %v9868
        %v9985 = vadd.f32 %v9631, %v9871
        %v9986 = vadd.f32 %v9632, %v9873
        %v9987 = vadd.f32 %v9633, %v9876
        %v9988 = vadd.f32 %v9634, %v9878
        %v9989 = vadd.f32 %v9635, %v9881
        %v9990 = vadd.f32 %v9636, %v9883
        %v9991 = vadd.f32 %v9637, %v9886
        %v9992 = vadd.f32 %v9638, %v9888
        %v9993 = vadd.f32 %v9639, %v9891
        %v9994 = vadd.f32 %v9640, %v9893
        %v9995 = vadd.f32 %v9641, %v9896
        %v9996 = vadd.f32 %v9642, %v9898
        %v9997 = vadd.f32 %v9643, %v9901
        %v9998 = vadd.f32 %v9644, %v9903
        %v9999 = vadd.f32 %v9645, %v9906
        %v10000 = vadd.f32 %v9646, %v9908
        %v10001 = vadd.f32 %v9647, %v9911
        %v10002 = vadd.f32 %v9648, %v9913
        %v10003 = vadd.f32 %v9649, %v9916
        %v10004 = vadd.f32 %v9650, %v9918
        %v10005 = vadd.f32 %v9651, %v9921
        %v10006 = vadd.f32 %v9652, %v9923
        %v10007 = vadd.f32 %v9653, %v9926
        %v10008 = vadd.f32 %v9654, %v9928
        %v10009 = vadd.f32 %v9655, %v9931
        %v10010 = vadd.f32 %v9656, %v9933
        %v10011 = vadd.f32 %v9657, %v9936
        %v10012 = vadd.f32 %v9658, %v9938
        %v10013 = vadd.f32 %v9659, %v9941
        %v10014 = vadd.f32 %v9660, %v9943
        %v10015 = vadd.f32 %v9661, %v9946
        %v10016 = vadd.f32 %v9662, %v9948
        %v10017 = vadd.f32 %v9663, %v9951
        %v10018 = vadd.f32 %v9664, %v9953
        %v10023 = vrot.slane %v6079, 5
        %v10024 = vrot.slane %v10023, 4
        %v10025 = vrot.slane %v5989, 5
        %v10026 = vsel %vm2052, %v10024, %v10025
        %v10027 = vrot.slane %v10025, 4
        %v10028 = vrot.slane %v6043, 5
        %v10029 = vsel %vm2052, %v10027, %v10028
        %v10030 = vrot.slane %v6097, 5
        %v10031 = vrot.slane %v10030, 4
        %v10032 = vrot.slane %v6025, 5
        %v10033 = vsel %vm2052, %v10031, %v10032
        %v10034 = vrot.slane %v10032, 4
        %v10035 = vrot.slane %v6061, 5
        %v10036 = vsel %vm2052, %v10034, %v10035
        %s10037 = scalar_lea.vmem %s3, 512
        %v10038 = vld [vmem:[%s10037] sm:$0xf]
        %v10039 = vld [vmem:[%s10037 + $0x4] sm:$0xf]
        %v10040 = vld [vmem:[%s10037 + $0x8] sm:$0xf]
        %v10041 = vld [vmem:[%s10037 + $0xc] sm:$0xf]
        %v10042 = vld [vmem:[%s10037 + $0x10] sm:$0xf]
        %v10043 = vld [vmem:[%s10037 + $0x14] sm:$0xf]
        %v10044 = vld [vmem:[%s10037 + $0x18] sm:$0xf]
        %v10045 = vld [vmem:[%s10037 + $0x1c] sm:$0xf]
        %v10046 = vld [vmem:[%s10037 + $0x20] sm:$0xf]
        %v10047 = vld [vmem:[%s10037 + $0x24] sm:$0xf]
        %v10048 = vld [vmem:[%s10037 + $0x28] sm:$0xf]
        %v10049 = vld [vmem:[%s10037 + $0x2c] sm:$0xf]
        %v10050 = vld [vmem:[%s10037 + $0x30] sm:$0xf]
        %v10051 = vld [vmem:[%s10037 + $0x34] sm:$0xf]
        %v10052 = vld [vmem:[%s10037 + $0x38] sm:$0xf]
        %v10053 = vld [vmem:[%s10037 + $0x3c] sm:$0xf]
        %v10054 = vunpack.c.l.b16 %v10026
        %v10055 = vunpack.c.l.b16 %v10029
        %v10056 = vunpack.c.l.b16 %v10033
        %v10057 = vunpack.c.l.b16 %v10036
        %v10058 = vpack.c.b16 %v10055, %v10054
        %v10059 = vpack.c.b16 %v10057, %v10056
        %v10078 = vunpack.c.l.b16 %v10038
        %v10079 = vunpack.c.l.b16 %v10039
        %v10080 = vunpack.c.l.b16 %v10040
        %v10081 = vunpack.c.l.b16 %v10041
        %v10082 = vunpack.c.l.b16 %v10042
        %v10083 = vunpack.c.l.b16 %v10043
        %v10084 = vunpack.c.l.b16 %v10044
        %v10085 = vunpack.c.l.b16 %v10045
        %v10086 = vunpack.c.l.b16 %v10046
        %v10087 = vunpack.c.l.b16 %v10047
        %v10088 = vunpack.c.l.b16 %v10048
        %v10089 = vunpack.c.l.b16 %v10049
        %v10090 = vunpack.c.l.b16 %v10050
        %v10091 = vunpack.c.l.b16 %v10051
        %v10092 = vunpack.c.l.b16 %v10052
        %v10093 = vunpack.c.l.b16 %v10053
        %v10094 = vpack.c.b16 %v10079, %v10078
        %v10095 = vpack.c.b16 %v10081, %v10080
        %v10096 = vpack.c.b16 %v10083, %v10082
        %v10097 = vpack.c.b16 %v10085, %v10084
        %v10098 = vpack.c.b16 %v10087, %v10086
        %v10099 = vpack.c.b16 %v10089, %v10088
        %v10100 = vpack.c.b16 %v10091, %v10090
        %v10101 = vpack.c.b16 %v10093, %v10092
        %10110 = vmatpush.bf16.msra.mxu0 %v10101
        %10111 = vmatpush.bf16.msra.mxu0 %v10100
        %10112 = vmatpush.bf16.msra.mxu0 %v10099
        %10113 = vmatpush.bf16.msra.mxu0 %v10098
        %10114 = vmatpush.bf16.msra.mxu0 %v10097
        %10115 = vmatpush.bf16.msra.mxu0 %v10096
        %10116 = vmatpush.bf16.msra.mxu0 %v10095
        %10117 = vmatpush.bf16.msra.mxu0 %v10094
        %10118 = vmatmul.bf16.gmra.mxu0 %v8024
        %v10119 = vpop.f32.mrf.mxu0
        %v10120 = vadd.f32 0.0, %v10119
        %v10121 = vpop.f32.mrf.mxu0
        %v10122 = vadd.f32 0.0, %v10121
        %10123 = vmatmul.bf16.gmra.mxu0 %v8025
        %v10124 = vpop.f32.mrf.mxu0
        %v10125 = vadd.f32 0.0, %v10124
        %v10126 = vpop.f32.mrf.mxu0
        %v10127 = vadd.f32 0.0, %v10126
        %10128 = vmatmul.bf16.gmra.mxu0 %v8026
        %v10129 = vpop.f32.mrf.mxu0
        %v10130 = vadd.f32 0.0, %v10129
        %v10131 = vpop.f32.mrf.mxu0
        %v10132 = vadd.f32 0.0, %v10131
        %10133 = vmatmul.bf16.gmra.mxu0 %v8027
        %v10134 = vpop.f32.mrf.mxu0
        %v10135 = vadd.f32 0.0, %v10134
        %v10136 = vpop.f32.mrf.mxu0
        %v10137 = vadd.f32 0.0, %v10136
        %10138 = vmatmul.bf16.gmra.mxu0 %v8028
        %v10139 = vpop.f32.mrf.mxu0
        %v10140 = vadd.f32 0.0, %v10139
        %v10141 = vpop.f32.mrf.mxu0
        %v10142 = vadd.f32 0.0, %v10141
        %10143 = vmatmul.bf16.gmra.mxu0 %v8029
        %v10144 = vpop.f32.mrf.mxu0
        %v10145 = vadd.f32 0.0, %v10144
        %v10146 = vpop.f32.mrf.mxu0
        %v10147 = vadd.f32 0.0, %v10146
        %10148 = vmatmul.bf16.gmra.mxu0 %v8030
        %v10149 = vpop.f32.mrf.mxu0
        %v10150 = vadd.f32 0.0, %v10149
        %v10151 = vpop.f32.mrf.mxu0
        %v10152 = vadd.f32 0.0, %v10151
        %10153 = vmatmul.bf16.gmra.mxu0 %v8031
        %v10154 = vpop.f32.mrf.mxu0
        %v10155 = vadd.f32 0.0, %v10154
        %v10156 = vpop.f32.mrf.mxu0
        %v10157 = vadd.f32 0.0, %v10156
        %10158 = vmatmul.bf16.gmra.mxu0 %v8032
        %v10159 = vpop.f32.mrf.mxu0
        %v10160 = vadd.f32 0.0, %v10159
        %v10161 = vpop.f32.mrf.mxu0
        %v10162 = vadd.f32 0.0, %v10161
        %10163 = vmatmul.bf16.gmra.mxu0 %v8033
        %v10164 = vpop.f32.mrf.mxu0
        %v10165 = vadd.f32 0.0, %v10164
        %v10166 = vpop.f32.mrf.mxu0
        %v10167 = vadd.f32 0.0, %v10166
        %10168 = vmatmul.bf16.gmra.mxu0 %v8034
        %v10169 = vpop.f32.mrf.mxu0
        %v10170 = vadd.f32 0.0, %v10169
        %v10171 = vpop.f32.mrf.mxu0
        %v10172 = vadd.f32 0.0, %v10171
        %10173 = vmatmul.bf16.gmra.mxu0 %v8035
        %v10174 = vpop.f32.mrf.mxu0
        %v10175 = vadd.f32 0.0, %v10174
        %v10176 = vpop.f32.mrf.mxu0
        %v10177 = vadd.f32 0.0, %v10176
        %10178 = vmatmul.bf16.gmra.mxu0 %v8036
        %v10179 = vpop.f32.mrf.mxu0
        %v10180 = vadd.f32 0.0, %v10179
        %v10181 = vpop.f32.mrf.mxu0
        %v10182 = vadd.f32 0.0, %v10181
        %10183 = vmatmul.bf16.gmra.mxu0 %v8037
        %v10184 = vpop.f32.mrf.mxu0
        %v10185 = vadd.f32 0.0, %v10184
        %v10186 = vpop.f32.mrf.mxu0
        %v10187 = vadd.f32 0.0, %v10186
        %10188 = vmatmul.bf16.gmra.mxu0 %v9070
        %v10189 = vpop.f32.mrf.mxu0
        %v10190 = vadd.f32 0.0, %v10189
        %v10191 = vpop.f32.mrf.mxu0
        %v10192 = vadd.f32 0.0, %v10191
        %10193 = vmatmul.bf16.gmra.mxu0 %v10058
        %v10194 = vpop.f32.mrf.mxu0
        %v10195 = vadd.f32 0.0, %v10194
        %v10196 = vpop.f32.mrf.mxu0
        %v10197 = vadd.f32 0.0, %v10196
        %10198 = vmatmul.bf16.gmra.mxu0 %v8040
        %v10199 = vpop.f32.mrf.mxu0
        %v10200 = vadd.f32 0.0, %v10199
        %v10201 = vpop.f32.mrf.mxu0
        %v10202 = vadd.f32 0.0, %v10201
        %10203 = vmatmul.bf16.gmra.mxu0 %v8041
        %v10204 = vpop.f32.mrf.mxu0
        %v10205 = vadd.f32 0.0, %v10204
        %v10206 = vpop.f32.mrf.mxu0
        %v10207 = vadd.f32 0.0, %v10206
        %10208 = vmatmul.bf16.gmra.mxu0 %v8042
        %v10209 = vpop.f32.mrf.mxu0
        %v10210 = vadd.f32 0.0, %v10209
        %v10211 = vpop.f32.mrf.mxu0
        %v10212 = vadd.f32 0.0, %v10211
        %10213 = vmatmul.bf16.gmra.mxu0 %v8043
        %v10214 = vpop.f32.mrf.mxu0
        %v10215 = vadd.f32 0.0, %v10214
        %v10216 = vpop.f32.mrf.mxu0
        %v10217 = vadd.f32 0.0, %v10216
        %10218 = vmatmul.bf16.gmra.mxu0 %v8044
        %v10219 = vpop.f32.mrf.mxu0
        %v10220 = vadd.f32 0.0, %v10219
        %v10221 = vpop.f32.mrf.mxu0
        %v10222 = vadd.f32 0.0, %v10221
        %10223 = vmatmul.bf16.gmra.mxu0 %v8045
        %v10224 = vpop.f32.mrf.mxu0
        %v10225 = vadd.f32 0.0, %v10224
        %v10226 = vpop.f32.mrf.mxu0
        %v10227 = vadd.f32 0.0, %v10226
        %10228 = vmatmul.bf16.gmra.mxu0 %v8046
        %v10229 = vpop.f32.mrf.mxu0
        %v10230 = vadd.f32 0.0, %v10229
        %v10231 = vpop.f32.mrf.mxu0
        %v10232 = vadd.f32 0.0, %v10231
        %10233 = vmatmul.bf16.gmra.mxu0 %v8047
        %v10234 = vpop.f32.mrf.mxu0
        %v10235 = vadd.f32 0.0, %v10234
        %v10236 = vpop.f32.mrf.mxu0
        %v10237 = vadd.f32 0.0, %v10236
        %10238 = vmatmul.bf16.gmra.mxu0 %v8048
        %v10239 = vpop.f32.mrf.mxu0
        %v10240 = vadd.f32 0.0, %v10239
        %v10241 = vpop.f32.mrf.mxu0
        %v10242 = vadd.f32 0.0, %v10241
        %10243 = vmatmul.bf16.gmra.mxu0 %v8049
        %v10244 = vpop.f32.mrf.mxu0
        %v10245 = vadd.f32 0.0, %v10244
        %v10246 = vpop.f32.mrf.mxu0
        %v10247 = vadd.f32 0.0, %v10246
        %10248 = vmatmul.bf16.gmra.mxu0 %v8050
        %v10249 = vpop.f32.mrf.mxu0
        %v10250 = vadd.f32 0.0, %v10249
        %v10251 = vpop.f32.mrf.mxu0
        %v10252 = vadd.f32 0.0, %v10251
        %10253 = vmatmul.bf16.gmra.mxu0 %v8051
        %v10254 = vpop.f32.mrf.mxu0
        %v10255 = vadd.f32 0.0, %v10254
        %v10256 = vpop.f32.mrf.mxu0
        %v10257 = vadd.f32 0.0, %v10256
        %10258 = vmatmul.bf16.gmra.mxu0 %v8052
        %v10259 = vpop.f32.mrf.mxu0
        %v10260 = vadd.f32 0.0, %v10259
        %v10261 = vpop.f32.mrf.mxu0
        %v10262 = vadd.f32 0.0, %v10261
        %10263 = vmatmul.bf16.gmra.mxu0 %v8053
        %v10264 = vpop.f32.mrf.mxu0
        %v10265 = vadd.f32 0.0, %v10264
        %v10266 = vpop.f32.mrf.mxu0
        %v10267 = vadd.f32 0.0, %v10266
        %10268 = vmatmul.bf16.gmra.mxu0 %v9071
        %v10269 = vpop.f32.mrf.mxu0
        %v10270 = vadd.f32 0.0, %v10269
        %v10271 = vpop.f32.mrf.mxu0
        %v10272 = vadd.f32 0.0, %v10271
        %10273 = vmatmul.bf16.gmra.mxu0 %v10059
        %v10274 = vpop.f32.mrf.mxu0
        %v10275 = vadd.f32 0.0, %v10274
        %v10276 = vpop.f32.mrf.mxu0
        %v10277 = vadd.f32 0.0, %v10276
        %10278 = vdwg.mxu0
        %v10279 = vadd.f32 %v9955, %v10120
        %v10280 = vadd.f32 %v9956, %v10122
        %v10281 = vadd.f32 %v9957, %v10125
        %v10282 = vadd.f32 %v9958, %v10127
        %v10283 = vadd.f32 %v9959, %v10130
        %v10284 = vadd.f32 %v9960, %v10132
        %v10285 = vadd.f32 %v9961, %v10135
        %v10286 = vadd.f32 %v9962, %v10137
        %v10287 = vadd.f32 %v9963, %v10140
        %v10288 = vadd.f32 %v9964, %v10142
        %v10289 = vadd.f32 %v9965, %v10145
        %v10290 = vadd.f32 %v9966, %v10147
        %v10291 = vadd.f32 %v9967, %v10150
        %v10292 = vadd.f32 %v9968, %v10152
        %v10293 = vadd.f32 %v9969, %v10155
        %v10294 = vadd.f32 %v9970, %v10157
        %v10295 = vadd.f32 %v9971, %v10160
        %v10296 = vadd.f32 %v9972, %v10162
        %v10297 = vadd.f32 %v9973, %v10165
        %v10298 = vadd.f32 %v9974, %v10167
        %v10299 = vadd.f32 %v9975, %v10170
        %v10300 = vadd.f32 %v9976, %v10172
        %v10301 = vadd.f32 %v9977, %v10175
        %v10302 = vadd.f32 %v9978, %v10177
        %v10303 = vadd.f32 %v9979, %v10180
        %v10304 = vadd.f32 %v9980, %v10182
        %v10305 = vadd.f32 %v9981, %v10185
        %v10306 = vadd.f32 %v9982, %v10187
        %v10307 = vadd.f32 %v9983, %v10190
        %v10308 = vadd.f32 %v9984, %v10192
        %v10309 = vadd.f32 %v9985, %v10195
        %v10310 = vadd.f32 %v9986, %v10197
        %v10311 = vadd.f32 %v9987, %v10200
        %v10312 = vadd.f32 %v9988, %v10202
        %v10313 = vadd.f32 %v9989, %v10205
        %v10314 = vadd.f32 %v9990, %v10207
        %v10315 = vadd.f32 %v9991, %v10210
        %v10316 = vadd.f32 %v9992, %v10212
        %v10317 = vadd.f32 %v9993, %v10215
        %v10318 = vadd.f32 %v9994, %v10217
        %v10319 = vadd.f32 %v9995, %v10220
        %v10320 = vadd.f32 %v9996, %v10222
        %v10321 = vadd.f32 %v9997, %v10225
        %v10322 = vadd.f32 %v9998, %v10227
        %v10323 = vadd.f32 %v9999, %v10230
        %v10324 = vadd.f32 %v10000, %v10232
        %v10325 = vadd.f32 %v10001, %v10235
        %v10326 = vadd.f32 %v10002, %v10237
        %v10327 = vadd.f32 %v10003, %v10240
        %v10328 = vadd.f32 %v10004, %v10242
        %v10329 = vadd.f32 %v10005, %v10245
        %v10330 = vadd.f32 %v10006, %v10247
        %v10331 = vadd.f32 %v10007, %v10250
        %v10332 = vadd.f32 %v10008, %v10252
        %v10333 = vadd.f32 %v10009, %v10255
        %v10334 = vadd.f32 %v10010, %v10257
        %v10335 = vadd.f32 %v10011, %v10260
        %v10336 = vadd.f32 %v10012, %v10262
        %v10337 = vadd.f32 %v10013, %v10265
        %v10338 = vadd.f32 %v10014, %v10267
        %v10339 = vadd.f32 %v10015, %v10270
        %v10340 = vadd.f32 %v10016, %v10272
        %v10341 = vadd.f32 %v10017, %v10275
        %v10342 = vadd.f32 %v10018, %v10277
        %v10343 = vld [vmem:[%s4] sm:$0x1]
        %v10345 = vperm.slane %v10343, 0
        %v10347 = vadd.f32 %v10279, %v10345
        %v10348 = vadd.f32 %v10280, %v10345
        %v10349 = vadd.f32 %v10281, %v10345
        %v10350 = vadd.f32 %v10282, %v10345
        %v10351 = vadd.f32 %v10283, %v10345
        %v10352 = vadd.f32 %v10284, %v10345
        %v10353 = vadd.f32 %v10285, %v10345
        %v10354 = vadd.f32 %v10286, %v10345
        %v10355 = vadd.f32 %v10287, %v10345
        %v10356 = vadd.f32 %v10288, %v10345
        %v10357 = vadd.f32 %v10289, %v10345
        %v10358 = vadd.f32 %v10290, %v10345
        %v10359 = vadd.f32 %v10291, %v10345
        %v10360 = vadd.f32 %v10292, %v10345
        %v10361 = vadd.f32 %v10293, %v10345
        %v10362 = vadd.f32 %v10294, %v10345
        %v10363 = vadd.f32 %v10295, %v10345
        %v10364 = vadd.f32 %v10296, %v10345
        %v10365 = vadd.f32 %v10297, %v10345
        %v10366 = vadd.f32 %v10298, %v10345
        %v10367 = vadd.f32 %v10299, %v10345
        %v10368 = vadd.f32 %v10300, %v10345
        %v10369 = vadd.f32 %v10301, %v10345
        %v10370 = vadd.f32 %v10302, %v10345
        %v10371 = vadd.f32 %v10303, %v10345
        %v10372 = vadd.f32 %v10304, %v10345
        %v10373 = vadd.f32 %v10305, %v10345
        %v10374 = vadd.f32 %v10306, %v10345
        %v10375 = vadd.f32 %v10307, %v10345
        %v10376 = vadd.f32 %v10308, %v10345
        %v10377 = vadd.f32 %v10309, %v10345
        %v10378 = vadd.f32 %v10310, %v10345
        %v10379 = vadd.f32 %v10311, %v10345
        %v10380 = vadd.f32 %v10312, %v10345
        %v10381 = vadd.f32 %v10313, %v10345
        %v10382 = vadd.f32 %v10314, %v10345
        %v10383 = vadd.f32 %v10315, %v10345
        %v10384 = vadd.f32 %v10316, %v10345
        %v10385 = vadd.f32 %v10317, %v10345
        %v10386 = vadd.f32 %v10318, %v10345
        %v10387 = vadd.f32 %v10319, %v10345
        %v10388 = vadd.f32 %v10320, %v10345
        %v10389 = vadd.f32 %v10321, %v10345
        %v10390 = vadd.f32 %v10322, %v10345
        %v10391 = vadd.f32 %v10323, %v10345
        %v10392 = vadd.f32 %v10324, %v10345
        %v10393 = vadd.f32 %v10325, %v10345
        %v10394 = vadd.f32 %v10326, %v10345
        %v10395 = vadd.f32 %v10327, %v10345
        %v10396 = vadd.f32 %v10328, %v10345
        %v10397 = vadd.f32 %v10329, %v10345
        %v10398 = vadd.f32 %v10330, %v10345
        %v10399 = vadd.f32 %v10331, %v10345
        %v10400 = vadd.f32 %v10332, %v10345
        %v10401 = vadd.f32 %v10333, %v10345
        %v10402 = vadd.f32 %v10334, %v10345
        %v10403 = vadd.f32 %v10335, %v10345
        %v10404 = vadd.f32 %v10336, %v10345
        %v10405 = vadd.f32 %v10337, %v10345
        %v10406 = vadd.f32 %v10338, %v10345
        %v10407 = vadd.f32 %v10339, %v10345
        %v10408 = vadd.f32 %v10340, %v10345
        %v10409 = vadd.f32 %v10341, %v10345
        %v10410 = vadd.f32 %v10342, %v10345
        %s10411 = scalar_lea.vmem %s280, 12
        %v10412 = vld [vmem:[%s10411] sm:$0xf]
        %v10413 = vld [vmem:[%s10411 + $0x4] sm:$0xf]
        %v10414 = vld [vmem:[%s10411 + $0x8] sm:$0x1]
        %v10415 = vld [vmem:[%s10411 + $0xc] sm:$0xf]
        %v10416 = vld [vmem:[%s10411 + $0x10] sm:$0xf]
        %v10417 = vld [vmem:[%s10411 + $0x14] sm:$0x1]
        %v10418 = vld [vmem:[%s10411 + $0x18] sm:$0xf]
        %v10419 = vld [vmem:[%s10411 + $0x1c] sm:$0xf]
        %v10420 = vld [vmem:[%s10411 + $0x20] sm:$0x1]
        %v10421 = vld [vmem:[%s10411 + $0x24] sm:$0xf]
        %v10422 = vld [vmem:[%s10411 + $0x28] sm:$0xf]
        %v10423 = vld [vmem:[%s10411 + $0x2c] sm:$0x1]
        %v10424 = vld [vmem:[%s10411 + $0x30] sm:$0xf]
        %v10425 = vld [vmem:[%s10411 + $0x34] sm:$0xf]
        %v10426 = vld [vmem:[%s10411 + $0x38] sm:$0x1]
        %v10427 = vld [vmem:[%s10411 + $0x3c] sm:$0xf]
        %v10428 = vld [vmem:[%s10411 + $0x40] sm:$0xf]
        %v10429 = vld [vmem:[%s10411 + $0x44] sm:$0x1]
        %v10430 = vld [vmem:[%s10411 + $0x48] sm:$0xf]
        %v10431 = vld [vmem:[%s10411 + $0x4c] sm:$0xf]
        %v10432 = vld [vmem:[%s10411 + $0x50] sm:$0x1]
        %v10433 = vld [vmem:[%s10411 + $0x54] sm:$0xf]
        %v10434 = vld [vmem:[%s10411 + $0x58] sm:$0xf]
        %v10435 = vld [vmem:[%s10411 + $0x5c] sm:$0x1]
        %v10436 = vld [vmem:[%s10411 + $0x60] sm:$0xf]
        %v10437 = vld [vmem:[%s10411 + $0x64] sm:$0xf]
        %v10438 = vld [vmem:[%s10411 + $0x68] sm:$0x1]
        %v10439 = vld [vmem:[%s10411 + $0x6c] sm:$0xf]
        %v10440 = vld [vmem:[%s10411 + $0x70] sm:$0xf]
        %v10441 = vld [vmem:[%s10411 + $0x74] sm:$0x1]
        %v10442 = vld [vmem:[%s10411 + $0x78] sm:$0xf]
        %v10443 = vld [vmem:[%s10411 + $0x7c] sm:$0xf]
        %v10444 = vld [vmem:[%s10411 + $0x80] sm:$0x1]
        %v10445 = vld [vmem:[%s10411 + $0x84] sm:$0xf]
        %v10446 = vld [vmem:[%s10411 + $0x88] sm:$0xf]
        %v10447 = vld [vmem:[%s10411 + $0x8c] sm:$0x1]
        %v10448 = vld [vmem:[%s10411 + $0x90] sm:$0xf]
        %v10449 = vld [vmem:[%s10411 + $0x94] sm:$0xf]
        %v10450 = vld [vmem:[%s10411 + $0x98] sm:$0x1]
        %v10451 = vld [vmem:[%s10411 + $0x9c] sm:$0xf]
        %v10452 = vld [vmem:[%s10411 + $0xa0] sm:$0xf]
        %v10453 = vld [vmem:[%s10411 + $0xa4] sm:$0x1]
        %v10454 = vld [vmem:[%s10411 + $0xa8] sm:$0xf]
        %v10455 = vld [vmem:[%s10411 + $0xac] sm:$0xf]
        %v10456 = vld [vmem:[%s10411 + $0xb0] sm:$0x1]
        %v10457 = vld [vmem:[%s10411 + $0xb4] sm:$0xf]
        %v10458 = vld [vmem:[%s10411 + $0xb8] sm:$0xf]
        %v10459 = vld [vmem:[%s10411 + $0xbc] sm:$0x1]
        %v10460 = vld [vmem:[%s10411 + $0xd8] sm:$0xf]
        %v10461 = vld [vmem:[%s10411 + $0xdc] sm:$0xf]
        %v10462 = vld [vmem:[%s10411 + $0xe0] sm:$0x1]
        %v10463 = vld [vmem:[%s10411 + $0xe4] sm:$0xf]
        %v10464 = vld [vmem:[%s10411 + $0xe8] sm:$0xf]
        %v10465 = vld [vmem:[%s10411 + $0xec] sm:$0x1]
        %v10466 = vld [vmem:[%s10411 + $0xf0] sm:$0xf]
        %v10467 = vld [vmem:[%s10411 + $0xf4] sm:$0xf]
        %v10468 = vld [vmem:[%s10411 + $0xf8] sm:$0x1]
        %v10469 = vld [vmem:[%s10411 + $0xfc] sm:$0xf]
        %v10470 = vld [vmem:[%s10411 + $0x100] sm:$0xf]
        %v10471 = vld [vmem:[%s10411 + $0x104] sm:$0x1]
        %v10472 = vld [vmem:[%s10411 + $0x108] sm:$0xf]
        %v10473 = vld [vmem:[%s10411 + $0x10c] sm:$0xf]
        %v10474 = vld [vmem:[%s10411 + $0x110] sm:$0x1]
        %v10475 = vld [vmem:[%s10411 + $0x114] sm:$0xf]
        %v10476 = vld [vmem:[%s10411 + $0x118] sm:$0xf]
        %v10477 = vld [vmem:[%s10411 + $0x11c] sm:$0x1]
        %v10478 = vld [vmem:[%s10411 + $0x120] sm:$0xf]
        %v10479 = vld [vmem:[%s10411 + $0x124] sm:$0xf]
        %v10480 = vld [vmem:[%s10411 + $0x128] sm:$0x1]
        %v10481 = vld [vmem:[%s10411 + $0x12c] sm:$0xf]
        %v10482 = vld [vmem:[%s10411 + $0x130] sm:$0xf]
        %v10483 = vld [vmem:[%s10411 + $0x134] sm:$0x1]
        %v10484 = vld [vmem:[%s10411 + $0x138] sm:$0xf]
        %v10485 = vld [vmem:[%s10411 + $0x13c] sm:$0xf]
        %v10486 = vld [vmem:[%s10411 + $0x140] sm:$0x1]
        %v10487 = vld [vmem:[%s10411 + $0x144] sm:$0xf]
        %v10488 = vld [vmem:[%s10411 + $0x148] sm:$0xf]
        %v10489 = vld [vmem:[%s10411 + $0x14c] sm:$0x1]
        %v10490 = vld [vmem:[%s10411 + $0x150] sm:$0xf]
        %v10491 = vld [vmem:[%s10411 + $0x154] sm:$0xf]
        %v10492 = vld [vmem:[%s10411 + $0x158] sm:$0x1]
        %v10493 = vld [vmem:[%s10411 + $0x15c] sm:$0xf]
        %v10494 = vld [vmem:[%s10411 + $0x160] sm:$0xf]
        %v10495 = vld [vmem:[%s10411 + $0x164] sm:$0x1]
        %v10496 = vld [vmem:[%s10411 + $0x168] sm:$0xf]
        %v10497 = vld [vmem:[%s10411 + $0x16c] sm:$0xf]
        %v10498 = vld [vmem:[%s10411 + $0x170] sm:$0x1]
        %v10499 = vld [vmem:[%s10411 + $0x174] sm:$0xf]
        %v10500 = vld [vmem:[%s10411 + $0x178] sm:$0xf]
        %v10501 = vld [vmem:[%s10411 + $0x17c] sm:$0x1]
        %v10502 = vld [vmem:[%s10411 + $0x180] sm:$0xf]
        %v10503 = vld [vmem:[%s10411 + $0x184] sm:$0xf]
        %v10504 = vld [vmem:[%s10411 + $0x188] sm:$0x1]
        %v10505 = vld [vmem:[%s10411 + $0x18c] sm:$0xf]
        %v10506 = vld [vmem:[%s10411 + $0x190] sm:$0xf]
        %v10507 = vld [vmem:[%s10411 + $0x194] sm:$0x1]
        %v10509 = vshrl.u32 %v10412, 16
        %v10511 = vrot.slane %v10509, 4
        %v10512 = vshll.u32 %v10412, 16
        %v10514 = vrot.slane %v10512, 5
        %v10515 = vor.u32 %v10511, %v10514
        %v10516 = vrot.slane %v10515, 4
        %v10518 = vshll.u32 %v10413, 16
        %v10520 = vrot.slane %v10518, 5
        %v10521 = vsel %vm446, %v10516, %v10520
        %v10522 = vshrl.u32 %v10413, 16
        %v10524 = vrot.slane %v10522, 4
        %v10525 = vor.u32 %v10524, %v10520
        %v10526 = vrot.slane %v10525, 4
        %v10528 = vshll.u32 %v10414, 16
        %v10530 = vrot.slane %v10528, 5
        %v10531 = vsel %vm446, %v10526, %v10530
        %v10533 = vshrl.u32 %v10415, 16
        %v10535 = vrot.slane %v10533, 4
        %v10536 = vshll.u32 %v10415, 16
        %v10538 = vrot.slane %v10536, 5
        %v10539 = vor.u32 %v10535, %v10538
        %v10540 = vrot.slane %v10539, 4
        %v10542 = vshll.u32 %v10416, 16
        %v10544 = vrot.slane %v10542, 5
        %v10545 = vsel %vm446, %v10540, %v10544
        %v10546 = vshrl.u32 %v10416, 16
        %v10548 = vrot.slane %v10546, 4
        %v10549 = vor.u32 %v10548, %v10544
        %v10550 = vrot.slane %v10549, 4
        %v10552 = vshll.u32 %v10417, 16
        %v10554 = vrot.slane %v10552, 5
        %v10555 = vsel %vm446, %v10550, %v10554
        %v10557 = vshrl.u32 %v10418, 16
        %v10559 = vrot.slane %v10557, 4
        %v10560 = vshll.u32 %v10418, 16
        %v10562 = vrot.slane %v10560, 5
        %v10563 = vor.u32 %v10559, %v10562
        %v10564 = vrot.slane %v10563, 4
        %v10566 = vshll.u32 %v10419, 16
        %v10568 = vrot.slane %v10566, 5
        %v10569 = vsel %vm446, %v10564, %v10568
        %v10570 = vshrl.u32 %v10419, 16
        %v10572 = vrot.slane %v10570, 4
        %v10573 = vor.u32 %v10572, %v10568
        %v10574 = vrot.slane %v10573, 4
        %v10576 = vshll.u32 %v10420, 16
        %v10578 = vrot.slane %v10576, 5
        %v10579 = vsel %vm446, %v10574, %v10578
        %v10581 = vshrl.u32 %v10421, 16
        %v10583 = vrot.slane %v10581, 4
        %v10584 = vshll.u32 %v10421, 16
        %v10586 = vrot.slane %v10584, 5
        %v10587 = vor.u32 %v10583, %v10586
        %v10588 = vrot.slane %v10587, 4
        %v10590 = vshll.u32 %v10422, 16
        %v10592 = vrot.slane %v10590, 5
        %v10593 = vsel %vm446, %v10588, %v10592
        %v10594 = vshrl.u32 %v10422, 16
        %v10596 = vrot.slane %v10594, 4
        %v10597 = vor.u32 %v10596, %v10592
        %v10598 = vrot.slane %v10597, 4
        %v10600 = vshll.u32 %v10423, 16
        %v10602 = vrot.slane %v10600, 5
        %v10603 = vsel %vm446, %v10598, %v10602
        %v10605 = vshrl.u32 %v10424, 16
        %v10607 = vrot.slane %v10605, 4
        %v10608 = vshll.u32 %v10424, 16
        %v10610 = vrot.slane %v10608, 5
        %v10611 = vor.u32 %v10607, %v10610
        %v10612 = vrot.slane %v10611, 4
        %v10614 = vshll.u32 %v10425, 16
        %v10616 = vrot.slane %v10614, 5
        %v10617 = vsel %vm446, %v10612, %v10616
        %v10618 = vshrl.u32 %v10425, 16
        %v10620 = vrot.slane %v10618, 4
        %v10621 = vor.u32 %v10620, %v10616
        %v10622 = vrot.slane %v10621, 4
        %v10624 = vshll.u32 %v10426, 16
        %v10626 = vrot.slane %v10624, 5
        %v10627 = vsel %vm446, %v10622, %v10626
        %v10629 = vshrl.u32 %v10427, 16
        %v10631 = vrot.slane %v10629, 4
        %v10632 = vshll.u32 %v10427, 16
        %v10634 = vrot.slane %v10632, 5
        %v10635 = vor.u32 %v10631, %v10634
        %v10636 = vrot.slane %v10635, 4
        %v10638 = vshll.u32 %v10428, 16
        %v10640 = vrot.slane %v10638, 5
        %v10641 = vsel %vm446, %v10636, %v10640
        %v10642 = vshrl.u32 %v10428, 16
        %v10644 = vrot.slane %v10642, 4
        %v10645 = vor.u32 %v10644, %v10640
        %v10646 = vrot.slane %v10645, 4
        %v10648 = vshll.u32 %v10429, 16
        %v10650 = vrot.slane %v10648, 5
        %v10651 = vsel %vm446, %v10646, %v10650
        %v10653 = vshrl.u32 %v10430, 16
        %v10655 = vrot.slane %v10653, 4
        %v10656 = vshll.u32 %v10430, 16
        %v10658 = vrot.slane %v10656, 5
        %v10659 = vor.u32 %v10655, %v10658
        %v10660 = vrot.slane %v10659, 4
        %v10662 = vshll.u32 %v10431, 16
        %v10664 = vrot.slane %v10662, 5
        %v10665 = vsel %vm446, %v10660, %v10664
        %v10666 = vshrl.u32 %v10431, 16
        %v10668 = vrot.slane %v10666, 4
        %v10669 = vor.u32 %v10668, %v10664
        %v10670 = vrot.slane %v10669, 4
        %v10672 = vshll.u32 %v10432, 16
        %v10674 = vrot.slane %v10672, 5
        %v10675 = vsel %vm446, %v10670, %v10674
        %v10677 = vshrl.u32 %v10433, 16
        %v10679 = vrot.slane %v10677, 4
        %v10680 = vshll.u32 %v10433, 16
        %v10682 = vrot.slane %v10680, 5
        %v10683 = vor.u32 %v10679, %v10682
        %v10684 = vrot.slane %v10683, 4
        %v10686 = vshll.u32 %v10434, 16
        %v10688 = vrot.slane %v10686, 5
        %v10689 = vsel %vm446, %v10684, %v10688
        %v10690 = vshrl.u32 %v10434, 16
        %v10692 = vrot.slane %v10690, 4
        %v10693 = vor.u32 %v10692, %v10688
        %v10694 = vrot.slane %v10693, 4
        %v10696 = vshll.u32 %v10435, 16
        %v10698 = vrot.slane %v10696, 5
        %v10699 = vsel %vm446, %v10694, %v10698
        %v10701 = vshrl.u32 %v10436, 16
        %v10703 = vrot.slane %v10701, 4
        %v10704 = vshll.u32 %v10436, 16
        %v10706 = vrot.slane %v10704, 5
        %v10707 = vor.u32 %v10703, %v10706
        %v10708 = vrot.slane %v10707, 4
        %v10710 = vshll.u32 %v10437, 16
        %v10712 = vrot.slane %v10710, 5
        %v10713 = vsel %vm446, %v10708, %v10712
        %v10714 = vshrl.u32 %v10437, 16
        %v10716 = vrot.slane %v10714, 4
        %v10717 = vor.u32 %v10716, %v10712
        %v10718 = vrot.slane %v10717, 4
        %v10720 = vshll.u32 %v10438, 16
        %v10722 = vrot.slane %v10720, 5
        %v10723 = vsel %vm446, %v10718, %v10722
        %v10725 = vshrl.u32 %v10439, 16
        %v10727 = vrot.slane %v10725, 4
        %v10728 = vshll.u32 %v10439, 16
        %v10730 = vrot.slane %v10728, 5
        %v10731 = vor.u32 %v10727, %v10730
        %v10732 = vrot.slane %v10731, 4
        %v10734 = vshll.u32 %v10440, 16
        %v10736 = vrot.slane %v10734, 5
        %v10737 = vsel %vm446, %v10732, %v10736
        %v10738 = vshrl.u32 %v10440, 16
        %v10740 = vrot.slane %v10738, 4
        %v10741 = vor.u32 %v10740, %v10736
        %v10742 = vrot.slane %v10741, 4
        %v10744 = vshll.u32 %v10441, 16
        %v10746 = vrot.slane %v10744, 5
        %v10747 = vsel %vm446, %v10742, %v10746
        %v10749 = vshrl.u32 %v10442, 16
        %v10751 = vrot.slane %v10749, 4
        %v10752 = vshll.u32 %v10442, 16
        %v10754 = vrot.slane %v10752, 5
        %v10755 = vor.u32 %v10751, %v10754
        %v10756 = vrot.slane %v10755, 4
        %v10758 = vshll.u32 %v10443, 16
        %v10760 = vrot.slane %v10758, 5
        %v10761 = vsel %vm446, %v10756, %v10760
        %v10762 = vshrl.u32 %v10443, 16
        %v10764 = vrot.slane %v10762, 4
        %v10765 = vor.u32 %v10764, %v10760
        %v10766 = vrot.slane %v10765, 4
        %v10768 = vshll.u32 %v10444, 16
        %v10770 = vrot.slane %v10768, 5
        %v10771 = vsel %vm446, %v10766, %v10770
        %v10773 = vshrl.u32 %v10445, 16
        %v10775 = vrot.slane %v10773, 4
        %v10776 = vshll.u32 %v10445, 16
        %v10778 = vrot.slane %v10776, 5
        %v10779 = vor.u32 %v10775, %v10778
        %v10780 = vrot.slane %v10779, 4
        %v10782 = vshll.u32 %v10446, 16
        %v10784 = vrot.slane %v10782, 5
        %v10785 = vsel %vm446, %v10780, %v10784
        %v10786 = vshrl.u32 %v10446, 16
        %v10788 = vrot.slane %v10786, 4
        %v10789 = vor.u32 %v10788, %v10784
        %v10790 = vrot.slane %v10789, 4
        %v10792 = vshll.u32 %v10447, 16
        %v10794 = vrot.slane %v10792, 5
        %v10795 = vsel %vm446, %v10790, %v10794
        %v10797 = vshrl.u32 %v10448, 16
        %v10799 = vrot.slane %v10797, 4
        %v10800 = vshll.u32 %v10448, 16
        %v10802 = vrot.slane %v10800, 5
        %v10803 = vor.u32 %v10799, %v10802
        %v10804 = vrot.slane %v10803, 4
        %v10806 = vshll.u32 %v10449, 16
        %v10808 = vrot.slane %v10806, 5
        %v10809 = vsel %vm446, %v10804, %v10808
        %v10810 = vshrl.u32 %v10449, 16
        %v10812 = vrot.slane %v10810, 4
        %v10813 = vor.u32 %v10812, %v10808
        %v10814 = vrot.slane %v10813, 4
        %v10816 = vshll.u32 %v10450, 16
        %v10818 = vrot.slane %v10816, 5
        %v10819 = vsel %vm446, %v10814, %v10818
        %v10821 = vshrl.u32 %v10451, 16
        %v10823 = vrot.slane %v10821, 4
        %v10824 = vshll.u32 %v10451, 16
        %v10826 = vrot.slane %v10824, 5
        %v10827 = vor.u32 %v10823, %v10826
        %v10828 = vrot.slane %v10827, 4
        %v10830 = vshll.u32 %v10452, 16
        %v10832 = vrot.slane %v10830, 5
        %v10833 = vsel %vm446, %v10828, %v10832
        %v10834 = vshrl.u32 %v10452, 16
        %v10836 = vrot.slane %v10834, 4
        %v10837 = vor.u32 %v10836, %v10832
        %v10838 = vrot.slane %v10837, 4
        %v10840 = vshll.u32 %v10453, 16
        %v10842 = vrot.slane %v10840, 5
        %v10843 = vsel %vm446, %v10838, %v10842
        %v10845 = vshrl.u32 %v10454, 16
        %v10847 = vrot.slane %v10845, 4
        %v10848 = vshll.u32 %v10454, 16
        %v10850 = vrot.slane %v10848, 5
        %v10851 = vor.u32 %v10847, %v10850
        %v10852 = vrot.slane %v10851, 4
        %v10854 = vshll.u32 %v10455, 16
        %v10856 = vrot.slane %v10854, 5
        %v10857 = vsel %vm446, %v10852, %v10856
        %v10858 = vshrl.u32 %v10455, 16
        %v10860 = vrot.slane %v10858, 4
        %v10861 = vor.u32 %v10860, %v10856
        %v10862 = vrot.slane %v10861, 4
        %v10864 = vshll.u32 %v10456, 16
        %v10866 = vrot.slane %v10864, 5
        %v10867 = vsel %vm446, %v10862, %v10866
        %v10869 = vshrl.u32 %v10457, 16
        %v10871 = vrot.slane %v10869, 4
        %v10872 = vshll.u32 %v10457, 16
        %v10874 = vrot.slane %v10872, 5
        %v10875 = vor.u32 %v10871, %v10874
        %v10876 = vrot.slane %v10875, 4
        %v10878 = vshll.u32 %v10458, 16
        %v10880 = vrot.slane %v10878, 5
        %v10881 = vsel %vm446, %v10876, %v10880
        %v10882 = vshrl.u32 %v10458, 16
        %v10884 = vrot.slane %v10882, 4
        %v10885 = vor.u32 %v10884, %v10880
        %v10886 = vrot.slane %v10885, 4
        %v10888 = vshll.u32 %v10459, 16
        %v10890 = vrot.slane %v10888, 5
        %v10891 = vsel %vm446, %v10886, %v10890
        %v10893 = vshrl.u32 %v10460, 16
        %v10895 = vrot.slane %v10893, 4
        %v10896 = vshll.u32 %v10460, 16
        %v10898 = vrot.slane %v10896, 5
        %v10899 = vor.u32 %v10895, %v10898
        %v10900 = vrot.slane %v10899, 4
        %v10902 = vshll.u32 %v10461, 16
        %v10904 = vrot.slane %v10902, 5
        %v10905 = vsel %vm446, %v10900, %v10904
        %v10906 = vshrl.u32 %v10461, 16
        %v10908 = vrot.slane %v10906, 4
        %v10909 = vor.u32 %v10908, %v10904
        %v10910 = vrot.slane %v10909, 4
        %v10912 = vshll.u32 %v10462, 16
        %v10914 = vrot.slane %v10912, 5
        %v10915 = vsel %vm446, %v10910, %v10914
        %v10917 = vshrl.u32 %v10463, 16
        %v10919 = vrot.slane %v10917, 4
        %v10920 = vshll.u32 %v10463, 16
        %v10922 = vrot.slane %v10920, 5
        %v10923 = vor.u32 %v10919, %v10922
        %v10924 = vrot.slane %v10923, 4
        %v10926 = vshll.u32 %v10464, 16
        %v10928 = vrot.slane %v10926, 5
        %v10929 = vsel %vm446, %v10924, %v10928
        %v10930 = vshrl.u32 %v10464, 16
        %v10932 = vrot.slane %v10930, 4
        %v10933 = vor.u32 %v10932, %v10928
        %v10934 = vrot.slane %v10933, 4
        %v10936 = vshll.u32 %v10465, 16
        %v10938 = vrot.slane %v10936, 5
        %v10939 = vsel %vm446, %v10934, %v10938
        %v10941 = vshrl.u32 %v10466, 16
        %v10943 = vrot.slane %v10941, 4
        %v10944 = vshll.u32 %v10466, 16
        %v10946 = vrot.slane %v10944, 5
        %v10947 = vor.u32 %v10943, %v10946
        %v10948 = vrot.slane %v10947, 4
        %v10950 = vshll.u32 %v10467, 16
        %v10952 = vrot.slane %v10950, 5
        %v10953 = vsel %vm446, %v10948, %v10952
        %v10954 = vshrl.u32 %v10467, 16
        %v10956 = vrot.slane %v10954, 4
        %v10957 = vor.u32 %v10956, %v10952
        %v10958 = vrot.slane %v10957, 4
        %v10960 = vshll.u32 %v10468, 16
        %v10962 = vrot.slane %v10960, 5
        %v10963 = vsel %vm446, %v10958, %v10962
        %v10965 = vshrl.u32 %v10469, 16
        %v10967 = vrot.slane %v10965, 4
        %v10968 = vshll.u32 %v10469, 16
        %v10970 = vrot.slane %v10968, 5
        %v10971 = vor.u32 %v10967, %v10970
        %v10972 = vrot.slane %v10971, 4
        %v10974 = vshll.u32 %v10470, 16
        %v10976 = vrot.slane %v10974, 5
        %v10977 = vsel %vm446, %v10972, %v10976
        %v10978 = vshrl.u32 %v10470, 16
        %v10980 = vrot.slane %v10978, 4
        %v10981 = vor.u32 %v10980, %v10976
        %v10982 = vrot.slane %v10981, 4
        %v10984 = vshll.u32 %v10471, 16
        %v10986 = vrot.slane %v10984, 5
        %v10987 = vsel %vm446, %v10982, %v10986
        %v10989 = vshrl.u32 %v10472, 16
        %v10991 = vrot.slane %v10989, 4
        %v10992 = vshll.u32 %v10472, 16
        %v10994 = vrot.slane %v10992, 5
        %v10995 = vor.u32 %v10991, %v10994
        %v10996 = vrot.slane %v10995, 4
        %v10998 = vshll.u32 %v10473, 16
        %v11000 = vrot.slane %v10998, 5
        %v11001 = vsel %vm446, %v10996, %v11000
        %v11002 = vshrl.u32 %v10473, 16
        %v11004 = vrot.slane %v11002, 4
        %v11005 = vor.u32 %v11004, %v11000
        %v11006 = vrot.slane %v11005, 4
        %v11008 = vshll.u32 %v10474, 16
        %v11010 = vrot.slane %v11008, 5
        %v11011 = vsel %vm446, %v11006, %v11010
        %v11013 = vshrl.u32 %v10475, 16
        %v11015 = vrot.slane %v11013, 4
        %v11016 = vshll.u32 %v10475, 16
        %v11018 = vrot.slane %v11016, 5
        %v11019 = vor.u32 %v11015, %v11018
        %v11020 = vrot.slane %v11019, 4
        %v11022 = vshll.u32 %v10476, 16
        %v11024 = vrot.slane %v11022, 5
        %v11025 = vsel %vm446, %v11020, %v11024
        %v11026 = vshrl.u32 %v10476, 16
        %v11028 = vrot.slane %v11026, 4
        %v11029 = vor.u32 %v11028, %v11024
        %v11030 = vrot.slane %v11029, 4
        %v11032 = vshll.u32 %v10477, 16
        %v11034 = vrot.slane %v11032, 5
        %v11035 = vsel %vm446, %v11030, %v11034
        %v11037 = vshrl.u32 %v10478, 16
        %v11039 = vrot.slane %v11037, 4
        %v11040 = vshll.u32 %v10478, 16
        %v11042 = vrot.slane %v11040, 5
        %v11043 = vor.u32 %v11039, %v11042
        %v11044 = vrot.slane %v11043, 4
        %v11046 = vshll.u32 %v10479, 16
        %v11048 = vrot.slane %v11046, 5
        %v11049 = vsel %vm446, %v11044, %v11048
        %v11050 = vshrl.u32 %v10479, 16
        %v11052 = vrot.slane %v11050, 4
        %v11053 = vor.u32 %v11052, %v11048
        %v11054 = vrot.slane %v11053, 4
        %v11056 = vshll.u32 %v10480, 16
        %v11058 = vrot.slane %v11056, 5
        %v11059 = vsel %vm446, %v11054, %v11058
        %v11061 = vshrl.u32 %v10481, 16
        %v11063 = vrot.slane %v11061, 4
        %v11064 = vshll.u32 %v10481, 16
        %v11066 = vrot.slane %v11064, 5
        %v11067 = vor.u32 %v11063, %v11066
        %v11068 = vrot.slane %v11067, 4
        %v11070 = vshll.u32 %v10482, 16
        %v11072 = vrot.slane %v11070, 5
        %v11073 = vsel %vm446, %v11068, %v11072
        %v11074 = vshrl.u32 %v10482, 16
        %v11076 = vrot.slane %v11074, 4
        %v11077 = vor.u32 %v11076, %v11072
        %v11078 = vrot.slane %v11077, 4
        %v11080 = vshll.u32 %v10483, 16
        %v11082 = vrot.slane %v11080, 5
        %v11083 = vsel %vm446, %v11078, %v11082
        %v11085 = vshrl.u32 %v10484, 16
        %v11087 = vrot.slane %v11085, 4
        %v11088 = vshll.u32 %v10484, 16
        %v11090 = vrot.slane %v11088, 5
        %v11091 = vor.u32 %v11087, %v11090
        %v11092 = vrot.slane %v11091, 4
        %v11094 = vshll.u32 %v10485, 16
        %v11096 = vrot.slane %v11094, 5
        %v11097 = vsel %vm446, %v11092, %v11096
        %v11098 = vshrl.u32 %v10485, 16
        %v11100 = vrot.slane %v11098, 4
        %v11101 = vor.u32 %v11100, %v11096
        %v11102 = vrot.slane %v11101, 4
        %v11104 = vshll.u32 %v10486, 16
        %v11106 = vrot.slane %v11104, 5
        %v11107 = vsel %vm446, %v11102, %v11106
        %v11109 = vshrl.u32 %v10487, 16
        %v11111 = vrot.slane %v11109, 4
        %v11112 = vshll.u32 %v10487, 16
        %v11114 = vrot.slane %v11112, 5
        %v11115 = vor.u32 %v11111, %v11114
        %v11116 = vrot.slane %v11115, 4
        %v11118 = vshll.u32 %v10488, 16
        %v11120 = vrot.slane %v11118, 5
        %v11121 = vsel %vm446, %v11116, %v11120
        %v11122 = vshrl.u32 %v10488, 16
        %v11124 = vrot.slane %v11122, 4
        %v11125 = vor.u32 %v11124, %v11120
        %v11126 = vrot.slane %v11125, 4
        %v11128 = vshll.u32 %v10489, 16
        %v11130 = vrot.slane %v11128, 5
        %v11131 = vsel %vm446, %v11126, %v11130
        %v11133 = vshrl.u32 %v10490, 16
        %v11135 = vrot.slane %v11133, 4
        %v11136 = vshll.u32 %v10490, 16
        %v11138 = vrot.slane %v11136, 5
        %v11139 = vor.u32 %v11135, %v11138
        %v11140 = vrot.slane %v11139, 4
        %v11142 = vshll.u32 %v10491, 16
        %v11144 = vrot.slane %v11142, 5
        %v11145 = vsel %vm446, %v11140, %v11144
        %v11146 = vshrl.u32 %v10491, 16
        %v11148 = vrot.slane %v11146, 4
        %v11149 = vor.u32 %v11148, %v11144
        %v11150 = vrot.slane %v11149, 4
        %v11152 = vshll.u32 %v10492, 16
        %v11154 = vrot.slane %v11152, 5
        %v11155 = vsel %vm446, %v11150, %v11154
        %v11157 = vshrl.u32 %v10493, 16
        %v11159 = vrot.slane %v11157, 4
        %v11160 = vshll.u32 %v10493, 16
        %v11162 = vrot.slane %v11160, 5
        %v11163 = vor.u32 %v11159, %v11162
        %v11164 = vrot.slane %v11163, 4
        %v11166 = vshll.u32 %v10494, 16
        %v11168 = vrot.slane %v11166, 5
        %v11169 = vsel %vm446, %v11164, %v11168
        %v11170 = vshrl.u32 %v10494, 16
        %v11172 = vrot.slane %v11170, 4
        %v11173 = vor.u32 %v11172, %v11168
        %v11174 = vrot.slane %v11173, 4
        %v11176 = vshll.u32 %v10495, 16
        %v11178 = vrot.slane %v11176, 5
        %v11179 = vsel %vm446, %v11174, %v11178
        %v11181 = vshrl.u32 %v10496, 16
        %v11183 = vrot.slane %v11181, 4
        %v11184 = vshll.u32 %v10496, 16
        %v11186 = vrot.slane %v11184, 5
        %v11187 = vor.u32 %v11183, %v11186
        %v11188 = vrot.slane %v11187, 4
        %v11190 = vshll.u32 %v10497, 16
        %v11192 = vrot.slane %v11190, 5
        %v11193 = vsel %vm446, %v11188, %v11192
        %v11194 = vshrl.u32 %v10497, 16
        %v11196 = vrot.slane %v11194, 4
        %v11197 = vor.u32 %v11196, %v11192
        %v11198 = vrot.slane %v11197, 4
        %v11200 = vshll.u32 %v10498, 16
        %v11202 = vrot.slane %v11200, 5
        %v11203 = vsel %vm446, %v11198, %v11202
        %v11205 = vshrl.u32 %v10499, 16
        %v11207 = vrot.slane %v11205, 4
        %v11208 = vshll.u32 %v10499, 16
        %v11210 = vrot.slane %v11208, 5
        %v11211 = vor.u32 %v11207, %v11210
        %v11212 = vrot.slane %v11211, 4
        %v11214 = vshll.u32 %v10500, 16
        %v11216 = vrot.slane %v11214, 5
        %v11217 = vsel %vm446, %v11212, %v11216
        %v11218 = vshrl.u32 %v10500, 16
        %v11220 = vrot.slane %v11218, 4
        %v11221 = vor.u32 %v11220, %v11216
        %v11222 = vrot.slane %v11221, 4
        %v11224 = vshll.u32 %v10501, 16
        %v11226 = vrot.slane %v11224, 5
        %v11227 = vsel %vm446, %v11222, %v11226
        %v11229 = vshrl.u32 %v10502, 16
        %v11231 = vrot.slane %v11229, 4
        %v11232 = vshll.u32 %v10502, 16
        %v11234 = vrot.slane %v11232, 5
        %v11235 = vor.u32 %v11231, %v11234
        %v11236 = vrot.slane %v11235, 4
        %v11238 = vshll.u32 %v10503, 16
        %v11240 = vrot.slane %v11238, 5
        %v11241 = vsel %vm446, %v11236, %v11240
        %v11242 = vshrl.u32 %v10503, 16
        %v11244 = vrot.slane %v11242, 4
        %v11245 = vor.u32 %v11244, %v11240
        %v11246 = vrot.slane %v11245, 4
        %v11248 = vshll.u32 %v10504, 16
        %v11250 = vrot.slane %v11248, 5
        %v11251 = vsel %vm446, %v11246, %v11250
        %v11253 = vshrl.u32 %v10505, 16
        %v11255 = vrot.slane %v11253, 4
        %v11256 = vshll.u32 %v10505, 16
        %v11258 = vrot.slane %v11256, 5
        %v11259 = vor.u32 %v11255, %v11258
        %v11260 = vrot.slane %v11259, 4
        %v11262 = vshll.u32 %v10506, 16
        %v11264 = vrot.slane %v11262, 5
        %v11265 = vsel %vm446, %v11260, %v11264
        %v11266 = vshrl.u32 %v10506, 16
        %v11268 = vrot.slane %v11266, 4
        %v11269 = vor.u32 %v11268, %v11264
        %v11270 = vrot.slane %v11269, 4
        %v11272 = vshll.u32 %v10507, 16
        %v11274 = vrot.slane %v11272, 5
        %v11275 = vsel %vm446, %v11270, %v11274
        %v11276 = vld [vmem:[%s5] sm:$0xf]
        %v11277 = vld [vmem:[%s5 + $0x4] sm:$0xf]
        %v11278 = vld [vmem:[%s5 + $0x8] sm:$0xf]
        %v11279 = vld [vmem:[%s5 + $0xc] sm:$0xf]
        %v11280 = vld [vmem:[%s5 + $0x10] sm:$0xf]
        %v11281 = vld [vmem:[%s5 + $0x14] sm:$0xf]
        %v11282 = vld [vmem:[%s5 + $0x18] sm:$0xf]
        %v11283 = vld [vmem:[%s5 + $0x1c] sm:$0xf]
        %v11284 = vld [vmem:[%s5 + $0x20] sm:$0xf]
        %v11285 = vld [vmem:[%s5 + $0x24] sm:$0xf]
        %v11286 = vld [vmem:[%s5 + $0x28] sm:$0xf]
        %v11287 = vld [vmem:[%s5 + $0x2c] sm:$0xf]
        %v11288 = vld [vmem:[%s5 + $0x30] sm:$0xf]
        %v11289 = vld [vmem:[%s5 + $0x34] sm:$0xf]
        %v11290 = vld [vmem:[%s5 + $0x38] sm:$0xf]
        %v11291 = vld [vmem:[%s5 + $0x3c] sm:$0xf]
        %v11292 = vld [vmem:[%s6] sm:$0x1]
        %v11294 = vperm.slane %v11292, 0
        %v11296 = vunpack.c.l.b16 %v10521
        %v11297 = vunpack.c.l.b16 %v10531
        %v11298 = vunpack.c.l.b16 %v10545
        %v11299 = vunpack.c.l.b16 %v10555
        %v11300 = vunpack.c.l.b16 %v10569
        %v11301 = vunpack.c.l.b16 %v10579
        %v11302 = vunpack.c.l.b16 %v10593
        %v11303 = vunpack.c.l.b16 %v10603
        %v11304 = vunpack.c.l.b16 %v10617
        %v11305 = vunpack.c.l.b16 %v10627
        %v11306 = vunpack.c.l.b16 %v10641
        %v11307 = vunpack.c.l.b16 %v10651
        %v11308 = vunpack.c.l.b16 %v10665
        %v11309 = vunpack.c.l.b16 %v10675
        %v11310 = vunpack.c.l.b16 %v10689
        %v11311 = vunpack.c.l.b16 %v10699
        %v11312 = vunpack.c.l.b16 %v10713
        %v11313 = vunpack.c.l.b16 %v10723
        %v11314 = vunpack.c.l.b16 %v10737
        %v11315 = vunpack.c.l.b16 %v10747
        %v11316 = vunpack.c.l.b16 %v10761
        %v11317 = vunpack.c.l.b16 %v10771
        %v11318 = vunpack.c.l.b16 %v10785
        %v11319 = vunpack.c.l.b16 %v10795
        %v11320 = vunpack.c.l.b16 %v10809
        %v11321 = vunpack.c.l.b16 %v10819
        %v11322 = vunpack.c.l.b16 %v10833
        %v11323 = vunpack.c.l.b16 %v10843
        %v11324 = vunpack.c.l.b16 %v10857
        %v11325 = vunpack.c.l.b16 %v10867
        %v11326 = vunpack.c.l.b16 %v10881
        %v11327 = vunpack.c.l.b16 %v10891
        %v11328 = vunpack.c.l.b16 %v10905
        %v11329 = vunpack.c.l.b16 %v10915
        %v11330 = vunpack.c.l.b16 %v10929
        %v11331 = vunpack.c.l.b16 %v10939
        %v11332 = vunpack.c.l.b16 %v10953
        %v11333 = vunpack.c.l.b16 %v10963
        %v11334 = vunpack.c.l.b16 %v10977
        %v11335 = vunpack.c.l.b16 %v10987
        %v11336 = vunpack.c.l.b16 %v11001
        %v11337 = vunpack.c.l.b16 %v11011
        %v11338 = vunpack.c.l.b16 %v11025
        %v11339 = vunpack.c.l.b16 %v11035
        %v11340 = vunpack.c.l.b16 %v11049
        %v11341 = vunpack.c.l.b16 %v11059
        %v11342 = vunpack.c.l.b16 %v11073
        %v11343 = vunpack.c.l.b16 %v11083
        %v11344 = vunpack.c.l.b16 %v11097
        %v11345 = vunpack.c.l.b16 %v11107
        %v11346 = vunpack.c.l.b16 %v11121
        %v11347 = vunpack.c.l.b16 %v11131
        %v11348 = vunpack.c.l.b16 %v11145
        %v11349 = vunpack.c.l.b16 %v11155
        %v11350 = vunpack.c.l.b16 %v11169
        %v11351 = vunpack.c.l.b16 %v11179
        %v11352 = vunpack.c.l.b16 %v11193
        %v11353 = vunpack.c.l.b16 %v11203
        %v11354 = vunpack.c.l.b16 %v11217
        %v11355 = vunpack.c.l.b16 %v11227
        %v11356 = vunpack.c.l.b16 %v11241
        %v11357 = vunpack.c.l.b16 %v11251
        %v11358 = vunpack.c.l.b16 %v11265
        %v11359 = vunpack.c.l.b16 %v11275
        %v11360 = vpack.c.b16 %v11297, %v11296
        %v11361 = vpack.c.b16 %v11299, %v11298
        %v11362 = vpack.c.b16 %v11301, %v11300
        %v11363 = vpack.c.b16 %v11303, %v11302
        %v11364 = vpack.c.b16 %v11305, %v11304
        %v11365 = vpack.c.b16 %v11307, %v11306
        %v11366 = vpack.c.b16 %v11309, %v11308
        %v11367 = vpack.c.b16 %v11311, %v11310
        %v11368 = vpack.c.b16 %v11313, %v11312
        %v11369 = vpack.c.b16 %v11315, %v11314
        %v11370 = vpack.c.b16 %v11317, %v11316
        %v11371 = vpack.c.b16 %v11319, %v11318
        %v11372 = vpack.c.b16 %v11321, %v11320
        %v11373 = vpack.c.b16 %v11323, %v11322
        %v11374 = vpack.c.b16 %v11325, %v11324
        %v11375 = vpack.c.b16 %v11327, %v11326
        %v11376 = vpack.c.b16 %v11329, %v11328
        %v11377 = vpack.c.b16 %v11331, %v11330
        %v11378 = vpack.c.b16 %v11333, %v11332
        %v11379 = vpack.c.b16 %v11335, %v11334
        %v11380 = vpack.c.b16 %v11337, %v11336
        %v11381 = vpack.c.b16 %v11339, %v11338
        %v11382 = vpack.c.b16 %v11341, %v11340
        %v11383 = vpack.c.b16 %v11343, %v11342
        %v11384 = vpack.c.b16 %v11345, %v11344
        %v11385 = vpack.c.b16 %v11347, %v11346
        %v11386 = vpack.c.b16 %v11349, %v11348
        %v11387 = vpack.c.b16 %v11351, %v11350
        %v11388 = vpack.c.b16 %v11353, %v11352
        %v11389 = vpack.c.b16 %v11355, %v11354
        %v11390 = vpack.c.b16 %v11357, %v11356
        %v11391 = vpack.c.b16 %v11359, %v11358
        %v11440 = vunpack.c.l.b16 %v11276
        %v11441 = vunpack.c.l.b16 %v11277
        %v11442 = vunpack.c.l.b16 %v11278
        %v11443 = vunpack.c.l.b16 %v11279
        %v11444 = vunpack.c.l.b16 %v11280
        %v11445 = vunpack.c.l.b16 %v11281
        %v11446 = vunpack.c.l.b16 %v11282
        %v11447 = vunpack.c.l.b16 %v11283
        %v11448 = vunpack.c.l.b16 %v11284
        %v11449 = vunpack.c.l.b16 %v11285
        %v11450 = vunpack.c.l.b16 %v11286
        %v11451 = vunpack.c.l.b16 %v11287
        %v11452 = vunpack.c.l.b16 %v11288
        %v11453 = vunpack.c.l.b16 %v11289
        %v11454 = vunpack.c.l.b16 %v11290
        %v11455 = vunpack.c.l.b16 %v11291
        %v11456 = vpack.c.b16 %v11441, %v11440
        %v11457 = vpack.c.b16 %v11443, %v11442
        %v11458 = vpack.c.b16 %v11445, %v11444
        %v11459 = vpack.c.b16 %v11447, %v11446
        %v11460 = vpack.c.b16 %v11449, %v11448
        %v11461 = vpack.c.b16 %v11451, %v11450
        %v11462 = vpack.c.b16 %v11453, %v11452
        %v11463 = vpack.c.b16 %v11455, %v11454
        %11472 = vmatpush.bf16.msra.mxu0 %v11463
        %11473 = vmatpush.bf16.msra.mxu0 %v11462
        %11474 = vmatpush.bf16.msra.mxu0 %v11461
        %11475 = vmatpush.bf16.msra.mxu0 %v11460
        %11476 = vmatpush.bf16.msra.mxu0 %v11459
        %11477 = vmatpush.bf16.msra.mxu0 %v11458
        %11478 = vmatpush.bf16.msra.mxu0 %v11457
        %11479 = vmatpush.bf16.msra.mxu0 %v11456
        %11480 = vmatmul.bf16.gmra.mxu0 %v11360
        %v11481 = vpop.f32.mrf.mxu0
        %v11482 = vadd.f32 %v11294, %v11481
        %v11483 = vpop.f32.mrf.mxu0
        %v11484 = vadd.f32 %v11294, %v11483
        %11485 = vmatmul.bf16.gmra.mxu0 %v11361
        %v11486 = vpop.f32.mrf.mxu0
        %v11487 = vadd.f32 %v11294, %v11486
        %v11488 = vpop.f32.mrf.mxu0
        %v11489 = vadd.f32 %v11294, %v11488
        %11490 = vmatmul.bf16.gmra.mxu0 %v11362
        %v11491 = vpop.f32.mrf.mxu0
        %v11492 = vadd.f32 %v11294, %v11491
        %v11493 = vpop.f32.mrf.mxu0
        %v11494 = vadd.f32 %v11294, %v11493
        %11495 = vmatmul.bf16.gmra.mxu0 %v11363
        %v11496 = vpop.f32.mrf.mxu0
        %v11497 = vadd.f32 %v11294, %v11496
        %v11498 = vpop.f32.mrf.mxu0
        %v11499 = vadd.f32 %v11294, %v11498
        %11500 = vmatmul.bf16.gmra.mxu0 %v11364
        %v11501 = vpop.f32.mrf.mxu0
        %v11502 = vadd.f32 %v11294, %v11501
        %v11503 = vpop.f32.mrf.mxu0
        %v11504 = vadd.f32 %v11294, %v11503
        %11505 = vmatmul.bf16.gmra.mxu0 %v11365
        %v11506 = vpop.f32.mrf.mxu0
        %v11507 = vadd.f32 %v11294, %v11506
        %v11508 = vpop.f32.mrf.mxu0
        %v11509 = vadd.f32 %v11294, %v11508
        %11510 = vmatmul.bf16.gmra.mxu0 %v11366
        %v11511 = vpop.f32.mrf.mxu0
        %v11512 = vadd.f32 %v11294, %v11511
        %v11513 = vpop.f32.mrf.mxu0
        %v11514 = vadd.f32 %v11294, %v11513
        %11515 = vmatmul.bf16.gmra.mxu0 %v11367
        %v11516 = vpop.f32.mrf.mxu0
        %v11517 = vadd.f32 %v11294, %v11516
        %v11518 = vpop.f32.mrf.mxu0
        %v11519 = vadd.f32 %v11294, %v11518
        %11520 = vmatmul.bf16.gmra.mxu0 %v11368
        %v11521 = vpop.f32.mrf.mxu0
        %v11522 = vadd.f32 %v11294, %v11521
        %v11523 = vpop.f32.mrf.mxu0
        %v11524 = vadd.f32 %v11294, %v11523
        %11525 = vmatmul.bf16.gmra.mxu0 %v11369
        %v11526 = vpop.f32.mrf.mxu0
        %v11527 = vadd.f32 %v11294, %v11526
        %v11528 = vpop.f32.mrf.mxu0
        %v11529 = vadd.f32 %v11294, %v11528
        %11530 = vmatmul.bf16.gmra.mxu0 %v11370
        %v11531 = vpop.f32.mrf.mxu0
        %v11532 = vadd.f32 %v11294, %v11531
        %v11533 = vpop.f32.mrf.mxu0
        %v11534 = vadd.f32 %v11294, %v11533
        %11535 = vmatmul.bf16.gmra.mxu0 %v11371
        %v11536 = vpop.f32.mrf.mxu0
        %v11537 = vadd.f32 %v11294, %v11536
        %v11538 = vpop.f32.mrf.mxu0
        %v11539 = vadd.f32 %v11294, %v11538
        %11540 = vmatmul.bf16.gmra.mxu0 %v11372
        %v11541 = vpop.f32.mrf.mxu0
        %v11542 = vadd.f32 %v11294, %v11541
        %v11543 = vpop.f32.mrf.mxu0
        %v11544 = vadd.f32 %v11294, %v11543
        %11545 = vmatmul.bf16.gmra.mxu0 %v11373
        %v11546 = vpop.f32.mrf.mxu0
        %v11547 = vadd.f32 %v11294, %v11546
        %v11548 = vpop.f32.mrf.mxu0
        %v11549 = vadd.f32 %v11294, %v11548
        %11550 = vmatmul.bf16.gmra.mxu0 %v11374
        %v11551 = vpop.f32.mrf.mxu0
        %v11552 = vadd.f32 %v11294, %v11551
        %v11553 = vpop.f32.mrf.mxu0
        %v11554 = vadd.f32 %v11294, %v11553
        %11555 = vmatmul.bf16.gmra.mxu0 %v11375
        %v11556 = vpop.f32.mrf.mxu0
        %v11557 = vadd.f32 %v11294, %v11556
        %v11558 = vpop.f32.mrf.mxu0
        %v11559 = vadd.f32 %v11294, %v11558
        %11560 = vmatmul.bf16.gmra.mxu0 %v11376
        %v11561 = vpop.f32.mrf.mxu0
        %v11562 = vadd.f32 %v11294, %v11561
        %v11563 = vpop.f32.mrf.mxu0
        %v11564 = vadd.f32 %v11294, %v11563
        %11565 = vmatmul.bf16.gmra.mxu0 %v11377
        %v11566 = vpop.f32.mrf.mxu0
        %v11567 = vadd.f32 %v11294, %v11566
        %v11568 = vpop.f32.mrf.mxu0
        %v11569 = vadd.f32 %v11294, %v11568
        %11570 = vmatmul.bf16.gmra.mxu0 %v11378
        %v11571 = vpop.f32.mrf.mxu0
        %v11572 = vadd.f32 %v11294, %v11571
        %v11573 = vpop.f32.mrf.mxu0
        %v11574 = vadd.f32 %v11294, %v11573
        %11575 = vmatmul.bf16.gmra.mxu0 %v11379
        %v11576 = vpop.f32.mrf.mxu0
        %v11577 = vadd.f32 %v11294, %v11576
        %v11578 = vpop.f32.mrf.mxu0
        %v11579 = vadd.f32 %v11294, %v11578
        %11580 = vmatmul.bf16.gmra.mxu0 %v11380
        %v11581 = vpop.f32.mrf.mxu0
        %v11582 = vadd.f32 %v11294, %v11581
        %v11583 = vpop.f32.mrf.mxu0
        %v11584 = vadd.f32 %v11294, %v11583
        %11585 = vmatmul.bf16.gmra.mxu0 %v11381
        %v11586 = vpop.f32.mrf.mxu0
        %v11587 = vadd.f32 %v11294, %v11586
        %v11588 = vpop.f32.mrf.mxu0
        %v11589 = vadd.f32 %v11294, %v11588
        %11590 = vmatmul.bf16.gmra.mxu0 %v11382
        %v11591 = vpop.f32.mrf.mxu0
        %v11592 = vadd.f32 %v11294, %v11591
        %v11593 = vpop.f32.mrf.mxu0
        %v11594 = vadd.f32 %v11294, %v11593
        %11595 = vmatmul.bf16.gmra.mxu0 %v11383
        %v11596 = vpop.f32.mrf.mxu0
        %v11597 = vadd.f32 %v11294, %v11596
        %v11598 = vpop.f32.mrf.mxu0
        %v11599 = vadd.f32 %v11294, %v11598
        %11600 = vmatmul.bf16.gmra.mxu0 %v11384
        %v11601 = vpop.f32.mrf.mxu0
        %v11602 = vadd.f32 %v11294, %v11601
        %v11603 = vpop.f32.mrf.mxu0
        %v11604 = vadd.f32 %v11294, %v11603
        %11605 = vmatmul.bf16.gmra.mxu0 %v11385
        %v11606 = vpop.f32.mrf.mxu0
        %v11607 = vadd.f32 %v11294, %v11606
        %v11608 = vpop.f32.mrf.mxu0
        %v11609 = vadd.f32 %v11294, %v11608
        %11610 = vmatmul.bf16.gmra.mxu0 %v11386
        %v11611 = vpop.f32.mrf.mxu0
        %v11612 = vadd.f32 %v11294, %v11611
        %v11613 = vpop.f32.mrf.mxu0
        %v11614 = vadd.f32 %v11294, %v11613
        %11615 = vmatmul.bf16.gmra.mxu0 %v11387
        %v11616 = vpop.f32.mrf.mxu0
        %v11617 = vadd.f32 %v11294, %v11616
        %v11618 = vpop.f32.mrf.mxu0
        %v11619 = vadd.f32 %v11294, %v11618
        %11620 = vmatmul.bf16.gmra.mxu0 %v11388
        %v11621 = vpop.f32.mrf.mxu0
        %v11622 = vadd.f32 %v11294, %v11621
        %v11623 = vpop.f32.mrf.mxu0
        %v11624 = vadd.f32 %v11294, %v11623
        %11625 = vmatmul.bf16.gmra.mxu0 %v11389
        %v11626 = vpop.f32.mrf.mxu0
        %v11627 = vadd.f32 %v11294, %v11626
        %v11628 = vpop.f32.mrf.mxu0
        %v11629 = vadd.f32 %v11294, %v11628
        %11630 = vmatmul.bf16.gmra.mxu0 %v11390
        %v11631 = vpop.f32.mrf.mxu0
        %v11632 = vadd.f32 %v11294, %v11631
        %v11633 = vpop.f32.mrf.mxu0
        %v11634 = vadd.f32 %v11294, %v11633
        %11635 = vmatmul.bf16.gmra.mxu0 %v11391
        %v11636 = vpop.f32.mrf.mxu0
        %v11637 = vadd.f32 %v11294, %v11636
        %v11638 = vpop.f32.mrf.mxu0
        %v11639 = vadd.f32 %v11294, %v11638
        %11640 = vdwg.mxu0
        %v11641 = vadd.f32 %v10347, %v11482
        %v11642 = vadd.f32 %v10348, %v11484
        %v11643 = vadd.f32 %v10349, %v11487
        %v11644 = vadd.f32 %v10350, %v11489
        %v11645 = vadd.f32 %v10351, %v11492
        %v11646 = vadd.f32 %v10352, %v11494
        %v11647 = vadd.f32 %v10353, %v11497
        %v11648 = vadd.f32 %v10354, %v11499
        %v11649 = vadd.f32 %v10355, %v11502
        %v11650 = vadd.f32 %v10356, %v11504
        %v11651 = vadd.f32 %v10357, %v11507
        %v11652 = vadd.f32 %v10358, %v11509
        %v11653 = vadd.f32 %v10359, %v11512
        %v11654 = vadd.f32 %v10360, %v11514
        %v11655 = vadd.f32 %v10361, %v11517
        %v11656 = vadd.f32 %v10362, %v11519
        %v11657 = vadd.f32 %v10363, %v11522
        %v11658 = vadd.f32 %v10364, %v11524
        %v11659 = vadd.f32 %v10365, %v11527
        %v11660 = vadd.f32 %v10366, %v11529
        %v11661 = vadd.f32 %v10367, %v11532
        %v11662 = vadd.f32 %v10368, %v11534
        %v11663 = vadd.f32 %v10369, %v11537
        %v11664 = vadd.f32 %v10370, %v11539
        %v11665 = vadd.f32 %v10371, %v11542
        %v11666 = vadd.f32 %v10372, %v11544
        %v11667 = vadd.f32 %v10373, %v11547
        %v11668 = vadd.f32 %v10374, %v11549
        %v11669 = vadd.f32 %v10375, %v11552
        %v11670 = vadd.f32 %v10376, %v11554
        %v11671 = vadd.f32 %v10377, %v11557
        %v11672 = vadd.f32 %v10378, %v11559
        %v11673 = vadd.f32 %v10379, %v11562
        %v11674 = vadd.f32 %v10380, %v11564
        %v11675 = vadd.f32 %v10381, %v11567
        %v11676 = vadd.f32 %v10382, %v11569
        %v11677 = vadd.f32 %v10383, %v11572
        %v11678 = vadd.f32 %v10384, %v11574
        %v11679 = vadd.f32 %v10385, %v11577
        %v11680 = vadd.f32 %v10386, %v11579
        %v11681 = vadd.f32 %v10387, %v11582
        %v11682 = vadd.f32 %v10388, %v11584
        %v11683 = vadd.f32 %v10389, %v11587
        %v11684 = vadd.f32 %v10390, %v11589
        %v11685 = vadd.f32 %v10391, %v11592
        %v11686 = vadd.f32 %v10392, %v11594
        %v11687 = vadd.f32 %v10393, %v11597
        %v11688 = vadd.f32 %v10394, %v11599
        %v11689 = vadd.f32 %v10395, %v11602
        %v11690 = vadd.f32 %v10396, %v11604
        %v11691 = vadd.f32 %v10397, %v11607
        %v11692 = vadd.f32 %v10398, %v11609
        %v11693 = vadd.f32 %v10399, %v11612
        %v11694 = vadd.f32 %v10400, %v11614
        %v11695 = vadd.f32 %v10401, %v11617
        %v11696 = vadd.f32 %v10402, %v11619
        %v11697 = vadd.f32 %v10403, %v11622
        %v11698 = vadd.f32 %v10404, %v11624
        %v11699 = vadd.f32 %v10405, %v11627
        %v11700 = vadd.f32 %v10406, %v11629
        %v11701 = vadd.f32 %v10407, %v11632
        %v11702 = vadd.f32 %v10408, %v11634
        %v11703 = vadd.f32 %v10409, %v11637
        %v11704 = vadd.f32 %v10410, %v11639
        %v11705 = vmax.f32 %v11641, 0.0
        %v11706 = vmax.f32 %v11642, 0.0
        %v11707 = vmax.f32 %v11643, 0.0
        %v11708 = vmax.f32 %v11644, 0.0
        %v11709 = vmax.f32 %v11645, 0.0
        %v11710 = vmax.f32 %v11646, 0.0
        %v11711 = vmax.f32 %v11647, 0.0
        %v11712 = vmax.f32 %v11648, 0.0
        %v11713 = vmax.f32 %v11649, 0.0
        %v11714 = vmax.f32 %v11650, 0.0
        %v11715 = vmax.f32 %v11651, 0.0
        %v11716 = vmax.f32 %v11652, 0.0
        %v11717 = vmax.f32 %v11653, 0.0
        %v11718 = vmax.f32 %v11654, 0.0
        %v11719 = vmax.f32 %v11655, 0.0
        %v11720 = vmax.f32 %v11656, 0.0
        %v11721 = vmax.f32 %v11657, 0.0
        %v11722 = vmax.f32 %v11658, 0.0
        %v11723 = vmax.f32 %v11659, 0.0
        %v11724 = vmax.f32 %v11660, 0.0
        %v11725 = vmax.f32 %v11661, 0.0
        %v11726 = vmax.f32 %v11662, 0.0
        %v11727 = vmax.f32 %v11663, 0.0
        %v11728 = vmax.f32 %v11664, 0.0
        %v11729 = vmax.f32 %v11665, 0.0
        %v11730 = vmax.f32 %v11666, 0.0
        %v11731 = vmax.f32 %v11667, 0.0
        %v11732 = vmax.f32 %v11668, 0.0
        %v11733 = vmax.f32 %v11669, 0.0
        %v11734 = vmax.f32 %v11670, 0.0
        %v11735 = vmax.f32 %v11671, 0.0
        %v11736 = vmax.f32 %v11672, 0.0
        %v11737 = vmax.f32 %v11673, 0.0
        %v11738 = vmax.f32 %v11674, 0.0
        %v11739 = vmax.f32 %v11675, 0.0
        %v11740 = vmax.f32 %v11676, 0.0
        %v11741 = vmax.f32 %v11677, 0.0
        %v11742 = vmax.f32 %v11678, 0.0
        %v11743 = vmax.f32 %v11679, 0.0
        %v11744 = vmax.f32 %v11680, 0.0
        %v11745 = vmax.f32 %v11681, 0.0
        %v11746 = vmax.f32 %v11682, 0.0
        %v11747 = vmax.f32 %v11683, 0.0
        %v11748 = vmax.f32 %v11684, 0.0
        %v11749 = vmax.f32 %v11685, 0.0
        %v11750 = vmax.f32 %v11686, 0.0
        %v11751 = vmax.f32 %v11687, 0.0
        %v11752 = vmax.f32 %v11688, 0.0
        %v11753 = vmax.f32 %v11689, 0.0
        %v11754 = vmax.f32 %v11690, 0.0
        %v11755 = vmax.f32 %v11691, 0.0
        %v11756 = vmax.f32 %v11692, 0.0
        %v11757 = vmax.f32 %v11693, 0.0
        %v11758 = vmax.f32 %v11694, 0.0
        %v11759 = vmax.f32 %v11695, 0.0
        %v11760 = vmax.f32 %v11696, 0.0
        %v11761 = vmax.f32 %v11697, 0.0
        %v11762 = vmax.f32 %v11698, 0.0
        %v11763 = vmax.f32 %v11699, 0.0
        %v11764 = vmax.f32 %v11700, 0.0
        %v11765 = vmax.f32 %v11701, 0.0
        %v11766 = vmax.f32 %v11702, 0.0
        %v11767 = vmax.f32 %v11703, 0.0
        %v11768 = vmax.f32 %v11704, 0.0
        %v11769 = vpack.c.bf16 %v11705, %v11705
        %v11770 = vpack.c.bf16 %v11706, %v11706
        %v11771 = vpack.c.bf16 %v11707, %v11707
        %v11772 = vpack.c.bf16 %v11708, %v11708
        %v11773 = vpack.c.bf16 %v11709, %v11709
        %v11774 = vpack.c.bf16 %v11710, %v11710
        %v11775 = vpack.c.bf16 %v11711, %v11711
        %v11776 = vpack.c.bf16 %v11712, %v11712
        %v11777 = vpack.c.bf16 %v11713, %v11713
        %v11778 = vpack.c.bf16 %v11714, %v11714
        %v11779 = vpack.c.bf16 %v11715, %v11715
        %v11780 = vpack.c.bf16 %v11716, %v11716
        %v11781 = vpack.c.bf16 %v11717, %v11717
        %v11782 = vpack.c.bf16 %v11718, %v11718
        %v11783 = vpack.c.bf16 %v11719, %v11719
        %v11784 = vpack.c.bf16 %v11720, %v11720
        %v11785 = vpack.c.bf16 %v11721, %v11721
        %v11786 = vpack.c.bf16 %v11722, %v11722
        %v11787 = vpack.c.bf16 %v11723, %v11723
        %v11788 = vpack.c.bf16 %v11724, %v11724
        %v11789 = vpack.c.bf16 %v11725, %v11725
        %v11790 = vpack.c.bf16 %v11726, %v11726
        %v11791 = vpack.c.bf16 %v11727, %v11727
        %v11792 = vpack.c.bf16 %v11728, %v11728
        %v11793 = vpack.c.bf16 %v11729, %v11729
        %v11794 = vpack.c.bf16 %v11730, %v11730
        %v11795 = vpack.c.bf16 %v11731, %v11731
        %v11796 = vpack.c.bf16 %v11732, %v11732
        %v11797 = vpack.c.bf16 %v11733, %v11733
        %v11798 = vpack.c.bf16 %v11734, %v11734
        %v11799 = vpack.c.bf16 %v11735, %v11735
        %v11800 = vpack.c.bf16 %v11736, %v11736
        %v11801 = vpack.c.bf16 %v11737, %v11737
        %v11802 = vpack.c.bf16 %v11738, %v11738
        %v11803 = vpack.c.bf16 %v11739, %v11739
        %v11804 = vpack.c.bf16 %v11740, %v11740
        %v11805 = vpack.c.bf16 %v11741, %v11741
        %v11806 = vpack.c.bf16 %v11742, %v11742
        %v11807 = vpack.c.bf16 %v11743, %v11743
        %v11808 = vpack.c.bf16 %v11744, %v11744
        %v11809 = vpack.c.bf16 %v11745, %v11745
        %v11810 = vpack.c.bf16 %v11746, %v11746
        %v11811 = vpack.c.bf16 %v11747, %v11747
        %v11812 = vpack.c.bf16 %v11748, %v11748
        %v11813 = vpack.c.bf16 %v11749, %v11749
        %v11814 = vpack.c.bf16 %v11750, %v11750
        %v11815 = vpack.c.bf16 %v11751, %v11751
        %v11816 = vpack.c.bf16 %v11752, %v11752
        %v11817 = vpack.c.bf16 %v11753, %v11753
        %v11818 = vpack.c.bf16 %v11754, %v11754
        %v11819 = vpack.c.bf16 %v11755, %v11755
        %v11820 = vpack.c.bf16 %v11756, %v11756
        %v11821 = vpack.c.bf16 %v11757, %v11757
        %v11822 = vpack.c.bf16 %v11758, %v11758
        %v11823 = vpack.c.bf16 %v11759, %v11759
        %v11824 = vpack.c.bf16 %v11760, %v11760
        %v11825 = vpack.c.bf16 %v11761, %v11761
        %v11826 = vpack.c.bf16 %v11762, %v11762
        %v11827 = vpack.c.bf16 %v11763, %v11763
        %v11828 = vpack.c.bf16 %v11764, %v11764
        %v11829 = vpack.c.bf16 %v11765, %v11765
        %v11830 = vpack.c.bf16 %v11766, %v11766
        %v11831 = vpack.c.bf16 %v11767, %v11767
        %v11832 = vpack.c.bf16 %v11768, %v11768
        %11833 = vst [vmem:[%s274] sm:$0xf] %v11769
        %11834 = vst [vmem:[%s274 + $0x4] sm:$0xf] %v11770
        %11835 = vst [vmem:[%s274 + $0x8] sm:$0xf] %v11771
        %11836 = vst [vmem:[%s274 + $0xc] sm:$0xf] %v11772
        %11837 = vst [vmem:[%s274 + $0x10] sm:$0xf] %v11773
        %11838 = vst [vmem:[%s274 + $0x14] sm:$0xf] %v11774
        %11839 = vst [vmem:[%s274 + $0x18] sm:$0xf] %v11775
        %11840 = vst [vmem:[%s274 + $0x1c] sm:$0xf] %v11776
        %11841 = vst [vmem:[%s274 + $0x20] sm:$0xf] %v11777
        %11842 = vst [vmem:[%s274 + $0x24] sm:$0xf] %v11778
        %11843 = vst [vmem:[%s274 + $0x28] sm:$0xf] %v11779
        %11844 = vst [vmem:[%s274 + $0x2c] sm:$0xf] %v11780
        %11845 = vst [vmem:[%s274 + $0x30] sm:$0xf] %v11781
        %11846 = vst [vmem:[%s274 + $0x34] sm:$0xf] %v11782
        %11847 = vst [vmem:[%s274 + $0x38] sm:$0xf] %v11783
        %11848 = vst [vmem:[%s274 + $0x3c] sm:$0xf] %v11784
        %11849 = vst [vmem:[%s274 + $0x40] sm:$0xf] %v11785
        %11850 = vst [vmem:[%s274 + $0x44] sm:$0xf] %v11786
        %11851 = vst [vmem:[%s274 + $0x48] sm:$0xf] %v11787
        %11852 = vst [vmem:[%s274 + $0x4c] sm:$0xf] %v11788
        %11853 = vst [vmem:[%s274 + $0x50] sm:$0xf] %v11789
        %11854 = vst [vmem:[%s274 + $0x54] sm:$0xf] %v11790
        %11855 = vst [vmem:[%s274 + $0x58] sm:$0xf] %v11791
        %11856 = vst [vmem:[%s274 + $0x5c] sm:$0xf] %v11792
        %11857 = vst [vmem:[%s274 + $0x60] sm:$0xf] %v11793
        %11858 = vst [vmem:[%s274 + $0x64] sm:$0xf] %v11794
        %11859 = vst [vmem:[%s274 + $0x68] sm:$0xf] %v11795
        %11860 = vst [vmem:[%s274 + $0x6c] sm:$0xf] %v11796
        %11861 = vst [vmem:[%s274 + $0x70] sm:$0xf] %v11797
        %11862 = vst [vmem:[%s274 + $0x74] sm:$0xf] %v11798
        %11863 = vst [vmem:[%s274 + $0x78] sm:$0xf] %v11799
        %11864 = vst [vmem:[%s274 + $0x7c] sm:$0xf] %v11800
        %11865 = vst [vmem:[%s274 + $0x80] sm:$0xf] %v11801
        %11866 = vst [vmem:[%s274 + $0x84] sm:$0xf] %v11802
        %11867 = vst [vmem:[%s274 + $0x88] sm:$0xf] %v11803
        %11868 = vst [vmem:[%s274 + $0x8c] sm:$0xf] %v11804
        %11869 = vst [vmem:[%s274 + $0x90] sm:$0xf] %v11805
        %11870 = vst [vmem:[%s274 + $0x94] sm:$0xf] %v11806
        %11871 = vst [vmem:[%s274 + $0x98] sm:$0xf] %v11807
        %11872 = vst [vmem:[%s274 + $0x9c] sm:$0xf] %v11808
        %11873 = vst [vmem:[%s274 + $0xa0] sm:$0xf] %v11809
        %11874 = vst [vmem:[%s274 + $0xa4] sm:$0xf] %v11810
        %11875 = vst [vmem:[%s274 + $0xa8] sm:$0xf] %v11811
        %11876 = vst [vmem:[%s274 + $0xac] sm:$0xf] %v11812
        %11877 = vst [vmem:[%s274 + $0xb0] sm:$0xf] %v11813
        %11878 = vst [vmem:[%s274 + $0xb4] sm:$0xf] %v11814
        %11879 = vst [vmem:[%s274 + $0xb8] sm:$0xf] %v11815
        %11880 = vst [vmem:[%s274 + $0xbc] sm:$0xf] %v11816
        %11881 = vst [vmem:[%s274 + $0xc0] sm:$0xf] %v11817
        %11882 = vst [vmem:[%s274 + $0xc4] sm:$0xf] %v11818
        %11883 = vst [vmem:[%s274 + $0xc8] sm:$0xf] %v11819
        %11884 = vst [vmem:[%s274 + $0xcc] sm:$0xf] %v11820
        %11885 = vst [vmem:[%s274 + $0xd0] sm:$0xf] %v11821
        %11886 = vst [vmem:[%s274 + $0xd4] sm:$0xf] %v11822
        %11887 = vst [vmem:[%s274 + $0xd8] sm:$0xf] %v11823
        %11888 = vst [vmem:[%s274 + $0xdc] sm:$0xf] %v11824
        %11889 = vst [vmem:[%s274 + $0xe0] sm:$0xf] %v11825
        %11890 = vst [vmem:[%s274 + $0xe4] sm:$0xf] %v11826
        %11891 = vst [vmem:[%s274 + $0xe8] sm:$0xf] %v11827
        %11892 = vst [vmem:[%s274 + $0xec] sm:$0xf] %v11828
        %11893 = vst [vmem:[%s274 + $0xf0] sm:$0xf] %v11829
        %11894 = vst [vmem:[%s274 + $0xf4] sm:$0xf] %v11830
        %11895 = vst [vmem:[%s274 + $0xf8] sm:$0xf] %v11831
        %11896 = vst [vmem:[%s274 + $0xfc] sm:$0xf] %v11832
        %s11897 = sand.u32 %s181, 1
        %s11898 = scalar_lea.sflag [#allocation4], %s11897
        %s11899 = sand.u32 %s181, 1
        %s11900 = smul.addr %s11899, 256
        %s11901 = scalar_lea.vmem [#allocation3], %s11900
        // Predicated region
        $region49: #{tpu_custom_call.1} parent=47 // pred_check
          %p11902 = pneg %p191
        $region50: #{tpu_custom_call.1} parent=47 // pred_check_branch
          %11904 = sbr.rel (%p11902) target = $region52
        $region51: #{tpu_custom_call.1} parent=47 // pred_region
          %s11905 = smul.u32 2, %s21
          %11907 = vsyncadd %s11898, 0
          %s11908 = smul.addr %s11905, 32
          %s11909 = smul.addr %s11908, 4
          %s11910 = scalar_lea.hbm %s7, %s11909
          %s11911 = sshll.u32 %s11901, 4
          %s11912 = int_to_ptr.vmem [resolvable:$true] %s11911
          %s11913 = sshll.u32 %s11910, 4
          %s11914 = int_to_ptr.hbm [resolvable:$true] %s11913
          %11919 = dma.vmem_to_hbm [thread:$0]  %s11912, 4096, %s11914, %s11898, 64, 64, 4
        $region52: #{tpu_custom_call.1} parent=47 // pred_fallthru
          _
      $region48: #{tpu_custom_call.1} parent=5 // pred_fallthru
        _
      %p11920 = scmp.le.s32.totalorder 2, %s16
      // Predicated region
      $region53: #{tpu_custom_call.1} parent=5 // pred_check
        %p11921 = pneg %p11920
      $region54: #{tpu_custom_call.1} parent=5 // pred_check_branch
        %11923 = sbr.rel (%p11921) target = $region56
      $region55: #{tpu_custom_call.1} parent=5 // pred_region
        %s11924 = ssub.s32 %s16, 2
        // Predicated region
        $region57: #{tpu_custom_call.1} parent=55 // pred_check
          %p11925 = pneg %p197
        $region58: #{tpu_custom_call.1} parent=55 // pred_check_branch
          %11927 = sbr.rel (%p11925) target = $region60
        $region59: #{tpu_custom_call.1} parent=55 // pred_region
          %s11928 = sand.u32 %s182, 1
          %s11929 = scalar_lea.sflag [#allocation4], %s11928
          %s11930 = sand.u32 %s182, 1
          %s11931 = smul.addr %s11930, 256
          %s11932 = scalar_lea.vmem [#allocation3], %s11931
          %11934 = dma.done %s11929, 4096
        $region60: #{tpu_custom_call.1} parent=55 // pred_fallthru
          _
      $region56: #{tpu_custom_call.1} parent=5 // pred_fallthru
        _
    $region6: #{tpu_custom_call.1} parent=1 // loop_footer
      %s20 = sadd.s32 1, %s16
    $region7: #{tpu_custom_call.1} parent=1 // loop_footer_branch
      %15 = sbr.rel target = $region3
    $region8: #{tpu_custom_call.1} parent=1 // loop_exit
      _
    %11935 = vsyncpa [#allocation4], 1
    %s11936 = scalar_lea.sflag [#allocation4], 1
    %11937 = vsyncpa %s11936, 1

</llo_original>
